<compile_context>
chip_gen: v6e
topology: v6e:2x2x1
jax: 0.10.0
libtpu: 0.0.40
codegen_flags: <defaults>
</compile_context>

<pallas_src>
from functools import partial

import jax
import jax.numpy as jnp
from jax import lax
from jax.experimental import pallas as pl
from jax.experimental.pallas import tpu as pltpu

LANES = 128
CL = 16   # column offset of the data interior inside the padded buffers
          # (bf16 sublane-tile aligned -> dense interior stores / centre-tap loads)


def _round_up(x, m):
    return ((x + m - 1) // m) * m


def _downsample_kernel(N, H, W, CP, WP,
                       xpad_ref, w1_ref, w2_ref, g1_ref, b1_ref, g2_ref, b2_ref,
                       down_ref, rowmax_ref,
                       h1pad_ref):
    eps = 1e-5
    NHW = N * H * W
    inv_nhw = 1.0 / float(NHW)
    Hh = H // 2

    def conv3x3(src_ref, w_ref):
        # 3 MXU matmuls, one per kernel column dx, each with K = 3*CP so the 256-deep
        # MXUs (v6e/v7x) stay fed.  dy shifts are free slab slices of the loaded window;
        # only dx=0 / dx=2 loads have a static sublane offset.
        acc = None
        for dx in range(3):
            c0 = CL - 1 + dx
            win = src_ref[:, :, c0:c0 + W, :]                   # (N, H+2, W, CP) bf16
            grp = jnp.concatenate([win[:, dy:dy + H] for dy in range(3)], axis=-1)
            part = jnp.dot(grp.reshape(NHW, 3 * CP), w_ref[dx],
                           preferred_element_type=jnp.float32)   # (NHW, CP) f32
            acc = part if acc is None else acc + part
        return acc

    def bn_fold(h, g_ref, b_ref):
        # Single-traversal training-mode BatchNorm2d stats (biased variance), folded to a
        # per-channel scale/shift so the big elementwise pass is one FMA (+ ReLU) fused
        # into the consumer store.  f32 accumulation; var = E[x^2] - mean^2 is fine at
        # these magnitudes (TODO(synk): per-tile Welford if stats drift at large NHW).
        s1 = jnp.sum(h, axis=0, keepdims=True)                   # (1, CP)
        s2 = jnp.sum(h * h, axis=0, keepdims=True)
        mean = s1 * inv_nhw
        var = s2 * inv_nhw - mean * mean
        scale = g_ref[...] * lax.rsqrt(var + eps)
        shift = b_ref[...] - mean * scale
        return scale, shift

    # ---- conv1 -> BN1 -> ReLU, fused into the (tile-aligned) h1pad interior store ----
    h1 = conv3x3(xpad_ref, w1_ref)                               # (NHW, CP) f32
    sc1, sh1 = bn_fold(h1, g1_ref, b1_ref)
    h1_act = jnp.maximum(h1 * sc1 + sh1, 0.0).reshape(N, H, W, CP)

    # Zero ONLY the halo strips of the conv2 input scratch (tile-aligned blocks).
    zrow = jnp.zeros((N, 1, WP, CP), jnp.bfloat16)
    h1pad_ref[:, 0:1, :, :] = zrow
    h1pad_ref[:, H + 1:H + 2, :, :] = zrow
    h1pad_ref[:, 1:H + 1, 0:CL, :] = jnp.zeros((N, H, CL, CP), jnp.bfloat16)
    h1pad_ref[:, 1:H + 1, CL + W:WP, :] = jnp.zeros((N, H, WP - CL - W, CP), jnp.bfloat16)
    h1pad_ref[:, 1:H + 1, CL:CL + W, :] = h1_act.astype(jnp.bfloat16)

    # ---- conv2 -> BN2 -> ReLU, fused into the down store ----
    h2 = conv3x3(h1pad_ref, w2_ref)                              # (NHW, CP) f32
    sc2, sh2 = bn_fold(h2, g2_ref, b2_ref)
    down = jnp.maximum(h2 * sc2 + sh2, 0.0).reshape(N, H, W, CP)
    down_ref[...] = down.astype(jnp.bfloat16)

    # ---- MaxPool2d(2,2): row-pair max in registers (free slab reshape + VPU max). ----
    d5 = down[:, :2 * Hh, :, :].reshape(N, Hh, 2, W, CP)
    rowmax_ref[...] = jnp.maximum(d5[:, :, 0, :, :], d5[:, :, 1, :, :]).astype(jnp.bfloat16)


@jax.jit
def downsample(x_nchw, w1, w2, g1, b1, g2, b2):
    """x_nchw: (N, Cin, H, W); w*: torch layout (Cout, Cin, 3, 3); g*/b*: (Cout,).
    Returns (down, pooled) in NCHW f32, matching DownSample.forward (training-mode BN)."""
    N, Cin, H, W = x_nchw.shape
    Cout = w1.shape[0]
    if W % 8 != 0:
        # TODO(synk): pad W in the wrapper and mask the BN statistics for ragged widths.
        raise NotImplementedError("W must be a multiple of 8 (sublane-preserving reshapes)")
    CP = _round_up(max(Cin, Cout), LANES)       # lane-dense channel padding
    WP = _round_up(CL + W + 1, 16)              # bf16 sublane-tile padded buffer width
    Hh, Wh = H // 2, W // 2

    # One fused prep pass: NCHW->NHWC, channel pad to CP, spatial pad (bf16, data at
    # column CL so the kernel's interior stores / centre-tap loads are tile-aligned).
    x = jnp.transpose(x_nchw.astype(jnp.float32), (0, 2, 3, 1)).astype(jnp.bfloat16)
    xpad = jnp.pad(x, ((0, 0), (1, 1), (CL, WP - CL - W), (0, CP - Cin)))

    def prep_w(w, cin):
        # (Cout, cin, ky, kx) -> [kx][ky*CP + cin, cout], bf16, zero padded to CP lanes.
        wk = jnp.transpose(w, (3, 2, 1, 0)).astype(jnp.bfloat16)        # (3, 3, cin, Cout)
        wk = jnp.pad(wk, ((0, 0), (0, 0), (0, CP - cin), (0, CP - Cout)))
        return wk.reshape(3, 3 * CP, CP)

    def prep_v(v):
        return jnp.pad(v.astype(jnp.float32), (0, CP - Cout)).reshape(1, CP)

    w1k, w2k = prep_w(w1, Cin), prep_w(w2, Cout)
    g1k, b1k, g2k, b2k = prep_v(g1), prep_v(b1), prep_v(g2), prep_v(b2)

    # Working set (bytes): padded inputs/scratch + weights + outputs + f32 matmul results
    # and BN / activation temporaries (review: count compiler-visible temporaries).
    ws = (2 * 2 * N * (H + 2) * WP * CP          # xpad + h1pad (bf16)
          + 2 * 2 * 9 * CP * CP                  # weights (bf16)
          + 4 * 4 * CP                           # gamma / beta
          + 2 * N * H * W * CP                   # down output (bf16)
          + 2 * N * Hh * W * CP                  # rowmax output (bf16)
          + 6 * 4 * N * H * W * CP)              # f32 conv accumulators, activations, BN temps
    try:
        cap = int(0.75 * pltpu.get_tpu_info().vmem_capacity_bytes)      # generation-aware
    except Exception:
        cap = 48 * 1024 * 1024
    vmem_limit = int(min(cap, max(32 * 1024 * 1024, 2 * ws)))

    vmem = pl.BlockSpec(memory_space=pltpu.MemorySpace.VMEM)
    kernel = partial(_downsample_kernel, N, H, W, CP, WP)
    # TODO(synk): tile over N / H row blocks with a ("parallel",) grid + real BlockSpec
    # index_maps (BN split into stats+normalize) to double-buffer HBM<->VMEM and use both
    # v7x TensorCores; at these toy, fully-VMEM-resident sizes a single invocation wins.
    down_p, rowmax_p = pl.pallas_call(
        kernel,
        out_shape=(jax.ShapeDtypeStruct((N, H, W, CP), jnp.bfloat16),
                   jax.ShapeDtypeStruct((N, Hh, W, CP), jnp.bfloat16)),
        in_specs=[vmem] * 7,
        out_specs=(vmem, vmem),
        scratch_shapes=[pltpu.VMEM((N, H + 2, WP, CP), jnp.bfloat16)],
        compiler_params=pltpu.CompilerParams(vmem_limit_bytes=vmem_limit),
    )(xpad, w1k, w2k, g1k, b1k, g2k, b2k)

    down = jnp.transpose(down_p[:, :, :, :Cout].astype(jnp.float32), (0, 3, 1, 2))
    # Finish the 2x2 pool: column-pair max + decimation on the small half-height tensor
    # (one fused XLA max; the sublane-decimating gather stays out of the kernel).
    rm = rowmax_p[:, :, :, :Cout].astype(jnp.float32)
    pooled = jnp.maximum(rm[:, :, 0:2 * Wh:2, :], rm[:, :, 1:2 * Wh:2, :])
    pooled = jnp.transpose(pooled, (0, 3, 1, 2))
    return down, pooled


def downsample_reference(x_nchw, w1, w2, g1, b1, g2, b2, conv_dtype=jnp.float32):
    """Pure-XLA reference of DownSample.forward (training-mode BN). conv_dtype=bfloat16
    reproduces the kernel's MXU input precision (f32 accumulation)."""
    def conv_bn_relu(x, w, g, b):
        w_hwio = jnp.transpose(w, (2, 3, 1, 0))
        y = lax.conv_general_dilated(
            x.astype(conv_dtype), w_hwio.astype(conv_dtype), (1, 1), 'SAME',
            dimension_numbers=('NHWC', 'HWIO', 'NHWC'),
            preferred_element_type=jnp.float32)
        mean = jnp.mean(y, axis=(0, 1, 2), keepdims=True)
        var = jnp.mean((y - mean) ** 2, axis=(0, 1, 2), keepdims=True)
        y = (y - mean) * lax.rsqrt(var + 1e-5) * g + b
        return jnp.maximum(y, 0.0)

    x = jnp.transpose(x_nchw, (0, 2, 3, 1)).astype(jnp.float32)
    h = conv_bn_relu(x, w1, g1, b1)
    h = conv_bn_relu(h, w2, g2, b2)
    N, H, W, C = h.shape
    p = h.reshape(N, H // 2, 2, W // 2, 2, C).max(axis=(2, 4))
    return jnp.transpose(h, (0, 3, 1, 2)), jnp.transpose(p, (0, 3, 1, 2))


if __name__ == "__main__":
    N, Cin, Cout, H, W = 2, 4, 8, 16, 16

    key = jax.random.PRNGKey(0)
    k_x, k_w1, k_w2, k_g1, k_b1, k_g2, k_b2 = jax.random.split(key, 7)

    x = jax.random.normal(k_x, (N, Cin, H, W), jnp.float32)
    w1 = 0.1 * jax.random.normal(k_w1, (Cout, Cin, 3, 3), jnp.float32)
    w2 = 0.1 * jax.random.normal(k_w2, (Cout, Cout, 3, 3), jnp.float32)
    g1 = 1.0 + 0.1 * jax.random.normal(k_g1, (Cout,), jnp.float32)
    b1 = 0.1 * jax.random.normal(k_b1, (Cout,), jnp.float32)
    g2 = 1.0 + 0.1 * jax.random.normal(k_g2, (Cout,), jnp.float32)
    b2 = 0.1 * jax.random.normal(k_b2, (Cout,), jnp.float32)

    down, pooled = downsample(x, w1, w2, g1, b1, g2, b2)
    jax.block_until_ready((down, pooled))

    assert down.shape == (N, Cout, H, W)
    assert pooled.shape == (N, Cout, H // 2, W // 2)

    # Check against the precision-matched reference (bf16 conv inputs, f32 accumulate).
    down_m, pooled_m = downsample_reference(x, w1, w2, g1, b1, g2, b2,
                                            conv_dtype=jnp.bfloat16)
    assert jnp.allclose(down, down_m, atol=2e-2, rtol=2e-2)
    assert jnp.allclose(pooled, pooled_m, atol=2e-2, rtol=2e-2)

    # Looser sanity check against the full-f32 module reference.
    down_f, pooled_f = downsample_reference(x, w1, w2, g1, b1, g2, b2,
                                            conv_dtype=jnp.float32)
    assert jnp.allclose(down, down_f, atol=7e-2, rtol=7e-2)
    assert jnp.allclose(pooled, pooled_f, atol=7e-2, rtol=7e-2)

    print("KERNEL_OK")
</pallas_src>

<mosaic_0001>
module attributes {stable_mosaic.version = 11 : i64} {
  func.func @_downsample_kernel(%arg0: memref<2x18x48x128xbf16, #tpu.memory_space<vmem>>, %arg1: memref<3x384x128xbf16, #tpu.memory_space<vmem>>, %arg2: memref<3x384x128xbf16, #tpu.memory_space<vmem>>, %arg3: memref<1x128xf32, #tpu.memory_space<vmem>>, %arg4: memref<1x128xf32, #tpu.memory_space<vmem>>, %arg5: memref<1x128xf32, #tpu.memory_space<vmem>>, %arg6: memref<1x128xf32, #tpu.memory_space<vmem>>, %arg7: memref<2x16x16x128xbf16, #tpu.memory_space<vmem>>, %arg8: memref<2x8x16x128xbf16, #tpu.memory_space<vmem>>, %arg9: memref<2x18x48x128xbf16, #tpu.memory_space<vmem>>) attributes {dimension_semantics = [], scalar_prefetch = 0 : i64, scratch_operands = 1 : i64, tpu.core_type = #tpu.core_type<tc>} {
    %c0 = arith.constant 0 : index
    %c0_0 = arith.constant 0 : index
    %c15 = arith.constant 15 : index
    %c0_1 = arith.constant 0 : index
    %0 = vector.load %arg0[%c0, %c0_0, %c15, %c0_1] : memref<2x18x48x128xbf16, #tpu.memory_space<vmem>>, vector<2x18x16x128xbf16>
    %1 = vector.extract_strided_slice %0 {offsets = [0, 0, 0, 0], sizes = [2, 16, 16, 128], strides = [1, 1, 1, 1]} : vector<2x18x16x128xbf16> to vector<2x16x16x128xbf16>
    %2 = vector.extract_strided_slice %0 {offsets = [0, 1, 0, 0], sizes = [2, 16, 16, 128], strides = [1, 1, 1, 1]} : vector<2x18x16x128xbf16> to vector<2x16x16x128xbf16>
    %3 = vector.extract_strided_slice %0 {offsets = [0, 2, 0, 0], sizes = [2, 16, 16, 128], strides = [1, 1, 1, 1]} : vector<2x18x16x128xbf16> to vector<2x16x16x128xbf16>
    %4 = tpu.concatenate %1, %2, %3 in 3 : vector<2x16x16x128xbf16>, vector<2x16x16x128xbf16>, vector<2x16x16x128xbf16> -> vector<2x16x16x384xbf16>
    %5 = vector.shape_cast %4 : vector<2x16x16x384xbf16> to vector<512x384xbf16>
    %c0_2 = arith.constant 0 : index
    %c0_3 = arith.constant 0 : index
    %c0_4 = arith.constant 0 : index
    %6 = vector.load %arg1[%c0_2, %c0_3, %c0_4] : memref<3x384x128xbf16, #tpu.memory_space<vmem>>, vector<1x384x128xbf16>
    %7 = vector.shape_cast %6 : vector<1x384x128xbf16> to vector<384x128xbf16>
    %cst = arith.constant dense<0.000000e+00> : vector<512x128xf32>
    %8 = tpu.matmul %5, %7, %cst {dimension_numbers = #tpu.dot_dimension_numbers<[1], [0], [0], [1], [0, 0, 1, 1], [], []>} : vector<512x384xbf16>, vector<384x128xbf16>, vector<512x128xf32> -> vector<512x128xf32>
    %c0_5 = arith.constant 0 : index
    %c0_6 = arith.constant 0 : index
    %c16 = arith.constant 16 : index
    %c0_7 = arith.constant 0 : index
    %9 = vector.load %arg0[%c0_5, %c0_6, %c16, %c0_7] : memref<2x18x48x128xbf16, #tpu.memory_space<vmem>>, vector<2x18x16x128xbf16>
    %10 = vector.extract_strided_slice %9 {offsets = [0, 0, 0, 0], sizes = [2, 16, 16, 128], strides = [1, 1, 1, 1]} : vector<2x18x16x128xbf16> to vector<2x16x16x128xbf16>
    %11 = vector.extract_strided_slice %9 {offsets = [0, 1, 0, 0], sizes = [2, 16, 16, 128], strides = [1, 1, 1, 1]} : vector<2x18x16x128xbf16> to vector<2x16x16x128xbf16>
    %12 = vector.extract_strided_slice %9 {offsets = [0, 2, 0, 0], sizes = [2, 16, 16, 128], strides = [1, 1, 1, 1]} : vector<2x18x16x128xbf16> to vector<2x16x16x128xbf16>
    %13 = tpu.concatenate %10, %11, %12 in 3 : vector<2x16x16x128xbf16>, vector<2x16x16x128xbf16>, vector<2x16x16x128xbf16> -> vector<2x16x16x384xbf16>
    %14 = vector.shape_cast %13 : vector<2x16x16x384xbf16> to vector<512x384xbf16>
    %c1 = arith.constant 1 : index
    %c0_8 = arith.constant 0 : index
    %c0_9 = arith.constant 0 : index
    %15 = vector.load %arg1[%c1, %c0_8, %c0_9] : memref<3x384x128xbf16, #tpu.memory_space<vmem>>, vector<1x384x128xbf16>
    %16 = vector.shape_cast %15 : vector<1x384x128xbf16> to vector<384x128xbf16>
    %cst_10 = arith.constant dense<0.000000e+00> : vector<512x128xf32>
    %17 = tpu.matmul %14, %16, %cst_10 {dimension_numbers = #tpu.dot_dimension_numbers<[1], [0], [0], [1], [0, 0, 1, 1], [], []>} : vector<512x384xbf16>, vector<384x128xbf16>, vector<512x128xf32> -> vector<512x128xf32>
    %18 = arith.addf %8, %17 : vector<512x128xf32>
    %c0_11 = arith.constant 0 : index
    %c0_12 = arith.constant 0 : index
    %c17 = arith.constant 17 : index
    %c0_13 = arith.constant 0 : index
    %19 = vector.load %arg0[%c0_11, %c0_12, %c17, %c0_13] : memref<2x18x48x128xbf16, #tpu.memory_space<vmem>>, vector<2x18x16x128xbf16>
    %20 = vector.extract_strided_slice %19 {offsets = [0, 0, 0, 0], sizes = [2, 16, 16, 128], strides = [1, 1, 1, 1]} : vector<2x18x16x128xbf16> to vector<2x16x16x128xbf16>
    %21 = vector.extract_strided_slice %19 {offsets = [0, 1, 0, 0], sizes = [2, 16, 16, 128], strides = [1, 1, 1, 1]} : vector<2x18x16x128xbf16> to vector<2x16x16x128xbf16>
    %22 = vector.extract_strided_slice %19 {offsets = [0, 2, 0, 0], sizes = [2, 16, 16, 128], strides = [1, 1, 1, 1]} : vector<2x18x16x128xbf16> to vector<2x16x16x128xbf16>
    %23 = tpu.concatenate %20, %21, %22 in 3 : vector<2x16x16x128xbf16>, vector<2x16x16x128xbf16>, vector<2x16x16x128xbf16> -> vector<2x16x16x384xbf16>
    %24 = vector.shape_cast %23 : vector<2x16x16x384xbf16> to vector<512x384xbf16>
    %c2 = arith.constant 2 : index
    %c0_14 = arith.constant 0 : index
    %c0_15 = arith.constant 0 : index
    %25 = vector.load %arg1[%c2, %c0_14, %c0_15] : memref<3x384x128xbf16, #tpu.memory_space<vmem>>, vector<1x384x128xbf16>
    %26 = vector.shape_cast %25 : vector<1x384x128xbf16> to vector<384x128xbf16>
    %cst_16 = arith.constant dense<0.000000e+00> : vector<512x128xf32>
    %27 = tpu.matmul %24, %26, %cst_16 {dimension_numbers = #tpu.dot_dimension_numbers<[1], [0], [0], [1], [0, 0, 1, 1], [], []>} : vector<512x384xbf16>, vector<384x128xbf16>, vector<512x128xf32> -> vector<512x128xf32>
    %28 = arith.addf %18, %27 : vector<512x128xf32>
    %cst_17 = arith.constant dense<0.000000e+00> : vector<128xf32>
    %29 = vector.multi_reduction <add>, %28, %cst_17 [0] : vector<512x128xf32> to vector<128xf32>
    %30 = vector.shape_cast %29 : vector<128xf32> to vector<1x128xf32>
    %31 = arith.mulf %28, %28 : vector<512x128xf32>
    %cst_18 = arith.constant dense<0.000000e+00> : vector<128xf32>
    %32 = vector.multi_reduction <add>, %31, %cst_18 [0] : vector<512x128xf32> to vector<128xf32>
    %33 = vector.shape_cast %32 : vector<128xf32> to vector<1x128xf32>
    %cst_19 = arith.constant 0.001953125 : f32
    %34 = vector.broadcast %cst_19 : f32 to vector<1x128xf32>
    %35 = arith.mulf %30, %34 : vector<1x128xf32>
    %cst_20 = arith.constant 0.001953125 : f32
    %36 = vector.broadcast %cst_20 : f32 to vector<1x128xf32>
    %37 = arith.mulf %33, %36 : vector<1x128xf32>
    %38 = arith.mulf %35, %35 : vector<1x128xf32>
    %39 = arith.subf %37, %38 : vector<1x128xf32>
    %c0_21 = arith.constant 0 : index
    %c0_22 = arith.constant 0 : index
    %40 = vector.load %arg3[%c0_21, %c0_22] : memref<1x128xf32, #tpu.memory_space<vmem>>, vector<1x128xf32>
    %cst_23 = arith.constant 9.99999974E-6 : f32
    %41 = vector.broadcast %cst_23 : f32 to vector<1x128xf32>
    %42 = arith.addf %39, %41 : vector<1x128xf32>
    %43 = math.rsqrt %42 : vector<1x128xf32>
    %44 = arith.mulf %40, %43 : vector<1x128xf32>
    %c0_24 = arith.constant 0 : index
    %c0_25 = arith.constant 0 : index
    %45 = vector.load %arg4[%c0_24, %c0_25] : memref<1x128xf32, #tpu.memory_space<vmem>>, vector<1x128xf32>
    %46 = arith.mulf %35, %44 : vector<1x128xf32>
    %47 = arith.subf %45, %46 : vector<1x128xf32>
    %48 = vector.broadcast %44 : vector<1x128xf32> to vector<512x128xf32>
    %49 = arith.mulf %28, %48 : vector<512x128xf32>
    %50 = vector.broadcast %47 : vector<1x128xf32> to vector<512x128xf32>
    %51 = arith.addf %49, %50 : vector<512x128xf32>
    %cst_26 = arith.constant 0.000000e+00 : f32
    %52 = vector.broadcast %cst_26 : f32 to vector<512x128xf32>
    %53 = arith.maximumf %51, %52 : vector<512x128xf32>
    %54 = vector.shape_cast %53 : vector<512x128xf32> to vector<2x16x16x128xf32>
    %cst_27 = arith.constant 0.000000e+00 : bf16
    %55 = vector.broadcast %cst_27 : bf16 to vector<2x1x48x128xbf16>
    %c0_28 = arith.constant 0 : index
    %c0_29 = arith.constant 0 : index
    %c0_30 = arith.constant 0 : index
    %c0_31 = arith.constant 0 : index
    %56 = vector.load %arg9[%c0_28, %c0_29, %c0_30, %c0_31] : memref<2x18x48x128xbf16, #tpu.memory_space<vmem>>, vector<2x1x48x128xbf16>
    tpu.vector_store %arg9[%c0_28, %c0_29, %c0_30, %c0_31], %55 {strides = array<i32>} : memref<2x18x48x128xbf16, #tpu.memory_space<vmem>>, vector<2x1x48x128xbf16>,
    %c0_32 = arith.constant 0 : index
    %c17_33 = arith.constant 17 : index
    %c0_34 = arith.constant 0 : index
    %c0_35 = arith.constant 0 : index
    %57 = vector.load %arg9[%c0_32, %c17_33, %c0_34, %c0_35] : memref<2x18x48x128xbf16, #tpu.memory_space<vmem>>, vector<2x1x48x128xbf16>
    tpu.vector_store %arg9[%c0_32, %c17_33, %c0_34, %c0_35], %55 {strides = array<i32>} : memref<2x18x48x128xbf16, #tpu.memory_space<vmem>>, vector<2x1x48x128xbf16>,
    %cst_36 = arith.constant 0.000000e+00 : bf16
    %58 = vector.broadcast %cst_36 : bf16 to vector<2x16x16x128xbf16>
    %c0_37 = arith.constant 0 : index
    %c1_38 = arith.constant 1 : index
    %c0_39 = arith.constant 0 : index
    %c0_40 = arith.constant 0 : index
    %59 = vector.load %arg9[%c0_37, %c1_38, %c0_39, %c0_40] : memref<2x18x48x128xbf16, #tpu.memory_space<vmem>>, vector<2x16x16x128xbf16>
    tpu.vector_store %arg9[%c0_37, %c1_38, %c0_39, %c0_40], %58 {strides = array<i32>} : memref<2x18x48x128xbf16, #tpu.memory_space<vmem>>, vector<2x16x16x128xbf16>,
    %cst_41 = arith.constant 0.000000e+00 : bf16
    %60 = vector.broadcast %cst_41 : bf16 to vector<2x16x16x128xbf16>
    %c0_42 = arith.constant 0 : index
    %c1_43 = arith.constant 1 : index
    %c32 = arith.constant 32 : index
    %c0_44 = arith.constant 0 : index
    %61 = vector.load %arg9[%c0_42, %c1_43, %c32, %c0_44] : memref<2x18x48x128xbf16, #tpu.memory_space<vmem>>, vector<2x16x16x128xbf16>
    tpu.vector_store %arg9[%c0_42, %c1_43, %c32, %c0_44], %60 {strides = array<i32>} : memref<2x18x48x128xbf16, #tpu.memory_space<vmem>>, vector<2x16x16x128xbf16>,
    %62 = arith.truncf %54 : vector<2x16x16x128xf32> to vector<2x16x16x128xbf16>
    %c0_45 = arith.constant 0 : index
    %c1_46 = arith.constant 1 : index
    %c16_47 = arith.constant 16 : index
    %c0_48 = arith.constant 0 : index
    %63 = vector.load %arg9[%c0_45, %c1_46, %c16_47, %c0_48] : memref<2x18x48x128xbf16, #tpu.memory_space<vmem>>, vector<2x16x16x128xbf16>
    tpu.vector_store %arg9[%c0_45, %c1_46, %c16_47, %c0_48], %62 {strides = array<i32>} : memref<2x18x48x128xbf16, #tpu.memory_space<vmem>>, vector<2x16x16x128xbf16>,
    %c0_49 = arith.constant 0 : index
    %c0_50 = arith.constant 0 : index
    %c15_51 = arith.constant 15 : index
    %c0_52 = arith.constant 0 : index
    %64 = vector.load %arg9[%c0_49, %c0_50, %c15_51, %c0_52] : memref<2x18x48x128xbf16, #tpu.memory_space<vmem>>, vector<2x18x16x128xbf16>
    %65 = vector.extract_strided_slice %64 {offsets = [0, 0, 0, 0], sizes = [2, 16, 16, 128], strides = [1, 1, 1, 1]} : vector<2x18x16x128xbf16> to vector<2x16x16x128xbf16>
    %66 = vector.extract_strided_slice %64 {offsets = [0, 1, 0, 0], sizes = [2, 16, 16, 128], strides = [1, 1, 1, 1]} : vector<2x18x16x128xbf16> to vector<2x16x16x128xbf16>
    %67 = vector.extract_strided_slice %64 {offsets = [0, 2, 0, 0], sizes = [2, 16, 16, 128], strides = [1, 1, 1, 1]} : vector<2x18x16x128xbf16> to vector<2x16x16x128xbf16>
    %68 = tpu.concatenate %65, %66, %67 in 3 : vector<2x16x16x128xbf16>, vector<2x16x16x128xbf16>, vector<2x16x16x128xbf16> -> vector<2x16x16x384xbf16>
    %69 = vector.shape_cast %68 : vector<2x16x16x384xbf16> to vector<512x384xbf16>
    %c0_53 = arith.constant 0 : index
    %c0_54 = arith.constant 0 : index
    %c0_55 = arith.constant 0 : index
    %70 = vector.load %arg2[%c0_53, %c0_54, %c0_55] : memref<3x384x128xbf16, #tpu.memory_space<vmem>>, vector<1x384x128xbf16>
    %71 = vector.shape_cast %70 : vector<1x384x128xbf16> to vector<384x128xbf16>
    %cst_56 = arith.constant dense<0.000000e+00> : vector<512x128xf32>
    %72 = tpu.matmul %69, %71, %cst_56 {dimension_numbers = #tpu.dot_dimension_numbers<[1], [0], [0], [1], [0, 0, 1, 1], [], []>} : vector<512x384xbf16>, vector<384x128xbf16>, vector<512x128xf32> -> vector<512x128xf32>
    %c0_57 = arith.constant 0 : index
    %c0_58 = arith.constant 0 : index
    %c16_59 = arith.constant 16 : index
    %c0_60 = arith.constant 0 : index
    %73 = vector.load %arg9[%c0_57, %c0_58, %c16_59, %c0_60] : memref<2x18x48x128xbf16, #tpu.memory_space<vmem>>, vector<2x18x16x128xbf16>
    %74 = vector.extract_strided_slice %73 {offsets = [0, 0, 0, 0], sizes = [2, 16, 16, 128], strides = [1, 1, 1, 1]} : vector<2x18x16x128xbf16> to vector<2x16x16x128xbf16>
    %75 = vector.extract_strided_slice %73 {offsets = [0, 1, 0, 0], sizes = [2, 16, 16, 128], strides = [1, 1, 1, 1]} : vector<2x18x16x128xbf16> to vector<2x16x16x128xbf16>
    %76 = vector.extract_strided_slice %73 {offsets = [0, 2, 0, 0], sizes = [2, 16, 16, 128], strides = [1, 1, 1, 1]} : vector<2x18x16x128xbf16> to vector<2x16x16x128xbf16>
    %77 = tpu.concatenate %74, %75, %76 in 3 : vector<2x16x16x128xbf16>, vector<2x16x16x128xbf16>, vector<2x16x16x128xbf16> -> vector<2x16x16x384xbf16>
    %78 = vector.shape_cast %77 : vector<2x16x16x384xbf16> to vector<512x384xbf16>
    %c1_61 = arith.constant 1 : index
    %c0_62 = arith.constant 0 : index
    %c0_63 = arith.constant 0 : index
    %79 = vector.load %arg2[%c1_61, %c0_62, %c0_63] : memref<3x384x128xbf16, #tpu.memory_space<vmem>>, vector<1x384x128xbf16>
    %80 = vector.shape_cast %79 : vector<1x384x128xbf16> to vector<384x128xbf16>
    %cst_64 = arith.constant dense<0.000000e+00> : vector<512x128xf32>
    %81 = tpu.matmul %78, %80, %cst_64 {dimension_numbers = #tpu.dot_dimension_numbers<[1], [0], [0], [1], [0, 0, 1, 1], [], []>} : vector<512x384xbf16>, vector<384x128xbf16>, vector<512x128xf32> -> vector<512x128xf32>
    %82 = arith.addf %72, %81 : vector<512x128xf32>
    %c0_65 = arith.constant 0 : index
    %c0_66 = arith.constant 0 : index
    %c17_67 = arith.constant 17 : index
    %c0_68 = arith.constant 0 : index
    %83 = vector.load %arg9[%c0_65, %c0_66, %c17_67, %c0_68] : memref<2x18x48x128xbf16, #tpu.memory_space<vmem>>, vector<2x18x16x128xbf16>
    %84 = vector.extract_strided_slice %83 {offsets = [0, 0, 0, 0], sizes = [2, 16, 16, 128], strides = [1, 1, 1, 1]} : vector<2x18x16x128xbf16> to vector<2x16x16x128xbf16>
    %85 = vector.extract_strided_slice %83 {offsets = [0, 1, 0, 0], sizes = [2, 16, 16, 128], strides = [1, 1, 1, 1]} : vector<2x18x16x128xbf16> to vector<2x16x16x128xbf16>
    %86 = vector.extract_strided_slice %83 {offsets = [0, 2, 0, 0], sizes = [2, 16, 16, 128], strides = [1, 1, 1, 1]} : vector<2x18x16x128xbf16> to vector<2x16x16x128xbf16>
    %87 = tpu.concatenate %84, %85, %86 in 3 : vector<2x16x16x128xbf16>, vector<2x16x16x128xbf16>, vector<2x16x16x128xbf16> -> vector<2x16x16x384xbf16>
    %88 = vector.shape_cast %87 : vector<2x16x16x384xbf16> to vector<512x384xbf16>
    %c2_69 = arith.constant 2 : index
    %c0_70 = arith.constant 0 : index
    %c0_71 = arith.constant 0 : index
    %89 = vector.load %arg2[%c2_69, %c0_70, %c0_71] : memref<3x384x128xbf16, #tpu.memory_space<vmem>>, vector<1x384x128xbf16>
    %90 = vector.shape_cast %89 : vector<1x384x128xbf16> to vector<384x128xbf16>
    %cst_72 = arith.constant dense<0.000000e+00> : vector<512x128xf32>
    %91 = tpu.matmul %88, %90, %cst_72 {dimension_numbers = #tpu.dot_dimension_numbers<[1], [0], [0], [1], [0, 0, 1, 1], [], []>} : vector<512x384xbf16>, vector<384x128xbf16>, vector<512x128xf32> -> vector<512x128xf32>
    %92 = arith.addf %82, %91 : vector<512x128xf32>
    %cst_73 = arith.constant dense<0.000000e+00> : vector<128xf32>
    %93 = vector.multi_reduction <add>, %92, %cst_73 [0] : vector<512x128xf32> to vector<128xf32>
    %94 = vector.shape_cast %93 : vector<128xf32> to vector<1x128xf32>
    %95 = arith.mulf %92, %92 : vector<512x128xf32>
    %cst_74 = arith.constant dense<0.000000e+00> : vector<128xf32>
    %96 = vector.multi_reduction <add>, %95, %cst_74 [0] : vector<512x128xf32> to vector<128xf32>
    %97 = vector.shape_cast %96 : vector<128xf32> to vector<1x128xf32>
    %cst_75 = arith.constant 0.001953125 : f32
    %98 = vector.broadcast %cst_75 : f32 to vector<1x128xf32>
    %99 = arith.mulf %94, %98 : vector<1x128xf32>
    %cst_76 = arith.constant 0.001953125 : f32
    %100 = vector.broadcast %cst_76 : f32 to vector<1x128xf32>
    %101 = arith.mulf %97, %100 : vector<1x128xf32>
    %102 = arith.mulf %99, %99 : vector<1x128xf32>
    %103 = arith.subf %101, %102 : vector<1x128xf32>
    %c0_77 = arith.constant 0 : index
    %c0_78 = arith.constant 0 : index
    %104 = vector.load %arg5[%c0_77, %c0_78] : memref<1x128xf32, #tpu.memory_space<vmem>>, vector<1x128xf32>
    %cst_79 = arith.constant 9.99999974E-6 : f32
    %105 = vector.broadcast %cst_79 : f32 to vector<1x128xf32>
    %106 = arith.addf %103, %105 : vector<1x128xf32>
    %107 = math.rsqrt %106 : vector<1x128xf32>
    %108 = arith.mulf %104, %107 : vector<1x128xf32>
    %c0_80 = arith.constant 0 : index
    %c0_81 = arith.constant 0 : index
    %109 = vector.load %arg6[%c0_80, %c0_81] : memref<1x128xf32, #tpu.memory_space<vmem>>, vector<1x128xf32>
    %110 = arith.mulf %99, %108 : vector<1x128xf32>
    %111 = arith.subf %109, %110 : vector<1x128xf32>
    %112 = vector.broadcast %108 : vector<1x128xf32> to vector<512x128xf32>
    %113 = arith.mulf %92, %112 : vector<512x128xf32>
    %114 = vector.broadcast %111 : vector<1x128xf32> to vector<512x128xf32>
    %115 = arith.addf %113, %114 : vector<512x128xf32>
    %cst_82 = arith.constant 0.000000e+00 : f32
    %116 = vector.broadcast %cst_82 : f32 to vector<512x128xf32>
    %117 = arith.maximumf %115, %116 : vector<512x128xf32>
    %118 = vector.shape_cast %117 : vector<512x128xf32> to vector<2x16x16x128xf32>
    %119 = arith.truncf %118 : vector<2x16x16x128xf32> to vector<2x16x16x128xbf16>
    %c0_83 = arith.constant 0 : index
    %c0_84 = arith.constant 0 : index
    %c0_85 = arith.constant 0 : index
    %c0_86 = arith.constant 0 : index
    %120 = vector.load %arg7[%c0_83, %c0_84, %c0_85, %c0_86] : memref<2x16x16x128xbf16, #tpu.memory_space<vmem>>, vector<2x16x16x128xbf16>
    tpu.vector_store %arg7[%c0_83, %c0_84, %c0_85, %c0_86], %119 {strides = array<i32>} : memref<2x16x16x128xbf16, #tpu.memory_space<vmem>>, vector<2x16x16x128xbf16>,
    %121 = vector.shape_cast %118 : vector<2x16x16x128xf32> to vector<2x8x2x16x128xf32>
    %122 = vector.extract_strided_slice %121 {offsets = [0, 0, 0, 0, 0], sizes = [2, 8, 1, 16, 128], strides = [1, 1, 1, 1, 1]} : vector<2x8x2x16x128xf32> to vector<2x8x1x16x128xf32>
    %123 = vector.shape_cast %122 : vector<2x8x1x16x128xf32> to vector<2x8x16x128xf32>
    %124 = vector.extract_strided_slice %121 {offsets = [0, 0, 1, 0, 0], sizes = [2, 8, 1, 16, 128], strides = [1, 1, 1, 1, 1]} : vector<2x8x2x16x128xf32> to vector<2x8x1x16x128xf32>
    %125 = vector.shape_cast %124 : vector<2x8x1x16x128xf32> to vector<2x8x16x128xf32>
    %126 = arith.maximumf %123, %125 : vector<2x8x16x128xf32>
    %127 = arith.truncf %126 : vector<2x8x16x128xf32> to vector<2x8x16x128xbf16>
    %c0_87 = arith.constant 0 : index
    %c0_88 = arith.constant 0 : index
    %c0_89 = arith.constant 0 : index
    %c0_90 = arith.constant 0 : index
    %128 = vector.load %arg8[%c0_87, %c0_88, %c0_89, %c0_90] : memref<2x8x16x128xbf16, #tpu.memory_space<vmem>>, vector<2x8x16x128xbf16>
    tpu.vector_store %arg8[%c0_87, %c0_88, %c0_89, %c0_90], %127 {strides = array<i32>} : memref<2x8x16x128xbf16, #tpu.memory_space<vmem>>, vector<2x8x16x128xbf16>,
    return
  }
}

</mosaic_0001>

<llo_original>
// kernel: downsample.1
$region0: #{downsample.1}
  #allocation0 [shape = 'u32[]', space=smem, size = 0x4, offset = 0x4, fixed_abs, tag = 'smem constant byte address 0x4 - core index']
  #allocation1 [shape = 'u32[144,128]{1,0:T(1,128)}', space=vmem, size = 0x12000, scoped, tag = 'internal scratch']
  #allocation2 [shape = 'bf16[2,18,48,128]{3,2,1,0:T(8,128)(2,1)}', space=vmem, size = 0x6c000, scoped, tag = 'scratch operand']
  %s0 = inlined_call_operand.vmem [shape: bf16[2,18,48,128], index: 0, kind: input, shape index: {}]
  %s1 = inlined_call_operand.vmem [shape: bf16[3,384,128], index: 1, kind: input, shape index: {}]
  %s2 = inlined_call_operand.vmem [shape: bf16[3,384,128], index: 2, kind: input, shape index: {}]
  %s3 = inlined_call_operand.vmem [shape: f32[1,128], index: 3, kind: input, shape index: {}]
  %s4 = inlined_call_operand.vmem [shape: f32[1,128], index: 4, kind: input, shape index: {}]
  %s5 = inlined_call_operand.vmem [shape: f32[1,128], index: 5, kind: input, shape index: {}]
  %s6 = inlined_call_operand.vmem [shape: f32[1,128], index: 6, kind: input, shape index: {}]
  %s7 = inlined_call_operand.vmem [shape: bf16[2,16,16,128], index: 7, kind: output, shape index: {0}]
  %s8 = inlined_call_operand.vmem [shape: bf16[2,8,16,128], index: 8, kind: output, shape index: {1}]
  %9 = xla_tuple %s7, %s8
  %s10 = sld [smem:[#allocation0]]
  $region46: #{downsample.1} parent=0
    _
  %s12 = ssub.s32 1, %s10
  %s13 = scalar_select 0, %s12, %s10
  // Predicated region
  $region2: #{downsample.1} parent=0 // pred_check
    _
  $region3: #{downsample.1} parent=0 // pred_check_branch
    %15 = sbr.rel (0) target = $region5
  $region4: #{downsample.1} parent=0 // pred_region
    _
  $region5: #{downsample.1} parent=0 // pred_fallthru
    _
  // Predicated region
  $region6: #{downsample.1} parent=0 // pred_check
    _
  $region7: #{downsample.1} parent=0 // pred_check_branch
    %17 = sbr.rel (0) target = $region9
  $region8: #{downsample.1} parent=0 // pred_region
    _
  $region9: #{downsample.1} parent=0 // pred_fallthru
    _
  // Predicated region
  $region10: #{downsample.1} parent=0 // pred_check
    _
  $region11: #{downsample.1} parent=0 // pred_check_branch
    %19 = sbr.rel (0) target = $region13
  $region12: #{downsample.1} parent=0 // pred_region
    _
  $region13: #{downsample.1} parent=0 // pred_fallthru
    _
  // Predicated region
  $region14: #{downsample.1} parent=0 // pred_check
    _
  $region15: #{downsample.1} parent=0 // pred_check_branch
    %21 = sbr.rel (0) target = $region17
  $region16: #{downsample.1} parent=0 // pred_region
    _
  $region17: #{downsample.1} parent=0 // pred_fallthru
    _
  // Predicated region
  $region18: #{downsample.1} parent=0 // pred_check
    _
  $region19: #{downsample.1} parent=0 // pred_check_branch
    %23 = sbr.rel (0) target = $region21
  $region20: #{downsample.1} parent=0 // pred_region
    _
  $region21: #{downsample.1} parent=0 // pred_fallthru
    _
  // Predicated region
  $region22: #{downsample.1} parent=0 // pred_check
    _
  $region23: #{downsample.1} parent=0 // pred_check_branch
    %25 = sbr.rel (0) target = $region25
  $region24: #{downsample.1} parent=0 // pred_region
    _
  $region25: #{downsample.1} parent=0 // pred_fallthru
    _
  // Predicated region
  $region26: #{downsample.1} parent=0 // pred_check
    _
  $region27: #{downsample.1} parent=0 // pred_check_branch
    %27 = sbr.rel (0) target = $region29
  $region28: #{downsample.1} parent=0 // pred_region
    _
  $region29: #{downsample.1} parent=0 // pred_fallthru
    _
  %v29 = vld [vmem:[%s0 + $0x4] sm:$0x8]
  %v30 = vld [vmem:[%s0 + $0x8] sm:$0xf]
  %v31 = vld [vmem:[%s0 + $0xc] sm:$0xf]
  %v32 = vld [vmem:[%s0 + $0x1c] sm:$0x8]
  %v33 = vld [vmem:[%s0 + $0x20] sm:$0xf]
  %v34 = vld [vmem:[%s0 + $0x24] sm:$0xf]
  %v35 = vld [vmem:[%s0 + $0x34] sm:$0x8]
  %v36 = vld [vmem:[%s0 + $0x38] sm:$0xf]
  %v37 = vld [vmem:[%s0 + $0x3c] sm:$0xf]
  %v38 = vld [vmem:[%s0 + $0x4c] sm:$0x8]
  %v39 = vld [vmem:[%s0 + $0x50] sm:$0xf]
  %v40 = vld [vmem:[%s0 + $0x54] sm:$0xf]
  %v41 = vld [vmem:[%s0 + $0x64] sm:$0x8]
  %v42 = vld [vmem:[%s0 + $0x68] sm:$0xf]
  %v43 = vld [vmem:[%s0 + $0x6c] sm:$0xf]
  %v44 = vld [vmem:[%s0 + $0x7c] sm:$0x8]
  %v45 = vld [vmem:[%s0 + $0x80] sm:$0xf]
  %v46 = vld [vmem:[%s0 + $0x84] sm:$0xf]
  %v47 = vld [vmem:[%s0 + $0x94] sm:$0x8]
  %v48 = vld [vmem:[%s0 + $0x98] sm:$0xf]
  %v49 = vld [vmem:[%s0 + $0x9c] sm:$0xf]
  %v50 = vld [vmem:[%s0 + $0xac] sm:$0x8]
  %v51 = vld [vmem:[%s0 + $0xb0] sm:$0xf]
  %v52 = vld [vmem:[%s0 + $0xb4] sm:$0xf]
  %v53 = vld [vmem:[%s0 + $0xc4] sm:$0x8]
  %v54 = vld [vmem:[%s0 + $0xc8] sm:$0xf]
  %v55 = vld [vmem:[%s0 + $0xcc] sm:$0xf]
  %v56 = vld [vmem:[%s0 + $0xdc] sm:$0x8]
  %v57 = vld [vmem:[%s0 + $0xe0] sm:$0xf]
  %v58 = vld [vmem:[%s0 + $0xe4] sm:$0xf]
  %v59 = vld [vmem:[%s0 + $0xf4] sm:$0x8]
  %v60 = vld [vmem:[%s0 + $0xf8] sm:$0xf]
  %v61 = vld [vmem:[%s0 + $0xfc] sm:$0xf]
  %v62 = vld [vmem:[%s0 + $0x10c] sm:$0x8]
  %v63 = vld [vmem:[%s0 + $0x110] sm:$0xf]
  %v64 = vld [vmem:[%s0 + $0x114] sm:$0xf]
  %v65 = vld [vmem:[%s0 + $0x124] sm:$0x8]
  %v66 = vld [vmem:[%s0 + $0x128] sm:$0xf]
  %v67 = vld [vmem:[%s0 + $0x12c] sm:$0xf]
  %v68 = vld [vmem:[%s0 + $0x13c] sm:$0x8]
  %v69 = vld [vmem:[%s0 + $0x140] sm:$0xf]
  %v70 = vld [vmem:[%s0 + $0x144] sm:$0xf]
  %v71 = vld [vmem:[%s0 + $0x154] sm:$0x8]
  %v72 = vld [vmem:[%s0 + $0x158] sm:$0xf]
  %v73 = vld [vmem:[%s0 + $0x15c] sm:$0xf]
  %v74 = vld [vmem:[%s0 + $0x16c] sm:$0x8]
  %v75 = vld [vmem:[%s0 + $0x170] sm:$0xf]
  %v76 = vld [vmem:[%s0 + $0x174] sm:$0xf]
  %v77 = vld [vmem:[%s0 + $0x184] sm:$0x8]
  %v78 = vld [vmem:[%s0 + $0x188] sm:$0xf]
  %v79 = vld [vmem:[%s0 + $0x18c] sm:$0xf]
  %v80 = vld [vmem:[%s0 + $0x19c] sm:$0x8]
  %v81 = vld [vmem:[%s0 + $0x1a0] sm:$0xf]
  %v82 = vld [vmem:[%s0 + $0x1a4] sm:$0xf]
  %v83 = vld [vmem:[%s0 + $0x1b4] sm:$0x8]
  %v84 = vld [vmem:[%s0 + $0x1b8] sm:$0xf]
  %v85 = vld [vmem:[%s0 + $0x1bc] sm:$0xf]
  %v86 = vld [vmem:[%s0 + $0x1cc] sm:$0x8]
  %v87 = vld [vmem:[%s0 + $0x1d0] sm:$0xf]
  %v88 = vld [vmem:[%s0 + $0x1d4] sm:$0xf]
  %v89 = vld [vmem:[%s0 + $0x1e4] sm:$0x8]
  %v90 = vld [vmem:[%s0 + $0x1e8] sm:$0xf]
  %v91 = vld [vmem:[%s0 + $0x1ec] sm:$0xf]
  %v92 = vld [vmem:[%s0 + $0x1fc] sm:$0x8]
  %v93 = vld [vmem:[%s0 + $0x200] sm:$0xf]
  %v94 = vld [vmem:[%s0 + $0x204] sm:$0xf]
  %v95 = vld [vmem:[%s0 + $0x214] sm:$0x8]
  %v96 = vld [vmem:[%s0 + $0x218] sm:$0xf]
  %v97 = vld [vmem:[%s0 + $0x21c] sm:$0xf]
  %v98 = vld [vmem:[%s0 + $0x22c] sm:$0x8]
  %v99 = vld [vmem:[%s0 + $0x230] sm:$0xf]
  %v100 = vld [vmem:[%s0 + $0x234] sm:$0xf]
  %v101 = vld [vmem:[%s0 + $0x244] sm:$0x8]
  %v102 = vld [vmem:[%s0 + $0x248] sm:$0xf]
  %v103 = vld [vmem:[%s0 + $0x24c] sm:$0xf]
  %v104 = vld [vmem:[%s0 + $0x25c] sm:$0x8]
  %v105 = vld [vmem:[%s0 + $0x260] sm:$0xf]
  %v106 = vld [vmem:[%s0 + $0x264] sm:$0xf]
  %v107 = vld [vmem:[%s0 + $0x274] sm:$0x8]
  %v108 = vld [vmem:[%s0 + $0x278] sm:$0xf]
  %v109 = vld [vmem:[%s0 + $0x27c] sm:$0xf]
  %v110 = vld [vmem:[%s0 + $0x28c] sm:$0x8]
  %v111 = vld [vmem:[%s0 + $0x290] sm:$0xf]
  %v112 = vld [vmem:[%s0 + $0x294] sm:$0xf]
  %v113 = vld [vmem:[%s0 + $0x2a4] sm:$0x8]
  %v114 = vld [vmem:[%s0 + $0x2a8] sm:$0xf]
  %v115 = vld [vmem:[%s0 + $0x2ac] sm:$0xf]
  %v116 = vld [vmem:[%s0 + $0x2bc] sm:$0x8]
  %v117 = vld [vmem:[%s0 + $0x2c0] sm:$0xf]
  %v118 = vld [vmem:[%s0 + $0x2c4] sm:$0xf]
  %v119 = vld [vmem:[%s0 + $0x2d4] sm:$0x8]
  %v120 = vld [vmem:[%s0 + $0x2d8] sm:$0xf]
  %v121 = vld [vmem:[%s0 + $0x2dc] sm:$0xf]
  %v122 = vld [vmem:[%s0 + $0x2ec] sm:$0x8]
  %v123 = vld [vmem:[%s0 + $0x2f0] sm:$0xf]
  %v124 = vld [vmem:[%s0 + $0x2f4] sm:$0xf]
  %v125 = vld [vmem:[%s0 + $0x304] sm:$0x8]
  %v126 = vld [vmem:[%s0 + $0x308] sm:$0xf]
  %v127 = vld [vmem:[%s0 + $0x30c] sm:$0xf]
  %v128 = vld [vmem:[%s0 + $0x31c] sm:$0x8]
  %v129 = vld [vmem:[%s0 + $0x320] sm:$0xf]
  %v130 = vld [vmem:[%s0 + $0x324] sm:$0xf]
  %v131 = vld [vmem:[%s0 + $0x334] sm:$0x8]
  %v132 = vld [vmem:[%s0 + $0x338] sm:$0xf]
  %v133 = vld [vmem:[%s0 + $0x33c] sm:$0xf]
  %v134 = vld [vmem:[%s0 + $0x34c] sm:$0x8]
  %v135 = vld [vmem:[%s0 + $0x350] sm:$0xf]
  %v136 = vld [vmem:[%s0 + $0x354] sm:$0xf]
  %v233 = vunpack.c.l.b16 %v29
  %v234 = vunpack.c.l.b16 %v30
  %v235 = vunpack.c.l.b16 %v31
  %v236 = vunpack.c.l.b16 %v32
  %v237 = vunpack.c.l.b16 %v33
  %v238 = vunpack.c.l.b16 %v34
  %v239 = vunpack.c.l.b16 %v35
  %v240 = vunpack.c.l.b16 %v36
  %v241 = vunpack.c.l.b16 %v37
  %v242 = vunpack.c.l.b16 %v38
  %v243 = vunpack.c.l.b16 %v39
  %v244 = vunpack.c.l.b16 %v40
  %v245 = vunpack.c.l.b16 %v41
  %v246 = vunpack.c.l.b16 %v42
  %v247 = vunpack.c.l.b16 %v43
  %v248 = vunpack.c.l.b16 %v44
  %v249 = vunpack.c.l.b16 %v45
  %v250 = vunpack.c.l.b16 %v46
  %v251 = vunpack.c.l.b16 %v47
  %v252 = vunpack.c.l.b16 %v48
  %v253 = vunpack.c.l.b16 %v49
  %v254 = vunpack.c.l.b16 %v50
  %v255 = vunpack.c.l.b16 %v51
  %v256 = vunpack.c.l.b16 %v52
  %v257 = vunpack.c.l.b16 %v53
  %v258 = vunpack.c.l.b16 %v54
  %v259 = vunpack.c.l.b16 %v55
  %v260 = vunpack.c.l.b16 %v56
  %v261 = vunpack.c.l.b16 %v57
  %v262 = vunpack.c.l.b16 %v58
  %v263 = vunpack.c.l.b16 %v59
  %v264 = vunpack.c.l.b16 %v60
  %v265 = vunpack.c.l.b16 %v61
  %v266 = vunpack.c.l.b16 %v62
  %v267 = vunpack.c.l.b16 %v63
  %v268 = vunpack.c.l.b16 %v64
  %v269 = vunpack.c.l.b16 %v65
  %v270 = vunpack.c.l.b16 %v66
  %v271 = vunpack.c.l.b16 %v67
  %v272 = vunpack.c.l.b16 %v68
  %v273 = vunpack.c.l.b16 %v69
  %v274 = vunpack.c.l.b16 %v70
  %v275 = vunpack.c.l.b16 %v71
  %v276 = vunpack.c.l.b16 %v72
  %v277 = vunpack.c.l.b16 %v73
  %v278 = vunpack.c.l.b16 %v74
  %v279 = vunpack.c.l.b16 %v75
  %v280 = vunpack.c.l.b16 %v76
  %v281 = vunpack.c.l.b16 %v83
  %v282 = vunpack.c.l.b16 %v84
  %v283 = vunpack.c.l.b16 %v85
  %v284 = vunpack.c.l.b16 %v86
  %v285 = vunpack.c.l.b16 %v87
  %v286 = vunpack.c.l.b16 %v88
  %v287 = vunpack.c.l.b16 %v89
  %v288 = vunpack.c.l.b16 %v90
  %v289 = vunpack.c.l.b16 %v91
  %v290 = vunpack.c.l.b16 %v92
  %v291 = vunpack.c.l.b16 %v93
  %v292 = vunpack.c.l.b16 %v94
  %v293 = vunpack.c.l.b16 %v95
  %v294 = vunpack.c.l.b16 %v96
  %v295 = vunpack.c.l.b16 %v97
  %v296 = vunpack.c.l.b16 %v98
  %v297 = vunpack.c.l.b16 %v99
  %v298 = vunpack.c.l.b16 %v100
  %v299 = vunpack.c.l.b16 %v101
  %v300 = vunpack.c.l.b16 %v102
  %v301 = vunpack.c.l.b16 %v103
  %v302 = vunpack.c.l.b16 %v104
  %v303 = vunpack.c.l.b16 %v105
  %v304 = vunpack.c.l.b16 %v106
  %v305 = vunpack.c.l.b16 %v107
  %v306 = vunpack.c.l.b16 %v108
  %v307 = vunpack.c.l.b16 %v109
  %v308 = vunpack.c.l.b16 %v110
  %v309 = vunpack.c.l.b16 %v111
  %v310 = vunpack.c.l.b16 %v112
  %v311 = vunpack.c.l.b16 %v113
  %v312 = vunpack.c.l.b16 %v114
  %v313 = vunpack.c.l.b16 %v115
  %v314 = vunpack.c.l.b16 %v116
  %v315 = vunpack.c.l.b16 %v117
  %v316 = vunpack.c.l.b16 %v118
  %v317 = vunpack.c.l.b16 %v119
  %v318 = vunpack.c.l.b16 %v120
  %v319 = vunpack.c.l.b16 %v121
  %v320 = vunpack.c.l.b16 %v122
  %v321 = vunpack.c.l.b16 %v123
  %v322 = vunpack.c.l.b16 %v124
  %v323 = vunpack.c.l.b16 %v125
  %v324 = vunpack.c.l.b16 %v126
  %v325 = vunpack.c.l.b16 %v127
  %v326 = vunpack.c.l.b16 %v128
  %v327 = vunpack.c.l.b16 %v129
  %v328 = vunpack.c.l.b16 %v130
  %v329 = vpack.c.b16 %v234, %v233
  %v330 = vpack.c.b16 %v235, %v235
  %v331 = vpack.c.b16 %v237, %v236
  %v332 = vpack.c.b16 %v238, %v238
  %v333 = vpack.c.b16 %v240, %v239
  %v334 = vpack.c.b16 %v241, %v241
  %v335 = vpack.c.b16 %v243, %v242
  %v336 = vpack.c.b16 %v244, %v244
  %v337 = vpack.c.b16 %v246, %v245
  %v338 = vpack.c.b16 %v247, %v247
  %v339 = vpack.c.b16 %v249, %v248
  %v340 = vpack.c.b16 %v250, %v250
  %v341 = vpack.c.b16 %v252, %v251
  %v342 = vpack.c.b16 %v253, %v253
  %v343 = vpack.c.b16 %v255, %v254
  %v344 = vpack.c.b16 %v256, %v256
  %v345 = vpack.c.b16 %v258, %v257
  %v346 = vpack.c.b16 %v259, %v259
  %v347 = vpack.c.b16 %v261, %v260
  %v348 = vpack.c.b16 %v262, %v262
  %v349 = vpack.c.b16 %v264, %v263
  %v350 = vpack.c.b16 %v265, %v265
  %v351 = vpack.c.b16 %v267, %v266
  %v352 = vpack.c.b16 %v268, %v268
  %v353 = vpack.c.b16 %v270, %v269
  %v354 = vpack.c.b16 %v271, %v271
  %v355 = vpack.c.b16 %v273, %v272
  %v356 = vpack.c.b16 %v274, %v274
  %v357 = vpack.c.b16 %v276, %v275
  %v358 = vpack.c.b16 %v277, %v277
  %v359 = vpack.c.b16 %v279, %v278
  %v360 = vpack.c.b16 %v280, %v280
  %v361 = vpack.c.b16 %v282, %v281
  %v362 = vpack.c.b16 %v283, %v283
  %v363 = vpack.c.b16 %v285, %v284
  %v364 = vpack.c.b16 %v286, %v286
  %v365 = vpack.c.b16 %v288, %v287
  %v366 = vpack.c.b16 %v289, %v289
  %v367 = vpack.c.b16 %v291, %v290
  %v368 = vpack.c.b16 %v292, %v292
  %v369 = vpack.c.b16 %v294, %v293
  %v370 = vpack.c.b16 %v295, %v295
  %v371 = vpack.c.b16 %v297, %v296
  %v372 = vpack.c.b16 %v298, %v298
  %v373 = vpack.c.b16 %v300, %v299
  %v374 = vpack.c.b16 %v301, %v301
  %v375 = vpack.c.b16 %v303, %v302
  %v376 = vpack.c.b16 %v304, %v304
  %v377 = vpack.c.b16 %v306, %v305
  %v378 = vpack.c.b16 %v307, %v307
  %v379 = vpack.c.b16 %v309, %v308
  %v380 = vpack.c.b16 %v310, %v310
  %v381 = vpack.c.b16 %v312, %v311
  %v382 = vpack.c.b16 %v313, %v313
  %v383 = vpack.c.b16 %v315, %v314
  %v384 = vpack.c.b16 %v316, %v316
  %v385 = vpack.c.b16 %v318, %v317
  %v386 = vpack.c.b16 %v319, %v319
  %v387 = vpack.c.b16 %v321, %v320
  %v388 = vpack.c.b16 %v322, %v322
  %v389 = vpack.c.b16 %v324, %v323
  %v390 = vpack.c.b16 %v325, %v325
  %v391 = vpack.c.b16 %v327, %v326
  %v392 = vpack.c.b16 %v328, %v328
  %v399 = vunpack.c.l.b16 %v77
  %v400 = vunpack.c.l.b16 %v78
  %v401 = vunpack.c.l.b16 %v79
  %v402 = vunpack.c.l.b16 %v131
  %v403 = vunpack.c.l.b16 %v132
  %v404 = vunpack.c.l.b16 %v133
  %v405 = vpack.c.b16 %v400, %v399
  %v406 = vpack.c.b16 %v401, %v401
  %v407 = vpack.c.b16 %v403, %v402
  %v408 = vpack.c.b16 %v404, %v404
  %v415 = vunpack.c.l.b16 %v80
  %v416 = vunpack.c.l.b16 %v81
  %v417 = vunpack.c.l.b16 %v82
  %v418 = vunpack.c.l.b16 %v134
  %v419 = vunpack.c.l.b16 %v135
  %v420 = vunpack.c.l.b16 %v136
  %v421 = vpack.c.b16 %v416, %v415
  %v422 = vpack.c.b16 %v417, %v417
  %v423 = vpack.c.b16 %v419, %v418
  %v424 = vpack.c.b16 %v420, %v420
  %vm425 = vsmask.f32 4352
  %v427 = vshrl.u32 %v329, 16
  %v429 = vrot.slane %v427, 3
  %v430 = vshll.u32 %v329, 16
  %v432 = vrot.slane %v430, 4
  %v433 = vor.u32 %v429, %v432
  %v435 = vshrl.u32 %v330, 16
  %v437 = vrot.slane %v435, 3
  %v438 = vshll.u32 %v330, 16
  %v440 = vrot.slane %v438, 4
  %v441 = vor.u32 %v437, %v440
  %v442 = vsel %vm425, %v433, %v441
  %v444 = vshrl.u32 %v331, 16
  %v446 = vrot.slane %v444, 3
  %v447 = vshll.u32 %v331, 16
  %v449 = vrot.slane %v447, 4
  %v450 = vor.u32 %v446, %v449
  %v452 = vshrl.u32 %v332, 16
  %v454 = vrot.slane %v452, 3
  %v455 = vshll.u32 %v332, 16
  %v457 = vrot.slane %v455, 4
  %v458 = vor.u32 %v454, %v457
  %v459 = vsel %vm425, %v450, %v458
  %v461 = vshrl.u32 %v333, 16
  %v463 = vrot.slane %v461, 3
  %v464 = vshll.u32 %v333, 16
  %v466 = vrot.slane %v464, 4
  %v467 = vor.u32 %v463, %v466
  %v469 = vshrl.u32 %v334, 16
  %v471 = vrot.slane %v469, 3
  %v472 = vshll.u32 %v334, 16
  %v474 = vrot.slane %v472, 4
  %v475 = vor.u32 %v471, %v474
  %v476 = vsel %vm425, %v467, %v475
  %v478 = vshrl.u32 %v335, 16
  %v480 = vrot.slane %v478, 3
  %v481 = vshll.u32 %v335, 16
  %v483 = vrot.slane %v481, 4
  %v484 = vor.u32 %v480, %v483
  %v486 = vshrl.u32 %v336, 16
  %v488 = vrot.slane %v486, 3
  %v489 = vshll.u32 %v336, 16
  %v491 = vrot.slane %v489, 4
  %v492 = vor.u32 %v488, %v491
  %v493 = vsel %vm425, %v484, %v492
  %v495 = vshrl.u32 %v337, 16
  %v497 = vrot.slane %v495, 3
  %v498 = vshll.u32 %v337, 16
  %v500 = vrot.slane %v498, 4
  %v501 = vor.u32 %v497, %v500
  %v503 = vshrl.u32 %v338, 16
  %v505 = vrot.slane %v503, 3
  %v506 = vshll.u32 %v338, 16
  %v508 = vrot.slane %v506, 4
  %v509 = vor.u32 %v505, %v508
  %v510 = vsel %vm425, %v501, %v509
  %v512 = vshrl.u32 %v339, 16
  %v514 = vrot.slane %v512, 3
  %v515 = vshll.u32 %v339, 16
  %v517 = vrot.slane %v515, 4
  %v518 = vor.u32 %v514, %v517
  %v520 = vshrl.u32 %v340, 16
  %v522 = vrot.slane %v520, 3
  %v523 = vshll.u32 %v340, 16
  %v525 = vrot.slane %v523, 4
  %v526 = vor.u32 %v522, %v525
  %v527 = vsel %vm425, %v518, %v526
  %v529 = vshrl.u32 %v341, 16
  %v531 = vrot.slane %v529, 3
  %v532 = vshll.u32 %v341, 16
  %v534 = vrot.slane %v532, 4
  %v535 = vor.u32 %v531, %v534
  %v537 = vshrl.u32 %v342, 16
  %v539 = vrot.slane %v537, 3
  %v540 = vshll.u32 %v342, 16
  %v542 = vrot.slane %v540, 4
  %v543 = vor.u32 %v539, %v542
  %v544 = vsel %vm425, %v535, %v543
  %v546 = vshrl.u32 %v343, 16
  %v548 = vrot.slane %v546, 3
  %v549 = vshll.u32 %v343, 16
  %v551 = vrot.slane %v549, 4
  %v552 = vor.u32 %v548, %v551
  %v554 = vshrl.u32 %v344, 16
  %v556 = vrot.slane %v554, 3
  %v557 = vshll.u32 %v344, 16
  %v559 = vrot.slane %v557, 4
  %v560 = vor.u32 %v556, %v559
  %v561 = vsel %vm425, %v552, %v560
  %v563 = vshrl.u32 %v345, 16
  %v565 = vrot.slane %v563, 3
  %v566 = vshll.u32 %v345, 16
  %v568 = vrot.slane %v566, 4
  %v569 = vor.u32 %v565, %v568
  %v571 = vshrl.u32 %v346, 16
  %v573 = vrot.slane %v571, 3
  %v574 = vshll.u32 %v346, 16
  %v576 = vrot.slane %v574, 4
  %v577 = vor.u32 %v573, %v576
  %v578 = vsel %vm425, %v569, %v577
  %v580 = vshrl.u32 %v347, 16
  %v582 = vrot.slane %v580, 3
  %v583 = vshll.u32 %v347, 16
  %v585 = vrot.slane %v583, 4
  %v586 = vor.u32 %v582, %v585
  %v588 = vshrl.u32 %v348, 16
  %v590 = vrot.slane %v588, 3
  %v591 = vshll.u32 %v348, 16
  %v593 = vrot.slane %v591, 4
  %v594 = vor.u32 %v590, %v593
  %v595 = vsel %vm425, %v586, %v594
  %v597 = vshrl.u32 %v349, 16
  %v599 = vrot.slane %v597, 3
  %v600 = vshll.u32 %v349, 16
  %v602 = vrot.slane %v600, 4
  %v603 = vor.u32 %v599, %v602
  %v605 = vshrl.u32 %v350, 16
  %v607 = vrot.slane %v605, 3
  %v608 = vshll.u32 %v350, 16
  %v610 = vrot.slane %v608, 4
  %v611 = vor.u32 %v607, %v610
  %v612 = vsel %vm425, %v603, %v611
  %v614 = vshrl.u32 %v351, 16
  %v616 = vrot.slane %v614, 3
  %v617 = vshll.u32 %v351, 16
  %v619 = vrot.slane %v617, 4
  %v620 = vor.u32 %v616, %v619
  %v622 = vshrl.u32 %v352, 16
  %v624 = vrot.slane %v622, 3
  %v625 = vshll.u32 %v352, 16
  %v627 = vrot.slane %v625, 4
  %v628 = vor.u32 %v624, %v627
  %v629 = vsel %vm425, %v620, %v628
  %v631 = vshrl.u32 %v353, 16
  %v633 = vrot.slane %v631, 3
  %v634 = vshll.u32 %v353, 16
  %v636 = vrot.slane %v634, 4
  %v637 = vor.u32 %v633, %v636
  %v639 = vshrl.u32 %v354, 16
  %v641 = vrot.slane %v639, 3
  %v642 = vshll.u32 %v354, 16
  %v644 = vrot.slane %v642, 4
  %v645 = vor.u32 %v641, %v644
  %v646 = vsel %vm425, %v637, %v645
  %v648 = vshrl.u32 %v355, 16
  %v650 = vrot.slane %v648, 3
  %v651 = vshll.u32 %v355, 16
  %v653 = vrot.slane %v651, 4
  %v654 = vor.u32 %v650, %v653
  %v656 = vshrl.u32 %v356, 16
  %v658 = vrot.slane %v656, 3
  %v659 = vshll.u32 %v356, 16
  %v661 = vrot.slane %v659, 4
  %v662 = vor.u32 %v658, %v661
  %v663 = vsel %vm425, %v654, %v662
  %v665 = vshrl.u32 %v357, 16
  %v667 = vrot.slane %v665, 3
  %v668 = vshll.u32 %v357, 16
  %v670 = vrot.slane %v668, 4
  %v671 = vor.u32 %v667, %v670
  %v673 = vshrl.u32 %v358, 16
  %v675 = vrot.slane %v673, 3
  %v676 = vshll.u32 %v358, 16
  %v678 = vrot.slane %v676, 4
  %v679 = vor.u32 %v675, %v678
  %v680 = vsel %vm425, %v671, %v679
  %v682 = vshrl.u32 %v359, 16
  %v684 = vrot.slane %v682, 3
  %v685 = vshll.u32 %v359, 16
  %v687 = vrot.slane %v685, 4
  %v688 = vor.u32 %v684, %v687
  %v690 = vshrl.u32 %v360, 16
  %v692 = vrot.slane %v690, 3
  %v693 = vshll.u32 %v360, 16
  %v695 = vrot.slane %v693, 4
  %v696 = vor.u32 %v692, %v695
  %v697 = vsel %vm425, %v688, %v696
  %v699 = vshrl.u32 %v405, 16
  %v701 = vrot.slane %v699, 3
  %v702 = vshll.u32 %v405, 16
  %v704 = vrot.slane %v702, 4
  %v705 = vor.u32 %v701, %v704
  %v707 = vshrl.u32 %v406, 16
  %v709 = vrot.slane %v707, 3
  %v710 = vshll.u32 %v406, 16
  %v712 = vrot.slane %v710, 4
  %v713 = vor.u32 %v709, %v712
  %v714 = vsel %vm425, %v705, %v713
  %v716 = vshrl.u32 %v421, 16
  %v718 = vrot.slane %v716, 3
  %v719 = vshll.u32 %v421, 16
  %v721 = vrot.slane %v719, 4
  %v722 = vor.u32 %v718, %v721
  %v724 = vshrl.u32 %v422, 16
  %v726 = vrot.slane %v724, 3
  %v727 = vshll.u32 %v422, 16
  %v729 = vrot.slane %v727, 4
  %v730 = vor.u32 %v726, %v729
  %v731 = vsel %vm425, %v722, %v730
  %v733 = vshrl.u32 %v361, 16
  %v735 = vrot.slane %v733, 3
  %v736 = vshll.u32 %v361, 16
  %v738 = vrot.slane %v736, 4
  %v739 = vor.u32 %v735, %v738
  %v741 = vshrl.u32 %v362, 16
  %v743 = vrot.slane %v741, 3
  %v744 = vshll.u32 %v362, 16
  %v746 = vrot.slane %v744, 4
  %v747 = vor.u32 %v743, %v746
  %v748 = vsel %vm425, %v739, %v747
  %v750 = vshrl.u32 %v363, 16
  %v752 = vrot.slane %v750, 3
  %v753 = vshll.u32 %v363, 16
  %v755 = vrot.slane %v753, 4
  %v756 = vor.u32 %v752, %v755
  %v758 = vshrl.u32 %v364, 16
  %v760 = vrot.slane %v758, 3
  %v761 = vshll.u32 %v364, 16
  %v763 = vrot.slane %v761, 4
  %v764 = vor.u32 %v760, %v763
  %v765 = vsel %vm425, %v756, %v764
  %v767 = vshrl.u32 %v365, 16
  %v769 = vrot.slane %v767, 3
  %v770 = vshll.u32 %v365, 16
  %v772 = vrot.slane %v770, 4
  %v773 = vor.u32 %v769, %v772
  %v775 = vshrl.u32 %v366, 16
  %v777 = vrot.slane %v775, 3
  %v778 = vshll.u32 %v366, 16
  %v780 = vrot.slane %v778, 4
  %v781 = vor.u32 %v777, %v780
  %v782 = vsel %vm425, %v773, %v781
  %v784 = vshrl.u32 %v367, 16
  %v786 = vrot.slane %v784, 3
  %v787 = vshll.u32 %v367, 16
  %v789 = vrot.slane %v787, 4
  %v790 = vor.u32 %v786, %v789
  %v792 = vshrl.u32 %v368, 16
  %v794 = vrot.slane %v792, 3
  %v795 = vshll.u32 %v368, 16
  %v797 = vrot.slane %v795, 4
  %v798 = vor.u32 %v794, %v797
  %v799 = vsel %vm425, %v790, %v798
  %v801 = vshrl.u32 %v369, 16
  %v803 = vrot.slane %v801, 3
  %v804 = vshll.u32 %v369, 16
  %v806 = vrot.slane %v804, 4
  %v807 = vor.u32 %v803, %v806
  %v809 = vshrl.u32 %v370, 16
  %v811 = vrot.slane %v809, 3
  %v812 = vshll.u32 %v370, 16
  %v814 = vrot.slane %v812, 4
  %v815 = vor.u32 %v811, %v814
  %v816 = vsel %vm425, %v807, %v815
  %v818 = vshrl.u32 %v371, 16
  %v820 = vrot.slane %v818, 3
  %v821 = vshll.u32 %v371, 16
  %v823 = vrot.slane %v821, 4
  %v824 = vor.u32 %v820, %v823
  %v826 = vshrl.u32 %v372, 16
  %v828 = vrot.slane %v826, 3
  %v829 = vshll.u32 %v372, 16
  %v831 = vrot.slane %v829, 4
  %v832 = vor.u32 %v828, %v831
  %v833 = vsel %vm425, %v824, %v832
  %v835 = vshrl.u32 %v373, 16
  %v837 = vrot.slane %v835, 3
  %v838 = vshll.u32 %v373, 16
  %v840 = vrot.slane %v838, 4
  %v841 = vor.u32 %v837, %v840
  %v843 = vshrl.u32 %v374, 16
  %v845 = vrot.slane %v843, 3
  %v846 = vshll.u32 %v374, 16
  %v848 = vrot.slane %v846, 4
  %v849 = vor.u32 %v845, %v848
  %v850 = vsel %vm425, %v841, %v849
  %v852 = vshrl.u32 %v375, 16
  %v854 = vrot.slane %v852, 3
  %v855 = vshll.u32 %v375, 16
  %v857 = vrot.slane %v855, 4
  %v858 = vor.u32 %v854, %v857
  %v860 = vshrl.u32 %v376, 16
  %v862 = vrot.slane %v860, 3
  %v863 = vshll.u32 %v376, 16
  %v865 = vrot.slane %v863, 4
  %v866 = vor.u32 %v862, %v865
  %v867 = vsel %vm425, %v858, %v866
  %v869 = vshrl.u32 %v377, 16
  %v871 = vrot.slane %v869, 3
  %v872 = vshll.u32 %v377, 16
  %v874 = vrot.slane %v872, 4
  %v875 = vor.u32 %v871, %v874
  %v877 = vshrl.u32 %v378, 16
  %v879 = vrot.slane %v877, 3
  %v880 = vshll.u32 %v378, 16
  %v882 = vrot.slane %v880, 4
  %v883 = vor.u32 %v879, %v882
  %v884 = vsel %vm425, %v875, %v883
  %v886 = vshrl.u32 %v379, 16
  %v888 = vrot.slane %v886, 3
  %v889 = vshll.u32 %v379, 16
  %v891 = vrot.slane %v889, 4
  %v892 = vor.u32 %v888, %v891
  %v894 = vshrl.u32 %v380, 16
  %v896 = vrot.slane %v894, 3
  %v897 = vshll.u32 %v380, 16
  %v899 = vrot.slane %v897, 4
  %v900 = vor.u32 %v896, %v899
  %v901 = vsel %vm425, %v892, %v900
  %v903 = vshrl.u32 %v381, 16
  %v905 = vrot.slane %v903, 3
  %v906 = vshll.u32 %v381, 16
  %v908 = vrot.slane %v906, 4
  %v909 = vor.u32 %v905, %v908
  %v911 = vshrl.u32 %v382, 16
  %v913 = vrot.slane %v911, 3
  %v914 = vshll.u32 %v382, 16
  %v916 = vrot.slane %v914, 4
  %v917 = vor.u32 %v913, %v916
  %v918 = vsel %vm425, %v909, %v917
  %v920 = vshrl.u32 %v383, 16
  %v922 = vrot.slane %v920, 3
  %v923 = vshll.u32 %v383, 16
  %v925 = vrot.slane %v923, 4
  %v926 = vor.u32 %v922, %v925
  %v928 = vshrl.u32 %v384, 16
  %v930 = vrot.slane %v928, 3
  %v931 = vshll.u32 %v384, 16
  %v933 = vrot.slane %v931, 4
  %v934 = vor.u32 %v930, %v933
  %v935 = vsel %vm425, %v926, %v934
  %v937 = vshrl.u32 %v385, 16
  %v939 = vrot.slane %v937, 3
  %v940 = vshll.u32 %v385, 16
  %v942 = vrot.slane %v940, 4
  %v943 = vor.u32 %v939, %v942
  %v945 = vshrl.u32 %v386, 16
  %v947 = vrot.slane %v945, 3
  %v948 = vshll.u32 %v386, 16
  %v950 = vrot.slane %v948, 4
  %v951 = vor.u32 %v947, %v950
  %v952 = vsel %vm425, %v943, %v951
  %v954 = vshrl.u32 %v387, 16
  %v956 = vrot.slane %v954, 3
  %v957 = vshll.u32 %v387, 16
  %v959 = vrot.slane %v957, 4
  %v960 = vor.u32 %v956, %v959
  %v962 = vshrl.u32 %v388, 16
  %v964 = vrot.slane %v962, 3
  %v965 = vshll.u32 %v388, 16
  %v967 = vrot.slane %v965, 4
  %v968 = vor.u32 %v964, %v967
  %v969 = vsel %vm425, %v960, %v968
  %v971 = vshrl.u32 %v389, 16
  %v973 = vrot.slane %v971, 3
  %v974 = vshll.u32 %v389, 16
  %v976 = vrot.slane %v974, 4
  %v977 = vor.u32 %v973, %v976
  %v979 = vshrl.u32 %v390, 16
  %v981 = vrot.slane %v979, 3
  %v982 = vshll.u32 %v390, 16
  %v984 = vrot.slane %v982, 4
  %v985 = vor.u32 %v981, %v984
  %v986 = vsel %vm425, %v977, %v985
  %v988 = vshrl.u32 %v391, 16
  %v990 = vrot.slane %v988, 3
  %v991 = vshll.u32 %v391, 16
  %v993 = vrot.slane %v991, 4
  %v994 = vor.u32 %v990, %v993
  %v996 = vshrl.u32 %v392, 16
  %v998 = vrot.slane %v996, 3
  %v999 = vshll.u32 %v392, 16
  %v1001 = vrot.slane %v999, 4
  %v1002 = vor.u32 %v998, %v1001
  %v1003 = vsel %vm425, %v994, %v1002
  %v1005 = vshrl.u32 %v407, 16
  %v1007 = vrot.slane %v1005, 3
  %v1008 = vshll.u32 %v407, 16
  %v1010 = vrot.slane %v1008, 4
  %v1011 = vor.u32 %v1007, %v1010
  %v1013 = vshrl.u32 %v408, 16
  %v1015 = vrot.slane %v1013, 3
  %v1016 = vshll.u32 %v408, 16
  %v1018 = vrot.slane %v1016, 4
  %v1019 = vor.u32 %v1015, %v1018
  %v1020 = vsel %vm425, %v1011, %v1019
  %v1022 = vshrl.u32 %v423, 16
  %v1024 = vrot.slane %v1022, 3
  %v1025 = vshll.u32 %v423, 16
  %v1027 = vrot.slane %v1025, 4
  %v1028 = vor.u32 %v1024, %v1027
  %v1030 = vshrl.u32 %v424, 16
  %v1032 = vrot.slane %v1030, 3
  %v1033 = vshll.u32 %v424, 16
  %v1035 = vrot.slane %v1033, 4
  %v1036 = vor.u32 %v1032, %v1035
  %v1037 = vsel %vm425, %v1028, %v1036
  %v1074 = vld [vmem:[%s1] sm:$0xf]
  %v1075 = vld [vmem:[%s1 + $0x4] sm:$0xf]
  %v1076 = vld [vmem:[%s1 + $0x8] sm:$0xf]
  %v1077 = vld [vmem:[%s1 + $0xc] sm:$0xf]
  %v1078 = vld [vmem:[%s1 + $0x10] sm:$0xf]
  %v1079 = vld [vmem:[%s1 + $0x14] sm:$0xf]
  %v1080 = vld [vmem:[%s1 + $0x18] sm:$0xf]
  %v1081 = vld [vmem:[%s1 + $0x1c] sm:$0xf]
  %v1082 = vld [vmem:[%s1 + $0x20] sm:$0xf]
  %v1083 = vld [vmem:[%s1 + $0x24] sm:$0xf]
  %v1084 = vld [vmem:[%s1 + $0x28] sm:$0xf]
  %v1085 = vld [vmem:[%s1 + $0x2c] sm:$0xf]
  %v1086 = vld [vmem:[%s1 + $0x30] sm:$0xf]
  %v1087 = vld [vmem:[%s1 + $0x34] sm:$0xf]
  %v1088 = vld [vmem:[%s1 + $0x38] sm:$0xf]
  %v1089 = vld [vmem:[%s1 + $0x3c] sm:$0xf]
  %v1090 = vld [vmem:[%s1 + $0x40] sm:$0xf]
  %v1091 = vld [vmem:[%s1 + $0x44] sm:$0xf]
  %v1092 = vld [vmem:[%s1 + $0x48] sm:$0xf]
  %v1093 = vld [vmem:[%s1 + $0x4c] sm:$0xf]
  %v1094 = vld [vmem:[%s1 + $0x50] sm:$0xf]
  %v1095 = vld [vmem:[%s1 + $0x54] sm:$0xf]
  %v1096 = vld [vmem:[%s1 + $0x58] sm:$0xf]
  %v1097 = vld [vmem:[%s1 + $0x5c] sm:$0xf]
  %v1098 = vld [vmem:[%s1 + $0x60] sm:$0xf]
  %v1099 = vld [vmem:[%s1 + $0x64] sm:$0xf]
  %v1100 = vld [vmem:[%s1 + $0x68] sm:$0xf]
  %v1101 = vld [vmem:[%s1 + $0x6c] sm:$0xf]
  %v1102 = vld [vmem:[%s1 + $0x70] sm:$0xf]
  %v1103 = vld [vmem:[%s1 + $0x74] sm:$0xf]
  %v1104 = vld [vmem:[%s1 + $0x78] sm:$0xf]
  %v1105 = vld [vmem:[%s1 + $0x7c] sm:$0xf]
  %v1106 = vld [vmem:[%s1 + $0x80] sm:$0xf]
  %v1107 = vld [vmem:[%s1 + $0x84] sm:$0xf]
  %v1108 = vld [vmem:[%s1 + $0x88] sm:$0xf]
  %v1109 = vld [vmem:[%s1 + $0x8c] sm:$0xf]
  %v1110 = vld [vmem:[%s1 + $0x90] sm:$0xf]
  %v1111 = vld [vmem:[%s1 + $0x94] sm:$0xf]
  %v1112 = vld [vmem:[%s1 + $0x98] sm:$0xf]
  %v1113 = vld [vmem:[%s1 + $0x9c] sm:$0xf]
  %v1114 = vld [vmem:[%s1 + $0xa0] sm:$0xf]
  %v1115 = vld [vmem:[%s1 + $0xa4] sm:$0xf]
  %v1116 = vld [vmem:[%s1 + $0xa8] sm:$0xf]
  %v1117 = vld [vmem:[%s1 + $0xac] sm:$0xf]
  %v1118 = vld [vmem:[%s1 + $0xb0] sm:$0xf]
  %v1119 = vld [vmem:[%s1 + $0xb4] sm:$0xf]
  %v1120 = vld [vmem:[%s1 + $0xb8] sm:$0xf]
  %v1121 = vld [vmem:[%s1 + $0xbc] sm:$0xf]
  %v1122 = vpack.c.b16 %v235, %v234
  %v1123 = vpack.c.b16 %v238, %v237
  %v1124 = vpack.c.b16 %v241, %v240
  %v1125 = vpack.c.b16 %v244, %v243
  %v1126 = vpack.c.b16 %v247, %v246
  %v1127 = vpack.c.b16 %v250, %v249
  %v1128 = vpack.c.b16 %v253, %v252
  %v1129 = vpack.c.b16 %v256, %v255
  %v1130 = vpack.c.b16 %v259, %v258
  %v1131 = vpack.c.b16 %v262, %v261
  %v1132 = vpack.c.b16 %v265, %v264
  %v1133 = vpack.c.b16 %v268, %v267
  %v1134 = vpack.c.b16 %v271, %v270
  %v1135 = vpack.c.b16 %v274, %v273
  %v1136 = vpack.c.b16 %v277, %v276
  %v1137 = vpack.c.b16 %v280, %v279
  %v1138 = vpack.c.b16 %v283, %v282
  %v1139 = vpack.c.b16 %v286, %v285
  %v1140 = vpack.c.b16 %v289, %v288
  %v1141 = vpack.c.b16 %v292, %v291
  %v1142 = vpack.c.b16 %v295, %v294
  %v1143 = vpack.c.b16 %v298, %v297
  %v1144 = vpack.c.b16 %v301, %v300
  %v1145 = vpack.c.b16 %v304, %v303
  %v1146 = vpack.c.b16 %v307, %v306
  %v1147 = vpack.c.b16 %v310, %v309
  %v1148 = vpack.c.b16 %v313, %v312
  %v1149 = vpack.c.b16 %v316, %v315
  %v1150 = vpack.c.b16 %v319, %v318
  %v1151 = vpack.c.b16 %v322, %v321
  %v1152 = vpack.c.b16 %v325, %v324
  %v1153 = vpack.c.b16 %v328, %v327
  %v1186 = vpack.c.b16 %v401, %v400
  %v1187 = vpack.c.b16 %v404, %v403
  %v1190 = vpack.c.b16 %v417, %v416
  %v1191 = vpack.c.b16 %v420, %v419
  %s1194 = scalar_lea.vmem %s1, 192
  %v1195 = vld [vmem:[%s1194] sm:$0xf]
  %v1196 = vld [vmem:[%s1194 + $0x4] sm:$0xf]
  %v1197 = vld [vmem:[%s1194 + $0x8] sm:$0xf]
  %v1198 = vld [vmem:[%s1194 + $0xc] sm:$0xf]
  %v1199 = vld [vmem:[%s1194 + $0x10] sm:$0xf]
  %v1200 = vld [vmem:[%s1194 + $0x14] sm:$0xf]
  %v1201 = vld [vmem:[%s1194 + $0x18] sm:$0xf]
  %v1202 = vld [vmem:[%s1194 + $0x1c] sm:$0xf]
  %v1203 = vld [vmem:[%s1194 + $0x20] sm:$0xf]
  %v1204 = vld [vmem:[%s1194 + $0x24] sm:$0xf]
  %v1205 = vld [vmem:[%s1194 + $0x28] sm:$0xf]
  %v1206 = vld [vmem:[%s1194 + $0x2c] sm:$0xf]
  %v1207 = vld [vmem:[%s1194 + $0x30] sm:$0xf]
  %v1208 = vld [vmem:[%s1194 + $0x34] sm:$0xf]
  %v1209 = vld [vmem:[%s1194 + $0x38] sm:$0xf]
  %v1210 = vld [vmem:[%s1194 + $0x3c] sm:$0xf]
  %v1211 = vld [vmem:[%s1194 + $0x40] sm:$0xf]
  %v1212 = vld [vmem:[%s1194 + $0x44] sm:$0xf]
  %v1213 = vld [vmem:[%s1194 + $0x48] sm:$0xf]
  %v1214 = vld [vmem:[%s1194 + $0x4c] sm:$0xf]
  %v1215 = vld [vmem:[%s1194 + $0x50] sm:$0xf]
  %v1216 = vld [vmem:[%s1194 + $0x54] sm:$0xf]
  %v1217 = vld [vmem:[%s1194 + $0x58] sm:$0xf]
  %v1218 = vld [vmem:[%s1194 + $0x5c] sm:$0xf]
  %v1219 = vld [vmem:[%s1194 + $0x60] sm:$0xf]
  %v1220 = vld [vmem:[%s1194 + $0x64] sm:$0xf]
  %v1221 = vld [vmem:[%s1194 + $0x68] sm:$0xf]
  %v1222 = vld [vmem:[%s1194 + $0x6c] sm:$0xf]
  %v1223 = vld [vmem:[%s1194 + $0x70] sm:$0xf]
  %v1224 = vld [vmem:[%s1194 + $0x74] sm:$0xf]
  %v1225 = vld [vmem:[%s1194 + $0x78] sm:$0xf]
  %v1226 = vld [vmem:[%s1194 + $0x7c] sm:$0xf]
  %v1227 = vld [vmem:[%s1194 + $0x80] sm:$0xf]
  %v1228 = vld [vmem:[%s1194 + $0x84] sm:$0xf]
  %v1229 = vld [vmem:[%s1194 + $0x88] sm:$0xf]
  %v1230 = vld [vmem:[%s1194 + $0x8c] sm:$0xf]
  %v1231 = vld [vmem:[%s1194 + $0x90] sm:$0xf]
  %v1232 = vld [vmem:[%s1194 + $0x94] sm:$0xf]
  %v1233 = vld [vmem:[%s1194 + $0x98] sm:$0xf]
  %v1234 = vld [vmem:[%s1194 + $0x9c] sm:$0xf]
  %v1235 = vld [vmem:[%s1194 + $0xa0] sm:$0xf]
  %v1236 = vld [vmem:[%s1194 + $0xa4] sm:$0xf]
  %v1237 = vld [vmem:[%s1194 + $0xa8] sm:$0xf]
  %v1238 = vld [vmem:[%s1194 + $0xac] sm:$0xf]
  %v1239 = vld [vmem:[%s1194 + $0xb0] sm:$0xf]
  %v1240 = vld [vmem:[%s1194 + $0xb4] sm:$0xf]
  %v1241 = vld [vmem:[%s1194 + $0xb8] sm:$0xf]
  %v1242 = vld [vmem:[%s1194 + $0xbc] sm:$0xf]
  %v1291 = vunpack.c.l.b16 %v1195
  %v1292 = vunpack.c.l.b16 %v1196
  %v1293 = vunpack.c.l.b16 %v1197
  %v1294 = vunpack.c.l.b16 %v1198
  %v1295 = vunpack.c.l.b16 %v1199
  %v1296 = vunpack.c.l.b16 %v1200
  %v1297 = vunpack.c.l.b16 %v1201
  %v1298 = vunpack.c.l.b16 %v1202
  %v1299 = vunpack.c.l.b16 %v1203
  %v1300 = vunpack.c.l.b16 %v1204
  %v1301 = vunpack.c.l.b16 %v1205
  %v1302 = vunpack.c.l.b16 %v1206
  %v1303 = vunpack.c.l.b16 %v1207
  %v1304 = vunpack.c.l.b16 %v1208
  %v1305 = vunpack.c.l.b16 %v1209
  %v1306 = vunpack.c.l.b16 %v1210
  %v1307 = vunpack.c.l.b16 %v1211
  %v1308 = vunpack.c.l.b16 %v1212
  %v1309 = vunpack.c.l.b16 %v1213
  %v1310 = vunpack.c.l.b16 %v1214
  %v1311 = vunpack.c.l.b16 %v1215
  %v1312 = vunpack.c.l.b16 %v1216
  %v1313 = vunpack.c.l.b16 %v1217
  %v1314 = vunpack.c.l.b16 %v1218
  %v1315 = vunpack.c.l.b16 %v1219
  %v1316 = vunpack.c.l.b16 %v1220
  %v1317 = vunpack.c.l.b16 %v1221
  %v1318 = vunpack.c.l.b16 %v1222
  %v1319 = vunpack.c.l.b16 %v1223
  %v1320 = vunpack.c.l.b16 %v1224
  %v1321 = vunpack.c.l.b16 %v1225
  %v1322 = vunpack.c.l.b16 %v1226
  %v1323 = vunpack.c.l.b16 %v1227
  %v1324 = vunpack.c.l.b16 %v1228
  %v1325 = vunpack.c.l.b16 %v1229
  %v1326 = vunpack.c.l.b16 %v1230
  %v1327 = vunpack.c.l.b16 %v1231
  %v1328 = vunpack.c.l.b16 %v1232
  %v1329 = vunpack.c.l.b16 %v1233
  %v1330 = vunpack.c.l.b16 %v1234
  %v1331 = vunpack.c.l.b16 %v1235
  %v1332 = vunpack.c.l.b16 %v1236
  %v1333 = vunpack.c.l.b16 %v1237
  %v1334 = vunpack.c.l.b16 %v1238
  %v1335 = vunpack.c.l.b16 %v1239
  %v1336 = vunpack.c.l.b16 %v1240
  %v1337 = vunpack.c.l.b16 %v1241
  %v1338 = vunpack.c.l.b16 %v1242
  %v1339 = vpack.c.b16 %v1292, %v1291
  %v1340 = vpack.c.b16 %v1294, %v1293
  %v1341 = vpack.c.b16 %v1296, %v1295
  %v1342 = vpack.c.b16 %v1298, %v1297
  %v1343 = vpack.c.b16 %v1300, %v1299
  %v1344 = vpack.c.b16 %v1302, %v1301
  %v1345 = vpack.c.b16 %v1304, %v1303
  %v1346 = vpack.c.b16 %v1306, %v1305
  %v1347 = vpack.c.b16 %v1308, %v1307
  %v1348 = vpack.c.b16 %v1310, %v1309
  %v1349 = vpack.c.b16 %v1312, %v1311
  %v1350 = vpack.c.b16 %v1314, %v1313
  %v1351 = vpack.c.b16 %v1316, %v1315
  %v1352 = vpack.c.b16 %v1318, %v1317
  %v1353 = vpack.c.b16 %v1320, %v1319
  %v1354 = vpack.c.b16 %v1322, %v1321
  %v1355 = vpack.c.b16 %v1324, %v1323
  %v1356 = vpack.c.b16 %v1326, %v1325
  %v1357 = vpack.c.b16 %v1328, %v1327
  %v1358 = vpack.c.b16 %v1330, %v1329
  %v1359 = vpack.c.b16 %v1332, %v1331
  %v1360 = vpack.c.b16 %v1334, %v1333
  %v1361 = vpack.c.b16 %v1336, %v1335
  %v1362 = vpack.c.b16 %v1338, %v1337
  %1387 = vmatprep.subr.bf16.mxu0 0
  %1388 = vmatpush1.bf16.msra.mxu0 %v1346
  %1389 = vmatprep.subr.bf16.mxu0 0
  %1390 = vmatpush1.bf16.msra.mxu0 %v1345
  %1391 = vmatprep.subr.bf16.mxu0 0
  %1392 = vmatpush1.bf16.msra.mxu0 %v1344
  %1393 = vmatprep.subr.bf16.mxu0 0
  %1394 = vmatpush1.bf16.msra.mxu0 %v1343
  %1395 = vmatprep.subr.bf16.mxu0 0
  %1396 = vmatpush1.bf16.msra.mxu0 %v1342
  %1397 = vmatprep.subr.bf16.mxu0 0
  %1398 = vmatpush1.bf16.msra.mxu0 %v1341
  %1399 = vmatprep.subr.bf16.mxu0 0
  %1400 = vmatpush1.bf16.msra.mxu0 %v1340
  %1401 = vmatprep.subr.bf16.mxu0 0
  %1402 = vmatpush1.bf16.msra.mxu0 %v1339
  %1403 = vmatprep.subr.bf16.mxu0 0
  %1404 = vmatpush2.bf16.msra.mxu0 %v1354
  %1405 = vmatprep.subr.bf16.mxu0 0
  %1406 = vmatpush2.bf16.msra.mxu0 %v1353
  %1407 = vmatprep.subr.bf16.mxu0 0
  %1408 = vmatpush2.bf16.msra.mxu0 %v1352
  %1409 = vmatprep.subr.bf16.mxu0 0
  %1410 = vmatpush2.bf16.msra.mxu0 %v1351
  %1411 = vmatprep.subr.bf16.mxu0 0
  %1412 = vmatpush2.bf16.msra.mxu0 %v1350
  %1413 = vmatprep.subr.bf16.mxu0 0
  %1414 = vmatpush2.bf16.msra.mxu0 %v1349
  %1415 = vmatprep.subr.bf16.mxu0 0
  %1416 = vmatpush2.bf16.msra.mxu0 %v1348
  %1417 = vmatprep.subr.bf16.mxu0 0
  %1418 = vmatpush2.bf16.msra.mxu0 %v1347
  %1419 = vmatprep.mubr.bf16.mxu0 %v1123
  %1420 = vmatmul.mubr.bf16.gmra.mxu0 %v1122
  %v1421 = vpop.f32.mrf.mxu0
  %v1422 = vadd.f32 0.0, %v1421
  %v1423 = vpop.f32.mrf.mxu0
  %v1424 = vpop.f32.mrf.mxu0
  %v1425 = vadd.f32 0.0, %v1424
  %v1426 = vpop.f32.mrf.mxu0
  %1427 = vmatprep.mubr.bf16.mxu0 %v1124
  %1428 = vmatmul.mubr.bf16.gmra.mxu0 %v1123
  %v1429 = vpop.f32.mrf.mxu0
  %v1430 = vadd.f32 0.0, %v1429
  %v1431 = vpop.f32.mrf.mxu0
  %v1432 = vpop.f32.mrf.mxu0
  %v1433 = vadd.f32 0.0, %v1432
  %v1434 = vpop.f32.mrf.mxu0
  %1435 = vmatprep.mubr.bf16.mxu0 %v1125
  %1436 = vmatmul.mubr.bf16.gmra.mxu0 %v1124
  %v1437 = vpop.f32.mrf.mxu0
  %v1438 = vadd.f32 0.0, %v1437
  %v1439 = vpop.f32.mrf.mxu0
  %v1440 = vpop.f32.mrf.mxu0
  %v1441 = vadd.f32 0.0, %v1440
  %v1442 = vpop.f32.mrf.mxu0
  %1443 = vmatprep.mubr.bf16.mxu0 %v1126
  %1444 = vmatmul.mubr.bf16.gmra.mxu0 %v1125
  %v1445 = vpop.f32.mrf.mxu0
  %v1446 = vadd.f32 0.0, %v1445
  %v1447 = vpop.f32.mrf.mxu0
  %v1448 = vpop.f32.mrf.mxu0
  %v1449 = vadd.f32 0.0, %v1448
  %v1450 = vpop.f32.mrf.mxu0
  %1451 = vmatprep.mubr.bf16.mxu0 %v1127
  %1452 = vmatmul.mubr.bf16.gmra.mxu0 %v1126
  %v1453 = vpop.f32.mrf.mxu0
  %v1454 = vadd.f32 0.0, %v1453
  %v1455 = vpop.f32.mrf.mxu0
  %v1456 = vpop.f32.mrf.mxu0
  %v1457 = vadd.f32 0.0, %v1456
  %v1458 = vpop.f32.mrf.mxu0
  %1459 = vmatprep.mubr.bf16.mxu0 %v1128
  %1460 = vmatmul.mubr.bf16.gmra.mxu0 %v1127
  %v1461 = vpop.f32.mrf.mxu0
  %v1462 = vadd.f32 0.0, %v1461
  %v1463 = vpop.f32.mrf.mxu0
  %v1464 = vpop.f32.mrf.mxu0
  %v1465 = vadd.f32 0.0, %v1464
  %v1466 = vpop.f32.mrf.mxu0
  %1467 = vmatprep.mubr.bf16.mxu0 %v1129
  %1468 = vmatmul.mubr.bf16.gmra.mxu0 %v1128
  %v1469 = vpop.f32.mrf.mxu0
  %v1470 = vadd.f32 0.0, %v1469
  %v1471 = vpop.f32.mrf.mxu0
  %v1472 = vpop.f32.mrf.mxu0
  %v1473 = vadd.f32 0.0, %v1472
  %v1474 = vpop.f32.mrf.mxu0
  %1475 = vmatprep.mubr.bf16.mxu0 %v1130
  %1476 = vmatmul.mubr.bf16.gmra.mxu0 %v1129
  %v1477 = vpop.f32.mrf.mxu0
  %v1478 = vadd.f32 0.0, %v1477
  %v1479 = vpop.f32.mrf.mxu0
  %v1480 = vpop.f32.mrf.mxu0
  %v1481 = vadd.f32 0.0, %v1480
  %v1482 = vpop.f32.mrf.mxu0
  %1483 = vmatprep.mubr.bf16.mxu0 %v1131
  %1484 = vmatmul.mubr.bf16.gmra.mxu0 %v1130
  %v1485 = vpop.f32.mrf.mxu0
  %v1486 = vadd.f32 0.0, %v1485
  %v1487 = vpop.f32.mrf.mxu0
  %v1488 = vpop.f32.mrf.mxu0
  %v1489 = vadd.f32 0.0, %v1488
  %v1490 = vpop.f32.mrf.mxu0
  %1491 = vmatprep.mubr.bf16.mxu0 %v1132
  %1492 = vmatmul.mubr.bf16.gmra.mxu0 %v1131
  %v1493 = vpop.f32.mrf.mxu0
  %v1494 = vadd.f32 0.0, %v1493
  %v1495 = vpop.f32.mrf.mxu0
  %v1496 = vpop.f32.mrf.mxu0
  %v1497 = vadd.f32 0.0, %v1496
  %v1498 = vpop.f32.mrf.mxu0
  %1499 = vmatprep.mubr.bf16.mxu0 %v1133
  %1500 = vmatmul.mubr.bf16.gmra.mxu0 %v1132
  %v1501 = vpop.f32.mrf.mxu0
  %v1502 = vadd.f32 0.0, %v1501
  %v1503 = vpop.f32.mrf.mxu0
  %v1504 = vpop.f32.mrf.mxu0
  %v1505 = vadd.f32 0.0, %v1504
  %v1506 = vpop.f32.mrf.mxu0
  %1507 = vmatprep.mubr.bf16.mxu0 %v1134
  %1508 = vmatmul.mubr.bf16.gmra.mxu0 %v1133
  %v1509 = vpop.f32.mrf.mxu0
  %v1510 = vadd.f32 0.0, %v1509
  %v1511 = vpop.f32.mrf.mxu0
  %v1512 = vpop.f32.mrf.mxu0
  %v1513 = vadd.f32 0.0, %v1512
  %v1514 = vpop.f32.mrf.mxu0
  %1515 = vmatprep.mubr.bf16.mxu0 %v1135
  %1516 = vmatmul.mubr.bf16.gmra.mxu0 %v1134
  %v1517 = vpop.f32.mrf.mxu0
  %v1518 = vadd.f32 0.0, %v1517
  %v1519 = vpop.f32.mrf.mxu0
  %v1520 = vpop.f32.mrf.mxu0
  %v1521 = vadd.f32 0.0, %v1520
  %v1522 = vpop.f32.mrf.mxu0
  %1523 = vmatprep.mubr.bf16.mxu0 %v1136
  %1524 = vmatmul.mubr.bf16.gmra.mxu0 %v1135
  %v1525 = vpop.f32.mrf.mxu0
  %v1526 = vadd.f32 0.0, %v1525
  %v1527 = vpop.f32.mrf.mxu0
  %v1528 = vpop.f32.mrf.mxu0
  %v1529 = vadd.f32 0.0, %v1528
  %v1530 = vpop.f32.mrf.mxu0
  %1531 = vmatprep.mubr.bf16.mxu0 %v1137
  %1532 = vmatmul.mubr.bf16.gmra.mxu0 %v1136
  %v1533 = vpop.f32.mrf.mxu0
  %v1534 = vadd.f32 0.0, %v1533
  %v1535 = vpop.f32.mrf.mxu0
  %v1536 = vpop.f32.mrf.mxu0
  %v1537 = vadd.f32 0.0, %v1536
  %v1538 = vpop.f32.mrf.mxu0
  %1539 = vmatprep.mubr.bf16.mxu0 %v1186
  %1540 = vmatmul.mubr.bf16.gmra.mxu0 %v1137
  %v1541 = vpop.f32.mrf.mxu0
  %v1542 = vadd.f32 0.0, %v1541
  %v1543 = vpop.f32.mrf.mxu0
  %v1544 = vpop.f32.mrf.mxu0
  %v1545 = vadd.f32 0.0, %v1544
  %v1546 = vpop.f32.mrf.mxu0
  %1547 = vmatprep.mubr.bf16.mxu0 %v1139
  %1548 = vmatmul.mubr.bf16.gmra.mxu0 %v1138
  %v1549 = vpop.f32.mrf.mxu0
  %v1550 = vadd.f32 0.0, %v1549
  %v1551 = vpop.f32.mrf.mxu0
  %v1552 = vpop.f32.mrf.mxu0
  %v1553 = vadd.f32 0.0, %v1552
  %v1554 = vpop.f32.mrf.mxu0
  %1555 = vmatprep.mubr.bf16.mxu0 %v1140
  %1556 = vmatmul.mubr.bf16.gmra.mxu0 %v1139
  %v1557 = vpop.f32.mrf.mxu0
  %v1558 = vadd.f32 0.0, %v1557
  %v1559 = vpop.f32.mrf.mxu0
  %v1560 = vpop.f32.mrf.mxu0
  %v1561 = vadd.f32 0.0, %v1560
  %v1562 = vpop.f32.mrf.mxu0
  %1563 = vmatprep.mubr.bf16.mxu0 %v1141
  %1564 = vmatmul.mubr.bf16.gmra.mxu0 %v1140
  %v1565 = vpop.f32.mrf.mxu0
  %v1566 = vadd.f32 0.0, %v1565
  %v1567 = vpop.f32.mrf.mxu0
  %v1568 = vpop.f32.mrf.mxu0
  %v1569 = vadd.f32 0.0, %v1568
  %v1570 = vpop.f32.mrf.mxu0
  %1571 = vmatprep.mubr.bf16.mxu0 %v1142
  %1572 = vmatmul.mubr.bf16.gmra.mxu0 %v1141
  %v1573 = vpop.f32.mrf.mxu0
  %v1574 = vadd.f32 0.0, %v1573
  %v1575 = vpop.f32.mrf.mxu0
  %v1576 = vpop.f32.mrf.mxu0
  %v1577 = vadd.f32 0.0, %v1576
  %v1578 = vpop.f32.mrf.mxu0
  %1579 = vmatprep.mubr.bf16.mxu0 %v1143
  %1580 = vmatmul.mubr.bf16.gmra.mxu0 %v1142
  %v1581 = vpop.f32.mrf.mxu0
  %v1582 = vadd.f32 0.0, %v1581
  %v1583 = vpop.f32.mrf.mxu0
  %v1584 = vpop.f32.mrf.mxu0
  %v1585 = vadd.f32 0.0, %v1584
  %v1586 = vpop.f32.mrf.mxu0
  %1587 = vmatprep.mubr.bf16.mxu0 %v1144
  %1588 = vmatmul.mubr.bf16.gmra.mxu0 %v1143
  %v1589 = vpop.f32.mrf.mxu0
  %v1590 = vadd.f32 0.0, %v1589
  %v1591 = vpop.f32.mrf.mxu0
  %v1592 = vpop.f32.mrf.mxu0
  %v1593 = vadd.f32 0.0, %v1592
  %v1594 = vpop.f32.mrf.mxu0
  %1595 = vmatprep.mubr.bf16.mxu0 %v1145
  %1596 = vmatmul.mubr.bf16.gmra.mxu0 %v1144
  %v1597 = vpop.f32.mrf.mxu0
  %v1598 = vadd.f32 0.0, %v1597
  %v1599 = vpop.f32.mrf.mxu0
  %v1600 = vpop.f32.mrf.mxu0
  %v1601 = vadd.f32 0.0, %v1600
  %v1602 = vpop.f32.mrf.mxu0
  %1603 = vmatprep.mubr.bf16.mxu0 %v1146
  %1604 = vmatmul.mubr.bf16.gmra.mxu0 %v1145
  %v1605 = vpop.f32.mrf.mxu0
  %v1606 = vadd.f32 0.0, %v1605
  %v1607 = vpop.f32.mrf.mxu0
  %v1608 = vpop.f32.mrf.mxu0
  %v1609 = vadd.f32 0.0, %v1608
  %v1610 = vpop.f32.mrf.mxu0
  %1611 = vmatprep.mubr.bf16.mxu0 %v1147
  %1612 = vmatmul.mubr.bf16.gmra.mxu0 %v1146
  %v1613 = vpop.f32.mrf.mxu0
  %v1614 = vadd.f32 0.0, %v1613
  %v1615 = vpop.f32.mrf.mxu0
  %v1616 = vpop.f32.mrf.mxu0
  %v1617 = vadd.f32 0.0, %v1616
  %v1618 = vpop.f32.mrf.mxu0
  %1619 = vmatprep.mubr.bf16.mxu0 %v1148
  %1620 = vmatmul.mubr.bf16.gmra.mxu0 %v1147
  %v1621 = vpop.f32.mrf.mxu0
  %v1622 = vadd.f32 0.0, %v1621
  %v1623 = vpop.f32.mrf.mxu0
  %v1624 = vpop.f32.mrf.mxu0
  %v1625 = vadd.f32 0.0, %v1624
  %v1626 = vpop.f32.mrf.mxu0
  %1627 = vmatprep.mubr.bf16.mxu0 %v1149
  %1628 = vmatmul.mubr.bf16.gmra.mxu0 %v1148
  %v1629 = vpop.f32.mrf.mxu0
  %v1630 = vadd.f32 0.0, %v1629
  %v1631 = vpop.f32.mrf.mxu0
  %v1632 = vpop.f32.mrf.mxu0
  %v1633 = vadd.f32 0.0, %v1632
  %v1634 = vpop.f32.mrf.mxu0
  %1635 = vmatprep.mubr.bf16.mxu0 %v1150
  %1636 = vmatmul.mubr.bf16.gmra.mxu0 %v1149
  %v1637 = vpop.f32.mrf.mxu0
  %v1638 = vadd.f32 0.0, %v1637
  %v1639 = vpop.f32.mrf.mxu0
  %v1640 = vpop.f32.mrf.mxu0
  %v1641 = vadd.f32 0.0, %v1640
  %v1642 = vpop.f32.mrf.mxu0
  %1643 = vmatprep.mubr.bf16.mxu0 %v1151
  %1644 = vmatmul.mubr.bf16.gmra.mxu0 %v1150
  %v1645 = vpop.f32.mrf.mxu0
  %v1646 = vadd.f32 0.0, %v1645
  %v1647 = vpop.f32.mrf.mxu0
  %v1648 = vpop.f32.mrf.mxu0
  %v1649 = vadd.f32 0.0, %v1648
  %v1650 = vpop.f32.mrf.mxu0
  %1651 = vmatprep.mubr.bf16.mxu0 %v1152
  %1652 = vmatmul.mubr.bf16.gmra.mxu0 %v1151
  %v1653 = vpop.f32.mrf.mxu0
  %v1654 = vadd.f32 0.0, %v1653
  %v1655 = vpop.f32.mrf.mxu0
  %v1656 = vpop.f32.mrf.mxu0
  %v1657 = vadd.f32 0.0, %v1656
  %v1658 = vpop.f32.mrf.mxu0
  %1659 = vmatprep.mubr.bf16.mxu0 %v1153
  %1660 = vmatmul.mubr.bf16.gmra.mxu0 %v1152
  %v1661 = vpop.f32.mrf.mxu0
  %v1662 = vadd.f32 0.0, %v1661
  %v1663 = vpop.f32.mrf.mxu0
  %v1664 = vpop.f32.mrf.mxu0
  %v1665 = vadd.f32 0.0, %v1664
  %v1666 = vpop.f32.mrf.mxu0
  %1667 = vmatprep.mubr.bf16.mxu0 %v1187
  %1668 = vmatmul.mubr.bf16.gmra.mxu0 %v1153
  %v1669 = vpop.f32.mrf.mxu0
  %v1670 = vadd.f32 0.0, %v1669
  %v1671 = vpop.f32.mrf.mxu0
  %v1672 = vpop.f32.mrf.mxu0
  %v1673 = vadd.f32 0.0, %v1672
  %v1674 = vpop.f32.mrf.mxu0
  %1675 = vdwg.mxu0
  %1676 = vmatprep.subr.bf16.mxu0 0
  %1677 = vmatpush1.bf16.msra.mxu0 %v1362
  %1678 = vmatprep.subr.bf16.mxu0 0
  %1679 = vmatpush1.bf16.msra.mxu0 %v1361
  %1680 = vmatprep.subr.bf16.mxu0 0
  %1681 = vmatpush1.bf16.msra.mxu0 %v1360
  %1682 = vmatprep.subr.bf16.mxu0 0
  %1683 = vmatpush1.bf16.msra.mxu0 %v1359
  %1684 = vmatprep.subr.bf16.mxu0 0
  %1685 = vmatpush1.bf16.msra.mxu0 %v1358
  %1686 = vmatprep.subr.bf16.mxu0 0
  %1687 = vmatpush1.bf16.msra.mxu0 %v1357
  %1688 = vmatprep.subr.bf16.mxu0 0
  %1689 = vmatpush1.bf16.msra.mxu0 %v1356
  %1690 = vmatprep.subr.bf16.mxu0 0
  %1691 = vmatpush1.bf16.msra.mxu0 %v1355
  %1692 = vmatprep.subr.bf16.mxu0 0
  %1693 = vmatpush2.bf16.msra.mxu0 0
  %1694 = vmatprep.subr.bf16.mxu0 0
  %1695 = vmatpush2.bf16.msra.mxu0 0
  %1696 = vmatprep.subr.bf16.mxu0 0
  %1697 = vmatpush2.bf16.msra.mxu0 0
  %1698 = vmatprep.subr.bf16.mxu0 0
  %1699 = vmatpush2.bf16.msra.mxu0 0
  %1700 = vmatprep.subr.bf16.mxu0 0
  %1701 = vmatpush2.bf16.msra.mxu0 0
  %1702 = vmatprep.subr.bf16.mxu0 0
  %1703 = vmatpush2.bf16.msra.mxu0 0
  %1704 = vmatprep.subr.bf16.mxu0 0
  %1705 = vmatpush2.bf16.msra.mxu0 0
  %1706 = vmatprep.subr.bf16.mxu0 0
  %1707 = vmatpush2.bf16.msra.mxu0 0
  %1708 = vmatprep.mubr.bf16.mxu0 0
  %1709 = vmatmul.mubr.bf16.gmra.mxu0 %v1124
  %v1710 = vpop.f32.mrf.mxu0
  %v1711 = vadd.f32 %v1422, %v1710
  %v1712 = vpop.f32.mrf.mxu0
  %v1713 = vpop.f32.mrf.mxu0
  %v1714 = vadd.f32 %v1425, %v1713
  %v1715 = vpop.f32.mrf.mxu0
  %1716 = vmatprep.mubr.bf16.mxu0 0
  %1717 = vmatmul.mubr.bf16.gmra.mxu0 %v1125
  %v1718 = vpop.f32.mrf.mxu0
  %v1719 = vadd.f32 %v1430, %v1718
  %v1720 = vpop.f32.mrf.mxu0
  %v1721 = vpop.f32.mrf.mxu0
  %v1722 = vadd.f32 %v1433, %v1721
  %v1723 = vpop.f32.mrf.mxu0
  %1724 = vmatprep.mubr.bf16.mxu0 0
  %1725 = vmatmul.mubr.bf16.gmra.mxu0 %v1126
  %v1726 = vpop.f32.mrf.mxu0
  %v1727 = vadd.f32 %v1438, %v1726
  %v1728 = vpop.f32.mrf.mxu0
  %v1729 = vpop.f32.mrf.mxu0
  %v1730 = vadd.f32 %v1441, %v1729
  %v1731 = vpop.f32.mrf.mxu0
  %1732 = vmatprep.mubr.bf16.mxu0 0
  %1733 = vmatmul.mubr.bf16.gmra.mxu0 %v1127
  %v1734 = vpop.f32.mrf.mxu0
  %v1735 = vadd.f32 %v1446, %v1734
  %v1736 = vpop.f32.mrf.mxu0
  %v1737 = vpop.f32.mrf.mxu0
  %v1738 = vadd.f32 %v1449, %v1737
  %v1739 = vpop.f32.mrf.mxu0
  %1740 = vmatprep.mubr.bf16.mxu0 0
  %1741 = vmatmul.mubr.bf16.gmra.mxu0 %v1128
  %v1742 = vpop.f32.mrf.mxu0
  %v1743 = vadd.f32 %v1454, %v1742
  %v1744 = vpop.f32.mrf.mxu0
  %v1745 = vpop.f32.mrf.mxu0
  %v1746 = vadd.f32 %v1457, %v1745
  %v1747 = vpop.f32.mrf.mxu0
  %1748 = vmatprep.mubr.bf16.mxu0 0
  %1749 = vmatmul.mubr.bf16.gmra.mxu0 %v1129
  %v1750 = vpop.f32.mrf.mxu0
  %v1751 = vadd.f32 %v1462, %v1750
  %v1752 = vpop.f32.mrf.mxu0
  %v1753 = vpop.f32.mrf.mxu0
  %v1754 = vadd.f32 %v1465, %v1753
  %v1755 = vpop.f32.mrf.mxu0
  %1756 = vmatprep.mubr.bf16.mxu0 0
  %1757 = vmatmul.mubr.bf16.gmra.mxu0 %v1130
  %v1758 = vpop.f32.mrf.mxu0
  %v1759 = vadd.f32 %v1470, %v1758
  %v1760 = vpop.f32.mrf.mxu0
  %v1761 = vpop.f32.mrf.mxu0
  %v1762 = vadd.f32 %v1473, %v1761
  %v1763 = vpop.f32.mrf.mxu0
  %1764 = vmatprep.mubr.bf16.mxu0 0
  %1765 = vmatmul.mubr.bf16.gmra.mxu0 %v1131
  %v1766 = vpop.f32.mrf.mxu0
  %v1767 = vadd.f32 %v1478, %v1766
  %v1768 = vpop.f32.mrf.mxu0
  %v1769 = vpop.f32.mrf.mxu0
  %v1770 = vadd.f32 %v1481, %v1769
  %v1771 = vpop.f32.mrf.mxu0
  %1772 = vmatprep.mubr.bf16.mxu0 0
  %1773 = vmatmul.mubr.bf16.gmra.mxu0 %v1132
  %v1774 = vpop.f32.mrf.mxu0
  %v1775 = vadd.f32 %v1486, %v1774
  %v1776 = vpop.f32.mrf.mxu0
  %v1777 = vpop.f32.mrf.mxu0
  %v1778 = vadd.f32 %v1489, %v1777
  %v1779 = vpop.f32.mrf.mxu0
  %1780 = vmatprep.mubr.bf16.mxu0 0
  %1781 = vmatmul.mubr.bf16.gmra.mxu0 %v1133
  %v1782 = vpop.f32.mrf.mxu0
  %v1783 = vadd.f32 %v1494, %v1782
  %v1784 = vpop.f32.mrf.mxu0
  %v1785 = vpop.f32.mrf.mxu0
  %v1786 = vadd.f32 %v1497, %v1785
  %v1787 = vpop.f32.mrf.mxu0
  %1788 = vmatprep.mubr.bf16.mxu0 0
  %1789 = vmatmul.mubr.bf16.gmra.mxu0 %v1134
  %v1790 = vpop.f32.mrf.mxu0
  %v1791 = vadd.f32 %v1502, %v1790
  %v1792 = vpop.f32.mrf.mxu0
  %v1793 = vpop.f32.mrf.mxu0
  %v1794 = vadd.f32 %v1505, %v1793
  %v1795 = vpop.f32.mrf.mxu0
  %1796 = vmatprep.mubr.bf16.mxu0 0
  %1797 = vmatmul.mubr.bf16.gmra.mxu0 %v1135
  %v1798 = vpop.f32.mrf.mxu0
  %v1799 = vadd.f32 %v1510, %v1798
  %v1800 = vpop.f32.mrf.mxu0
  %v1801 = vpop.f32.mrf.mxu0
  %v1802 = vadd.f32 %v1513, %v1801
  %v1803 = vpop.f32.mrf.mxu0
  %1804 = vmatprep.mubr.bf16.mxu0 0
  %1805 = vmatmul.mubr.bf16.gmra.mxu0 %v1136
  %v1806 = vpop.f32.mrf.mxu0
  %v1807 = vadd.f32 %v1518, %v1806
  %v1808 = vpop.f32.mrf.mxu0
  %v1809 = vpop.f32.mrf.mxu0
  %v1810 = vadd.f32 %v1521, %v1809
  %v1811 = vpop.f32.mrf.mxu0
  %1812 = vmatprep.mubr.bf16.mxu0 0
  %1813 = vmatmul.mubr.bf16.gmra.mxu0 %v1137
  %v1814 = vpop.f32.mrf.mxu0
  %v1815 = vadd.f32 %v1526, %v1814
  %v1816 = vpop.f32.mrf.mxu0
  %v1817 = vpop.f32.mrf.mxu0
  %v1818 = vadd.f32 %v1529, %v1817
  %v1819 = vpop.f32.mrf.mxu0
  %1820 = vmatprep.mubr.bf16.mxu0 0
  %1821 = vmatmul.mubr.bf16.gmra.mxu0 %v1186
  %v1822 = vpop.f32.mrf.mxu0
  %v1823 = vadd.f32 %v1534, %v1822
  %v1824 = vpop.f32.mrf.mxu0
  %v1825 = vpop.f32.mrf.mxu0
  %v1826 = vadd.f32 %v1537, %v1825
  %v1827 = vpop.f32.mrf.mxu0
  %1828 = vmatprep.mubr.bf16.mxu0 0
  %1829 = vmatmul.mubr.bf16.gmra.mxu0 %v1190
  %v1830 = vpop.f32.mrf.mxu0
  %v1831 = vadd.f32 %v1542, %v1830
  %v1832 = vpop.f32.mrf.mxu0
  %v1833 = vpop.f32.mrf.mxu0
  %v1834 = vadd.f32 %v1545, %v1833
  %v1835 = vpop.f32.mrf.mxu0
  %1836 = vmatprep.mubr.bf16.mxu0 0
  %1837 = vmatmul.mubr.bf16.gmra.mxu0 %v1140
  %v1838 = vpop.f32.mrf.mxu0
  %v1839 = vadd.f32 %v1550, %v1838
  %v1840 = vpop.f32.mrf.mxu0
  %v1841 = vpop.f32.mrf.mxu0
  %v1842 = vadd.f32 %v1553, %v1841
  %v1843 = vpop.f32.mrf.mxu0
  %1844 = vmatprep.mubr.bf16.mxu0 0
  %1845 = vmatmul.mubr.bf16.gmra.mxu0 %v1141
  %v1846 = vpop.f32.mrf.mxu0
  %v1847 = vadd.f32 %v1558, %v1846
  %v1848 = vpop.f32.mrf.mxu0
  %v1849 = vpop.f32.mrf.mxu0
  %v1850 = vadd.f32 %v1561, %v1849
  %v1851 = vpop.f32.mrf.mxu0
  %1852 = vmatprep.mubr.bf16.mxu0 0
  %1853 = vmatmul.mubr.bf16.gmra.mxu0 %v1142
  %v1854 = vpop.f32.mrf.mxu0
  %v1855 = vadd.f32 %v1566, %v1854
  %v1856 = vpop.f32.mrf.mxu0
  %v1857 = vpop.f32.mrf.mxu0
  %v1858 = vadd.f32 %v1569, %v1857
  %v1859 = vpop.f32.mrf.mxu0
  %1860 = vmatprep.mubr.bf16.mxu0 0
  %1861 = vmatmul.mubr.bf16.gmra.mxu0 %v1143
  %v1862 = vpop.f32.mrf.mxu0
  %v1863 = vadd.f32 %v1574, %v1862
  %v1864 = vpop.f32.mrf.mxu0
  %v1865 = vpop.f32.mrf.mxu0
  %v1866 = vadd.f32 %v1577, %v1865
  %v1867 = vpop.f32.mrf.mxu0
  %1868 = vmatprep.mubr.bf16.mxu0 0
  %1869 = vmatmul.mubr.bf16.gmra.mxu0 %v1144
  %v1870 = vpop.f32.mrf.mxu0
  %v1871 = vadd.f32 %v1582, %v1870
  %v1872 = vpop.f32.mrf.mxu0
  %v1873 = vpop.f32.mrf.mxu0
  %v1874 = vadd.f32 %v1585, %v1873
  %v1875 = vpop.f32.mrf.mxu0
  %1876 = vmatprep.mubr.bf16.mxu0 0
  %1877 = vmatmul.mubr.bf16.gmra.mxu0 %v1145
  %v1878 = vpop.f32.mrf.mxu0
  %v1879 = vadd.f32 %v1590, %v1878
  %v1880 = vpop.f32.mrf.mxu0
  %v1881 = vpop.f32.mrf.mxu0
  %v1882 = vadd.f32 %v1593, %v1881
  %v1883 = vpop.f32.mrf.mxu0
  %1884 = vmatprep.mubr.bf16.mxu0 0
  %1885 = vmatmul.mubr.bf16.gmra.mxu0 %v1146
  %v1886 = vpop.f32.mrf.mxu0
  %v1887 = vadd.f32 %v1598, %v1886
  %v1888 = vpop.f32.mrf.mxu0
  %v1889 = vpop.f32.mrf.mxu0
  %v1890 = vadd.f32 %v1601, %v1889
  %v1891 = vpop.f32.mrf.mxu0
  %1892 = vmatprep.mubr.bf16.mxu0 0
  %1893 = vmatmul.mubr.bf16.gmra.mxu0 %v1147
  %v1894 = vpop.f32.mrf.mxu0
  %v1895 = vadd.f32 %v1606, %v1894
  %v1896 = vpop.f32.mrf.mxu0
  %v1897 = vpop.f32.mrf.mxu0
  %v1898 = vadd.f32 %v1609, %v1897
  %v1899 = vpop.f32.mrf.mxu0
  %1900 = vmatprep.mubr.bf16.mxu0 0
  %1901 = vmatmul.mubr.bf16.gmra.mxu0 %v1148
  %v1902 = vpop.f32.mrf.mxu0
  %v1903 = vadd.f32 %v1614, %v1902
  %v1904 = vpop.f32.mrf.mxu0
  %v1905 = vpop.f32.mrf.mxu0
  %v1906 = vadd.f32 %v1617, %v1905
  %v1907 = vpop.f32.mrf.mxu0
  %1908 = vmatprep.mubr.bf16.mxu0 0
  %1909 = vmatmul.mubr.bf16.gmra.mxu0 %v1149
  %v1910 = vpop.f32.mrf.mxu0
  %v1911 = vadd.f32 %v1622, %v1910
  %v1912 = vpop.f32.mrf.mxu0
  %v1913 = vpop.f32.mrf.mxu0
  %v1914 = vadd.f32 %v1625, %v1913
  %v1915 = vpop.f32.mrf.mxu0
  %1916 = vmatprep.mubr.bf16.mxu0 0
  %1917 = vmatmul.mubr.bf16.gmra.mxu0 %v1150
  %v1918 = vpop.f32.mrf.mxu0
  %v1919 = vadd.f32 %v1630, %v1918
  %v1920 = vpop.f32.mrf.mxu0
  %v1921 = vpop.f32.mrf.mxu0
  %v1922 = vadd.f32 %v1633, %v1921
  %v1923 = vpop.f32.mrf.mxu0
  %1924 = vmatprep.mubr.bf16.mxu0 0
  %1925 = vmatmul.mubr.bf16.gmra.mxu0 %v1151
  %v1926 = vpop.f32.mrf.mxu0
  %v1927 = vadd.f32 %v1638, %v1926
  %v1928 = vpop.f32.mrf.mxu0
  %v1929 = vpop.f32.mrf.mxu0
  %v1930 = vadd.f32 %v1641, %v1929
  %v1931 = vpop.f32.mrf.mxu0
  %1932 = vmatprep.mubr.bf16.mxu0 0
  %1933 = vmatmul.mubr.bf16.gmra.mxu0 %v1152
  %v1934 = vpop.f32.mrf.mxu0
  %v1935 = vadd.f32 %v1646, %v1934
  %v1936 = vpop.f32.mrf.mxu0
  %v1937 = vpop.f32.mrf.mxu0
  %v1938 = vadd.f32 %v1649, %v1937
  %v1939 = vpop.f32.mrf.mxu0
  %1940 = vmatprep.mubr.bf16.mxu0 0
  %1941 = vmatmul.mubr.bf16.gmra.mxu0 %v1153
  %v1942 = vpop.f32.mrf.mxu0
  %v1943 = vadd.f32 %v1654, %v1942
  %v1944 = vpop.f32.mrf.mxu0
  %v1945 = vpop.f32.mrf.mxu0
  %v1946 = vadd.f32 %v1657, %v1945
  %v1947 = vpop.f32.mrf.mxu0
  %1948 = vmatprep.mubr.bf16.mxu0 0
  %1949 = vmatmul.mubr.bf16.gmra.mxu0 %v1187
  %v1950 = vpop.f32.mrf.mxu0
  %v1951 = vadd.f32 %v1662, %v1950
  %v1952 = vpop.f32.mrf.mxu0
  %v1953 = vpop.f32.mrf.mxu0
  %v1954 = vadd.f32 %v1665, %v1953
  %v1955 = vpop.f32.mrf.mxu0
  %1956 = vmatprep.mubr.bf16.mxu0 0
  %1957 = vmatmul.mubr.bf16.gmra.mxu0 %v1191
  %v1958 = vpop.f32.mrf.mxu0
  %v1959 = vadd.f32 %v1670, %v1958
  %v1960 = vpop.f32.mrf.mxu0
  %v1961 = vpop.f32.mrf.mxu0
  %v1962 = vadd.f32 %v1673, %v1961
  %v1963 = vpop.f32.mrf.mxu0
  %1964 = vdwg.mxu0
  %v2013 = vunpack.c.l.b16 %v1074
  %v2014 = vunpack.c.l.b16 %v1075
  %v2015 = vunpack.c.l.b16 %v1076
  %v2016 = vunpack.c.l.b16 %v1077
  %v2017 = vunpack.c.l.b16 %v1078
  %v2018 = vunpack.c.l.b16 %v1079
  %v2019 = vunpack.c.l.b16 %v1080
  %v2020 = vunpack.c.l.b16 %v1081
  %v2021 = vunpack.c.l.b16 %v1082
  %v2022 = vunpack.c.l.b16 %v1083
  %v2023 = vunpack.c.l.b16 %v1084
  %v2024 = vunpack.c.l.b16 %v1085
  %v2025 = vunpack.c.l.b16 %v1086
  %v2026 = vunpack.c.l.b16 %v1087
  %v2027 = vunpack.c.l.b16 %v1088
  %v2028 = vunpack.c.l.b16 %v1089
  %v2029 = vunpack.c.l.b16 %v1090
  %v2030 = vunpack.c.l.b16 %v1091
  %v2031 = vunpack.c.l.b16 %v1092
  %v2032 = vunpack.c.l.b16 %v1093
  %v2033 = vunpack.c.l.b16 %v1094
  %v2034 = vunpack.c.l.b16 %v1095
  %v2035 = vunpack.c.l.b16 %v1096
  %v2036 = vunpack.c.l.b16 %v1097
  %v2037 = vunpack.c.l.b16 %v1098
  %v2038 = vunpack.c.l.b16 %v1099
  %v2039 = vunpack.c.l.b16 %v1100
  %v2040 = vunpack.c.l.b16 %v1101
  %v2041 = vunpack.c.l.b16 %v1102
  %v2042 = vunpack.c.l.b16 %v1103
  %v2043 = vunpack.c.l.b16 %v1104
  %v2044 = vunpack.c.l.b16 %v1105
  %v2045 = vunpack.c.l.b16 %v1106
  %v2046 = vunpack.c.l.b16 %v1107
  %v2047 = vunpack.c.l.b16 %v1108
  %v2048 = vunpack.c.l.b16 %v1109
  %v2049 = vunpack.c.l.b16 %v1110
  %v2050 = vunpack.c.l.b16 %v1111
  %v2051 = vunpack.c.l.b16 %v1112
  %v2052 = vunpack.c.l.b16 %v1113
  %v2053 = vunpack.c.l.b16 %v1114
  %v2054 = vunpack.c.l.b16 %v1115
  %v2055 = vunpack.c.l.b16 %v1116
  %v2056 = vunpack.c.l.b16 %v1117
  %v2057 = vunpack.c.l.b16 %v1118
  %v2058 = vunpack.c.l.b16 %v1119
  %v2059 = vunpack.c.l.b16 %v1120
  %v2060 = vunpack.c.l.b16 %v1121
  %v2061 = vpack.c.b16 %v2014, %v2013
  %v2062 = vpack.c.b16 %v2016, %v2015
  %v2063 = vpack.c.b16 %v2018, %v2017
  %v2064 = vpack.c.b16 %v2020, %v2019
  %v2065 = vpack.c.b16 %v2022, %v2021
  %v2066 = vpack.c.b16 %v2024, %v2023
  %v2067 = vpack.c.b16 %v2026, %v2025
  %v2068 = vpack.c.b16 %v2028, %v2027
  %v2069 = vpack.c.b16 %v2030, %v2029
  %v2070 = vpack.c.b16 %v2032, %v2031
  %v2071 = vpack.c.b16 %v2034, %v2033
  %v2072 = vpack.c.b16 %v2036, %v2035
  %v2073 = vpack.c.b16 %v2038, %v2037
  %v2074 = vpack.c.b16 %v2040, %v2039
  %v2075 = vpack.c.b16 %v2042, %v2041
  %v2076 = vpack.c.b16 %v2044, %v2043
  %v2077 = vpack.c.b16 %v2046, %v2045
  %v2078 = vpack.c.b16 %v2048, %v2047
  %v2079 = vpack.c.b16 %v2050, %v2049
  %v2080 = vpack.c.b16 %v2052, %v2051
  %v2081 = vpack.c.b16 %v2054, %v2053
  %v2082 = vpack.c.b16 %v2056, %v2055
  %v2083 = vpack.c.b16 %v2058, %v2057
  %v2084 = vpack.c.b16 %v2060, %v2059
  %2109 = vmatprep.subr.bf16.mxu0 0
  %2110 = vmatpush1.bf16.msra.mxu0 %v2068
  %2111 = vmatprep.subr.bf16.mxu0 0
  %2112 = vmatpush1.bf16.msra.mxu0 %v2067
  %2113 = vmatprep.subr.bf16.mxu0 0
  %2114 = vmatpush1.bf16.msra.mxu0 %v2066
  %2115 = vmatprep.subr.bf16.mxu0 0
  %2116 = vmatpush1.bf16.msra.mxu0 %v2065
  %2117 = vmatprep.subr.bf16.mxu0 0
  %2118 = vmatpush1.bf16.msra.mxu0 %v2064
  %2119 = vmatprep.subr.bf16.mxu0 0
  %2120 = vmatpush1.bf16.msra.mxu0 %v2063
  %2121 = vmatprep.subr.bf16.mxu0 0
  %2122 = vmatpush1.bf16.msra.mxu0 %v2062
  %2123 = vmatprep.subr.bf16.mxu0 0
  %2124 = vmatpush1.bf16.msra.mxu0 %v2061
  %2125 = vmatprep.subr.bf16.mxu0 0
  %2126 = vmatpush2.bf16.msra.mxu0 %v2076
  %2127 = vmatprep.subr.bf16.mxu0 0
  %2128 = vmatpush2.bf16.msra.mxu0 %v2075
  %2129 = vmatprep.subr.bf16.mxu0 0
  %2130 = vmatpush2.bf16.msra.mxu0 %v2074
  %2131 = vmatprep.subr.bf16.mxu0 0
  %2132 = vmatpush2.bf16.msra.mxu0 %v2073
  %2133 = vmatprep.subr.bf16.mxu0 0
  %2134 = vmatpush2.bf16.msra.mxu0 %v2072
  %2135 = vmatprep.subr.bf16.mxu0 0
  %2136 = vmatpush2.bf16.msra.mxu0 %v2071
  %2137 = vmatprep.subr.bf16.mxu0 0
  %2138 = vmatpush2.bf16.msra.mxu0 %v2070
  %2139 = vmatprep.subr.bf16.mxu0 0
  %2140 = vmatpush2.bf16.msra.mxu0 %v2069
  %2141 = vmatprep.mubr.bf16.mxu0 %v459
  %2142 = vmatmul.mubr.bf16.gmra.mxu0 %v442
  %v2143 = vpop.f32.mrf.mxu0
  %v2144 = vadd.f32 %v1711, %v2143
  %v2145 = vpop.f32.mrf.mxu0
  %v2146 = vpop.f32.mrf.mxu0
  %v2147 = vadd.f32 %v1714, %v2146
  %v2148 = vpop.f32.mrf.mxu0
  %2149 = vmatprep.mubr.bf16.mxu0 %v476
  %2150 = vmatmul.mubr.bf16.gmra.mxu0 %v459
  %v2151 = vpop.f32.mrf.mxu0
  %v2152 = vadd.f32 %v1719, %v2151
  %v2153 = vpop.f32.mrf.mxu0
  %v2154 = vpop.f32.mrf.mxu0
  %v2155 = vadd.f32 %v1722, %v2154
  %v2156 = vpop.f32.mrf.mxu0
  %2157 = vmatprep.mubr.bf16.mxu0 %v493
  %2158 = vmatmul.mubr.bf16.gmra.mxu0 %v476
  %v2159 = vpop.f32.mrf.mxu0
  %v2160 = vadd.f32 %v1727, %v2159
  %v2161 = vpop.f32.mrf.mxu0
  %v2162 = vpop.f32.mrf.mxu0
  %v2163 = vadd.f32 %v1730, %v2162
  %v2164 = vpop.f32.mrf.mxu0
  %2165 = vmatprep.mubr.bf16.mxu0 %v510
  %2166 = vmatmul.mubr.bf16.gmra.mxu0 %v493
  %v2167 = vpop.f32.mrf.mxu0
  %v2168 = vadd.f32 %v1735, %v2167
  %v2169 = vpop.f32.mrf.mxu0
  %v2170 = vpop.f32.mrf.mxu0
  %v2171 = vadd.f32 %v1738, %v2170
  %v2172 = vpop.f32.mrf.mxu0
  %2173 = vmatprep.mubr.bf16.mxu0 %v527
  %2174 = vmatmul.mubr.bf16.gmra.mxu0 %v510
  %v2175 = vpop.f32.mrf.mxu0
  %v2176 = vadd.f32 %v1743, %v2175
  %v2177 = vpop.f32.mrf.mxu0
  %v2178 = vpop.f32.mrf.mxu0
  %v2179 = vadd.f32 %v1746, %v2178
  %v2180 = vpop.f32.mrf.mxu0
  %2181 = vmatprep.mubr.bf16.mxu0 %v544
  %2182 = vmatmul.mubr.bf16.gmra.mxu0 %v527
  %v2183 = vpop.f32.mrf.mxu0
  %v2184 = vadd.f32 %v1751, %v2183
  %v2185 = vpop.f32.mrf.mxu0
  %v2186 = vpop.f32.mrf.mxu0
  %v2187 = vadd.f32 %v1754, %v2186
  %v2188 = vpop.f32.mrf.mxu0
  %2189 = vmatprep.mubr.bf16.mxu0 %v561
  %2190 = vmatmul.mubr.bf16.gmra.mxu0 %v544
  %v2191 = vpop.f32.mrf.mxu0
  %v2192 = vadd.f32 %v1759, %v2191
  %v2193 = vpop.f32.mrf.mxu0
  %v2194 = vpop.f32.mrf.mxu0
  %v2195 = vadd.f32 %v1762, %v2194
  %v2196 = vpop.f32.mrf.mxu0
  %2197 = vmatprep.mubr.bf16.mxu0 %v578
  %2198 = vmatmul.mubr.bf16.gmra.mxu0 %v561
  %v2199 = vpop.f32.mrf.mxu0
  %v2200 = vadd.f32 %v1767, %v2199
  %v2201 = vpop.f32.mrf.mxu0
  %v2202 = vpop.f32.mrf.mxu0
  %v2203 = vadd.f32 %v1770, %v2202
  %v2204 = vpop.f32.mrf.mxu0
  %2205 = vmatprep.mubr.bf16.mxu0 %v595
  %2206 = vmatmul.mubr.bf16.gmra.mxu0 %v578
  %v2207 = vpop.f32.mrf.mxu0
  %v2208 = vadd.f32 %v1775, %v2207
  %v2209 = vpop.f32.mrf.mxu0
  %v2210 = vpop.f32.mrf.mxu0
  %v2211 = vadd.f32 %v1778, %v2210
  %v2212 = vpop.f32.mrf.mxu0
  %2213 = vmatprep.mubr.bf16.mxu0 %v612
  %2214 = vmatmul.mubr.bf16.gmra.mxu0 %v595
  %v2215 = vpop.f32.mrf.mxu0
  %v2216 = vadd.f32 %v1783, %v2215
  %v2217 = vpop.f32.mrf.mxu0
  %v2218 = vpop.f32.mrf.mxu0
  %v2219 = vadd.f32 %v1786, %v2218
  %v2220 = vpop.f32.mrf.mxu0
  %2221 = vmatprep.mubr.bf16.mxu0 %v629
  %2222 = vmatmul.mubr.bf16.gmra.mxu0 %v612
  %v2223 = vpop.f32.mrf.mxu0
  %v2224 = vadd.f32 %v1791, %v2223
  %v2225 = vpop.f32.mrf.mxu0
  %v2226 = vpop.f32.mrf.mxu0
  %v2227 = vadd.f32 %v1794, %v2226
  %v2228 = vpop.f32.mrf.mxu0
  %2229 = vmatprep.mubr.bf16.mxu0 %v646
  %2230 = vmatmul.mubr.bf16.gmra.mxu0 %v629
  %v2231 = vpop.f32.mrf.mxu0
  %v2232 = vadd.f32 %v1799, %v2231
  %v2233 = vpop.f32.mrf.mxu0
  %v2234 = vpop.f32.mrf.mxu0
  %v2235 = vadd.f32 %v1802, %v2234
  %v2236 = vpop.f32.mrf.mxu0
  %2237 = vmatprep.mubr.bf16.mxu0 %v663
  %2238 = vmatmul.mubr.bf16.gmra.mxu0 %v646
  %v2239 = vpop.f32.mrf.mxu0
  %v2240 = vadd.f32 %v1807, %v2239
  %v2241 = vpop.f32.mrf.mxu0
  %v2242 = vpop.f32.mrf.mxu0
  %v2243 = vadd.f32 %v1810, %v2242
  %v2244 = vpop.f32.mrf.mxu0
  %2245 = vmatprep.mubr.bf16.mxu0 %v680
  %2246 = vmatmul.mubr.bf16.gmra.mxu0 %v663
  %v2247 = vpop.f32.mrf.mxu0
  %v2248 = vadd.f32 %v1815, %v2247
  %v2249 = vpop.f32.mrf.mxu0
  %v2250 = vpop.f32.mrf.mxu0
  %v2251 = vadd.f32 %v1818, %v2250
  %v2252 = vpop.f32.mrf.mxu0
  %2253 = vmatprep.mubr.bf16.mxu0 %v697
  %2254 = vmatmul.mubr.bf16.gmra.mxu0 %v680
  %v2255 = vpop.f32.mrf.mxu0
  %v2256 = vadd.f32 %v1823, %v2255
  %v2257 = vpop.f32.mrf.mxu0
  %v2258 = vpop.f32.mrf.mxu0
  %v2259 = vadd.f32 %v1826, %v2258
  %v2260 = vpop.f32.mrf.mxu0
  %2261 = vmatprep.mubr.bf16.mxu0 %v714
  %2262 = vmatmul.mubr.bf16.gmra.mxu0 %v697
  %v2263 = vpop.f32.mrf.mxu0
  %v2264 = vadd.f32 %v1831, %v2263
  %v2265 = vpop.f32.mrf.mxu0
  %v2266 = vpop.f32.mrf.mxu0
  %v2267 = vadd.f32 %v1834, %v2266
  %v2268 = vpop.f32.mrf.mxu0
  %2269 = vmatprep.mubr.bf16.mxu0 %v765
  %2270 = vmatmul.mubr.bf16.gmra.mxu0 %v748
  %v2271 = vpop.f32.mrf.mxu0
  %v2272 = vadd.f32 %v1839, %v2271
  %v2273 = vpop.f32.mrf.mxu0
  %v2274 = vpop.f32.mrf.mxu0
  %v2275 = vadd.f32 %v1842, %v2274
  %v2276 = vpop.f32.mrf.mxu0
  %2277 = vmatprep.mubr.bf16.mxu0 %v782
  %2278 = vmatmul.mubr.bf16.gmra.mxu0 %v765
  %v2279 = vpop.f32.mrf.mxu0
  %v2280 = vadd.f32 %v1847, %v2279
  %v2281 = vpop.f32.mrf.mxu0
  %v2282 = vpop.f32.mrf.mxu0
  %v2283 = vadd.f32 %v1850, %v2282
  %v2284 = vpop.f32.mrf.mxu0
  %2285 = vmatprep.mubr.bf16.mxu0 %v799
  %2286 = vmatmul.mubr.bf16.gmra.mxu0 %v782
  %v2287 = vpop.f32.mrf.mxu0
  %v2288 = vadd.f32 %v1855, %v2287
  %v2289 = vpop.f32.mrf.mxu0
  %v2290 = vpop.f32.mrf.mxu0
  %v2291 = vadd.f32 %v1858, %v2290
  %v2292 = vpop.f32.mrf.mxu0
  %2293 = vmatprep.mubr.bf16.mxu0 %v816
  %2294 = vmatmul.mubr.bf16.gmra.mxu0 %v799
  %v2295 = vpop.f32.mrf.mxu0
  %v2296 = vadd.f32 %v1863, %v2295
  %v2297 = vpop.f32.mrf.mxu0
  %v2298 = vpop.f32.mrf.mxu0
  %v2299 = vadd.f32 %v1866, %v2298
  %v2300 = vpop.f32.mrf.mxu0
  %2301 = vmatprep.mubr.bf16.mxu0 %v833
  %2302 = vmatmul.mubr.bf16.gmra.mxu0 %v816
  %v2303 = vpop.f32.mrf.mxu0
  %v2304 = vadd.f32 %v1871, %v2303
  %v2305 = vpop.f32.mrf.mxu0
  %v2306 = vpop.f32.mrf.mxu0
  %v2307 = vadd.f32 %v1874, %v2306
  %v2308 = vpop.f32.mrf.mxu0
  %2309 = vmatprep.mubr.bf16.mxu0 %v850
  %2310 = vmatmul.mubr.bf16.gmra.mxu0 %v833
  %v2311 = vpop.f32.mrf.mxu0
  %v2312 = vadd.f32 %v1879, %v2311
  %v2313 = vpop.f32.mrf.mxu0
  %v2314 = vpop.f32.mrf.mxu0
  %v2315 = vadd.f32 %v1882, %v2314
  %v2316 = vpop.f32.mrf.mxu0
  %2317 = vmatprep.mubr.bf16.mxu0 %v867
  %2318 = vmatmul.mubr.bf16.gmra.mxu0 %v850
  %v2319 = vpop.f32.mrf.mxu0
  %v2320 = vadd.f32 %v1887, %v2319
  %v2321 = vpop.f32.mrf.mxu0
  %v2322 = vpop.f32.mrf.mxu0
  %v2323 = vadd.f32 %v1890, %v2322
  %v2324 = vpop.f32.mrf.mxu0
  %2325 = vmatprep.mubr.bf16.mxu0 %v884
  %2326 = vmatmul.mubr.bf16.gmra.mxu0 %v867
  %v2327 = vpop.f32.mrf.mxu0
  %v2328 = vadd.f32 %v1895, %v2327
  %v2329 = vpop.f32.mrf.mxu0
  %v2330 = vpop.f32.mrf.mxu0
  %v2331 = vadd.f32 %v1898, %v2330
  %v2332 = vpop.f32.mrf.mxu0
  %2333 = vmatprep.mubr.bf16.mxu0 %v901
  %2334 = vmatmul.mubr.bf16.gmra.mxu0 %v884
  %v2335 = vpop.f32.mrf.mxu0
  %v2336 = vadd.f32 %v1903, %v2335
  %v2337 = vpop.f32.mrf.mxu0
  %v2338 = vpop.f32.mrf.mxu0
  %v2339 = vadd.f32 %v1906, %v2338
  %v2340 = vpop.f32.mrf.mxu0
  %2341 = vmatprep.mubr.bf16.mxu0 %v918
  %2342 = vmatmul.mubr.bf16.gmra.mxu0 %v901
  %v2343 = vpop.f32.mrf.mxu0
  %v2344 = vadd.f32 %v1911, %v2343
  %v2345 = vpop.f32.mrf.mxu0
  %v2346 = vpop.f32.mrf.mxu0
  %v2347 = vadd.f32 %v1914, %v2346
  %v2348 = vpop.f32.mrf.mxu0
  %2349 = vmatprep.mubr.bf16.mxu0 %v935
  %2350 = vmatmul.mubr.bf16.gmra.mxu0 %v918
  %v2351 = vpop.f32.mrf.mxu0
  %v2352 = vadd.f32 %v1919, %v2351
  %v2353 = vpop.f32.mrf.mxu0
  %v2354 = vpop.f32.mrf.mxu0
  %v2355 = vadd.f32 %v1922, %v2354
  %v2356 = vpop.f32.mrf.mxu0
  %2357 = vmatprep.mubr.bf16.mxu0 %v952
  %2358 = vmatmul.mubr.bf16.gmra.mxu0 %v935
  %v2359 = vpop.f32.mrf.mxu0
  %v2360 = vadd.f32 %v1927, %v2359
  %v2361 = vpop.f32.mrf.mxu0
  %v2362 = vpop.f32.mrf.mxu0
  %v2363 = vadd.f32 %v1930, %v2362
  %v2364 = vpop.f32.mrf.mxu0
  %2365 = vmatprep.mubr.bf16.mxu0 %v969
  %2366 = vmatmul.mubr.bf16.gmra.mxu0 %v952
  %v2367 = vpop.f32.mrf.mxu0
  %v2368 = vadd.f32 %v1935, %v2367
  %v2369 = vpop.f32.mrf.mxu0
  %v2370 = vpop.f32.mrf.mxu0
  %v2371 = vadd.f32 %v1938, %v2370
  %v2372 = vpop.f32.mrf.mxu0
  %2373 = vmatprep.mubr.bf16.mxu0 %v986
  %2374 = vmatmul.mubr.bf16.gmra.mxu0 %v969
  %v2375 = vpop.f32.mrf.mxu0
  %v2376 = vadd.f32 %v1943, %v2375
  %v2377 = vpop.f32.mrf.mxu0
  %v2378 = vpop.f32.mrf.mxu0
  %v2379 = vadd.f32 %v1946, %v2378
  %v2380 = vpop.f32.mrf.mxu0
  %2381 = vmatprep.mubr.bf16.mxu0 %v1003
  %2382 = vmatmul.mubr.bf16.gmra.mxu0 %v986
  %v2383 = vpop.f32.mrf.mxu0
  %v2384 = vadd.f32 %v1951, %v2383
  %v2385 = vpop.f32.mrf.mxu0
  %v2386 = vpop.f32.mrf.mxu0
  %v2387 = vadd.f32 %v1954, %v2386
  %v2388 = vpop.f32.mrf.mxu0
  %2389 = vmatprep.mubr.bf16.mxu0 %v1020
  %2390 = vmatmul.mubr.bf16.gmra.mxu0 %v1003
  %v2391 = vpop.f32.mrf.mxu0
  %v2392 = vadd.f32 %v1959, %v2391
  %v2393 = vpop.f32.mrf.mxu0
  %v2394 = vpop.f32.mrf.mxu0
  %v2395 = vadd.f32 %v1962, %v2394
  %v2396 = vpop.f32.mrf.mxu0
  %2397 = vdwg.mxu0
  %2398 = vmatprep.subr.bf16.mxu0 0
  %2399 = vmatpush1.bf16.msra.mxu0 %v2084
  %2400 = vmatprep.subr.bf16.mxu0 0
  %2401 = vmatpush1.bf16.msra.mxu0 %v2083
  %2402 = vmatprep.subr.bf16.mxu0 0
  %2403 = vmatpush1.bf16.msra.mxu0 %v2082
  %2404 = vmatprep.subr.bf16.mxu0 0
  %2405 = vmatpush1.bf16.msra.mxu0 %v2081
  %2406 = vmatprep.subr.bf16.mxu0 0
  %2407 = vmatpush1.bf16.msra.mxu0 %v2080
  %2408 = vmatprep.subr.bf16.mxu0 0
  %2409 = vmatpush1.bf16.msra.mxu0 %v2079
  %2410 = vmatprep.subr.bf16.mxu0 0
  %2411 = vmatpush1.bf16.msra.mxu0 %v2078
  %2412 = vmatprep.subr.bf16.mxu0 0
  %2413 = vmatpush1.bf16.msra.mxu0 %v2077
  %2414 = vmatprep.subr.bf16.mxu0 0
  %2415 = vmatpush2.bf16.msra.mxu0 0
  %2416 = vmatprep.subr.bf16.mxu0 0
  %2417 = vmatpush2.bf16.msra.mxu0 0
  %2418 = vmatprep.subr.bf16.mxu0 0
  %2419 = vmatpush2.bf16.msra.mxu0 0
  %2420 = vmatprep.subr.bf16.mxu0 0
  %2421 = vmatpush2.bf16.msra.mxu0 0
  %2422 = vmatprep.subr.bf16.mxu0 0
  %2423 = vmatpush2.bf16.msra.mxu0 0
  %2424 = vmatprep.subr.bf16.mxu0 0
  %2425 = vmatpush2.bf16.msra.mxu0 0
  %2426 = vmatprep.subr.bf16.mxu0 0
  %2427 = vmatpush2.bf16.msra.mxu0 0
  %2428 = vmatprep.subr.bf16.mxu0 0
  %2429 = vmatpush2.bf16.msra.mxu0 0
  %2430 = vmatprep.mubr.bf16.mxu0 0
  %2431 = vmatmul.mubr.bf16.gmra.mxu0 %v476
  %v2432 = vpop.f32.mrf.mxu0
  %v2433 = vadd.f32 %v2144, %v2432
  %v2434 = vpop.f32.mrf.mxu0
  %v2435 = vpop.f32.mrf.mxu0
  %v2436 = vadd.f32 %v2147, %v2435
  %v2437 = vpop.f32.mrf.mxu0
  %2438 = vmatprep.mubr.bf16.mxu0 0
  %2439 = vmatmul.mubr.bf16.gmra.mxu0 %v493
  %v2440 = vpop.f32.mrf.mxu0
  %v2441 = vadd.f32 %v2152, %v2440
  %v2442 = vpop.f32.mrf.mxu0
  %v2443 = vpop.f32.mrf.mxu0
  %v2444 = vadd.f32 %v2155, %v2443
  %v2445 = vpop.f32.mrf.mxu0
  %2446 = vmatprep.mubr.bf16.mxu0 0
  %2447 = vmatmul.mubr.bf16.gmra.mxu0 %v510
  %v2448 = vpop.f32.mrf.mxu0
  %v2449 = vadd.f32 %v2160, %v2448
  %v2450 = vpop.f32.mrf.mxu0
  %v2451 = vpop.f32.mrf.mxu0
  %v2452 = vadd.f32 %v2163, %v2451
  %v2453 = vpop.f32.mrf.mxu0
  %2454 = vmatprep.mubr.bf16.mxu0 0
  %2455 = vmatmul.mubr.bf16.gmra.mxu0 %v527
  %v2456 = vpop.f32.mrf.mxu0
  %v2457 = vadd.f32 %v2168, %v2456
  %v2458 = vpop.f32.mrf.mxu0
  %v2459 = vpop.f32.mrf.mxu0
  %v2460 = vadd.f32 %v2171, %v2459
  %v2461 = vpop.f32.mrf.mxu0
  %2462 = vmatprep.mubr.bf16.mxu0 0
  %2463 = vmatmul.mubr.bf16.gmra.mxu0 %v544
  %v2464 = vpop.f32.mrf.mxu0
  %v2465 = vadd.f32 %v2176, %v2464
  %v2466 = vpop.f32.mrf.mxu0
  %v2467 = vpop.f32.mrf.mxu0
  %v2468 = vadd.f32 %v2179, %v2467
  %v2469 = vpop.f32.mrf.mxu0
  %2470 = vmatprep.mubr.bf16.mxu0 0
  %2471 = vmatmul.mubr.bf16.gmra.mxu0 %v561
  %v2472 = vpop.f32.mrf.mxu0
  %v2473 = vadd.f32 %v2184, %v2472
  %v2474 = vpop.f32.mrf.mxu0
  %v2475 = vpop.f32.mrf.mxu0
  %v2476 = vadd.f32 %v2187, %v2475
  %v2477 = vpop.f32.mrf.mxu0
  %2478 = vmatprep.mubr.bf16.mxu0 0
  %2479 = vmatmul.mubr.bf16.gmra.mxu0 %v578
  %v2480 = vpop.f32.mrf.mxu0
  %v2481 = vadd.f32 %v2192, %v2480
  %v2482 = vpop.f32.mrf.mxu0
  %v2483 = vpop.f32.mrf.mxu0
  %v2484 = vadd.f32 %v2195, %v2483
  %v2485 = vpop.f32.mrf.mxu0
  %2486 = vmatprep.mubr.bf16.mxu0 0
  %2487 = vmatmul.mubr.bf16.gmra.mxu0 %v595
  %v2488 = vpop.f32.mrf.mxu0
  %v2489 = vadd.f32 %v2200, %v2488
  %v2490 = vpop.f32.mrf.mxu0
  %v2491 = vpop.f32.mrf.mxu0
  %v2492 = vadd.f32 %v2203, %v2491
  %v2493 = vpop.f32.mrf.mxu0
  %2494 = vmatprep.mubr.bf16.mxu0 0
  %2495 = vmatmul.mubr.bf16.gmra.mxu0 %v612
  %v2496 = vpop.f32.mrf.mxu0
  %v2497 = vadd.f32 %v2208, %v2496
  %v2498 = vpop.f32.mrf.mxu0
  %v2499 = vpop.f32.mrf.mxu0
  %v2500 = vadd.f32 %v2211, %v2499
  %v2501 = vpop.f32.mrf.mxu0
  %2502 = vmatprep.mubr.bf16.mxu0 0
  %2503 = vmatmul.mubr.bf16.gmra.mxu0 %v629
  %v2504 = vpop.f32.mrf.mxu0
  %v2505 = vadd.f32 %v2216, %v2504
  %v2506 = vpop.f32.mrf.mxu0
  %v2507 = vpop.f32.mrf.mxu0
  %v2508 = vadd.f32 %v2219, %v2507
  %v2509 = vpop.f32.mrf.mxu0
  %2510 = vmatprep.mubr.bf16.mxu0 0
  %2511 = vmatmul.mubr.bf16.gmra.mxu0 %v646
  %v2512 = vpop.f32.mrf.mxu0
  %v2513 = vadd.f32 %v2224, %v2512
  %v2514 = vpop.f32.mrf.mxu0
  %v2515 = vpop.f32.mrf.mxu0
  %v2516 = vadd.f32 %v2227, %v2515
  %v2517 = vpop.f32.mrf.mxu0
  %2518 = vmatprep.mubr.bf16.mxu0 0
  %2519 = vmatmul.mubr.bf16.gmra.mxu0 %v663
  %v2520 = vpop.f32.mrf.mxu0
  %v2521 = vadd.f32 %v2232, %v2520
  %v2522 = vpop.f32.mrf.mxu0
  %v2523 = vpop.f32.mrf.mxu0
  %v2524 = vadd.f32 %v2235, %v2523
  %v2525 = vpop.f32.mrf.mxu0
  %2526 = vmatprep.mubr.bf16.mxu0 0
  %2527 = vmatmul.mubr.bf16.gmra.mxu0 %v680
  %v2528 = vpop.f32.mrf.mxu0
  %v2529 = vadd.f32 %v2240, %v2528
  %v2530 = vpop.f32.mrf.mxu0
  %v2531 = vpop.f32.mrf.mxu0
  %v2532 = vadd.f32 %v2243, %v2531
  %v2533 = vpop.f32.mrf.mxu0
  %2534 = vmatprep.mubr.bf16.mxu0 0
  %2535 = vmatmul.mubr.bf16.gmra.mxu0 %v697
  %v2536 = vpop.f32.mrf.mxu0
  %v2537 = vadd.f32 %v2248, %v2536
  %v2538 = vpop.f32.mrf.mxu0
  %v2539 = vpop.f32.mrf.mxu0
  %v2540 = vadd.f32 %v2251, %v2539
  %v2541 = vpop.f32.mrf.mxu0
  %2542 = vmatprep.mubr.bf16.mxu0 0
  %2543 = vmatmul.mubr.bf16.gmra.mxu0 %v714
  %v2544 = vpop.f32.mrf.mxu0
  %v2545 = vadd.f32 %v2256, %v2544
  %v2546 = vpop.f32.mrf.mxu0
  %v2547 = vpop.f32.mrf.mxu0
  %v2548 = vadd.f32 %v2259, %v2547
  %v2549 = vpop.f32.mrf.mxu0
  %2550 = vmatprep.mubr.bf16.mxu0 0
  %2551 = vmatmul.mubr.bf16.gmra.mxu0 %v731
  %v2552 = vpop.f32.mrf.mxu0
  %v2553 = vadd.f32 %v2264, %v2552
  %v2554 = vpop.f32.mrf.mxu0
  %v2555 = vpop.f32.mrf.mxu0
  %v2556 = vadd.f32 %v2267, %v2555
  %v2557 = vpop.f32.mrf.mxu0
  %2558 = vmatprep.mubr.bf16.mxu0 0
  %2559 = vmatmul.mubr.bf16.gmra.mxu0 %v782
  %v2560 = vpop.f32.mrf.mxu0
  %v2561 = vadd.f32 %v2272, %v2560
  %v2562 = vpop.f32.mrf.mxu0
  %v2563 = vpop.f32.mrf.mxu0
  %v2564 = vadd.f32 %v2275, %v2563
  %v2565 = vpop.f32.mrf.mxu0
  %2566 = vmatprep.mubr.bf16.mxu0 0
  %2567 = vmatmul.mubr.bf16.gmra.mxu0 %v799
  %v2568 = vpop.f32.mrf.mxu0
  %v2569 = vadd.f32 %v2280, %v2568
  %v2570 = vpop.f32.mrf.mxu0
  %v2571 = vpop.f32.mrf.mxu0
  %v2572 = vadd.f32 %v2283, %v2571
  %v2573 = vpop.f32.mrf.mxu0
  %2574 = vmatprep.mubr.bf16.mxu0 0
  %2575 = vmatmul.mubr.bf16.gmra.mxu0 %v816
  %v2576 = vpop.f32.mrf.mxu0
  %v2577 = vadd.f32 %v2288, %v2576
  %v2578 = vpop.f32.mrf.mxu0
  %v2579 = vpop.f32.mrf.mxu0
  %v2580 = vadd.f32 %v2291, %v2579
  %v2581 = vpop.f32.mrf.mxu0
  %2582 = vmatprep.mubr.bf16.mxu0 0
  %2583 = vmatmul.mubr.bf16.gmra.mxu0 %v833
  %v2584 = vpop.f32.mrf.mxu0
  %v2585 = vadd.f32 %v2296, %v2584
  %v2586 = vpop.f32.mrf.mxu0
  %v2587 = vpop.f32.mrf.mxu0
  %v2588 = vadd.f32 %v2299, %v2587
  %v2589 = vpop.f32.mrf.mxu0
  %2590 = vmatprep.mubr.bf16.mxu0 0
  %2591 = vmatmul.mubr.bf16.gmra.mxu0 %v850
  %v2592 = vpop.f32.mrf.mxu0
  %v2593 = vadd.f32 %v2304, %v2592
  %v2594 = vpop.f32.mrf.mxu0
  %v2595 = vpop.f32.mrf.mxu0
  %v2596 = vadd.f32 %v2307, %v2595
  %v2597 = vpop.f32.mrf.mxu0
  %2598 = vmatprep.mubr.bf16.mxu0 0
  %2599 = vmatmul.mubr.bf16.gmra.mxu0 %v867
  %v2600 = vpop.f32.mrf.mxu0
  %v2601 = vadd.f32 %v2312, %v2600
  %v2602 = vpop.f32.mrf.mxu0
  %v2603 = vpop.f32.mrf.mxu0
  %v2604 = vadd.f32 %v2315, %v2603
  %v2605 = vpop.f32.mrf.mxu0
  %2606 = vmatprep.mubr.bf16.mxu0 0
  %2607 = vmatmul.mubr.bf16.gmra.mxu0 %v884
  %v2608 = vpop.f32.mrf.mxu0
  %v2609 = vadd.f32 %v2320, %v2608
  %v2610 = vpop.f32.mrf.mxu0
  %v2611 = vpop.f32.mrf.mxu0
  %v2612 = vadd.f32 %v2323, %v2611
  %v2613 = vpop.f32.mrf.mxu0
  %2614 = vmatprep.mubr.bf16.mxu0 0
  %2615 = vmatmul.mubr.bf16.gmra.mxu0 %v901
  %v2616 = vpop.f32.mrf.mxu0
  %v2617 = vadd.f32 %v2328, %v2616
  %v2618 = vpop.f32.mrf.mxu0
  %v2619 = vpop.f32.mrf.mxu0
  %v2620 = vadd.f32 %v2331, %v2619
  %v2621 = vpop.f32.mrf.mxu0
  %2622 = vmatprep.mubr.bf16.mxu0 0
  %2623 = vmatmul.mubr.bf16.gmra.mxu0 %v918
  %v2624 = vpop.f32.mrf.mxu0
  %v2625 = vadd.f32 %v2336, %v2624
  %v2626 = vpop.f32.mrf.mxu0
  %v2627 = vpop.f32.mrf.mxu0
  %v2628 = vadd.f32 %v2339, %v2627
  %v2629 = vpop.f32.mrf.mxu0
  %2630 = vmatprep.mubr.bf16.mxu0 0
  %2631 = vmatmul.mubr.bf16.gmra.mxu0 %v935
  %v2632 = vpop.f32.mrf.mxu0
  %v2633 = vadd.f32 %v2344, %v2632
  %v2634 = vpop.f32.mrf.mxu0
  %v2635 = vpop.f32.mrf.mxu0
  %v2636 = vadd.f32 %v2347, %v2635
  %v2637 = vpop.f32.mrf.mxu0
  %2638 = vmatprep.mubr.bf16.mxu0 0
  %2639 = vmatmul.mubr.bf16.gmra.mxu0 %v952
  %v2640 = vpop.f32.mrf.mxu0
  %v2641 = vadd.f32 %v2352, %v2640
  %v2642 = vpop.f32.mrf.mxu0
  %v2643 = vpop.f32.mrf.mxu0
  %v2644 = vadd.f32 %v2355, %v2643
  %v2645 = vpop.f32.mrf.mxu0
  %2646 = vmatprep.mubr.bf16.mxu0 0
  %2647 = vmatmul.mubr.bf16.gmra.mxu0 %v969
  %v2648 = vpop.f32.mrf.mxu0
  %v2649 = vadd.f32 %v2360, %v2648
  %v2650 = vpop.f32.mrf.mxu0
  %v2651 = vpop.f32.mrf.mxu0
  %v2652 = vadd.f32 %v2363, %v2651
  %v2653 = vpop.f32.mrf.mxu0
  %2654 = vmatprep.mubr.bf16.mxu0 0
  %2655 = vmatmul.mubr.bf16.gmra.mxu0 %v986
  %v2656 = vpop.f32.mrf.mxu0
  %v2657 = vadd.f32 %v2368, %v2656
  %v2658 = vpop.f32.mrf.mxu0
  %v2659 = vpop.f32.mrf.mxu0
  %v2660 = vadd.f32 %v2371, %v2659
  %v2661 = vpop.f32.mrf.mxu0
  %2662 = vmatprep.mubr.bf16.mxu0 0
  %2663 = vmatmul.mubr.bf16.gmra.mxu0 %v1003
  %v2664 = vpop.f32.mrf.mxu0
  %v2665 = vadd.f32 %v2376, %v2664
  %v2666 = vpop.f32.mrf.mxu0
  %v2667 = vpop.f32.mrf.mxu0
  %v2668 = vadd.f32 %v2379, %v2667
  %v2669 = vpop.f32.mrf.mxu0
  %2670 = vmatprep.mubr.bf16.mxu0 0
  %2671 = vmatmul.mubr.bf16.gmra.mxu0 %v1020
  %v2672 = vpop.f32.mrf.mxu0
  %v2673 = vadd.f32 %v2384, %v2672
  %v2674 = vpop.f32.mrf.mxu0
  %v2675 = vpop.f32.mrf.mxu0
  %v2676 = vadd.f32 %v2387, %v2675
  %v2677 = vpop.f32.mrf.mxu0
  %2678 = vmatprep.mubr.bf16.mxu0 0
  %2679 = vmatmul.mubr.bf16.gmra.mxu0 %v1037
  %v2680 = vpop.f32.mrf.mxu0
  %v2681 = vadd.f32 %v2392, %v2680
  %v2682 = vpop.f32.mrf.mxu0
  %v2683 = vpop.f32.mrf.mxu0
  %v2684 = vadd.f32 %v2395, %v2683
  %v2685 = vpop.f32.mrf.mxu0
  %2686 = vdwg.mxu0
  %v2687 = vld [vmem:[%s0 + $0x8] sm:$0xf]
  %v2688 = vld [vmem:[%s0 + $0xc] sm:$0xf]
  %v2689 = vld [vmem:[%s0 + $0x10] sm:$0x1]
  %v2690 = vld [vmem:[%s0 + $0x20] sm:$0xf]
  %v2691 = vld [vmem:[%s0 + $0x24] sm:$0xf]
  %v2692 = vld [vmem:[%s0 + $0x28] sm:$0x1]
  %v2693 = vld [vmem:[%s0 + $0x38] sm:$0xf]
  %v2694 = vld [vmem:[%s0 + $0x3c] sm:$0xf]
  %v2695 = vld [vmem:[%s0 + $0x40] sm:$0x1]
  %v2696 = vld [vmem:[%s0 + $0x50] sm:$0xf]
  %v2697 = vld [vmem:[%s0 + $0x54] sm:$0xf]
  %v2698 = vld [vmem:[%s0 + $0x58] sm:$0x1]
  %v2699 = vld [vmem:[%s0 + $0x68] sm:$0xf]
  %v2700 = vld [vmem:[%s0 + $0x6c] sm:$0xf]
  %v2701 = vld [vmem:[%s0 + $0x70] sm:$0x1]
  %v2702 = vld [vmem:[%s0 + $0x80] sm:$0xf]
  %v2703 = vld [vmem:[%s0 + $0x84] sm:$0xf]
  %v2704 = vld [vmem:[%s0 + $0x88] sm:$0x1]
  %v2705 = vld [vmem:[%s0 + $0x98] sm:$0xf]
  %v2706 = vld [vmem:[%s0 + $0x9c] sm:$0xf]
  %v2707 = vld [vmem:[%s0 + $0xa0] sm:$0x1]
  %v2708 = vld [vmem:[%s0 + $0xb0] sm:$0xf]
  %v2709 = vld [vmem:[%s0 + $0xb4] sm:$0xf]
  %v2710 = vld [vmem:[%s0 + $0xb8] sm:$0x1]
  %v2711 = vld [vmem:[%s0 + $0xc8] sm:$0xf]
  %v2712 = vld [vmem:[%s0 + $0xcc] sm:$0xf]
  %v2713 = vld [vmem:[%s0 + $0xd0] sm:$0x1]
  %v2714 = vld [vmem:[%s0 + $0xe0] sm:$0xf]
  %v2715 = vld [vmem:[%s0 + $0xe4] sm:$0xf]
  %v2716 = vld [vmem:[%s0 + $0xe8] sm:$0x1]
  %v2717 = vld [vmem:[%s0 + $0xf8] sm:$0xf]
  %v2718 = vld [vmem:[%s0 + $0xfc] sm:$0xf]
  %v2719 = vld [vmem:[%s0 + $0x100] sm:$0x1]
  %v2720 = vld [vmem:[%s0 + $0x110] sm:$0xf]
  %v2721 = vld [vmem:[%s0 + $0x114] sm:$0xf]
  %v2722 = vld [vmem:[%s0 + $0x118] sm:$0x1]
  %v2723 = vld [vmem:[%s0 + $0x128] sm:$0xf]
  %v2724 = vld [vmem:[%s0 + $0x12c] sm:$0xf]
  %v2725 = vld [vmem:[%s0 + $0x130] sm:$0x1]
  %v2726 = vld [vmem:[%s0 + $0x140] sm:$0xf]
  %v2727 = vld [vmem:[%s0 + $0x144] sm:$0xf]
  %v2728 = vld [vmem:[%s0 + $0x148] sm:$0x1]
  %v2729 = vld [vmem:[%s0 + $0x158] sm:$0xf]
  %v2730 = vld [vmem:[%s0 + $0x15c] sm:$0xf]
  %v2731 = vld [vmem:[%s0 + $0x160] sm:$0x1]
  %v2732 = vld [vmem:[%s0 + $0x170] sm:$0xf]
  %v2733 = vld [vmem:[%s0 + $0x174] sm:$0xf]
  %v2734 = vld [vmem:[%s0 + $0x178] sm:$0x1]
  %v2735 = vld [vmem:[%s0 + $0x188] sm:$0xf]
  %v2736 = vld [vmem:[%s0 + $0x18c] sm:$0xf]
  %v2737 = vld [vmem:[%s0 + $0x190] sm:$0x1]
  %v2738 = vld [vmem:[%s0 + $0x1a0] sm:$0xf]
  %v2739 = vld [vmem:[%s0 + $0x1a4] sm:$0xf]
  %v2740 = vld [vmem:[%s0 + $0x1a8] sm:$0x1]
  %v2741 = vld [vmem:[%s0 + $0x1b8] sm:$0xf]
  %v2742 = vld [vmem:[%s0 + $0x1bc] sm:$0xf]
  %v2743 = vld [vmem:[%s0 + $0x1c0] sm:$0x1]
  %v2744 = vld [vmem:[%s0 + $0x1d0] sm:$0xf]
  %v2745 = vld [vmem:[%s0 + $0x1d4] sm:$0xf]
  %v2746 = vld [vmem:[%s0 + $0x1d8] sm:$0x1]
  %v2747 = vld [vmem:[%s0 + $0x1e8] sm:$0xf]
  %v2748 = vld [vmem:[%s0 + $0x1ec] sm:$0xf]
  %v2749 = vld [vmem:[%s0 + $0x1f0] sm:$0x1]
  %v2750 = vld [vmem:[%s0 + $0x200] sm:$0xf]
  %v2751 = vld [vmem:[%s0 + $0x204] sm:$0xf]
  %v2752 = vld [vmem:[%s0 + $0x208] sm:$0x1]
  %v2753 = vld [vmem:[%s0 + $0x218] sm:$0xf]
  %v2754 = vld [vmem:[%s0 + $0x21c] sm:$0xf]
  %v2755 = vld [vmem:[%s0 + $0x220] sm:$0x1]
  %v2756 = vld [vmem:[%s0 + $0x230] sm:$0xf]
  %v2757 = vld [vmem:[%s0 + $0x234] sm:$0xf]
  %v2758 = vld [vmem:[%s0 + $0x238] sm:$0x1]
  %v2759 = vld [vmem:[%s0 + $0x248] sm:$0xf]
  %v2760 = vld [vmem:[%s0 + $0x24c] sm:$0xf]
  %v2761 = vld [vmem:[%s0 + $0x250] sm:$0x1]
  %v2762 = vld [vmem:[%s0 + $0x260] sm:$0xf]
  %v2763 = vld [vmem:[%s0 + $0x264] sm:$0xf]
  %v2764 = vld [vmem:[%s0 + $0x268] sm:$0x1]
  %v2765 = vld [vmem:[%s0 + $0x278] sm:$0xf]
  %v2766 = vld [vmem:[%s0 + $0x27c] sm:$0xf]
  %v2767 = vld [vmem:[%s0 + $0x280] sm:$0x1]
  %v2768 = vld [vmem:[%s0 + $0x290] sm:$0xf]
  %v2769 = vld [vmem:[%s0 + $0x294] sm:$0xf]
  %v2770 = vld [vmem:[%s0 + $0x298] sm:$0x1]
  %v2771 = vld [vmem:[%s0 + $0x2a8] sm:$0xf]
  %v2772 = vld [vmem:[%s0 + $0x2ac] sm:$0xf]
  %v2773 = vld [vmem:[%s0 + $0x2b0] sm:$0x1]
  %v2774 = vld [vmem:[%s0 + $0x2c0] sm:$0xf]
  %v2775 = vld [vmem:[%s0 + $0x2c4] sm:$0xf]
  %v2776 = vld [vmem:[%s0 + $0x2c8] sm:$0x1]
  %v2777 = vld [vmem:[%s0 + $0x2d8] sm:$0xf]
  %v2778 = vld [vmem:[%s0 + $0x2dc] sm:$0xf]
  %v2779 = vld [vmem:[%s0 + $0x2e0] sm:$0x1]
  %v2780 = vld [vmem:[%s0 + $0x2f0] sm:$0xf]
  %v2781 = vld [vmem:[%s0 + $0x2f4] sm:$0xf]
  %v2782 = vld [vmem:[%s0 + $0x2f8] sm:$0x1]
  %v2783 = vld [vmem:[%s0 + $0x308] sm:$0xf]
  %v2784 = vld [vmem:[%s0 + $0x30c] sm:$0xf]
  %v2785 = vld [vmem:[%s0 + $0x310] sm:$0x1]
  %v2786 = vld [vmem:[%s0 + $0x320] sm:$0xf]
  %v2787 = vld [vmem:[%s0 + $0x324] sm:$0xf]
  %v2788 = vld [vmem:[%s0 + $0x328] sm:$0x1]
  %v2789 = vld [vmem:[%s0 + $0x338] sm:$0xf]
  %v2790 = vld [vmem:[%s0 + $0x33c] sm:$0xf]
  %v2791 = vld [vmem:[%s0 + $0x340] sm:$0x1]
  %v2792 = vld [vmem:[%s0 + $0x350] sm:$0xf]
  %v2793 = vld [vmem:[%s0 + $0x354] sm:$0xf]
  %v2794 = vld [vmem:[%s0 + $0x358] sm:$0x1]
  %v2891 = vunpack.c.l.b16 %v2687
  %v2892 = vunpack.c.l.b16 %v2688
  %v2893 = vunpack.c.l.b16 %v2689
  %v2894 = vunpack.c.l.b16 %v2690
  %v2895 = vunpack.c.l.b16 %v2691
  %v2896 = vunpack.c.l.b16 %v2692
  %v2897 = vunpack.c.l.b16 %v2693
  %v2898 = vunpack.c.l.b16 %v2694
  %v2899 = vunpack.c.l.b16 %v2695
  %v2900 = vunpack.c.l.b16 %v2696
  %v2901 = vunpack.c.l.b16 %v2697
  %v2902 = vunpack.c.l.b16 %v2698
  %v2903 = vunpack.c.l.b16 %v2699
  %v2904 = vunpack.c.l.b16 %v2700
  %v2905 = vunpack.c.l.b16 %v2701
  %v2906 = vunpack.c.l.b16 %v2702
  %v2907 = vunpack.c.l.b16 %v2703
  %v2908 = vunpack.c.l.b16 %v2704
  %v2909 = vunpack.c.l.b16 %v2705
  %v2910 = vunpack.c.l.b16 %v2706
  %v2911 = vunpack.c.l.b16 %v2707
  %v2912 = vunpack.c.l.b16 %v2708
  %v2913 = vunpack.c.l.b16 %v2709
  %v2914 = vunpack.c.l.b16 %v2710
  %v2915 = vunpack.c.l.b16 %v2711
  %v2916 = vunpack.c.l.b16 %v2712
  %v2917 = vunpack.c.l.b16 %v2713
  %v2918 = vunpack.c.l.b16 %v2714
  %v2919 = vunpack.c.l.b16 %v2715
  %v2920 = vunpack.c.l.b16 %v2716
  %v2921 = vunpack.c.l.b16 %v2717
  %v2922 = vunpack.c.l.b16 %v2718
  %v2923 = vunpack.c.l.b16 %v2719
  %v2924 = vunpack.c.l.b16 %v2720
  %v2925 = vunpack.c.l.b16 %v2721
  %v2926 = vunpack.c.l.b16 %v2722
  %v2927 = vunpack.c.l.b16 %v2723
  %v2928 = vunpack.c.l.b16 %v2724
  %v2929 = vunpack.c.l.b16 %v2725
  %v2930 = vunpack.c.l.b16 %v2726
  %v2931 = vunpack.c.l.b16 %v2727
  %v2932 = vunpack.c.l.b16 %v2728
  %v2933 = vunpack.c.l.b16 %v2729
  %v2934 = vunpack.c.l.b16 %v2730
  %v2935 = vunpack.c.l.b16 %v2731
  %v2936 = vunpack.c.l.b16 %v2732
  %v2937 = vunpack.c.l.b16 %v2733
  %v2938 = vunpack.c.l.b16 %v2734
  %v2939 = vunpack.c.l.b16 %v2741
  %v2940 = vunpack.c.l.b16 %v2742
  %v2941 = vunpack.c.l.b16 %v2743
  %v2942 = vunpack.c.l.b16 %v2744
  %v2943 = vunpack.c.l.b16 %v2745
  %v2944 = vunpack.c.l.b16 %v2746
  %v2945 = vunpack.c.l.b16 %v2747
  %v2946 = vunpack.c.l.b16 %v2748
  %v2947 = vunpack.c.l.b16 %v2749
  %v2948 = vunpack.c.l.b16 %v2750
  %v2949 = vunpack.c.l.b16 %v2751
  %v2950 = vunpack.c.l.b16 %v2752
  %v2951 = vunpack.c.l.b16 %v2753
  %v2952 = vunpack.c.l.b16 %v2754
  %v2953 = vunpack.c.l.b16 %v2755
  %v2954 = vunpack.c.l.b16 %v2756
  %v2955 = vunpack.c.l.b16 %v2757
  %v2956 = vunpack.c.l.b16 %v2758
  %v2957 = vunpack.c.l.b16 %v2759
  %v2958 = vunpack.c.l.b16 %v2760
  %v2959 = vunpack.c.l.b16 %v2761
  %v2960 = vunpack.c.l.b16 %v2762
  %v2961 = vunpack.c.l.b16 %v2763
  %v2962 = vunpack.c.l.b16 %v2764
  %v2963 = vunpack.c.l.b16 %v2765
  %v2964 = vunpack.c.l.b16 %v2766
  %v2965 = vunpack.c.l.b16 %v2767
  %v2966 = vunpack.c.l.b16 %v2768
  %v2967 = vunpack.c.l.b16 %v2769
  %v2968 = vunpack.c.l.b16 %v2770
  %v2969 = vunpack.c.l.b16 %v2771
  %v2970 = vunpack.c.l.b16 %v2772
  %v2971 = vunpack.c.l.b16 %v2773
  %v2972 = vunpack.c.l.b16 %v2774
  %v2973 = vunpack.c.l.b16 %v2775
  %v2974 = vunpack.c.l.b16 %v2776
  %v2975 = vunpack.c.l.b16 %v2777
  %v2976 = vunpack.c.l.b16 %v2778
  %v2977 = vunpack.c.l.b16 %v2779
  %v2978 = vunpack.c.l.b16 %v2780
  %v2979 = vunpack.c.l.b16 %v2781
  %v2980 = vunpack.c.l.b16 %v2782
  %v2981 = vunpack.c.l.b16 %v2783
  %v2982 = vunpack.c.l.b16 %v2784
  %v2983 = vunpack.c.l.b16 %v2785
  %v2984 = vunpack.c.l.b16 %v2786
  %v2985 = vunpack.c.l.b16 %v2787
  %v2986 = vunpack.c.l.b16 %v2788
  %v2987 = vpack.c.b16 %v2892, %v2891
  %v2988 = vpack.c.b16 %v2893, %v2893
  %v2989 = vpack.c.b16 %v2895, %v2894
  %v2990 = vpack.c.b16 %v2896, %v2896
  %v2991 = vpack.c.b16 %v2898, %v2897
  %v2992 = vpack.c.b16 %v2899, %v2899
  %v2993 = vpack.c.b16 %v2901, %v2900
  %v2994 = vpack.c.b16 %v2902, %v2902
  %v2995 = vpack.c.b16 %v2904, %v2903
  %v2996 = vpack.c.b16 %v2905, %v2905
  %v2997 = vpack.c.b16 %v2907, %v2906
  %v2998 = vpack.c.b16 %v2908, %v2908
  %v2999 = vpack.c.b16 %v2910, %v2909
  %v3000 = vpack.c.b16 %v2911, %v2911
  %v3001 = vpack.c.b16 %v2913, %v2912
  %v3002 = vpack.c.b16 %v2914, %v2914
  %v3003 = vpack.c.b16 %v2916, %v2915
  %v3004 = vpack.c.b16 %v2917, %v2917
  %v3005 = vpack.c.b16 %v2919, %v2918
  %v3006 = vpack.c.b16 %v2920, %v2920
  %v3007 = vpack.c.b16 %v2922, %v2921
  %v3008 = vpack.c.b16 %v2923, %v2923
  %v3009 = vpack.c.b16 %v2925, %v2924
  %v3010 = vpack.c.b16 %v2926, %v2926
  %v3011 = vpack.c.b16 %v2928, %v2927
  %v3012 = vpack.c.b16 %v2929, %v2929
  %v3013 = vpack.c.b16 %v2931, %v2930
  %v3014 = vpack.c.b16 %v2932, %v2932
  %v3015 = vpack.c.b16 %v2934, %v2933
  %v3016 = vpack.c.b16 %v2935, %v2935
  %v3017 = vpack.c.b16 %v2937, %v2936
  %v3018 = vpack.c.b16 %v2938, %v2938
  %v3019 = vpack.c.b16 %v2940, %v2939
  %v3020 = vpack.c.b16 %v2941, %v2941
  %v3021 = vpack.c.b16 %v2943, %v2942
  %v3022 = vpack.c.b16 %v2944, %v2944
  %v3023 = vpack.c.b16 %v2946, %v2945
  %v3024 = vpack.c.b16 %v2947, %v2947
  %v3025 = vpack.c.b16 %v2949, %v2948
  %v3026 = vpack.c.b16 %v2950, %v2950
  %v3027 = vpack.c.b16 %v2952, %v2951
  %v3028 = vpack.c.b16 %v2953, %v2953
  %v3029 = vpack.c.b16 %v2955, %v2954
  %v3030 = vpack.c.b16 %v2956, %v2956
  %v3031 = vpack.c.b16 %v2958, %v2957
  %v3032 = vpack.c.b16 %v2959, %v2959
  %v3033 = vpack.c.b16 %v2961, %v2960
  %v3034 = vpack.c.b16 %v2962, %v2962
  %v3035 = vpack.c.b16 %v2964, %v2963
  %v3036 = vpack.c.b16 %v2965, %v2965
  %v3037 = vpack.c.b16 %v2967, %v2966
  %v3038 = vpack.c.b16 %v2968, %v2968
  %v3039 = vpack.c.b16 %v2970, %v2969
  %v3040 = vpack.c.b16 %v2971, %v2971
  %v3041 = vpack.c.b16 %v2973, %v2972
  %v3042 = vpack.c.b16 %v2974, %v2974
  %v3043 = vpack.c.b16 %v2976, %v2975
  %v3044 = vpack.c.b16 %v2977, %v2977
  %v3045 = vpack.c.b16 %v2979, %v2978
  %v3046 = vpack.c.b16 %v2980, %v2980
  %v3047 = vpack.c.b16 %v2982, %v2981
  %v3048 = vpack.c.b16 %v2983, %v2983
  %v3049 = vpack.c.b16 %v2985, %v2984
  %v3050 = vpack.c.b16 %v2986, %v2986
  %v3057 = vunpack.c.l.b16 %v2735
  %v3058 = vunpack.c.l.b16 %v2736
  %v3059 = vunpack.c.l.b16 %v2737
  %v3060 = vunpack.c.l.b16 %v2789
  %v3061 = vunpack.c.l.b16 %v2790
  %v3062 = vunpack.c.l.b16 %v2791
  %v3063 = vpack.c.b16 %v3058, %v3057
  %v3064 = vpack.c.b16 %v3059, %v3059
  %v3065 = vpack.c.b16 %v3061, %v3060
  %v3066 = vpack.c.b16 %v3062, %v3062
  %v3073 = vunpack.c.l.b16 %v2738
  %v3074 = vunpack.c.l.b16 %v2739
  %v3075 = vunpack.c.l.b16 %v2740
  %v3076 = vunpack.c.l.b16 %v2792
  %v3077 = vunpack.c.l.b16 %v2793
  %v3078 = vunpack.c.l.b16 %v2794
  %v3079 = vpack.c.b16 %v3074, %v3073
  %v3080 = vpack.c.b16 %v3075, %v3075
  %v3081 = vpack.c.b16 %v3077, %v3076
  %v3082 = vpack.c.b16 %v3078, %v3078
  %vm3083 = vsmask.f32 7424
  %v3085 = vshrl.u32 %v2987, 16
  %v3087 = vshll.u32 %v2987, 16
  %v3089 = vrot.slane %v3087, 1
  %v3090 = vor.u32 %v3085, %v3089
  %v3092 = vshll.u32 %v2988, 16
  %v3094 = vrot.slane %v3092, 1
  %v3095 = vsel %vm3083, %v3090, %v3094
  %v3097 = vshrl.u32 %v2989, 16
  %v3099 = vshll.u32 %v2989, 16
  %v3101 = vrot.slane %v3099, 1
  %v3102 = vor.u32 %v3097, %v3101
  %v3104 = vshll.u32 %v2990, 16
  %v3106 = vrot.slane %v3104, 1
  %v3107 = vsel %vm3083, %v3102, %v3106
  %v3109 = vshrl.u32 %v2991, 16
  %v3111 = vshll.u32 %v2991, 16
  %v3113 = vrot.slane %v3111, 1
  %v3114 = vor.u32 %v3109, %v3113
  %v3116 = vshll.u32 %v2992, 16
  %v3118 = vrot.slane %v3116, 1
  %v3119 = vsel %vm3083, %v3114, %v3118
  %v3121 = vshrl.u32 %v2993, 16
  %v3123 = vshll.u32 %v2993, 16
  %v3125 = vrot.slane %v3123, 1
  %v3126 = vor.u32 %v3121, %v3125
  %v3128 = vshll.u32 %v2994, 16
  %v3130 = vrot.slane %v3128, 1
  %v3131 = vsel %vm3083, %v3126, %v3130
  %v3133 = vshrl.u32 %v2995, 16
  %v3135 = vshll.u32 %v2995, 16
  %v3137 = vrot.slane %v3135, 1
  %v3138 = vor.u32 %v3133, %v3137
  %v3140 = vshll.u32 %v2996, 16
  %v3142 = vrot.slane %v3140, 1
  %v3143 = vsel %vm3083, %v3138, %v3142
  %v3145 = vshrl.u32 %v2997, 16
  %v3147 = vshll.u32 %v2997, 16
  %v3149 = vrot.slane %v3147, 1
  %v3150 = vor.u32 %v3145, %v3149
  %v3152 = vshll.u32 %v2998, 16
  %v3154 = vrot.slane %v3152, 1
  %v3155 = vsel %vm3083, %v3150, %v3154
  %v3157 = vshrl.u32 %v2999, 16
  %v3159 = vshll.u32 %v2999, 16
  %v3161 = vrot.slane %v3159, 1
  %v3162 = vor.u32 %v3157, %v3161
  %v3164 = vshll.u32 %v3000, 16
  %v3166 = vrot.slane %v3164, 1
  %v3167 = vsel %vm3083, %v3162, %v3166
  %v3169 = vshrl.u32 %v3001, 16
  %v3171 = vshll.u32 %v3001, 16
  %v3173 = vrot.slane %v3171, 1
  %v3174 = vor.u32 %v3169, %v3173
  %v3176 = vshll.u32 %v3002, 16
  %v3178 = vrot.slane %v3176, 1
  %v3179 = vsel %vm3083, %v3174, %v3178
  %v3181 = vshrl.u32 %v3003, 16
  %v3183 = vshll.u32 %v3003, 16
  %v3185 = vrot.slane %v3183, 1
  %v3186 = vor.u32 %v3181, %v3185
  %v3188 = vshll.u32 %v3004, 16
  %v3190 = vrot.slane %v3188, 1
  %v3191 = vsel %vm3083, %v3186, %v3190
  %v3193 = vshrl.u32 %v3005, 16
  %v3195 = vshll.u32 %v3005, 16
  %v3197 = vrot.slane %v3195, 1
  %v3198 = vor.u32 %v3193, %v3197
  %v3200 = vshll.u32 %v3006, 16
  %v3202 = vrot.slane %v3200, 1
  %v3203 = vsel %vm3083, %v3198, %v3202
  %v3205 = vshrl.u32 %v3007, 16
  %v3207 = vshll.u32 %v3007, 16
  %v3209 = vrot.slane %v3207, 1
  %v3210 = vor.u32 %v3205, %v3209
  %v3212 = vshll.u32 %v3008, 16
  %v3214 = vrot.slane %v3212, 1
  %v3215 = vsel %vm3083, %v3210, %v3214
  %v3217 = vshrl.u32 %v3009, 16
  %v3219 = vshll.u32 %v3009, 16
  %v3221 = vrot.slane %v3219, 1
  %v3222 = vor.u32 %v3217, %v3221
  %v3224 = vshll.u32 %v3010, 16
  %v3226 = vrot.slane %v3224, 1
  %v3227 = vsel %vm3083, %v3222, %v3226
  %v3229 = vshrl.u32 %v3011, 16
  %v3231 = vshll.u32 %v3011, 16
  %v3233 = vrot.slane %v3231, 1
  %v3234 = vor.u32 %v3229, %v3233
  %v3236 = vshll.u32 %v3012, 16
  %v3238 = vrot.slane %v3236, 1
  %v3239 = vsel %vm3083, %v3234, %v3238
  %v3241 = vshrl.u32 %v3013, 16
  %v3243 = vshll.u32 %v3013, 16
  %v3245 = vrot.slane %v3243, 1
  %v3246 = vor.u32 %v3241, %v3245
  %v3248 = vshll.u32 %v3014, 16
  %v3250 = vrot.slane %v3248, 1
  %v3251 = vsel %vm3083, %v3246, %v3250
  %v3253 = vshrl.u32 %v3015, 16
  %v3255 = vshll.u32 %v3015, 16
  %v3257 = vrot.slane %v3255, 1
  %v3258 = vor.u32 %v3253, %v3257
  %v3260 = vshll.u32 %v3016, 16
  %v3262 = vrot.slane %v3260, 1
  %v3263 = vsel %vm3083, %v3258, %v3262
  %v3265 = vshrl.u32 %v3017, 16
  %v3267 = vshll.u32 %v3017, 16
  %v3269 = vrot.slane %v3267, 1
  %v3270 = vor.u32 %v3265, %v3269
  %v3272 = vshll.u32 %v3018, 16
  %v3274 = vrot.slane %v3272, 1
  %v3275 = vsel %vm3083, %v3270, %v3274
  %v3277 = vshrl.u32 %v3063, 16
  %v3279 = vshll.u32 %v3063, 16
  %v3281 = vrot.slane %v3279, 1
  %v3282 = vor.u32 %v3277, %v3281
  %v3284 = vshll.u32 %v3064, 16
  %v3286 = vrot.slane %v3284, 1
  %v3287 = vsel %vm3083, %v3282, %v3286
  %v3289 = vshrl.u32 %v3079, 16
  %v3291 = vshll.u32 %v3079, 16
  %v3293 = vrot.slane %v3291, 1
  %v3294 = vor.u32 %v3289, %v3293
  %v3296 = vshll.u32 %v3080, 16
  %v3298 = vrot.slane %v3296, 1
  %v3299 = vsel %vm3083, %v3294, %v3298
  %v3301 = vshrl.u32 %v3019, 16
  %v3303 = vshll.u32 %v3019, 16
  %v3305 = vrot.slane %v3303, 1
  %v3306 = vor.u32 %v3301, %v3305
  %v3308 = vshll.u32 %v3020, 16
  %v3310 = vrot.slane %v3308, 1
  %v3311 = vsel %vm3083, %v3306, %v3310
  %v3313 = vshrl.u32 %v3021, 16
  %v3315 = vshll.u32 %v3021, 16
  %v3317 = vrot.slane %v3315, 1
  %v3318 = vor.u32 %v3313, %v3317
  %v3320 = vshll.u32 %v3022, 16
  %v3322 = vrot.slane %v3320, 1
  %v3323 = vsel %vm3083, %v3318, %v3322
  %v3325 = vshrl.u32 %v3023, 16
  %v3327 = vshll.u32 %v3023, 16
  %v3329 = vrot.slane %v3327, 1
  %v3330 = vor.u32 %v3325, %v3329
  %v3332 = vshll.u32 %v3024, 16
  %v3334 = vrot.slane %v3332, 1
  %v3335 = vsel %vm3083, %v3330, %v3334
  %v3337 = vshrl.u32 %v3025, 16
  %v3339 = vshll.u32 %v3025, 16
  %v3341 = vrot.slane %v3339, 1
  %v3342 = vor.u32 %v3337, %v3341
  %v3344 = vshll.u32 %v3026, 16
  %v3346 = vrot.slane %v3344, 1
  %v3347 = vsel %vm3083, %v3342, %v3346
  %v3349 = vshrl.u32 %v3027, 16
  %v3351 = vshll.u32 %v3027, 16
  %v3353 = vrot.slane %v3351, 1
  %v3354 = vor.u32 %v3349, %v3353
  %v3356 = vshll.u32 %v3028, 16
  %v3358 = vrot.slane %v3356, 1
  %v3359 = vsel %vm3083, %v3354, %v3358
  %v3361 = vshrl.u32 %v3029, 16
  %v3363 = vshll.u32 %v3029, 16
  %v3365 = vrot.slane %v3363, 1
  %v3366 = vor.u32 %v3361, %v3365
  %v3368 = vshll.u32 %v3030, 16
  %v3370 = vrot.slane %v3368, 1
  %v3371 = vsel %vm3083, %v3366, %v3370
  %v3373 = vshrl.u32 %v3031, 16
  %v3375 = vshll.u32 %v3031, 16
  %v3377 = vrot.slane %v3375, 1
  %v3378 = vor.u32 %v3373, %v3377
  %v3380 = vshll.u32 %v3032, 16
  %v3382 = vrot.slane %v3380, 1
  %v3383 = vsel %vm3083, %v3378, %v3382
  %v3385 = vshrl.u32 %v3033, 16
  %v3387 = vshll.u32 %v3033, 16
  %v3389 = vrot.slane %v3387, 1
  %v3390 = vor.u32 %v3385, %v3389
  %v3392 = vshll.u32 %v3034, 16
  %v3394 = vrot.slane %v3392, 1
  %v3395 = vsel %vm3083, %v3390, %v3394
  %v3397 = vshrl.u32 %v3035, 16
  %v3399 = vshll.u32 %v3035, 16
  %v3401 = vrot.slane %v3399, 1
  %v3402 = vor.u32 %v3397, %v3401
  %v3404 = vshll.u32 %v3036, 16
  %v3406 = vrot.slane %v3404, 1
  %v3407 = vsel %vm3083, %v3402, %v3406
  %v3409 = vshrl.u32 %v3037, 16
  %v3411 = vshll.u32 %v3037, 16
  %v3413 = vrot.slane %v3411, 1
  %v3414 = vor.u32 %v3409, %v3413
  %v3416 = vshll.u32 %v3038, 16
  %v3418 = vrot.slane %v3416, 1
  %v3419 = vsel %vm3083, %v3414, %v3418
  %v3421 = vshrl.u32 %v3039, 16
  %v3423 = vshll.u32 %v3039, 16
  %v3425 = vrot.slane %v3423, 1
  %v3426 = vor.u32 %v3421, %v3425
  %v3428 = vshll.u32 %v3040, 16
  %v3430 = vrot.slane %v3428, 1
  %v3431 = vsel %vm3083, %v3426, %v3430
  %v3433 = vshrl.u32 %v3041, 16
  %v3435 = vshll.u32 %v3041, 16
  %v3437 = vrot.slane %v3435, 1
  %v3438 = vor.u32 %v3433, %v3437
  %v3440 = vshll.u32 %v3042, 16
  %v3442 = vrot.slane %v3440, 1
  %v3443 = vsel %vm3083, %v3438, %v3442
  %v3445 = vshrl.u32 %v3043, 16
  %v3447 = vshll.u32 %v3043, 16
  %v3449 = vrot.slane %v3447, 1
  %v3450 = vor.u32 %v3445, %v3449
  %v3452 = vshll.u32 %v3044, 16
  %v3454 = vrot.slane %v3452, 1
  %v3455 = vsel %vm3083, %v3450, %v3454
  %v3457 = vshrl.u32 %v3045, 16
  %v3459 = vshll.u32 %v3045, 16
  %v3461 = vrot.slane %v3459, 1
  %v3462 = vor.u32 %v3457, %v3461
  %v3464 = vshll.u32 %v3046, 16
  %v3466 = vrot.slane %v3464, 1
  %v3467 = vsel %vm3083, %v3462, %v3466
  %v3469 = vshrl.u32 %v3047, 16
  %v3471 = vshll.u32 %v3047, 16
  %v3473 = vrot.slane %v3471, 1
  %v3474 = vor.u32 %v3469, %v3473
  %v3476 = vshll.u32 %v3048, 16
  %v3478 = vrot.slane %v3476, 1
  %v3479 = vsel %vm3083, %v3474, %v3478
  %v3481 = vshrl.u32 %v3049, 16
  %v3483 = vshll.u32 %v3049, 16
  %v3485 = vrot.slane %v3483, 1
  %v3486 = vor.u32 %v3481, %v3485
  %v3488 = vshll.u32 %v3050, 16
  %v3490 = vrot.slane %v3488, 1
  %v3491 = vsel %vm3083, %v3486, %v3490
  %v3493 = vshrl.u32 %v3065, 16
  %v3495 = vshll.u32 %v3065, 16
  %v3497 = vrot.slane %v3495, 1
  %v3498 = vor.u32 %v3493, %v3497
  %v3500 = vshll.u32 %v3066, 16
  %v3502 = vrot.slane %v3500, 1
  %v3503 = vsel %vm3083, %v3498, %v3502
  %v3505 = vshrl.u32 %v3081, 16
  %v3507 = vshll.u32 %v3081, 16
  %v3509 = vrot.slane %v3507, 1
  %v3510 = vor.u32 %v3505, %v3509
  %v3512 = vshll.u32 %v3082, 16
  %v3514 = vrot.slane %v3512, 1
  %v3515 = vsel %vm3083, %v3510, %v3514
  %s3552 = scalar_lea.vmem %s1, 384
  %v3553 = vld [vmem:[%s3552] sm:$0xf]
  %v3554 = vld [vmem:[%s3552 + $0x4] sm:$0xf]
  %v3555 = vld [vmem:[%s3552 + $0x8] sm:$0xf]
  %v3556 = vld [vmem:[%s3552 + $0xc] sm:$0xf]
  %v3557 = vld [vmem:[%s3552 + $0x10] sm:$0xf]
  %v3558 = vld [vmem:[%s3552 + $0x14] sm:$0xf]
  %v3559 = vld [vmem:[%s3552 + $0x18] sm:$0xf]
  %v3560 = vld [vmem:[%s3552 + $0x1c] sm:$0xf]
  %v3561 = vld [vmem:[%s3552 + $0x20] sm:$0xf]
  %v3562 = vld [vmem:[%s3552 + $0x24] sm:$0xf]
  %v3563 = vld [vmem:[%s3552 + $0x28] sm:$0xf]
  %v3564 = vld [vmem:[%s3552 + $0x2c] sm:$0xf]
  %v3565 = vld [vmem:[%s3552 + $0x30] sm:$0xf]
  %v3566 = vld [vmem:[%s3552 + $0x34] sm:$0xf]
  %v3567 = vld [vmem:[%s3552 + $0x38] sm:$0xf]
  %v3568 = vld [vmem:[%s3552 + $0x3c] sm:$0xf]
  %v3569 = vld [vmem:[%s3552 + $0x40] sm:$0xf]
  %v3570 = vld [vmem:[%s3552 + $0x44] sm:$0xf]
  %v3571 = vld [vmem:[%s3552 + $0x48] sm:$0xf]
  %v3572 = vld [vmem:[%s3552 + $0x4c] sm:$0xf]
  %v3573 = vld [vmem:[%s3552 + $0x50] sm:$0xf]
  %v3574 = vld [vmem:[%s3552 + $0x54] sm:$0xf]
  %v3575 = vld [vmem:[%s3552 + $0x58] sm:$0xf]
  %v3576 = vld [vmem:[%s3552 + $0x5c] sm:$0xf]
  %v3577 = vld [vmem:[%s3552 + $0x60] sm:$0xf]
  %v3578 = vld [vmem:[%s3552 + $0x64] sm:$0xf]
  %v3579 = vld [vmem:[%s3552 + $0x68] sm:$0xf]
  %v3580 = vld [vmem:[%s3552 + $0x6c] sm:$0xf]
  %v3581 = vld [vmem:[%s3552 + $0x70] sm:$0xf]
  %v3582 = vld [vmem:[%s3552 + $0x74] sm:$0xf]
  %v3583 = vld [vmem:[%s3552 + $0x78] sm:$0xf]
  %v3584 = vld [vmem:[%s3552 + $0x7c] sm:$0xf]
  %v3585 = vld [vmem:[%s3552 + $0x80] sm:$0xf]
  %v3586 = vld [vmem:[%s3552 + $0x84] sm:$0xf]
  %v3587 = vld [vmem:[%s3552 + $0x88] sm:$0xf]
  %v3588 = vld [vmem:[%s3552 + $0x8c] sm:$0xf]
  %v3589 = vld [vmem:[%s3552 + $0x90] sm:$0xf]
  %v3590 = vld [vmem:[%s3552 + $0x94] sm:$0xf]
  %v3591 = vld [vmem:[%s3552 + $0x98] sm:$0xf]
  %v3592 = vld [vmem:[%s3552 + $0x9c] sm:$0xf]
  %v3593 = vld [vmem:[%s3552 + $0xa0] sm:$0xf]
  %v3594 = vld [vmem:[%s3552 + $0xa4] sm:$0xf]
  %v3595 = vld [vmem:[%s3552 + $0xa8] sm:$0xf]
  %v3596 = vld [vmem:[%s3552 + $0xac] sm:$0xf]
  %v3597 = vld [vmem:[%s3552 + $0xb0] sm:$0xf]
  %v3598 = vld [vmem:[%s3552 + $0xb4] sm:$0xf]
  %v3599 = vld [vmem:[%s3552 + $0xb8] sm:$0xf]
  %v3600 = vld [vmem:[%s3552 + $0xbc] sm:$0xf]
  %v3649 = vunpack.c.l.b16 %v3553
  %v3650 = vunpack.c.l.b16 %v3554
  %v3651 = vunpack.c.l.b16 %v3555
  %v3652 = vunpack.c.l.b16 %v3556
  %v3653 = vunpack.c.l.b16 %v3557
  %v3654 = vunpack.c.l.b16 %v3558
  %v3655 = vunpack.c.l.b16 %v3559
  %v3656 = vunpack.c.l.b16 %v3560
  %v3657 = vunpack.c.l.b16 %v3561
  %v3658 = vunpack.c.l.b16 %v3562
  %v3659 = vunpack.c.l.b16 %v3563
  %v3660 = vunpack.c.l.b16 %v3564
  %v3661 = vunpack.c.l.b16 %v3565
  %v3662 = vunpack.c.l.b16 %v3566
  %v3663 = vunpack.c.l.b16 %v3567
  %v3664 = vunpack.c.l.b16 %v3568
  %v3665 = vunpack.c.l.b16 %v3569
  %v3666 = vunpack.c.l.b16 %v3570
  %v3667 = vunpack.c.l.b16 %v3571
  %v3668 = vunpack.c.l.b16 %v3572
  %v3669 = vunpack.c.l.b16 %v3573
  %v3670 = vunpack.c.l.b16 %v3574
  %v3671 = vunpack.c.l.b16 %v3575
  %v3672 = vunpack.c.l.b16 %v3576
  %v3673 = vunpack.c.l.b16 %v3577
  %v3674 = vunpack.c.l.b16 %v3578
  %v3675 = vunpack.c.l.b16 %v3579
  %v3676 = vunpack.c.l.b16 %v3580
  %v3677 = vunpack.c.l.b16 %v3581
  %v3678 = vunpack.c.l.b16 %v3582
  %v3679 = vunpack.c.l.b16 %v3583
  %v3680 = vunpack.c.l.b16 %v3584
  %v3681 = vunpack.c.l.b16 %v3585
  %v3682 = vunpack.c.l.b16 %v3586
  %v3683 = vunpack.c.l.b16 %v3587
  %v3684 = vunpack.c.l.b16 %v3588
  %v3685 = vunpack.c.l.b16 %v3589
  %v3686 = vunpack.c.l.b16 %v3590
  %v3687 = vunpack.c.l.b16 %v3591
  %v3688 = vunpack.c.l.b16 %v3592
  %v3689 = vunpack.c.l.b16 %v3593
  %v3690 = vunpack.c.l.b16 %v3594
  %v3691 = vunpack.c.l.b16 %v3595
  %v3692 = vunpack.c.l.b16 %v3596
  %v3693 = vunpack.c.l.b16 %v3597
  %v3694 = vunpack.c.l.b16 %v3598
  %v3695 = vunpack.c.l.b16 %v3599
  %v3696 = vunpack.c.l.b16 %v3600
  %v3697 = vpack.c.b16 %v3650, %v3649
  %v3698 = vpack.c.b16 %v3652, %v3651
  %v3699 = vpack.c.b16 %v3654, %v3653
  %v3700 = vpack.c.b16 %v3656, %v3655
  %v3701 = vpack.c.b16 %v3658, %v3657
  %v3702 = vpack.c.b16 %v3660, %v3659
  %v3703 = vpack.c.b16 %v3662, %v3661
  %v3704 = vpack.c.b16 %v3664, %v3663
  %v3705 = vpack.c.b16 %v3666, %v3665
  %v3706 = vpack.c.b16 %v3668, %v3667
  %v3707 = vpack.c.b16 %v3670, %v3669
  %v3708 = vpack.c.b16 %v3672, %v3671
  %v3709 = vpack.c.b16 %v3674, %v3673
  %v3710 = vpack.c.b16 %v3676, %v3675
  %v3711 = vpack.c.b16 %v3678, %v3677
  %v3712 = vpack.c.b16 %v3680, %v3679
  %v3713 = vpack.c.b16 %v3682, %v3681
  %v3714 = vpack.c.b16 %v3684, %v3683
  %v3715 = vpack.c.b16 %v3686, %v3685
  %v3716 = vpack.c.b16 %v3688, %v3687
  %v3717 = vpack.c.b16 %v3690, %v3689
  %v3718 = vpack.c.b16 %v3692, %v3691
  %v3719 = vpack.c.b16 %v3694, %v3693
  %v3720 = vpack.c.b16 %v3696, %v3695
  %3745 = vmatprep.subr.bf16.mxu0 0
  %3746 = vmatpush1.bf16.msra.mxu0 %v3704
  %3747 = vmatprep.subr.bf16.mxu0 0
  %3748 = vmatpush1.bf16.msra.mxu0 %v3703
  %3749 = vmatprep.subr.bf16.mxu0 0
  %3750 = vmatpush1.bf16.msra.mxu0 %v3702
  %3751 = vmatprep.subr.bf16.mxu0 0
  %3752 = vmatpush1.bf16.msra.mxu0 %v3701
  %3753 = vmatprep.subr.bf16.mxu0 0
  %3754 = vmatpush1.bf16.msra.mxu0 %v3700
  %3755 = vmatprep.subr.bf16.mxu0 0
  %3756 = vmatpush1.bf16.msra.mxu0 %v3699
  %3757 = vmatprep.subr.bf16.mxu0 0
  %3758 = vmatpush1.bf16.msra.mxu0 %v3698
  %3759 = vmatprep.subr.bf16.mxu0 0
  %3760 = vmatpush1.bf16.msra.mxu0 %v3697
  %3761 = vmatprep.subr.bf16.mxu0 0
  %3762 = vmatpush2.bf16.msra.mxu0 %v3712
  %3763 = vmatprep.subr.bf16.mxu0 0
  %3764 = vmatpush2.bf16.msra.mxu0 %v3711
  %3765 = vmatprep.subr.bf16.mxu0 0
  %3766 = vmatpush2.bf16.msra.mxu0 %v3710
  %3767 = vmatprep.subr.bf16.mxu0 0
  %3768 = vmatpush2.bf16.msra.mxu0 %v3709
  %3769 = vmatprep.subr.bf16.mxu0 0
  %3770 = vmatpush2.bf16.msra.mxu0 %v3708
  %3771 = vmatprep.subr.bf16.mxu0 0
  %3772 = vmatpush2.bf16.msra.mxu0 %v3707
  %3773 = vmatprep.subr.bf16.mxu0 0
  %3774 = vmatpush2.bf16.msra.mxu0 %v3706
  %3775 = vmatprep.subr.bf16.mxu0 0
  %3776 = vmatpush2.bf16.msra.mxu0 %v3705
  %3777 = vmatprep.mubr.bf16.mxu0 %v3107
  %3778 = vmatmul.mubr.bf16.gmra.mxu0 %v3095
  %v3779 = vpop.f32.mrf.mxu0
  %v3780 = vadd.f32 0.0, %v3779
  %v3781 = vpop.f32.mrf.mxu0
  %v3782 = vpop.f32.mrf.mxu0
  %v3783 = vadd.f32 0.0, %v3782
  %v3784 = vpop.f32.mrf.mxu0
  %3785 = vmatprep.mubr.bf16.mxu0 %v3119
  %3786 = vmatmul.mubr.bf16.gmra.mxu0 %v3107
  %v3787 = vpop.f32.mrf.mxu0
  %v3788 = vadd.f32 0.0, %v3787
  %v3789 = vpop.f32.mrf.mxu0
  %v3790 = vpop.f32.mrf.mxu0
  %v3791 = vadd.f32 0.0, %v3790
  %v3792 = vpop.f32.mrf.mxu0
  %3793 = vmatprep.mubr.bf16.mxu0 %v3131
  %3794 = vmatmul.mubr.bf16.gmra.mxu0 %v3119
  %v3795 = vpop.f32.mrf.mxu0
  %v3796 = vadd.f32 0.0, %v3795
  %v3797 = vpop.f32.mrf.mxu0
  %v3798 = vpop.f32.mrf.mxu0
  %v3799 = vadd.f32 0.0, %v3798
  %v3800 = vpop.f32.mrf.mxu0
  %3801 = vmatprep.mubr.bf16.mxu0 %v3143
  %3802 = vmatmul.mubr.bf16.gmra.mxu0 %v3131
  %v3803 = vpop.f32.mrf.mxu0
  %v3804 = vadd.f32 0.0, %v3803
  %v3805 = vpop.f32.mrf.mxu0
  %v3806 = vpop.f32.mrf.mxu0
  %v3807 = vadd.f32 0.0, %v3806
  %v3808 = vpop.f32.mrf.mxu0
  %3809 = vmatprep.mubr.bf16.mxu0 %v3155
  %3810 = vmatmul.mubr.bf16.gmra.mxu0 %v3143
  %v3811 = vpop.f32.mrf.mxu0
  %v3812 = vadd.f32 0.0, %v3811
  %v3813 = vpop.f32.mrf.mxu0
  %v3814 = vpop.f32.mrf.mxu0
  %v3815 = vadd.f32 0.0, %v3814
  %v3816 = vpop.f32.mrf.mxu0
  %3817 = vmatprep.mubr.bf16.mxu0 %v3167
  %3818 = vmatmul.mubr.bf16.gmra.mxu0 %v3155
  %v3819 = vpop.f32.mrf.mxu0
  %v3820 = vadd.f32 0.0, %v3819
  %v3821 = vpop.f32.mrf.mxu0
  %v3822 = vpop.f32.mrf.mxu0
  %v3823 = vadd.f32 0.0, %v3822
  %v3824 = vpop.f32.mrf.mxu0
  %3825 = vmatprep.mubr.bf16.mxu0 %v3179
  %3826 = vmatmul.mubr.bf16.gmra.mxu0 %v3167
  %v3827 = vpop.f32.mrf.mxu0
  %v3828 = vadd.f32 0.0, %v3827
  %v3829 = vpop.f32.mrf.mxu0
  %v3830 = vpop.f32.mrf.mxu0
  %v3831 = vadd.f32 0.0, %v3830
  %v3832 = vpop.f32.mrf.mxu0
  %3833 = vmatprep.mubr.bf16.mxu0 %v3191
  %3834 = vmatmul.mubr.bf16.gmra.mxu0 %v3179
  %v3835 = vpop.f32.mrf.mxu0
  %v3836 = vadd.f32 0.0, %v3835
  %v3837 = vpop.f32.mrf.mxu0
  %v3838 = vpop.f32.mrf.mxu0
  %v3839 = vadd.f32 0.0, %v3838
  %v3840 = vpop.f32.mrf.mxu0
  %3841 = vmatprep.mubr.bf16.mxu0 %v3203
  %3842 = vmatmul.mubr.bf16.gmra.mxu0 %v3191
  %v3843 = vpop.f32.mrf.mxu0
  %v3844 = vadd.f32 0.0, %v3843
  %v3845 = vpop.f32.mrf.mxu0
  %v3846 = vpop.f32.mrf.mxu0
  %v3847 = vadd.f32 0.0, %v3846
  %v3848 = vpop.f32.mrf.mxu0
  %3849 = vmatprep.mubr.bf16.mxu0 %v3215
  %3850 = vmatmul.mubr.bf16.gmra.mxu0 %v3203
  %v3851 = vpop.f32.mrf.mxu0
  %v3852 = vadd.f32 0.0, %v3851
  %v3853 = vpop.f32.mrf.mxu0
  %v3854 = vpop.f32.mrf.mxu0
  %v3855 = vadd.f32 0.0, %v3854
  %v3856 = vpop.f32.mrf.mxu0
  %3857 = vmatprep.mubr.bf16.mxu0 %v3227
  %3858 = vmatmul.mubr.bf16.gmra.mxu0 %v3215
  %v3859 = vpop.f32.mrf.mxu0
  %v3860 = vadd.f32 0.0, %v3859
  %v3861 = vpop.f32.mrf.mxu0
  %v3862 = vpop.f32.mrf.mxu0
  %v3863 = vadd.f32 0.0, %v3862
  %v3864 = vpop.f32.mrf.mxu0
  %3865 = vmatprep.mubr.bf16.mxu0 %v3239
  %3866 = vmatmul.mubr.bf16.gmra.mxu0 %v3227
  %v3867 = vpop.f32.mrf.mxu0
  %v3868 = vadd.f32 0.0, %v3867
  %v3869 = vpop.f32.mrf.mxu0
  %v3870 = vpop.f32.mrf.mxu0
  %v3871 = vadd.f32 0.0, %v3870
  %v3872 = vpop.f32.mrf.mxu0
  %3873 = vmatprep.mubr.bf16.mxu0 %v3251
  %3874 = vmatmul.mubr.bf16.gmra.mxu0 %v3239
  %v3875 = vpop.f32.mrf.mxu0
  %v3876 = vadd.f32 0.0, %v3875
  %v3877 = vpop.f32.mrf.mxu0
  %v3878 = vpop.f32.mrf.mxu0
  %v3879 = vadd.f32 0.0, %v3878
  %v3880 = vpop.f32.mrf.mxu0
  %3881 = vmatprep.mubr.bf16.mxu0 %v3263
  %3882 = vmatmul.mubr.bf16.gmra.mxu0 %v3251
  %v3883 = vpop.f32.mrf.mxu0
  %v3884 = vadd.f32 0.0, %v3883
  %v3885 = vpop.f32.mrf.mxu0
  %v3886 = vpop.f32.mrf.mxu0
  %v3887 = vadd.f32 0.0, %v3886
  %v3888 = vpop.f32.mrf.mxu0
  %3889 = vmatprep.mubr.bf16.mxu0 %v3275
  %3890 = vmatmul.mubr.bf16.gmra.mxu0 %v3263
  %v3891 = vpop.f32.mrf.mxu0
  %v3892 = vadd.f32 0.0, %v3891
  %v3893 = vpop.f32.mrf.mxu0
  %v3894 = vpop.f32.mrf.mxu0
  %v3895 = vadd.f32 0.0, %v3894
  %v3896 = vpop.f32.mrf.mxu0
  %3897 = vmatprep.mubr.bf16.mxu0 %v3287
  %3898 = vmatmul.mubr.bf16.gmra.mxu0 %v3275
  %v3899 = vpop.f32.mrf.mxu0
  %v3900 = vadd.f32 0.0, %v3899
  %v3901 = vpop.f32.mrf.mxu0
  %v3902 = vpop.f32.mrf.mxu0
  %v3903 = vadd.f32 0.0, %v3902
  %v3904 = vpop.f32.mrf.mxu0
  %3905 = vmatprep.mubr.bf16.mxu0 %v3323
  %3906 = vmatmul.mubr.bf16.gmra.mxu0 %v3311
  %v3907 = vpop.f32.mrf.mxu0
  %v3908 = vadd.f32 0.0, %v3907
  %v3909 = vpop.f32.mrf.mxu0
  %v3910 = vpop.f32.mrf.mxu0
  %v3911 = vadd.f32 0.0, %v3910
  %v3912 = vpop.f32.mrf.mxu0
  %3913 = vmatprep.mubr.bf16.mxu0 %v3335
  %3914 = vmatmul.mubr.bf16.gmra.mxu0 %v3323
  %v3915 = vpop.f32.mrf.mxu0
  %v3916 = vadd.f32 0.0, %v3915
  %v3917 = vpop.f32.mrf.mxu0
  %v3918 = vpop.f32.mrf.mxu0
  %v3919 = vadd.f32 0.0, %v3918
  %v3920 = vpop.f32.mrf.mxu0
  %3921 = vmatprep.mubr.bf16.mxu0 %v3347
  %3922 = vmatmul.mubr.bf16.gmra.mxu0 %v3335
  %v3923 = vpop.f32.mrf.mxu0
  %v3924 = vadd.f32 0.0, %v3923
  %v3925 = vpop.f32.mrf.mxu0
  %v3926 = vpop.f32.mrf.mxu0
  %v3927 = vadd.f32 0.0, %v3926
  %v3928 = vpop.f32.mrf.mxu0
  %3929 = vmatprep.mubr.bf16.mxu0 %v3359
  %3930 = vmatmul.mubr.bf16.gmra.mxu0 %v3347
  %v3931 = vpop.f32.mrf.mxu0
  %v3932 = vadd.f32 0.0, %v3931
  %v3933 = vpop.f32.mrf.mxu0
  %v3934 = vpop.f32.mrf.mxu0
  %v3935 = vadd.f32 0.0, %v3934
  %v3936 = vpop.f32.mrf.mxu0
  %3937 = vmatprep.mubr.bf16.mxu0 %v3371
  %3938 = vmatmul.mubr.bf16.gmra.mxu0 %v3359
  %v3939 = vpop.f32.mrf.mxu0
  %v3940 = vadd.f32 0.0, %v3939
  %v3941 = vpop.f32.mrf.mxu0
  %v3942 = vpop.f32.mrf.mxu0
  %v3943 = vadd.f32 0.0, %v3942
  %v3944 = vpop.f32.mrf.mxu0
  %3945 = vmatprep.mubr.bf16.mxu0 %v3383
  %3946 = vmatmul.mubr.bf16.gmra.mxu0 %v3371
  %v3947 = vpop.f32.mrf.mxu0
  %v3948 = vadd.f32 0.0, %v3947
  %v3949 = vpop.f32.mrf.mxu0
  %v3950 = vpop.f32.mrf.mxu0
  %v3951 = vadd.f32 0.0, %v3950
  %v3952 = vpop.f32.mrf.mxu0
  %3953 = vmatprep.mubr.bf16.mxu0 %v3395
  %3954 = vmatmul.mubr.bf16.gmra.mxu0 %v3383
  %v3955 = vpop.f32.mrf.mxu0
  %v3956 = vadd.f32 0.0, %v3955
  %v3957 = vpop.f32.mrf.mxu0
  %v3958 = vpop.f32.mrf.mxu0
  %v3959 = vadd.f32 0.0, %v3958
  %v3960 = vpop.f32.mrf.mxu0
  %3961 = vmatprep.mubr.bf16.mxu0 %v3407
  %3962 = vmatmul.mubr.bf16.gmra.mxu0 %v3395
  %v3963 = vpop.f32.mrf.mxu0
  %v3964 = vadd.f32 0.0, %v3963
  %v3965 = vpop.f32.mrf.mxu0
  %v3966 = vpop.f32.mrf.mxu0
  %v3967 = vadd.f32 0.0, %v3966
  %v3968 = vpop.f32.mrf.mxu0
  %3969 = vmatprep.mubr.bf16.mxu0 %v3419
  %3970 = vmatmul.mubr.bf16.gmra.mxu0 %v3407
  %v3971 = vpop.f32.mrf.mxu0
  %v3972 = vadd.f32 0.0, %v3971
  %v3973 = vpop.f32.mrf.mxu0
  %v3974 = vpop.f32.mrf.mxu0
  %v3975 = vadd.f32 0.0, %v3974
  %v3976 = vpop.f32.mrf.mxu0
  %3977 = vmatprep.mubr.bf16.mxu0 %v3431
  %3978 = vmatmul.mubr.bf16.gmra.mxu0 %v3419
  %v3979 = vpop.f32.mrf.mxu0
  %v3980 = vadd.f32 0.0, %v3979
  %v3981 = vpop.f32.mrf.mxu0
  %v3982 = vpop.f32.mrf.mxu0
  %v3983 = vadd.f32 0.0, %v3982
  %v3984 = vpop.f32.mrf.mxu0
  %3985 = vmatprep.mubr.bf16.mxu0 %v3443
  %3986 = vmatmul.mubr.bf16.gmra.mxu0 %v3431
  %v3987 = vpop.f32.mrf.mxu0
  %v3988 = vadd.f32 0.0, %v3987
  %v3989 = vpop.f32.mrf.mxu0
  %v3990 = vpop.f32.mrf.mxu0
  %v3991 = vadd.f32 0.0, %v3990
  %v3992 = vpop.f32.mrf.mxu0
  %3993 = vmatprep.mubr.bf16.mxu0 %v3455
  %3994 = vmatmul.mubr.bf16.gmra.mxu0 %v3443
  %v3995 = vpop.f32.mrf.mxu0
  %v3996 = vadd.f32 0.0, %v3995
  %v3997 = vpop.f32.mrf.mxu0
  %v3998 = vpop.f32.mrf.mxu0
  %v3999 = vadd.f32 0.0, %v3998
  %v4000 = vpop.f32.mrf.mxu0
  %4001 = vmatprep.mubr.bf16.mxu0 %v3467
  %4002 = vmatmul.mubr.bf16.gmra.mxu0 %v3455
  %v4003 = vpop.f32.mrf.mxu0
  %v4004 = vadd.f32 0.0, %v4003
  %v4005 = vpop.f32.mrf.mxu0
  %v4006 = vpop.f32.mrf.mxu0
  %v4007 = vadd.f32 0.0, %v4006
  %v4008 = vpop.f32.mrf.mxu0
  %4009 = vmatprep.mubr.bf16.mxu0 %v3479
  %4010 = vmatmul.mubr.bf16.gmra.mxu0 %v3467
  %v4011 = vpop.f32.mrf.mxu0
  %v4012 = vadd.f32 0.0, %v4011
  %v4013 = vpop.f32.mrf.mxu0
  %v4014 = vpop.f32.mrf.mxu0
  %v4015 = vadd.f32 0.0, %v4014
  %v4016 = vpop.f32.mrf.mxu0
  %4017 = vmatprep.mubr.bf16.mxu0 %v3491
  %4018 = vmatmul.mubr.bf16.gmra.mxu0 %v3479
  %v4019 = vpop.f32.mrf.mxu0
  %v4020 = vadd.f32 0.0, %v4019
  %v4021 = vpop.f32.mrf.mxu0
  %v4022 = vpop.f32.mrf.mxu0
  %v4023 = vadd.f32 0.0, %v4022
  %v4024 = vpop.f32.mrf.mxu0
  %4025 = vmatprep.mubr.bf16.mxu0 %v3503
  %4026 = vmatmul.mubr.bf16.gmra.mxu0 %v3491
  %v4027 = vpop.f32.mrf.mxu0
  %v4028 = vadd.f32 0.0, %v4027
  %v4029 = vpop.f32.mrf.mxu0
  %v4030 = vpop.f32.mrf.mxu0
  %v4031 = vadd.f32 0.0, %v4030
  %v4032 = vpop.f32.mrf.mxu0
  %4033 = vdwg.mxu0
  %4034 = vmatprep.subr.bf16.mxu0 0
  %4035 = vmatpush1.bf16.msra.mxu0 %v3720
  %4036 = vmatprep.subr.bf16.mxu0 0
  %4037 = vmatpush1.bf16.msra.mxu0 %v3719
  %4038 = vmatprep.subr.bf16.mxu0 0
  %4039 = vmatpush1.bf16.msra.mxu0 %v3718
  %4040 = vmatprep.subr.bf16.mxu0 0
  %4041 = vmatpush1.bf16.msra.mxu0 %v3717
  %4042 = vmatprep.subr.bf16.mxu0 0
  %4043 = vmatpush1.bf16.msra.mxu0 %v3716
  %4044 = vmatprep.subr.bf16.mxu0 0
  %4045 = vmatpush1.bf16.msra.mxu0 %v3715
  %4046 = vmatprep.subr.bf16.mxu0 0
  %4047 = vmatpush1.bf16.msra.mxu0 %v3714
  %4048 = vmatprep.subr.bf16.mxu0 0
  %4049 = vmatpush1.bf16.msra.mxu0 %v3713
  %4050 = vmatprep.subr.bf16.mxu0 0
  %4051 = vmatpush2.bf16.msra.mxu0 0
  %4052 = vmatprep.subr.bf16.mxu0 0
  %4053 = vmatpush2.bf16.msra.mxu0 0
  %4054 = vmatprep.subr.bf16.mxu0 0
  %4055 = vmatpush2.bf16.msra.mxu0 0
  %4056 = vmatprep.subr.bf16.mxu0 0
  %4057 = vmatpush2.bf16.msra.mxu0 0
  %4058 = vmatprep.subr.bf16.mxu0 0
  %4059 = vmatpush2.bf16.msra.mxu0 0
  %4060 = vmatprep.subr.bf16.mxu0 0
  %4061 = vmatpush2.bf16.msra.mxu0 0
  %4062 = vmatprep.subr.bf16.mxu0 0
  %4063 = vmatpush2.bf16.msra.mxu0 0
  %4064 = vmatprep.subr.bf16.mxu0 0
  %4065 = vmatpush2.bf16.msra.mxu0 0
  %4066 = vmatprep.mubr.bf16.mxu0 0
  %4067 = vmatmul.mubr.bf16.gmra.mxu0 %v3119
  %v4068 = vpop.f32.mrf.mxu0
  %v4069 = vadd.f32 %v3780, %v4068
  %v4070 = vpop.f32.mrf.mxu0
  %v4071 = vpop.f32.mrf.mxu0
  %v4072 = vadd.f32 %v3783, %v4071
  %v4073 = vpop.f32.mrf.mxu0
  %4074 = vmatprep.mubr.bf16.mxu0 0
  %4075 = vmatmul.mubr.bf16.gmra.mxu0 %v3131
  %v4076 = vpop.f32.mrf.mxu0
  %v4077 = vadd.f32 %v3788, %v4076
  %v4078 = vpop.f32.mrf.mxu0
  %v4079 = vpop.f32.mrf.mxu0
  %v4080 = vadd.f32 %v3791, %v4079
  %v4081 = vpop.f32.mrf.mxu0
  %4082 = vmatprep.mubr.bf16.mxu0 0
  %4083 = vmatmul.mubr.bf16.gmra.mxu0 %v3143
  %v4084 = vpop.f32.mrf.mxu0
  %v4085 = vadd.f32 %v3796, %v4084
  %v4086 = vpop.f32.mrf.mxu0
  %v4087 = vpop.f32.mrf.mxu0
  %v4088 = vadd.f32 %v3799, %v4087
  %v4089 = vpop.f32.mrf.mxu0
  %4090 = vmatprep.mubr.bf16.mxu0 0
  %4091 = vmatmul.mubr.bf16.gmra.mxu0 %v3155
  %v4092 = vpop.f32.mrf.mxu0
  %v4093 = vadd.f32 %v3804, %v4092
  %v4094 = vpop.f32.mrf.mxu0
  %v4095 = vpop.f32.mrf.mxu0
  %v4096 = vadd.f32 %v3807, %v4095
  %v4097 = vpop.f32.mrf.mxu0
  %4098 = vmatprep.mubr.bf16.mxu0 0
  %4099 = vmatmul.mubr.bf16.gmra.mxu0 %v3167
  %v4100 = vpop.f32.mrf.mxu0
  %v4101 = vadd.f32 %v3812, %v4100
  %v4102 = vpop.f32.mrf.mxu0
  %v4103 = vpop.f32.mrf.mxu0
  %v4104 = vadd.f32 %v3815, %v4103
  %v4105 = vpop.f32.mrf.mxu0
  %4106 = vmatprep.mubr.bf16.mxu0 0
  %4107 = vmatmul.mubr.bf16.gmra.mxu0 %v3179
  %v4108 = vpop.f32.mrf.mxu0
  %v4109 = vadd.f32 %v3820, %v4108
  %v4110 = vpop.f32.mrf.mxu0
  %v4111 = vpop.f32.mrf.mxu0
  %v4112 = vadd.f32 %v3823, %v4111
  %v4113 = vpop.f32.mrf.mxu0
  %4114 = vmatprep.mubr.bf16.mxu0 0
  %4115 = vmatmul.mubr.bf16.gmra.mxu0 %v3191
  %v4116 = vpop.f32.mrf.mxu0
  %v4117 = vadd.f32 %v3828, %v4116
  %v4118 = vpop.f32.mrf.mxu0
  %v4119 = vpop.f32.mrf.mxu0
  %v4120 = vadd.f32 %v3831, %v4119
  %v4121 = vpop.f32.mrf.mxu0
  %4122 = vmatprep.mubr.bf16.mxu0 0
  %4123 = vmatmul.mubr.bf16.gmra.mxu0 %v3203
  %v4124 = vpop.f32.mrf.mxu0
  %v4125 = vadd.f32 %v3836, %v4124
  %v4126 = vpop.f32.mrf.mxu0
  %v4127 = vpop.f32.mrf.mxu0
  %v4128 = vadd.f32 %v3839, %v4127
  %v4129 = vpop.f32.mrf.mxu0
  %4130 = vmatprep.mubr.bf16.mxu0 0
  %4131 = vmatmul.mubr.bf16.gmra.mxu0 %v3215
  %v4132 = vpop.f32.mrf.mxu0
  %v4133 = vadd.f32 %v3844, %v4132
  %v4134 = vpop.f32.mrf.mxu0
  %v4135 = vpop.f32.mrf.mxu0
  %v4136 = vadd.f32 %v3847, %v4135
  %v4137 = vpop.f32.mrf.mxu0
  %4138 = vmatprep.mubr.bf16.mxu0 0
  %4139 = vmatmul.mubr.bf16.gmra.mxu0 %v3227
  %v4140 = vpop.f32.mrf.mxu0
  %v4141 = vadd.f32 %v3852, %v4140
  %v4142 = vpop.f32.mrf.mxu0
  %v4143 = vpop.f32.mrf.mxu0
  %v4144 = vadd.f32 %v3855, %v4143
  %v4145 = vpop.f32.mrf.mxu0
  %4146 = vmatprep.mubr.bf16.mxu0 0
  %4147 = vmatmul.mubr.bf16.gmra.mxu0 %v3239
  %v4148 = vpop.f32.mrf.mxu0
  %v4149 = vadd.f32 %v3860, %v4148
  %v4150 = vpop.f32.mrf.mxu0
  %v4151 = vpop.f32.mrf.mxu0
  %v4152 = vadd.f32 %v3863, %v4151
  %v4153 = vpop.f32.mrf.mxu0
  %4154 = vmatprep.mubr.bf16.mxu0 0
  %4155 = vmatmul.mubr.bf16.gmra.mxu0 %v3251
  %v4156 = vpop.f32.mrf.mxu0
  %v4157 = vadd.f32 %v3868, %v4156
  %v4158 = vpop.f32.mrf.mxu0
  %v4159 = vpop.f32.mrf.mxu0
  %v4160 = vadd.f32 %v3871, %v4159
  %v4161 = vpop.f32.mrf.mxu0
  %4162 = vmatprep.mubr.bf16.mxu0 0
  %4163 = vmatmul.mubr.bf16.gmra.mxu0 %v3263
  %v4164 = vpop.f32.mrf.mxu0
  %v4165 = vadd.f32 %v3876, %v4164
  %v4166 = vpop.f32.mrf.mxu0
  %v4167 = vpop.f32.mrf.mxu0
  %v4168 = vadd.f32 %v3879, %v4167
  %v4169 = vpop.f32.mrf.mxu0
  %4170 = vmatprep.mubr.bf16.mxu0 0
  %4171 = vmatmul.mubr.bf16.gmra.mxu0 %v3275
  %v4172 = vpop.f32.mrf.mxu0
  %v4173 = vadd.f32 %v3884, %v4172
  %v4174 = vpop.f32.mrf.mxu0
  %v4175 = vpop.f32.mrf.mxu0
  %v4176 = vadd.f32 %v3887, %v4175
  %v4177 = vpop.f32.mrf.mxu0
  %4178 = vmatprep.mubr.bf16.mxu0 0
  %4179 = vmatmul.mubr.bf16.gmra.mxu0 %v3287
  %v4180 = vpop.f32.mrf.mxu0
  %v4181 = vadd.f32 %v3892, %v4180
  %v4182 = vpop.f32.mrf.mxu0
  %v4183 = vpop.f32.mrf.mxu0
  %v4184 = vadd.f32 %v3895, %v4183
  %v4185 = vpop.f32.mrf.mxu0
  %4186 = vmatprep.mubr.bf16.mxu0 0
  %4187 = vmatmul.mubr.bf16.gmra.mxu0 %v3299
  %v4188 = vpop.f32.mrf.mxu0
  %v4189 = vadd.f32 %v3900, %v4188
  %v4190 = vpop.f32.mrf.mxu0
  %v4191 = vpop.f32.mrf.mxu0
  %v4192 = vadd.f32 %v3903, %v4191
  %v4193 = vpop.f32.mrf.mxu0
  %4194 = vmatprep.mubr.bf16.mxu0 0
  %4195 = vmatmul.mubr.bf16.gmra.mxu0 %v3335
  %v4196 = vpop.f32.mrf.mxu0
  %v4197 = vadd.f32 %v3908, %v4196
  %v4198 = vpop.f32.mrf.mxu0
  %v4199 = vpop.f32.mrf.mxu0
  %v4200 = vadd.f32 %v3911, %v4199
  %v4201 = vpop.f32.mrf.mxu0
  %4202 = vmatprep.mubr.bf16.mxu0 0
  %4203 = vmatmul.mubr.bf16.gmra.mxu0 %v3347
  %v4204 = vpop.f32.mrf.mxu0
  %v4205 = vadd.f32 %v3916, %v4204
  %v4206 = vpop.f32.mrf.mxu0
  %v4207 = vpop.f32.mrf.mxu0
  %v4208 = vadd.f32 %v3919, %v4207
  %v4209 = vpop.f32.mrf.mxu0
  %4210 = vmatprep.mubr.bf16.mxu0 0
  %4211 = vmatmul.mubr.bf16.gmra.mxu0 %v3359
  %v4212 = vpop.f32.mrf.mxu0
  %v4213 = vadd.f32 %v3924, %v4212
  %v4214 = vpop.f32.mrf.mxu0
  %v4215 = vpop.f32.mrf.mxu0
  %v4216 = vadd.f32 %v3927, %v4215
  %v4217 = vpop.f32.mrf.mxu0
  %4218 = vmatprep.mubr.bf16.mxu0 0
  %4219 = vmatmul.mubr.bf16.gmra.mxu0 %v3371
  %v4220 = vpop.f32.mrf.mxu0
  %v4221 = vadd.f32 %v3932, %v4220
  %v4222 = vpop.f32.mrf.mxu0
  %v4223 = vpop.f32.mrf.mxu0
  %v4224 = vadd.f32 %v3935, %v4223
  %v4225 = vpop.f32.mrf.mxu0
  %4226 = vmatprep.mubr.bf16.mxu0 0
  %4227 = vmatmul.mubr.bf16.gmra.mxu0 %v3383
  %v4228 = vpop.f32.mrf.mxu0
  %v4229 = vadd.f32 %v3940, %v4228
  %v4230 = vpop.f32.mrf.mxu0
  %v4231 = vpop.f32.mrf.mxu0
  %v4232 = vadd.f32 %v3943, %v4231
  %v4233 = vpop.f32.mrf.mxu0
  %4234 = vmatprep.mubr.bf16.mxu0 0
  %4235 = vmatmul.mubr.bf16.gmra.mxu0 %v3395
  %v4236 = vpop.f32.mrf.mxu0
  %v4237 = vadd.f32 %v3948, %v4236
  %v4238 = vpop.f32.mrf.mxu0
  %v4239 = vpop.f32.mrf.mxu0
  %v4240 = vadd.f32 %v3951, %v4239
  %v4241 = vpop.f32.mrf.mxu0
  %4242 = vmatprep.mubr.bf16.mxu0 0
  %4243 = vmatmul.mubr.bf16.gmra.mxu0 %v3407
  %v4244 = vpop.f32.mrf.mxu0
  %v4245 = vadd.f32 %v3956, %v4244
  %v4246 = vpop.f32.mrf.mxu0
  %v4247 = vpop.f32.mrf.mxu0
  %v4248 = vadd.f32 %v3959, %v4247
  %v4249 = vpop.f32.mrf.mxu0
  %4250 = vmatprep.mubr.bf16.mxu0 0
  %4251 = vmatmul.mubr.bf16.gmra.mxu0 %v3419
  %v4252 = vpop.f32.mrf.mxu0
  %v4253 = vadd.f32 %v3964, %v4252
  %v4254 = vpop.f32.mrf.mxu0
  %v4255 = vpop.f32.mrf.mxu0
  %v4256 = vadd.f32 %v3967, %v4255
  %v4257 = vpop.f32.mrf.mxu0
  %4258 = vmatprep.mubr.bf16.mxu0 0
  %4259 = vmatmul.mubr.bf16.gmra.mxu0 %v3431
  %v4260 = vpop.f32.mrf.mxu0
  %v4261 = vadd.f32 %v3972, %v4260
  %v4262 = vpop.f32.mrf.mxu0
  %v4263 = vpop.f32.mrf.mxu0
  %v4264 = vadd.f32 %v3975, %v4263
  %v4265 = vpop.f32.mrf.mxu0
  %4266 = vmatprep.mubr.bf16.mxu0 0
  %4267 = vmatmul.mubr.bf16.gmra.mxu0 %v3443
  %v4268 = vpop.f32.mrf.mxu0
  %v4269 = vadd.f32 %v3980, %v4268
  %v4270 = vpop.f32.mrf.mxu0
  %v4271 = vpop.f32.mrf.mxu0
  %v4272 = vadd.f32 %v3983, %v4271
  %v4273 = vpop.f32.mrf.mxu0
  %4274 = vmatprep.mubr.bf16.mxu0 0
  %4275 = vmatmul.mubr.bf16.gmra.mxu0 %v3455
  %v4276 = vpop.f32.mrf.mxu0
  %v4277 = vadd.f32 %v3988, %v4276
  %v4278 = vpop.f32.mrf.mxu0
  %v4279 = vpop.f32.mrf.mxu0
  %v4280 = vadd.f32 %v3991, %v4279
  %v4281 = vpop.f32.mrf.mxu0
  %4282 = vmatprep.mubr.bf16.mxu0 0
  %4283 = vmatmul.mubr.bf16.gmra.mxu0 %v3467
  %v4284 = vpop.f32.mrf.mxu0
  %v4285 = vadd.f32 %v3996, %v4284
  %v4286 = vpop.f32.mrf.mxu0
  %v4287 = vpop.f32.mrf.mxu0
  %v4288 = vadd.f32 %v3999, %v4287
  %v4289 = vpop.f32.mrf.mxu0
  %4290 = vmatprep.mubr.bf16.mxu0 0
  %4291 = vmatmul.mubr.bf16.gmra.mxu0 %v3479
  %v4292 = vpop.f32.mrf.mxu0
  %v4293 = vadd.f32 %v4004, %v4292
  %v4294 = vpop.f32.mrf.mxu0
  %v4295 = vpop.f32.mrf.mxu0
  %v4296 = vadd.f32 %v4007, %v4295
  %v4297 = vpop.f32.mrf.mxu0
  %4298 = vmatprep.mubr.bf16.mxu0 0
  %4299 = vmatmul.mubr.bf16.gmra.mxu0 %v3491
  %v4300 = vpop.f32.mrf.mxu0
  %v4301 = vadd.f32 %v4012, %v4300
  %v4302 = vpop.f32.mrf.mxu0
  %v4303 = vpop.f32.mrf.mxu0
  %v4304 = vadd.f32 %v4015, %v4303
  %v4305 = vpop.f32.mrf.mxu0
  %4306 = vmatprep.mubr.bf16.mxu0 0
  %4307 = vmatmul.mubr.bf16.gmra.mxu0 %v3503
  %v4308 = vpop.f32.mrf.mxu0
  %v4309 = vadd.f32 %v4020, %v4308
  %v4310 = vpop.f32.mrf.mxu0
  %v4311 = vpop.f32.mrf.mxu0
  %v4312 = vadd.f32 %v4023, %v4311
  %v4313 = vpop.f32.mrf.mxu0
  %4314 = vmatprep.mubr.bf16.mxu0 0
  %4315 = vmatmul.mubr.bf16.gmra.mxu0 %v3515
  %v4316 = vpop.f32.mrf.mxu0
  %v4317 = vadd.f32 %v4028, %v4316
  %v4318 = vpop.f32.mrf.mxu0
  %v4319 = vpop.f32.mrf.mxu0
  %v4320 = vadd.f32 %v4031, %v4319
  %v4321 = vpop.f32.mrf.mxu0
  %4322 = vdwg.mxu0
  %v4323 = vadd.f32 %v2433, %v4069
  %v4324 = vadd.f32 %v2436, %v4072
  %v4325 = vadd.f32 %v2441, %v4077
  %v4326 = vadd.f32 %v2444, %v4080
  %v4327 = vadd.f32 %v2449, %v4085
  %v4328 = vadd.f32 %v2452, %v4088
  %v4329 = vadd.f32 %v2457, %v4093
  %v4330 = vadd.f32 %v2460, %v4096
  %v4331 = vadd.f32 %v2465, %v4101
  %v4332 = vadd.f32 %v2468, %v4104
  %v4333 = vadd.f32 %v2473, %v4109
  %v4334 = vadd.f32 %v2476, %v4112
  %v4335 = vadd.f32 %v2481, %v4117
  %v4336 = vadd.f32 %v2484, %v4120
  %v4337 = vadd.f32 %v2489, %v4125
  %v4338 = vadd.f32 %v2492, %v4128
  %v4339 = vadd.f32 %v2497, %v4133
  %v4340 = vadd.f32 %v2500, %v4136
  %v4341 = vadd.f32 %v2505, %v4141
  %v4342 = vadd.f32 %v2508, %v4144
  %v4343 = vadd.f32 %v2513, %v4149
  %v4344 = vadd.f32 %v2516, %v4152
  %v4345 = vadd.f32 %v2521, %v4157
  %v4346 = vadd.f32 %v2524, %v4160
  %v4347 = vadd.f32 %v2529, %v4165
  %v4348 = vadd.f32 %v2532, %v4168
  %v4349 = vadd.f32 %v2537, %v4173
  %v4350 = vadd.f32 %v2540, %v4176
  %v4351 = vadd.f32 %v2545, %v4181
  %v4352 = vadd.f32 %v2548, %v4184
  %v4353 = vadd.f32 %v2553, %v4189
  %v4354 = vadd.f32 %v2556, %v4192
  %v4355 = vadd.f32 %v2561, %v4197
  %v4356 = vadd.f32 %v2564, %v4200
  %v4357 = vadd.f32 %v2569, %v4205
  %v4358 = vadd.f32 %v2572, %v4208
  %v4359 = vadd.f32 %v2577, %v4213
  %v4360 = vadd.f32 %v2580, %v4216
  %v4361 = vadd.f32 %v2585, %v4221
  %v4362 = vadd.f32 %v2588, %v4224
  %v4363 = vadd.f32 %v2593, %v4229
  %v4364 = vadd.f32 %v2596, %v4232
  %v4365 = vadd.f32 %v2601, %v4237
  %v4366 = vadd.f32 %v2604, %v4240
  %v4367 = vadd.f32 %v2609, %v4245
  %v4368 = vadd.f32 %v2612, %v4248
  %v4369 = vadd.f32 %v2617, %v4253
  %v4370 = vadd.f32 %v2620, %v4256
  %v4371 = vadd.f32 %v2625, %v4261
  %v4372 = vadd.f32 %v2628, %v4264
  %v4373 = vadd.f32 %v2633, %v4269
  %v4374 = vadd.f32 %v2636, %v4272
  %v4375 = vadd.f32 %v2641, %v4277
  %v4376 = vadd.f32 %v2644, %v4280
  %v4377 = vadd.f32 %v2649, %v4285
  %v4378 = vadd.f32 %v2652, %v4288
  %v4379 = vadd.f32 %v2657, %v4293
  %v4380 = vadd.f32 %v2660, %v4296
  %v4381 = vadd.f32 %v2665, %v4301
  %v4382 = vadd.f32 %v2668, %v4304
  %v4383 = vadd.f32 %v2673, %v4309
  %v4384 = vadd.f32 %v2676, %v4312
  %v4385 = vadd.f32 %v2681, %v4317
  %v4386 = vadd.f32 %v2684, %v4320
  %v4387 = vadd.f32 %v4323, %v4324
  %v4388 = vadd.f32 %v4387, %v4325
  %v4389 = vadd.f32 %v4388, %v4326
  %v4390 = vadd.f32 %v4389, %v4327
  %v4391 = vadd.f32 %v4390, %v4328
  %v4392 = vadd.f32 %v4391, %v4329
  %v4393 = vadd.f32 %v4392, %v4330
  %v4394 = vadd.f32 %v4393, %v4331
  %v4395 = vadd.f32 %v4394, %v4332
  %v4396 = vadd.f32 %v4395, %v4333
  %v4397 = vadd.f32 %v4396, %v4334
  %v4398 = vadd.f32 %v4397, %v4335
  %v4399 = vadd.f32 %v4398, %v4336
  %v4400 = vadd.f32 %v4399, %v4337
  %v4401 = vadd.f32 %v4400, %v4338
  %v4402 = vadd.f32 %v4401, %v4339
  %v4403 = vadd.f32 %v4402, %v4340
  %v4404 = vadd.f32 %v4403, %v4341
  %v4405 = vadd.f32 %v4404, %v4342
  %v4406 = vadd.f32 %v4405, %v4343
  %v4407 = vadd.f32 %v4406, %v4344
  %v4408 = vadd.f32 %v4407, %v4345
  %v4409 = vadd.f32 %v4408, %v4346
  %v4410 = vadd.f32 %v4409, %v4347
  %v4411 = vadd.f32 %v4410, %v4348
  %v4412 = vadd.f32 %v4411, %v4349
  %v4413 = vadd.f32 %v4412, %v4350
  %v4414 = vadd.f32 %v4413, %v4351
  %v4415 = vadd.f32 %v4414, %v4352
  %v4416 = vadd.f32 %v4415, %v4353
  %v4417 = vadd.f32 %v4416, %v4354
  %v4418 = vadd.f32 %v4417, %v4355
  %v4419 = vadd.f32 %v4418, %v4356
  %v4420 = vadd.f32 %v4419, %v4357
  %v4421 = vadd.f32 %v4420, %v4358
  %v4422 = vadd.f32 %v4421, %v4359
  %v4423 = vadd.f32 %v4422, %v4360
  %v4424 = vadd.f32 %v4423, %v4361
  %v4425 = vadd.f32 %v4424, %v4362
  %v4426 = vadd.f32 %v4425, %v4363
  %v4427 = vadd.f32 %v4426, %v4364
  %v4428 = vadd.f32 %v4427, %v4365
  %v4429 = vadd.f32 %v4428, %v4366
  %v4430 = vadd.f32 %v4429, %v4367
  %v4431 = vadd.f32 %v4430, %v4368
  %v4432 = vadd.f32 %v4431, %v4369
  %v4433 = vadd.f32 %v4432, %v4370
  %v4434 = vadd.f32 %v4433, %v4371
  %v4435 = vadd.f32 %v4434, %v4372
  %v4436 = vadd.f32 %v4435, %v4373
  %v4437 = vadd.f32 %v4436, %v4374
  %v4438 = vadd.f32 %v4437, %v4375
  %v4439 = vadd.f32 %v4438, %v4376
  %v4440 = vadd.f32 %v4439, %v4377
  %v4441 = vadd.f32 %v4440, %v4378
  %v4442 = vadd.f32 %v4441, %v4379
  %v4443 = vadd.f32 %v4442, %v4380
  %v4444 = vadd.f32 %v4443, %v4381
  %v4445 = vadd.f32 %v4444, %v4382
  %v4446 = vadd.f32 %v4445, %v4383
  %v4447 = vadd.f32 %v4446, %v4384
  %v4448 = vadd.f32 %v4447, %v4385
  %v4449 = vadd.f32 %v4448, %v4386
  %v4450 = vrot.slane %v4449, 4
  %v4451 = vadd.f32 %v4449, %v4450
  %v4452 = vrot.slane %v4451, 2
  %v4453 = vadd.f32 %v4451, %v4452
  %v4454 = vrot.slane %v4453, 1
  %v4455 = vadd.f32 %v4453, %v4454
  %v4456 = vmul.f32 %v4323, %v4323
  %v4457 = vmul.f32 %v4324, %v4324
  %v4458 = vmul.f32 %v4325, %v4325
  %v4459 = vmul.f32 %v4326, %v4326
  %v4460 = vmul.f32 %v4327, %v4327
  %v4461 = vmul.f32 %v4328, %v4328
  %v4462 = vmul.f32 %v4329, %v4329
  %v4463 = vmul.f32 %v4330, %v4330
  %v4464 = vmul.f32 %v4331, %v4331
  %v4465 = vmul.f32 %v4332, %v4332
  %v4466 = vmul.f32 %v4333, %v4333
  %v4467 = vmul.f32 %v4334, %v4334
  %v4468 = vmul.f32 %v4335, %v4335
  %v4469 = vmul.f32 %v4336, %v4336
  %v4470 = vmul.f32 %v4337, %v4337
  %v4471 = vmul.f32 %v4338, %v4338
  %v4472 = vmul.f32 %v4339, %v4339
  %v4473 = vmul.f32 %v4340, %v4340
  %v4474 = vmul.f32 %v4341, %v4341
  %v4475 = vmul.f32 %v4342, %v4342
  %v4476 = vmul.f32 %v4343, %v4343
  %v4477 = vmul.f32 %v4344, %v4344
  %v4478 = vmul.f32 %v4345, %v4345
  %v4479 = vmul.f32 %v4346, %v4346
  %v4480 = vmul.f32 %v4347, %v4347
  %v4481 = vmul.f32 %v4348, %v4348
  %v4482 = vmul.f32 %v4349, %v4349
  %v4483 = vmul.f32 %v4350, %v4350
  %v4484 = vmul.f32 %v4351, %v4351
  %v4485 = vmul.f32 %v4352, %v4352
  %v4486 = vmul.f32 %v4353, %v4353
  %v4487 = vmul.f32 %v4354, %v4354
  %v4488 = vmul.f32 %v4355, %v4355
  %v4489 = vmul.f32 %v4356, %v4356
  %v4490 = vmul.f32 %v4357, %v4357
  %v4491 = vmul.f32 %v4358, %v4358
  %v4492 = vmul.f32 %v4359, %v4359
  %v4493 = vmul.f32 %v4360, %v4360
  %v4494 = vmul.f32 %v4361, %v4361
  %v4495 = vmul.f32 %v4362, %v4362
  %v4496 = vmul.f32 %v4363, %v4363
  %v4497 = vmul.f32 %v4364, %v4364
  %v4498 = vmul.f32 %v4365, %v4365
  %v4499 = vmul.f32 %v4366, %v4366
  %v4500 = vmul.f32 %v4367, %v4367
  %v4501 = vmul.f32 %v4368, %v4368
  %v4502 = vmul.f32 %v4369, %v4369
  %v4503 = vmul.f32 %v4370, %v4370
  %v4504 = vmul.f32 %v4371, %v4371
  %v4505 = vmul.f32 %v4372, %v4372
  %v4506 = vmul.f32 %v4373, %v4373
  %v4507 = vmul.f32 %v4374, %v4374
  %v4508 = vmul.f32 %v4375, %v4375
  %v4509 = vmul.f32 %v4376, %v4376
  %v4510 = vmul.f32 %v4377, %v4377
  %v4511 = vmul.f32 %v4378, %v4378
  %v4512 = vmul.f32 %v4379, %v4379
  %v4513 = vmul.f32 %v4380, %v4380
  %v4514 = vmul.f32 %v4381, %v4381
  %v4515 = vmul.f32 %v4382, %v4382
  %v4516 = vmul.f32 %v4383, %v4383
  %v4517 = vmul.f32 %v4384, %v4384
  %v4518 = vmul.f32 %v4385, %v4385
  %v4519 = vmul.f32 %v4386, %v4386
  %v4520 = vadd.f32 %v4456, %v4457
  %v4521 = vadd.f32 %v4520, %v4458
  %v4522 = vadd.f32 %v4521, %v4459
  %v4523 = vadd.f32 %v4522, %v4460
  %v4524 = vadd.f32 %v4523, %v4461
  %v4525 = vadd.f32 %v4524, %v4462
  %v4526 = vadd.f32 %v4525, %v4463
  %v4527 = vadd.f32 %v4526, %v4464
  %v4528 = vadd.f32 %v4527, %v4465
  %v4529 = vadd.f32 %v4528, %v4466
  %v4530 = vadd.f32 %v4529, %v4467
  %v4531 = vadd.f32 %v4530, %v4468
  %v4532 = vadd.f32 %v4531, %v4469
  %v4533 = vadd.f32 %v4532, %v4470
  %v4534 = vadd.f32 %v4533, %v4471
  %v4535 = vadd.f32 %v4534, %v4472
  %v4536 = vadd.f32 %v4535, %v4473
  %v4537 = vadd.f32 %v4536, %v4474
  %v4538 = vadd.f32 %v4537, %v4475
  %v4539 = vadd.f32 %v4538, %v4476
  %v4540 = vadd.f32 %v4539, %v4477
  %v4541 = vadd.f32 %v4540, %v4478
  %v4542 = vadd.f32 %v4541, %v4479
  %v4543 = vadd.f32 %v4542, %v4480
  %v4544 = vadd.f32 %v4543, %v4481
  %v4545 = vadd.f32 %v4544, %v4482
  %v4546 = vadd.f32 %v4545, %v4483
  %v4547 = vadd.f32 %v4546, %v4484
  %v4548 = vadd.f32 %v4547, %v4485
  %v4549 = vadd.f32 %v4548, %v4486
  %v4550 = vadd.f32 %v4549, %v4487
  %v4551 = vadd.f32 %v4550, %v4488
  %v4552 = vadd.f32 %v4551, %v4489
  %v4553 = vadd.f32 %v4552, %v4490
  %v4554 = vadd.f32 %v4553, %v4491
  %v4555 = vadd.f32 %v4554, %v4492
  %v4556 = vadd.f32 %v4555, %v4493
  %v4557 = vadd.f32 %v4556, %v4494
  %v4558 = vadd.f32 %v4557, %v4495
  %v4559 = vadd.f32 %v4558, %v4496
  %v4560 = vadd.f32 %v4559, %v4497
  %v4561 = vadd.f32 %v4560, %v4498
  %v4562 = vadd.f32 %v4561, %v4499
  %v4563 = vadd.f32 %v4562, %v4500
  %v4564 = vadd.f32 %v4563, %v4501
  %v4565 = vadd.f32 %v4564, %v4502
  %v4566 = vadd.f32 %v4565, %v4503
  %v4567 = vadd.f32 %v4566, %v4504
  %v4568 = vadd.f32 %v4567, %v4505
  %v4569 = vadd.f32 %v4568, %v4506
  %v4570 = vadd.f32 %v4569, %v4507
  %v4571 = vadd.f32 %v4570, %v4508
  %v4572 = vadd.f32 %v4571, %v4509
  %v4573 = vadd.f32 %v4572, %v4510
  %v4574 = vadd.f32 %v4573, %v4511
  %v4575 = vadd.f32 %v4574, %v4512
  %v4576 = vadd.f32 %v4575, %v4513
  %v4577 = vadd.f32 %v4576, %v4514
  %v4578 = vadd.f32 %v4577, %v4515
  %v4579 = vadd.f32 %v4578, %v4516
  %v4580 = vadd.f32 %v4579, %v4517
  %v4581 = vadd.f32 %v4580, %v4518
  %v4582 = vadd.f32 %v4581, %v4519
  %v4583 = vrot.slane %v4582, 4
  %v4584 = vadd.f32 %v4582, %v4583
  %v4585 = vrot.slane %v4584, 2
  %v4586 = vadd.f32 %v4584, %v4585
  %v4587 = vrot.slane %v4586, 1
  %v4588 = vadd.f32 %v4586, %v4587
  %v4589 = vmul.f32 %v4455, 0.001953125
  %v4590 = vmul.f32 %v4588, 0.001953125
  %v4591 = vmul.f32 %v4589, %v4589
  %v4592 = vsub.f32 %v4590, %v4591
  %v4593 = vld [vmem:[%s3] sm:$0x1]
  %v4594 = vadd.f32 %v4592, 1e-05
  %v4595 = vrsqrt.pop %v4594
  %v4596 = vmul.f32 %v4593, %v4595
  %v4597 = vld [vmem:[%s4] sm:$0x1]
  %v4598 = vmul.f32 %v4589, %v4596
  %v4599 = vsub.f32 %v4597, %v4598
  %v4601 = vlaneseq
  %v4602 = vshrl.u32 %v4601, 7
  %v4603 = vsub.s32 0, %v4602
  %v4604 = vrot.slane %v4596, %v4603
  %v4606 = vmul.f32 %v4323, %v4604
  %v4607 = vmul.f32 %v4324, %v4604
  %v4608 = vmul.f32 %v4325, %v4604
  %v4609 = vmul.f32 %v4326, %v4604
  %v4610 = vmul.f32 %v4327, %v4604
  %v4611 = vmul.f32 %v4328, %v4604
  %v4612 = vmul.f32 %v4329, %v4604
  %v4613 = vmul.f32 %v4330, %v4604
  %v4614 = vmul.f32 %v4331, %v4604
  %v4615 = vmul.f32 %v4332, %v4604
  %v4616 = vmul.f32 %v4333, %v4604
  %v4617 = vmul.f32 %v4334, %v4604
  %v4618 = vmul.f32 %v4335, %v4604
  %v4619 = vmul.f32 %v4336, %v4604
  %v4620 = vmul.f32 %v4337, %v4604
  %v4621 = vmul.f32 %v4338, %v4604
  %v4622 = vmul.f32 %v4339, %v4604
  %v4623 = vmul.f32 %v4340, %v4604
  %v4624 = vmul.f32 %v4341, %v4604
  %v4625 = vmul.f32 %v4342, %v4604
  %v4626 = vmul.f32 %v4343, %v4604
  %v4627 = vmul.f32 %v4344, %v4604
  %v4628 = vmul.f32 %v4345, %v4604
  %v4629 = vmul.f32 %v4346, %v4604
  %v4630 = vmul.f32 %v4347, %v4604
  %v4631 = vmul.f32 %v4348, %v4604
  %v4632 = vmul.f32 %v4349, %v4604
  %v4633 = vmul.f32 %v4350, %v4604
  %v4634 = vmul.f32 %v4351, %v4604
  %v4635 = vmul.f32 %v4352, %v4604
  %v4636 = vmul.f32 %v4353, %v4604
  %v4637 = vmul.f32 %v4354, %v4604
  %v4638 = vmul.f32 %v4355, %v4604
  %v4639 = vmul.f32 %v4356, %v4604
  %v4640 = vmul.f32 %v4357, %v4604
  %v4641 = vmul.f32 %v4358, %v4604
  %v4642 = vmul.f32 %v4359, %v4604
  %v4643 = vmul.f32 %v4360, %v4604
  %v4644 = vmul.f32 %v4361, %v4604
  %v4645 = vmul.f32 %v4362, %v4604
  %v4646 = vmul.f32 %v4363, %v4604
  %v4647 = vmul.f32 %v4364, %v4604
  %v4648 = vmul.f32 %v4365, %v4604
  %v4649 = vmul.f32 %v4366, %v4604
  %v4650 = vmul.f32 %v4367, %v4604
  %v4651 = vmul.f32 %v4368, %v4604
  %v4652 = vmul.f32 %v4369, %v4604
  %v4653 = vmul.f32 %v4370, %v4604
  %v4654 = vmul.f32 %v4371, %v4604
  %v4655 = vmul.f32 %v4372, %v4604
  %v4656 = vmul.f32 %v4373, %v4604
  %v4657 = vmul.f32 %v4374, %v4604
  %v4658 = vmul.f32 %v4375, %v4604
  %v4659 = vmul.f32 %v4376, %v4604
  %v4660 = vmul.f32 %v4377, %v4604
  %v4661 = vmul.f32 %v4378, %v4604
  %v4662 = vmul.f32 %v4379, %v4604
  %v4663 = vmul.f32 %v4380, %v4604
  %v4664 = vmul.f32 %v4381, %v4604
  %v4665 = vmul.f32 %v4382, %v4604
  %v4666 = vmul.f32 %v4383, %v4604
  %v4667 = vmul.f32 %v4384, %v4604
  %v4668 = vmul.f32 %v4385, %v4604
  %v4669 = vmul.f32 %v4386, %v4604
  %v4671 = vlaneseq
  %v4672 = vshrl.u32 %v4671, 7
  %v4673 = vsub.s32 0, %v4672
  %v4674 = vrot.slane %v4599, %v4673
  %v4676 = vadd.f32 %v4606, %v4674
  %v4677 = vadd.f32 %v4607, %v4674
  %v4678 = vadd.f32 %v4608, %v4674
  %v4679 = vadd.f32 %v4609, %v4674
  %v4680 = vadd.f32 %v4610, %v4674
  %v4681 = vadd.f32 %v4611, %v4674
  %v4682 = vadd.f32 %v4612, %v4674
  %v4683 = vadd.f32 %v4613, %v4674
  %v4684 = vadd.f32 %v4614, %v4674
  %v4685 = vadd.f32 %v4615, %v4674
  %v4686 = vadd.f32 %v4616, %v4674
  %v4687 = vadd.f32 %v4617, %v4674
  %v4688 = vadd.f32 %v4618, %v4674
  %v4689 = vadd.f32 %v4619, %v4674
  %v4690 = vadd.f32 %v4620, %v4674
  %v4691 = vadd.f32 %v4621, %v4674
  %v4692 = vadd.f32 %v4622, %v4674
  %v4693 = vadd.f32 %v4623, %v4674
  %v4694 = vadd.f32 %v4624, %v4674
  %v4695 = vadd.f32 %v4625, %v4674
  %v4696 = vadd.f32 %v4626, %v4674
  %v4697 = vadd.f32 %v4627, %v4674
  %v4698 = vadd.f32 %v4628, %v4674
  %v4699 = vadd.f32 %v4629, %v4674
  %v4700 = vadd.f32 %v4630, %v4674
  %v4701 = vadd.f32 %v4631, %v4674
  %v4702 = vadd.f32 %v4632, %v4674
  %v4703 = vadd.f32 %v4633, %v4674
  %v4704 = vadd.f32 %v4634, %v4674
  %v4705 = vadd.f32 %v4635, %v4674
  %v4706 = vadd.f32 %v4636, %v4674
  %v4707 = vadd.f32 %v4637, %v4674
  %v4708 = vadd.f32 %v4638, %v4674
  %v4709 = vadd.f32 %v4639, %v4674
  %v4710 = vadd.f32 %v4640, %v4674
  %v4711 = vadd.f32 %v4641, %v4674
  %v4712 = vadd.f32 %v4642, %v4674
  %v4713 = vadd.f32 %v4643, %v4674
  %v4714 = vadd.f32 %v4644, %v4674
  %v4715 = vadd.f32 %v4645, %v4674
  %v4716 = vadd.f32 %v4646, %v4674
  %v4717 = vadd.f32 %v4647, %v4674
  %v4718 = vadd.f32 %v4648, %v4674
  %v4719 = vadd.f32 %v4649, %v4674
  %v4720 = vadd.f32 %v4650, %v4674
  %v4721 = vadd.f32 %v4651, %v4674
  %v4722 = vadd.f32 %v4652, %v4674
  %v4723 = vadd.f32 %v4653, %v4674
  %v4724 = vadd.f32 %v4654, %v4674
  %v4725 = vadd.f32 %v4655, %v4674
  %v4726 = vadd.f32 %v4656, %v4674
  %v4727 = vadd.f32 %v4657, %v4674
  %v4728 = vadd.f32 %v4658, %v4674
  %v4729 = vadd.f32 %v4659, %v4674
  %v4730 = vadd.f32 %v4660, %v4674
  %v4731 = vadd.f32 %v4661, %v4674
  %v4732 = vadd.f32 %v4662, %v4674
  %v4733 = vadd.f32 %v4663, %v4674
  %v4734 = vadd.f32 %v4664, %v4674
  %v4735 = vadd.f32 %v4665, %v4674
  %v4736 = vadd.f32 %v4666, %v4674
  %v4737 = vadd.f32 %v4667, %v4674
  %v4738 = vadd.f32 %v4668, %v4674
  %v4739 = vadd.f32 %v4669, %v4674
  %v4740 = vmax.f32 %v4676, 0.0
  %v4741 = vmax.f32 %v4677, 0.0
  %v4742 = vmax.f32 %v4678, 0.0
  %v4743 = vmax.f32 %v4679, 0.0
  %v4744 = vmax.f32 %v4680, 0.0
  %v4745 = vmax.f32 %v4681, 0.0
  %v4746 = vmax.f32 %v4682, 0.0
  %v4747 = vmax.f32 %v4683, 0.0
  %v4748 = vmax.f32 %v4684, 0.0
  %v4749 = vmax.f32 %v4685, 0.0
  %v4750 = vmax.f32 %v4686, 0.0
  %v4751 = vmax.f32 %v4687, 0.0
  %v4752 = vmax.f32 %v4688, 0.0
  %v4753 = vmax.f32 %v4689, 0.0
  %v4754 = vmax.f32 %v4690, 0.0
  %v4755 = vmax.f32 %v4691, 0.0
  %v4756 = vmax.f32 %v4692, 0.0
  %v4757 = vmax.f32 %v4693, 0.0
  %v4758 = vmax.f32 %v4694, 0.0
  %v4759 = vmax.f32 %v4695, 0.0
  %v4760 = vmax.f32 %v4696, 0.0
  %v4761 = vmax.f32 %v4697, 0.0
  %v4762 = vmax.f32 %v4698, 0.0
  %v4763 = vmax.f32 %v4699, 0.0
  %v4764 = vmax.f32 %v4700, 0.0
  %v4765 = vmax.f32 %v4701, 0.0
  %v4766 = vmax.f32 %v4702, 0.0
  %v4767 = vmax.f32 %v4703, 0.0
  %v4768 = vmax.f32 %v4704, 0.0
  %v4769 = vmax.f32 %v4705, 0.0
  %v4770 = vmax.f32 %v4706, 0.0
  %v4771 = vmax.f32 %v4707, 0.0
  %v4772 = vmax.f32 %v4708, 0.0
  %v4773 = vmax.f32 %v4709, 0.0
  %v4774 = vmax.f32 %v4710, 0.0
  %v4775 = vmax.f32 %v4711, 0.0
  %v4776 = vmax.f32 %v4712, 0.0
  %v4777 = vmax.f32 %v4713, 0.0
  %v4778 = vmax.f32 %v4714, 0.0
  %v4779 = vmax.f32 %v4715, 0.0
  %v4780 = vmax.f32 %v4716, 0.0
  %v4781 = vmax.f32 %v4717, 0.0
  %v4782 = vmax.f32 %v4718, 0.0
  %v4783 = vmax.f32 %v4719, 0.0
  %v4784 = vmax.f32 %v4720, 0.0
  %v4785 = vmax.f32 %v4721, 0.0
  %v4786 = vmax.f32 %v4722, 0.0
  %v4787 = vmax.f32 %v4723, 0.0
  %v4788 = vmax.f32 %v4724, 0.0
  %v4789 = vmax.f32 %v4725, 0.0
  %v4790 = vmax.f32 %v4726, 0.0
  %v4791 = vmax.f32 %v4727, 0.0
  %v4792 = vmax.f32 %v4728, 0.0
  %v4793 = vmax.f32 %v4729, 0.0
  %v4794 = vmax.f32 %v4730, 0.0
  %v4795 = vmax.f32 %v4731, 0.0
  %v4796 = vmax.f32 %v4732, 0.0
  %v4797 = vmax.f32 %v4733, 0.0
  %v4798 = vmax.f32 %v4734, 0.0
  %v4799 = vmax.f32 %v4735, 0.0
  %v4800 = vmax.f32 %v4736, 0.0
  %v4801 = vmax.f32 %v4737, 0.0
  %v4802 = vmax.f32 %v4738, 0.0
  %v4803 = vmax.f32 %v4739, 0.0
  %4804 = vst [vmem:[#allocation2] sm:$0xf] 0
  %4805 = vst [vmem:[#allocation2 + $0x4] sm:$0xf] 0
  %4806 = vst [vmem:[#allocation2 + $0x8] sm:$0xf] 0
  %4807 = vst [vmem:[#allocation2 + $0xc] sm:$0xf] 0
  %4808 = vst [vmem:[#allocation2 + $0x10] sm:$0xf] 0
  %4809 = vst [vmem:[#allocation2 + $0x14] sm:$0xf] 0
  %4810 = vst [vmem:[#allocation2 + $0x1b0] sm:$0xf] 0
  %4811 = vst [vmem:[#allocation2 + $0x1b4] sm:$0xf] 0
  %4812 = vst [vmem:[#allocation2 + $0x1b8] sm:$0xf] 0
  %4813 = vst [vmem:[#allocation2 + $0x1bc] sm:$0xf] 0
  %4814 = vst [vmem:[#allocation2 + $0x1c0] sm:$0xf] 0
  %4815 = vst [vmem:[#allocation2 + $0x1c4] sm:$0xf] 0
  %s4816 = scalar_lea.vmem [#allocation2], 408
  %4817 = vst [vmem:[%s4816] sm:$0xf] 0
  %4818 = vst [vmem:[%s4816 + $0x4] sm:$0xf] 0
  %4819 = vst [vmem:[%s4816 + $0x8] sm:$0xf] 0
  %4820 = vst [vmem:[%s4816 + $0xc] sm:$0xf] 0
  %4821 = vst [vmem:[%s4816 + $0x10] sm:$0xf] 0
  %4822 = vst [vmem:[%s4816 + $0x14] sm:$0xf] 0
  %4823 = vst [vmem:[%s4816 + $0x1b0] sm:$0xf] 0
  %4824 = vst [vmem:[%s4816 + $0x1b4] sm:$0xf] 0
  %4825 = vst [vmem:[%s4816 + $0x1b8] sm:$0xf] 0
  %4826 = vst [vmem:[%s4816 + $0x1bc] sm:$0xf] 0
  %4827 = vst [vmem:[%s4816 + $0x1c0] sm:$0xf] 0
  %4828 = vst [vmem:[%s4816 + $0x1c4] sm:$0xf] 0
  %s4829 = scalar_lea.vmem [#allocation2], 24
  %4830 = vst [vmem:[%s4829] sm:$0xf] 0
  %4831 = vst [vmem:[%s4829 + $0x4] sm:$0xf] 0
  %4832 = vst [vmem:[%s4829 + $0x18] sm:$0xf] 0
  %4833 = vst [vmem:[%s4829 + $0x1c] sm:$0xf] 0
  %4834 = vst [vmem:[%s4829 + $0x30] sm:$0xf] 0
  %4835 = vst [vmem:[%s4829 + $0x34] sm:$0xf] 0
  %4836 = vst [vmem:[%s4829 + $0x48] sm:$0xf] 0
  %4837 = vst [vmem:[%s4829 + $0x4c] sm:$0xf] 0
  %4838 = vst [vmem:[%s4829 + $0x60] sm:$0xf] 0
  %4839 = vst [vmem:[%s4829 + $0x64] sm:$0xf] 0
  %4840 = vst [vmem:[%s4829 + $0x78] sm:$0xf] 0
  %4841 = vst [vmem:[%s4829 + $0x7c] sm:$0xf] 0
  %4842 = vst [vmem:[%s4829 + $0x90] sm:$0xf] 0
  %4843 = vst [vmem:[%s4829 + $0x94] sm:$0xf] 0
  %4844 = vst [vmem:[%s4829 + $0xa8] sm:$0xf] 0
  %4845 = vst [vmem:[%s4829 + $0xac] sm:$0xf] 0
  %4846 = vst [vmem:[%s4829 + $0xc0] sm:$0xf] 0
  %4847 = vst [vmem:[%s4829 + $0xc4] sm:$0xf] 0
  %4848 = vst [vmem:[%s4829 + $0xd8] sm:$0xf] 0
  %4849 = vst [vmem:[%s4829 + $0xdc] sm:$0xf] 0
  %4850 = vst [vmem:[%s4829 + $0xf0] sm:$0xf] 0
  %4851 = vst [vmem:[%s4829 + $0xf4] sm:$0xf] 0
  %4852 = vst [vmem:[%s4829 + $0x108] sm:$0xf] 0
  %4853 = vst [vmem:[%s4829 + $0x10c] sm:$0xf] 0
  %4854 = vst [vmem:[%s4829 + $0x120] sm:$0xf] 0
  %4855 = vst [vmem:[%s4829 + $0x124] sm:$0xf] 0
  %4856 = vst [vmem:[%s4829 + $0x138] sm:$0xf] 0
  %4857 = vst [vmem:[%s4829 + $0x13c] sm:$0xf] 0
  %4858 = vst [vmem:[%s4829 + $0x150] sm:$0xf] 0
  %4859 = vst [vmem:[%s4829 + $0x154] sm:$0xf] 0
  %4860 = vst [vmem:[%s4829 + $0x168] sm:$0xf] 0
  %4861 = vst [vmem:[%s4829 + $0x16c] sm:$0xf] 0
  %4862 = vst [vmem:[%s4829 + $0x1b0] sm:$0xf] 0
  %4863 = vst [vmem:[%s4829 + $0x1b4] sm:$0xf] 0
  %4864 = vst [vmem:[%s4829 + $0x1c8] sm:$0xf] 0
  %4865 = vst [vmem:[%s4829 + $0x1cc] sm:$0xf] 0
  %4866 = vst [vmem:[%s4829 + $0x1e0] sm:$0xf] 0
  %4867 = vst [vmem:[%s4829 + $0x1e4] sm:$0xf] 0
  %4868 = vst [vmem:[%s4829 + $0x1f8] sm:$0xf] 0
  %4869 = vst [vmem:[%s4829 + $0x1fc] sm:$0xf] 0
  %4870 = vst [vmem:[%s4829 + $0x210] sm:$0xf] 0
  %4871 = vst [vmem:[%s4829 + $0x214] sm:$0xf] 0
  %4872 = vst [vmem:[%s4829 + $0x228] sm:$0xf] 0
  %4873 = vst [vmem:[%s4829 + $0x22c] sm:$0xf] 0
  %4874 = vst [vmem:[%s4829 + $0x240] sm:$0xf] 0
  %4875 = vst [vmem:[%s4829 + $0x244] sm:$0xf] 0
  %4876 = vst [vmem:[%s4829 + $0x258] sm:$0xf] 0
  %4877 = vst [vmem:[%s4829 + $0x25c] sm:$0xf] 0
  %4878 = vst [vmem:[%s4829 + $0x270] sm:$0xf] 0
  %4879 = vst [vmem:[%s4829 + $0x274] sm:$0xf] 0
  %4880 = vst [vmem:[%s4829 + $0x288] sm:$0xf] 0
  %4881 = vst [vmem:[%s4829 + $0x28c] sm:$0xf] 0
  %4882 = vst [vmem:[%s4829 + $0x2a0] sm:$0xf] 0
  %4883 = vst [vmem:[%s4829 + $0x2a4] sm:$0xf] 0
  %4884 = vst [vmem:[%s4829 + $0x2b8] sm:$0xf] 0
  %4885 = vst [vmem:[%s4829 + $0x2bc] sm:$0xf] 0
  %4886 = vst [vmem:[%s4829 + $0x2d0] sm:$0xf] 0
  %4887 = vst [vmem:[%s4829 + $0x2d4] sm:$0xf] 0
  %4888 = vst [vmem:[%s4829 + $0x2e8] sm:$0xf] 0
  %4889 = vst [vmem:[%s4829 + $0x2ec] sm:$0xf] 0
  %4890 = vst [vmem:[%s4829 + $0x300] sm:$0xf] 0
  %4891 = vst [vmem:[%s4829 + $0x304] sm:$0xf] 0
  %4892 = vst [vmem:[%s4829 + $0x318] sm:$0xf] 0
  %4893 = vst [vmem:[%s4829 + $0x31c] sm:$0xf] 0
  %4894 = vst [vmem:[%s4829 + $0x10] sm:$0xf] 0
  %4895 = vst [vmem:[%s4829 + $0x14] sm:$0xf] 0
  %4896 = vst [vmem:[%s4829 + $0x28] sm:$0xf] 0
  %4897 = vst [vmem:[%s4829 + $0x2c] sm:$0xf] 0
  %4898 = vst [vmem:[%s4829 + $0x40] sm:$0xf] 0
  %4899 = vst [vmem:[%s4829 + $0x44] sm:$0xf] 0
  %4900 = vst [vmem:[%s4829 + $0x58] sm:$0xf] 0
  %4901 = vst [vmem:[%s4829 + $0x5c] sm:$0xf] 0
  %4902 = vst [vmem:[%s4829 + $0x70] sm:$0xf] 0
  %4903 = vst [vmem:[%s4829 + $0x74] sm:$0xf] 0
  %4904 = vst [vmem:[%s4829 + $0x88] sm:$0xf] 0
  %4905 = vst [vmem:[%s4829 + $0x8c] sm:$0xf] 0
  %4906 = vst [vmem:[%s4829 + $0xa0] sm:$0xf] 0
  %4907 = vst [vmem:[%s4829 + $0xa4] sm:$0xf] 0
  %4908 = vst [vmem:[%s4829 + $0xb8] sm:$0xf] 0
  %4909 = vst [vmem:[%s4829 + $0xbc] sm:$0xf] 0
  %4910 = vst [vmem:[%s4829 + $0xd0] sm:$0xf] 0
  %4911 = vst [vmem:[%s4829 + $0xd4] sm:$0xf] 0
  %4912 = vst [vmem:[%s4829 + $0xe8] sm:$0xf] 0
  %4913 = vst [vmem:[%s4829 + $0xec] sm:$0xf] 0
  %4914 = vst [vmem:[%s4829 + $0x100] sm:$0xf] 0
  %4915 = vst [vmem:[%s4829 + $0x104] sm:$0xf] 0
  %4916 = vst [vmem:[%s4829 + $0x118] sm:$0xf] 0
  %4917 = vst [vmem:[%s4829 + $0x11c] sm:$0xf] 0
  %4918 = vst [vmem:[%s4829 + $0x130] sm:$0xf] 0
  %4919 = vst [vmem:[%s4829 + $0x134] sm:$0xf] 0
  %4920 = vst [vmem:[%s4829 + $0x148] sm:$0xf] 0
  %4921 = vst [vmem:[%s4829 + $0x14c] sm:$0xf] 0
  %4922 = vst [vmem:[%s4829 + $0x160] sm:$0xf] 0
  %4923 = vst [vmem:[%s4829 + $0x164] sm:$0xf] 0
  %4924 = vst [vmem:[%s4829 + $0x178] sm:$0xf] 0
  %4925 = vst [vmem:[%s4829 + $0x17c] sm:$0xf] 0
  %4926 = vst [vmem:[%s4829 + $0x1c0] sm:$0xf] 0
  %4927 = vst [vmem:[%s4829 + $0x1c4] sm:$0xf] 0
  %4928 = vst [vmem:[%s4829 + $0x1d8] sm:$0xf] 0
  %4929 = vst [vmem:[%s4829 + $0x1dc] sm:$0xf] 0
  %4930 = vst [vmem:[%s4829 + $0x1f0] sm:$0xf] 0
  %4931 = vst [vmem:[%s4829 + $0x1f4] sm:$0xf] 0
  %4932 = vst [vmem:[%s4829 + $0x208] sm:$0xf] 0
  %4933 = vst [vmem:[%s4829 + $0x20c] sm:$0xf] 0
  %4934 = vst [vmem:[%s4829 + $0x220] sm:$0xf] 0
  %4935 = vst [vmem:[%s4829 + $0x224] sm:$0xf] 0
  %4936 = vst [vmem:[%s4829 + $0x238] sm:$0xf] 0
  %4937 = vst [vmem:[%s4829 + $0x23c] sm:$0xf] 0
  %4938 = vst [vmem:[%s4829 + $0x250] sm:$0xf] 0
  %4939 = vst [vmem:[%s4829 + $0x254] sm:$0xf] 0
  %4940 = vst [vmem:[%s4829 + $0x268] sm:$0xf] 0
  %4941 = vst [vmem:[%s4829 + $0x26c] sm:$0xf] 0
  %4942 = vst [vmem:[%s4829 + $0x280] sm:$0xf] 0
  %4943 = vst [vmem:[%s4829 + $0x284] sm:$0xf] 0
  %4944 = vst [vmem:[%s4829 + $0x298] sm:$0xf] 0
  %4945 = vst [vmem:[%s4829 + $0x29c] sm:$0xf] 0
  %4946 = vst [vmem:[%s4829 + $0x2b0] sm:$0xf] 0
  %4947 = vst [vmem:[%s4829 + $0x2b4] sm:$0xf] 0
  %4948 = vst [vmem:[%s4829 + $0x2c8] sm:$0xf] 0
  %4949 = vst [vmem:[%s4829 + $0x2cc] sm:$0xf] 0
  %4950 = vst [vmem:[%s4829 + $0x2e0] sm:$0xf] 0
  %4951 = vst [vmem:[%s4829 + $0x2e4] sm:$0xf] 0
  %4952 = vst [vmem:[%s4829 + $0x2f8] sm:$0xf] 0
  %4953 = vst [vmem:[%s4829 + $0x2fc] sm:$0xf] 0
  %4954 = vst [vmem:[%s4829 + $0x310] sm:$0xf] 0
  %4955 = vst [vmem:[%s4829 + $0x314] sm:$0xf] 0
  %4956 = vst [vmem:[%s4829 + $0x328] sm:$0xf] 0
  %4957 = vst [vmem:[%s4829 + $0x32c] sm:$0xf] 0
  %v4958 = vpack.c.bf16 %v4741, %v4740
  %v4959 = vpack.c.bf16 %v4743, %v4742
  %v4960 = vpack.c.bf16 %v4745, %v4744
  %v4961 = vpack.c.bf16 %v4747, %v4746
  %v4962 = vpack.c.bf16 %v4749, %v4748
  %v4963 = vpack.c.bf16 %v4751, %v4750
  %v4964 = vpack.c.bf16 %v4753, %v4752
  %v4965 = vpack.c.bf16 %v4755, %v4754
  %v4966 = vpack.c.bf16 %v4757, %v4756
  %v4967 = vpack.c.bf16 %v4759, %v4758
  %v4968 = vpack.c.bf16 %v4761, %v4760
  %v4969 = vpack.c.bf16 %v4763, %v4762
  %v4970 = vpack.c.bf16 %v4765, %v4764
  %v4971 = vpack.c.bf16 %v4767, %v4766
  %v4972 = vpack.c.bf16 %v4769, %v4768
  %v4973 = vpack.c.bf16 %v4771, %v4770
  %v4974 = vpack.c.bf16 %v4773, %v4772
  %v4975 = vpack.c.bf16 %v4775, %v4774
  %v4976 = vpack.c.bf16 %v4777, %v4776
  %v4977 = vpack.c.bf16 %v4779, %v4778
  %v4978 = vpack.c.bf16 %v4781, %v4780
  %v4979 = vpack.c.bf16 %v4783, %v4782
  %v4980 = vpack.c.bf16 %v4785, %v4784
  %v4981 = vpack.c.bf16 %v4787, %v4786
  %v4982 = vpack.c.bf16 %v4789, %v4788
  %v4983 = vpack.c.bf16 %v4791, %v4790
  %v4984 = vpack.c.bf16 %v4793, %v4792
  %v4985 = vpack.c.bf16 %v4795, %v4794
  %v4986 = vpack.c.bf16 %v4797, %v4796
  %v4987 = vpack.c.bf16 %v4799, %v4798
  %v4988 = vpack.c.bf16 %v4801, %v4800
  %v4989 = vpack.c.bf16 %v4803, %v4802
  %v5022 = vunpack.c.l.b16 %v4958
  %v5023 = vunpack.c.h.b16 %v4958
  %v5024 = vunpack.c.l.b16 %v4959
  %v5025 = vunpack.c.h.b16 %v4959
  %v5026 = vunpack.c.l.b16 %v4960
  %v5027 = vunpack.c.h.b16 %v4960
  %v5028 = vunpack.c.l.b16 %v4961
  %v5029 = vunpack.c.h.b16 %v4961
  %v5030 = vunpack.c.l.b16 %v4962
  %v5031 = vunpack.c.h.b16 %v4962
  %v5032 = vunpack.c.l.b16 %v4963
  %v5033 = vunpack.c.h.b16 %v4963
  %v5034 = vunpack.c.l.b16 %v4964
  %v5035 = vunpack.c.h.b16 %v4964
  %v5036 = vunpack.c.l.b16 %v4965
  %v5037 = vunpack.c.h.b16 %v4965
  %v5038 = vunpack.c.l.b16 %v4966
  %v5039 = vunpack.c.h.b16 %v4966
  %v5040 = vunpack.c.l.b16 %v4967
  %v5041 = vunpack.c.h.b16 %v4967
  %v5042 = vunpack.c.l.b16 %v4968
  %v5043 = vunpack.c.h.b16 %v4968
  %v5044 = vunpack.c.l.b16 %v4969
  %v5045 = vunpack.c.h.b16 %v4969
  %v5046 = vunpack.c.l.b16 %v4970
  %v5047 = vunpack.c.h.b16 %v4970
  %v5048 = vunpack.c.l.b16 %v4971
  %v5049 = vunpack.c.h.b16 %v4971
  %v5050 = vunpack.c.l.b16 %v4972
  %v5051 = vunpack.c.h.b16 %v4972
  %v5052 = vunpack.c.l.b16 %v4973
  %v5053 = vunpack.c.h.b16 %v4973
  %v5054 = vunpack.c.l.b16 %v4974
  %v5055 = vunpack.c.h.b16 %v4974
  %v5056 = vunpack.c.l.b16 %v4975
  %v5057 = vunpack.c.h.b16 %v4975
  %v5058 = vunpack.c.l.b16 %v4976
  %v5059 = vunpack.c.h.b16 %v4976
  %v5060 = vunpack.c.l.b16 %v4977
  %v5061 = vunpack.c.h.b16 %v4977
  %v5062 = vunpack.c.l.b16 %v4978
  %v5063 = vunpack.c.h.b16 %v4978
  %v5064 = vunpack.c.l.b16 %v4979
  %v5065 = vunpack.c.h.b16 %v4979
  %v5066 = vunpack.c.l.b16 %v4980
  %v5067 = vunpack.c.h.b16 %v4980
  %v5068 = vunpack.c.l.b16 %v4981
  %v5069 = vunpack.c.h.b16 %v4981
  %v5070 = vunpack.c.l.b16 %v4982
  %v5071 = vunpack.c.h.b16 %v4982
  %v5072 = vunpack.c.l.b16 %v4983
  %v5073 = vunpack.c.h.b16 %v4983
  %v5074 = vunpack.c.l.b16 %v4984
  %v5075 = vunpack.c.h.b16 %v4984
  %v5076 = vunpack.c.l.b16 %v4985
  %v5077 = vunpack.c.h.b16 %v4985
  %v5078 = vunpack.c.l.b16 %v4986
  %v5079 = vunpack.c.h.b16 %v4986
  %v5080 = vunpack.c.l.b16 %v4987
  %v5081 = vunpack.c.h.b16 %v4987
  %v5082 = vunpack.c.l.b16 %v4988
  %v5083 = vunpack.c.h.b16 %v4988
  %v5084 = vunpack.c.l.b16 %v4989
  %v5085 = vunpack.c.h.b16 %v4989
  %v5086 = vpack.c.b16 %v5022, %v5022
  %v5087 = vpack.c.b16 %v5023, %v5023
  %v5088 = vpack.c.b16 %v5024, %v5024
  %v5089 = vpack.c.b16 %v5025, %v5025
  %v5090 = vpack.c.b16 %v5026, %v5026
  %v5091 = vpack.c.b16 %v5027, %v5027
  %v5092 = vpack.c.b16 %v5028, %v5028
  %v5093 = vpack.c.b16 %v5029, %v5029
  %v5094 = vpack.c.b16 %v5030, %v5030
  %v5095 = vpack.c.b16 %v5031, %v5031
  %v5096 = vpack.c.b16 %v5032, %v5032
  %v5097 = vpack.c.b16 %v5033, %v5033
  %v5098 = vpack.c.b16 %v5034, %v5034
  %v5099 = vpack.c.b16 %v5035, %v5035
  %v5100 = vpack.c.b16 %v5036, %v5036
  %v5101 = vpack.c.b16 %v5037, %v5037
  %v5102 = vpack.c.b16 %v5038, %v5038
  %v5103 = vpack.c.b16 %v5039, %v5039
  %v5104 = vpack.c.b16 %v5040, %v5040
  %v5105 = vpack.c.b16 %v5041, %v5041
  %v5106 = vpack.c.b16 %v5042, %v5042
  %v5107 = vpack.c.b16 %v5043, %v5043
  %v5108 = vpack.c.b16 %v5044, %v5044
  %v5109 = vpack.c.b16 %v5045, %v5045
  %v5110 = vpack.c.b16 %v5046, %v5046
  %v5111 = vpack.c.b16 %v5047, %v5047
  %v5112 = vpack.c.b16 %v5048, %v5048
  %v5113 = vpack.c.b16 %v5049, %v5049
  %v5114 = vpack.c.b16 %v5050, %v5050
  %v5115 = vpack.c.b16 %v5051, %v5051
  %v5116 = vpack.c.b16 %v5052, %v5052
  %v5117 = vpack.c.b16 %v5053, %v5053
  %v5118 = vpack.c.b16 %v5054, %v5054
  %v5119 = vpack.c.b16 %v5055, %v5055
  %v5120 = vpack.c.b16 %v5056, %v5056
  %v5121 = vpack.c.b16 %v5057, %v5057
  %v5122 = vpack.c.b16 %v5058, %v5058
  %v5123 = vpack.c.b16 %v5059, %v5059
  %v5124 = vpack.c.b16 %v5060, %v5060
  %v5125 = vpack.c.b16 %v5061, %v5061
  %v5126 = vpack.c.b16 %v5062, %v5062
  %v5127 = vpack.c.b16 %v5063, %v5063
  %v5128 = vpack.c.b16 %v5064, %v5064
  %v5129 = vpack.c.b16 %v5065, %v5065
  %v5130 = vpack.c.b16 %v5066, %v5066
  %v5131 = vpack.c.b16 %v5067, %v5067
  %v5132 = vpack.c.b16 %v5068, %v5068
  %v5133 = vpack.c.b16 %v5069, %v5069
  %v5134 = vpack.c.b16 %v5070, %v5070
  %v5135 = vpack.c.b16 %v5071, %v5071
  %v5136 = vpack.c.b16 %v5072, %v5072
  %v5137 = vpack.c.b16 %v5073, %v5073
  %v5138 = vpack.c.b16 %v5074, %v5074
  %v5139 = vpack.c.b16 %v5075, %v5075
  %v5140 = vpack.c.b16 %v5076, %v5076
  %v5141 = vpack.c.b16 %v5077, %v5077
  %v5142 = vpack.c.b16 %v5078, %v5078
  %v5143 = vpack.c.b16 %v5079, %v5079
  %v5144 = vpack.c.b16 %v5080, %v5080
  %v5145 = vpack.c.b16 %v5081, %v5081
  %v5146 = vpack.c.b16 %v5082, %v5082
  %v5147 = vpack.c.b16 %v5083, %v5083
  %v5148 = vpack.c.b16 %v5084, %v5084
  %v5149 = vpack.c.b16 %v5085, %v5085
  %5214 = vst [vmem:[%s4829 + $0x8] sm:$0xf] %v5086
  %5215 = vst [vmem:[%s4829 + $0xc] sm:$0xf] %v5087
  %5216 = vst [vmem:[%s4829 + $0x20] sm:$0xf] %v5088
  %5217 = vst [vmem:[%s4829 + $0x24] sm:$0xf] %v5089
  %5218 = vst [vmem:[%s4829 + $0x38] sm:$0xf] %v5090
  %5219 = vst [vmem:[%s4829 + $0x3c] sm:$0xf] %v5091
  %5220 = vst [vmem:[%s4829 + $0x50] sm:$0xf] %v5092
  %5221 = vst [vmem:[%s4829 + $0x54] sm:$0xf] %v5093
  %5222 = vst [vmem:[%s4829 + $0x68] sm:$0xf] %v5094
  %5223 = vst [vmem:[%s4829 + $0x6c] sm:$0xf] %v5095
  %5224 = vst [vmem:[%s4829 + $0x80] sm:$0xf] %v5096
  %5225 = vst [vmem:[%s4829 + $0x84] sm:$0xf] %v5097
  %5226 = vst [vmem:[%s4829 + $0x98] sm:$0xf] %v5098
  %5227 = vst [vmem:[%s4829 + $0x9c] sm:$0xf] %v5099
  %5228 = vst [vmem:[%s4829 + $0xb0] sm:$0xf] %v5100
  %5229 = vst [vmem:[%s4829 + $0xb4] sm:$0xf] %v5101
  %5230 = vst [vmem:[%s4829 + $0xc8] sm:$0xf] %v5102
  %5231 = vst [vmem:[%s4829 + $0xcc] sm:$0xf] %v5103
  %5232 = vst [vmem:[%s4829 + $0xe0] sm:$0xf] %v5104
  %5233 = vst [vmem:[%s4829 + $0xe4] sm:$0xf] %v5105
  %5234 = vst [vmem:[%s4829 + $0xf8] sm:$0xf] %v5106
  %5235 = vst [vmem:[%s4829 + $0xfc] sm:$0xf] %v5107
  %5236 = vst [vmem:[%s4829 + $0x110] sm:$0xf] %v5108
  %5237 = vst [vmem:[%s4829 + $0x114] sm:$0xf] %v5109
  %5238 = vst [vmem:[%s4829 + $0x128] sm:$0xf] %v5110
  %5239 = vst [vmem:[%s4829 + $0x12c] sm:$0xf] %v5111
  %5240 = vst [vmem:[%s4829 + $0x140] sm:$0xf] %v5112
  %5241 = vst [vmem:[%s4829 + $0x144] sm:$0xf] %v5113
  %5242 = vst [vmem:[%s4829 + $0x158] sm:$0xf] %v5114
  %5243 = vst [vmem:[%s4829 + $0x15c] sm:$0xf] %v5115
  %5244 = vst [vmem:[%s4829 + $0x170] sm:$0xf] %v5116
  %5245 = vst [vmem:[%s4829 + $0x174] sm:$0xf] %v5117
  %5246 = vst [vmem:[%s4829 + $0x1b8] sm:$0xf] %v5118
  %5247 = vst [vmem:[%s4829 + $0x1bc] sm:$0xf] %v5119
  %5248 = vst [vmem:[%s4829 + $0x1d0] sm:$0xf] %v5120
  %5249 = vst [vmem:[%s4829 + $0x1d4] sm:$0xf] %v5121
  %5250 = vst [vmem:[%s4829 + $0x1e8] sm:$0xf] %v5122
  %5251 = vst [vmem:[%s4829 + $0x1ec] sm:$0xf] %v5123
  %5252 = vst [vmem:[%s4829 + $0x200] sm:$0xf] %v5124
  %5253 = vst [vmem:[%s4829 + $0x204] sm:$0xf] %v5125
  %5254 = vst [vmem:[%s4829 + $0x218] sm:$0xf] %v5126
  %5255 = vst [vmem:[%s4829 + $0x21c] sm:$0xf] %v5127
  %5256 = vst [vmem:[%s4829 + $0x230] sm:$0xf] %v5128
  %5257 = vst [vmem:[%s4829 + $0x234] sm:$0xf] %v5129
  %5258 = vst [vmem:[%s4829 + $0x248] sm:$0xf] %v5130
  %5259 = vst [vmem:[%s4829 + $0x24c] sm:$0xf] %v5131
  %5260 = vst [vmem:[%s4829 + $0x260] sm:$0xf] %v5132
  %5261 = vst [vmem:[%s4829 + $0x264] sm:$0xf] %v5133
  %5262 = vst [vmem:[%s4829 + $0x278] sm:$0xf] %v5134
  %5263 = vst [vmem:[%s4829 + $0x27c] sm:$0xf] %v5135
  %5264 = vst [vmem:[%s4829 + $0x290] sm:$0xf] %v5136
  %5265 = vst [vmem:[%s4829 + $0x294] sm:$0xf] %v5137
  %5266 = vst [vmem:[%s4829 + $0x2a8] sm:$0xf] %v5138
  %5267 = vst [vmem:[%s4829 + $0x2ac] sm:$0xf] %v5139
  %5268 = vst [vmem:[%s4829 + $0x2c0] sm:$0xf] %v5140
  %5269 = vst [vmem:[%s4829 + $0x2c4] sm:$0xf] %v5141
  %5270 = vst [vmem:[%s4829 + $0x2d8] sm:$0xf] %v5142
  %5271 = vst [vmem:[%s4829 + $0x2dc] sm:$0xf] %v5143
  %5272 = vst [vmem:[%s4829 + $0x2f0] sm:$0xf] %v5144
  %5273 = vst [vmem:[%s4829 + $0x2f4] sm:$0xf] %v5145
  %5274 = vst [vmem:[%s4829 + $0x308] sm:$0xf] %v5146
  %5275 = vst [vmem:[%s4829 + $0x30c] sm:$0xf] %v5147
  %5276 = vst [vmem:[%s4829 + $0x320] sm:$0xf] %v5148
  %5277 = vst [vmem:[%s4829 + $0x324] sm:$0xf] %v5149
  %v5278 = vld [vmem:[#allocation2 + $0x4] sm:$0x8]
  %v5279 = vld [vmem:[#allocation2 + $0x8] sm:$0xf]
  %v5280 = vld [vmem:[#allocation2 + $0xc] sm:$0xf]
  %v5281 = vld [vmem:[#allocation2 + $0x1c] sm:$0x8]
  %v5282 = vld [vmem:[#allocation2 + $0x20] sm:$0xf]
  %v5283 = vld [vmem:[#allocation2 + $0x24] sm:$0xf]
  %v5284 = vld [vmem:[#allocation2 + $0x34] sm:$0x8]
  %v5285 = vld [vmem:[#allocation2 + $0x38] sm:$0xf]
  %v5286 = vld [vmem:[#allocation2 + $0x3c] sm:$0xf]
  %v5287 = vld [vmem:[#allocation2 + $0x4c] sm:$0x8]
  %v5288 = vld [vmem:[#allocation2 + $0x50] sm:$0xf]
  %v5289 = vld [vmem:[#allocation2 + $0x54] sm:$0xf]
  %v5290 = vld [vmem:[#allocation2 + $0x64] sm:$0x8]
  %v5291 = vld [vmem:[#allocation2 + $0x68] sm:$0xf]
  %v5292 = vld [vmem:[#allocation2 + $0x6c] sm:$0xf]
  %v5293 = vld [vmem:[#allocation2 + $0x7c] sm:$0x8]
  %v5294 = vld [vmem:[#allocation2 + $0x80] sm:$0xf]
  %v5295 = vld [vmem:[#allocation2 + $0x84] sm:$0xf]
  %v5296 = vld [vmem:[#allocation2 + $0x94] sm:$0x8]
  %v5297 = vld [vmem:[#allocation2 + $0x98] sm:$0xf]
  %v5298 = vld [vmem:[#allocation2 + $0x9c] sm:$0xf]
  %v5299 = vld [vmem:[#allocation2 + $0xac] sm:$0x8]
  %v5300 = vld [vmem:[#allocation2 + $0xb0] sm:$0xf]
  %v5301 = vld [vmem:[#allocation2 + $0xb4] sm:$0xf]
  %v5302 = vld [vmem:[#allocation2 + $0xc4] sm:$0x8]
  %v5303 = vld [vmem:[#allocation2 + $0xc8] sm:$0xf]
  %v5304 = vld [vmem:[#allocation2 + $0xcc] sm:$0xf]
  %v5305 = vld [vmem:[#allocation2 + $0xdc] sm:$0x8]
  %v5306 = vld [vmem:[#allocation2 + $0xe0] sm:$0xf]
  %v5307 = vld [vmem:[#allocation2 + $0xe4] sm:$0xf]
  %v5308 = vld [vmem:[#allocation2 + $0xf4] sm:$0x8]
  %v5309 = vld [vmem:[#allocation2 + $0xf8] sm:$0xf]
  %v5310 = vld [vmem:[#allocation2 + $0xfc] sm:$0xf]
  %v5311 = vld [vmem:[#allocation2 + $0x10c] sm:$0x8]
  %v5312 = vld [vmem:[#allocation2 + $0x110] sm:$0xf]
  %v5313 = vld [vmem:[#allocation2 + $0x114] sm:$0xf]
  %v5314 = vld [vmem:[#allocation2 + $0x124] sm:$0x8]
  %v5315 = vld [vmem:[#allocation2 + $0x128] sm:$0xf]
  %v5316 = vld [vmem:[#allocation2 + $0x12c] sm:$0xf]
  %v5317 = vld [vmem:[#allocation2 + $0x13c] sm:$0x8]
  %v5318 = vld [vmem:[#allocation2 + $0x140] sm:$0xf]
  %v5319 = vld [vmem:[#allocation2 + $0x144] sm:$0xf]
  %v5320 = vld [vmem:[#allocation2 + $0x154] sm:$0x8]
  %v5321 = vld [vmem:[#allocation2 + $0x158] sm:$0xf]
  %v5322 = vld [vmem:[#allocation2 + $0x15c] sm:$0xf]
  %v5323 = vld [vmem:[#allocation2 + $0x16c] sm:$0x8]
  %v5324 = vld [vmem:[#allocation2 + $0x170] sm:$0xf]
  %v5325 = vld [vmem:[#allocation2 + $0x174] sm:$0xf]
  %v5326 = vld [vmem:[#allocation2 + $0x184] sm:$0x8]
  %v5327 = vld [vmem:[#allocation2 + $0x188] sm:$0xf]
  %v5328 = vld [vmem:[#allocation2 + $0x18c] sm:$0xf]
  %v5329 = vld [vmem:[#allocation2 + $0x19c] sm:$0x8]
  %v5330 = vld [vmem:[#allocation2 + $0x1a0] sm:$0xf]
  %v5331 = vld [vmem:[#allocation2 + $0x1a4] sm:$0xf]
  %v5332 = vld [vmem:[#allocation2 + $0x1b4] sm:$0x8]
  %v5333 = vld [vmem:[#allocation2 + $0x1b8] sm:$0xf]
  %v5334 = vld [vmem:[#allocation2 + $0x1bc] sm:$0xf]
  %v5335 = vld [vmem:[#allocation2 + $0x1cc] sm:$0x8]
  %v5336 = vld [vmem:[#allocation2 + $0x1d0] sm:$0xf]
  %v5337 = vld [vmem:[#allocation2 + $0x1d4] sm:$0xf]
  %v5338 = vld [vmem:[#allocation2 + $0x1e4] sm:$0x8]
  %v5339 = vld [vmem:[#allocation2 + $0x1e8] sm:$0xf]
  %v5340 = vld [vmem:[#allocation2 + $0x1ec] sm:$0xf]
  %v5341 = vld [vmem:[#allocation2 + $0x1fc] sm:$0x8]
  %v5342 = vld [vmem:[#allocation2 + $0x200] sm:$0xf]
  %v5343 = vld [vmem:[#allocation2 + $0x204] sm:$0xf]
  %v5344 = vld [vmem:[#allocation2 + $0x214] sm:$0x8]
  %v5345 = vld [vmem:[#allocation2 + $0x218] sm:$0xf]
  %v5346 = vld [vmem:[#allocation2 + $0x21c] sm:$0xf]
  %v5347 = vld [vmem:[#allocation2 + $0x22c] sm:$0x8]
  %v5348 = vld [vmem:[#allocation2 + $0x230] sm:$0xf]
  %v5349 = vld [vmem:[#allocation2 + $0x234] sm:$0xf]
  %v5350 = vld [vmem:[#allocation2 + $0x244] sm:$0x8]
  %v5351 = vld [vmem:[#allocation2 + $0x248] sm:$0xf]
  %v5352 = vld [vmem:[#allocation2 + $0x24c] sm:$0xf]
  %v5353 = vld [vmem:[#allocation2 + $0x25c] sm:$0x8]
  %v5354 = vld [vmem:[#allocation2 + $0x260] sm:$0xf]
  %v5355 = vld [vmem:[#allocation2 + $0x264] sm:$0xf]
  %v5356 = vld [vmem:[#allocation2 + $0x274] sm:$0x8]
  %v5357 = vld [vmem:[#allocation2 + $0x278] sm:$0xf]
  %v5358 = vld [vmem:[#allocation2 + $0x27c] sm:$0xf]
  %v5359 = vld [vmem:[#allocation2 + $0x28c] sm:$0x8]
  %v5360 = vld [vmem:[#allocation2 + $0x290] sm:$0xf]
  %v5361 = vld [vmem:[#allocation2 + $0x294] sm:$0xf]
  %v5362 = vld [vmem:[#allocation2 + $0x2a4] sm:$0x8]
  %v5363 = vld [vmem:[#allocation2 + $0x2a8] sm:$0xf]
  %v5364 = vld [vmem:[#allocation2 + $0x2ac] sm:$0xf]
  %v5365 = vld [vmem:[#allocation2 + $0x2bc] sm:$0x8]
  %v5366 = vld [vmem:[#allocation2 + $0x2c0] sm:$0xf]
  %v5367 = vld [vmem:[#allocation2 + $0x2c4] sm:$0xf]
  %v5368 = vld [vmem:[#allocation2 + $0x2d4] sm:$0x8]
  %v5369 = vld [vmem:[#allocation2 + $0x2d8] sm:$0xf]
  %v5370 = vld [vmem:[#allocation2 + $0x2dc] sm:$0xf]
  %v5371 = vld [vmem:[#allocation2 + $0x2ec] sm:$0x8]
  %v5372 = vld [vmem:[#allocation2 + $0x2f0] sm:$0xf]
  %v5373 = vld [vmem:[#allocation2 + $0x2f4] sm:$0xf]
  %v5374 = vld [vmem:[#allocation2 + $0x304] sm:$0x8]
  %v5375 = vld [vmem:[#allocation2 + $0x308] sm:$0xf]
  %v5376 = vld [vmem:[#allocation2 + $0x30c] sm:$0xf]
  %v5377 = vld [vmem:[#allocation2 + $0x31c] sm:$0x8]
  %v5378 = vld [vmem:[#allocation2 + $0x320] sm:$0xf]
  %v5379 = vld [vmem:[#allocation2 + $0x324] sm:$0xf]
  %v5380 = vld [vmem:[#allocation2 + $0x334] sm:$0x8]
  %v5381 = vld [vmem:[#allocation2 + $0x338] sm:$0xf]
  %v5382 = vld [vmem:[#allocation2 + $0x33c] sm:$0xf]
  %v5383 = vld [vmem:[#allocation2 + $0x34c] sm:$0x8]
  %v5384 = vld [vmem:[#allocation2 + $0x350] sm:$0xf]
  %v5385 = vld [vmem:[#allocation2 + $0x354] sm:$0xf]
  %v5482 = vunpack.c.l.b16 %v5278
  %v5483 = vunpack.c.l.b16 %v5279
  %v5484 = vunpack.c.l.b16 %v5280
  %v5485 = vunpack.c.l.b16 %v5281
  %v5486 = vunpack.c.l.b16 %v5282
  %v5487 = vunpack.c.l.b16 %v5283
  %v5488 = vunpack.c.l.b16 %v5284
  %v5489 = vunpack.c.l.b16 %v5285
  %v5490 = vunpack.c.l.b16 %v5286
  %v5491 = vunpack.c.l.b16 %v5287
  %v5492 = vunpack.c.l.b16 %v5288
  %v5493 = vunpack.c.l.b16 %v5289
  %v5494 = vunpack.c.l.b16 %v5290
  %v5495 = vunpack.c.l.b16 %v5291
  %v5496 = vunpack.c.l.b16 %v5292
  %v5497 = vunpack.c.l.b16 %v5293
  %v5498 = vunpack.c.l.b16 %v5294
  %v5499 = vunpack.c.l.b16 %v5295
  %v5500 = vunpack.c.l.b16 %v5296
  %v5501 = vunpack.c.l.b16 %v5297
  %v5502 = vunpack.c.l.b16 %v5298
  %v5503 = vunpack.c.l.b16 %v5299
  %v5504 = vunpack.c.l.b16 %v5300
  %v5505 = vunpack.c.l.b16 %v5301
  %v5506 = vunpack.c.l.b16 %v5302
  %v5507 = vunpack.c.l.b16 %v5303
  %v5508 = vunpack.c.l.b16 %v5304
  %v5509 = vunpack.c.l.b16 %v5305
  %v5510 = vunpack.c.l.b16 %v5306
  %v5511 = vunpack.c.l.b16 %v5307
  %v5512 = vunpack.c.l.b16 %v5308
  %v5513 = vunpack.c.l.b16 %v5309
  %v5514 = vunpack.c.l.b16 %v5310
  %v5515 = vunpack.c.l.b16 %v5311
  %v5516 = vunpack.c.l.b16 %v5312
  %v5517 = vunpack.c.l.b16 %v5313
  %v5518 = vunpack.c.l.b16 %v5314
  %v5519 = vunpack.c.l.b16 %v5315
  %v5520 = vunpack.c.l.b16 %v5316
  %v5521 = vunpack.c.l.b16 %v5317
  %v5522 = vunpack.c.l.b16 %v5318
  %v5523 = vunpack.c.l.b16 %v5319
  %v5524 = vunpack.c.l.b16 %v5320
  %v5525 = vunpack.c.l.b16 %v5321
  %v5526 = vunpack.c.l.b16 %v5322
  %v5527 = vunpack.c.l.b16 %v5323
  %v5528 = vunpack.c.l.b16 %v5324
  %v5529 = vunpack.c.l.b16 %v5325
  %v5530 = vunpack.c.l.b16 %v5332
  %v5531 = vunpack.c.l.b16 %v5333
  %v5532 = vunpack.c.l.b16 %v5334
  %v5533 = vunpack.c.l.b16 %v5335
  %v5534 = vunpack.c.l.b16 %v5336
  %v5535 = vunpack.c.l.b16 %v5337
  %v5536 = vunpack.c.l.b16 %v5338
  %v5537 = vunpack.c.l.b16 %v5339
  %v5538 = vunpack.c.l.b16 %v5340
  %v5539 = vunpack.c.l.b16 %v5341
  %v5540 = vunpack.c.l.b16 %v5342
  %v5541 = vunpack.c.l.b16 %v5343
  %v5542 = vunpack.c.l.b16 %v5344
  %v5543 = vunpack.c.l.b16 %v5345
  %v5544 = vunpack.c.l.b16 %v5346
  %v5545 = vunpack.c.l.b16 %v5347
  %v5546 = vunpack.c.l.b16 %v5348
  %v5547 = vunpack.c.l.b16 %v5349
  %v5548 = vunpack.c.l.b16 %v5350
  %v5549 = vunpack.c.l.b16 %v5351
  %v5550 = vunpack.c.l.b16 %v5352
  %v5551 = vunpack.c.l.b16 %v5353
  %v5552 = vunpack.c.l.b16 %v5354
  %v5553 = vunpack.c.l.b16 %v5355
  %v5554 = vunpack.c.l.b16 %v5356
  %v5555 = vunpack.c.l.b16 %v5357
  %v5556 = vunpack.c.l.b16 %v5358
  %v5557 = vunpack.c.l.b16 %v5359
  %v5558 = vunpack.c.l.b16 %v5360
  %v5559 = vunpack.c.l.b16 %v5361
  %v5560 = vunpack.c.l.b16 %v5362
  %v5561 = vunpack.c.l.b16 %v5363
  %v5562 = vunpack.c.l.b16 %v5364
  %v5563 = vunpack.c.l.b16 %v5365
  %v5564 = vunpack.c.l.b16 %v5366
  %v5565 = vunpack.c.l.b16 %v5367
  %v5566 = vunpack.c.l.b16 %v5368
  %v5567 = vunpack.c.l.b16 %v5369
  %v5568 = vunpack.c.l.b16 %v5370
  %v5569 = vunpack.c.l.b16 %v5371
  %v5570 = vunpack.c.l.b16 %v5372
  %v5571 = vunpack.c.l.b16 %v5373
  %v5572 = vunpack.c.l.b16 %v5374
  %v5573 = vunpack.c.l.b16 %v5375
  %v5574 = vunpack.c.l.b16 %v5376
  %v5575 = vunpack.c.l.b16 %v5377
  %v5576 = vunpack.c.l.b16 %v5378
  %v5577 = vunpack.c.l.b16 %v5379
  %v5578 = vpack.c.b16 %v5483, %v5482
  %v5579 = vpack.c.b16 %v5484, %v5484
  %v5580 = vpack.c.b16 %v5486, %v5485
  %v5581 = vpack.c.b16 %v5487, %v5487
  %v5582 = vpack.c.b16 %v5489, %v5488
  %v5583 = vpack.c.b16 %v5490, %v5490
  %v5584 = vpack.c.b16 %v5492, %v5491
  %v5585 = vpack.c.b16 %v5493, %v5493
  %v5586 = vpack.c.b16 %v5495, %v5494
  %v5587 = vpack.c.b16 %v5496, %v5496
  %v5588 = vpack.c.b16 %v5498, %v5497
  %v5589 = vpack.c.b16 %v5499, %v5499
  %v5590 = vpack.c.b16 %v5501, %v5500
  %v5591 = vpack.c.b16 %v5502, %v5502
  %v5592 = vpack.c.b16 %v5504, %v5503
  %v5593 = vpack.c.b16 %v5505, %v5505
  %v5594 = vpack.c.b16 %v5507, %v5506
  %v5595 = vpack.c.b16 %v5508, %v5508
  %v5596 = vpack.c.b16 %v5510, %v5509
  %v5597 = vpack.c.b16 %v5511, %v5511
  %v5598 = vpack.c.b16 %v5513, %v5512
  %v5599 = vpack.c.b16 %v5514, %v5514
  %v5600 = vpack.c.b16 %v5516, %v5515
  %v5601 = vpack.c.b16 %v5517, %v5517
  %v5602 = vpack.c.b16 %v5519, %v5518
  %v5603 = vpack.c.b16 %v5520, %v5520
  %v5604 = vpack.c.b16 %v5522, %v5521
  %v5605 = vpack.c.b16 %v5523, %v5523
  %v5606 = vpack.c.b16 %v5525, %v5524
  %v5607 = vpack.c.b16 %v5526, %v5526
  %v5608 = vpack.c.b16 %v5528, %v5527
  %v5609 = vpack.c.b16 %v5529, %v5529
  %v5610 = vpack.c.b16 %v5531, %v5530
  %v5611 = vpack.c.b16 %v5532, %v5532
  %v5612 = vpack.c.b16 %v5534, %v5533
  %v5613 = vpack.c.b16 %v5535, %v5535
  %v5614 = vpack.c.b16 %v5537, %v5536
  %v5615 = vpack.c.b16 %v5538, %v5538
  %v5616 = vpack.c.b16 %v5540, %v5539
  %v5617 = vpack.c.b16 %v5541, %v5541
  %v5618 = vpack.c.b16 %v5543, %v5542
  %v5619 = vpack.c.b16 %v5544, %v5544
  %v5620 = vpack.c.b16 %v5546, %v5545
  %v5621 = vpack.c.b16 %v5547, %v5547
  %v5622 = vpack.c.b16 %v5549, %v5548
  %v5623 = vpack.c.b16 %v5550, %v5550
  %v5624 = vpack.c.b16 %v5552, %v5551
  %v5625 = vpack.c.b16 %v5553, %v5553
  %v5626 = vpack.c.b16 %v5555, %v5554
  %v5627 = vpack.c.b16 %v5556, %v5556
  %v5628 = vpack.c.b16 %v5558, %v5557
  %v5629 = vpack.c.b16 %v5559, %v5559
  %v5630 = vpack.c.b16 %v5561, %v5560
  %v5631 = vpack.c.b16 %v5562, %v5562
  %v5632 = vpack.c.b16 %v5564, %v5563
  %v5633 = vpack.c.b16 %v5565, %v5565
  %v5634 = vpack.c.b16 %v5567, %v5566
  %v5635 = vpack.c.b16 %v5568, %v5568
  %v5636 = vpack.c.b16 %v5570, %v5569
  %v5637 = vpack.c.b16 %v5571, %v5571
  %v5638 = vpack.c.b16 %v5573, %v5572
  %v5639 = vpack.c.b16 %v5574, %v5574
  %v5640 = vpack.c.b16 %v5576, %v5575
  %v5641 = vpack.c.b16 %v5577, %v5577
  %v5648 = vunpack.c.l.b16 %v5326
  %v5649 = vunpack.c.l.b16 %v5327
  %v5650 = vunpack.c.l.b16 %v5328
  %v5651 = vunpack.c.l.b16 %v5380
  %v5652 = vunpack.c.l.b16 %v5381
  %v5653 = vunpack.c.l.b16 %v5382
  %v5654 = vpack.c.b16 %v5649, %v5648
  %v5655 = vpack.c.b16 %v5650, %v5650
  %v5656 = vpack.c.b16 %v5652, %v5651
  %v5657 = vpack.c.b16 %v5653, %v5653
  %v5664 = vunpack.c.l.b16 %v5329
  %v5665 = vunpack.c.l.b16 %v5330
  %v5666 = vunpack.c.l.b16 %v5331
  %v5667 = vunpack.c.l.b16 %v5383
  %v5668 = vunpack.c.l.b16 %v5384
  %v5669 = vunpack.c.l.b16 %v5385
  %v5670 = vpack.c.b16 %v5665, %v5664
  %v5671 = vpack.c.b16 %v5666, %v5666
  %v5672 = vpack.c.b16 %v5668, %v5667
  %v5673 = vpack.c.b16 %v5669, %v5669
  %v5675 = vshrl.u32 %v5578, 16
  %v5677 = vrot.slane %v5675, 3
  %v5678 = vshll.u32 %v5578, 16
  %v5680 = vrot.slane %v5678, 4
  %v5681 = vor.u32 %v5677, %v5680
  %v5683 = vshrl.u32 %v5579, 16
  %v5685 = vrot.slane %v5683, 3
  %v5686 = vshll.u32 %v5579, 16
  %v5688 = vrot.slane %v5686, 4
  %v5689 = vor.u32 %v5685, %v5688
  %v5690 = vsel %vm425, %v5681, %v5689
  %v5692 = vshrl.u32 %v5580, 16
  %v5694 = vrot.slane %v5692, 3
  %v5695 = vshll.u32 %v5580, 16
  %v5697 = vrot.slane %v5695, 4
  %v5698 = vor.u32 %v5694, %v5697
  %v5700 = vshrl.u32 %v5581, 16
  %v5702 = vrot.slane %v5700, 3
  %v5703 = vshll.u32 %v5581, 16
  %v5705 = vrot.slane %v5703, 4
  %v5706 = vor.u32 %v5702, %v5705
  %v5707 = vsel %vm425, %v5698, %v5706
  %v5709 = vshrl.u32 %v5582, 16
  %v5711 = vrot.slane %v5709, 3
  %v5712 = vshll.u32 %v5582, 16
  %v5714 = vrot.slane %v5712, 4
  %v5715 = vor.u32 %v5711, %v5714
  %v5717 = vshrl.u32 %v5583, 16
  %v5719 = vrot.slane %v5717, 3
  %v5720 = vshll.u32 %v5583, 16
  %v5722 = vrot.slane %v5720, 4
  %v5723 = vor.u32 %v5719, %v5722
  %v5724 = vsel %vm425, %v5715, %v5723
  %v5726 = vshrl.u32 %v5584, 16
  %v5728 = vrot.slane %v5726, 3
  %v5729 = vshll.u32 %v5584, 16
  %v5731 = vrot.slane %v5729, 4
  %v5732 = vor.u32 %v5728, %v5731
  %v5734 = vshrl.u32 %v5585, 16
  %v5736 = vrot.slane %v5734, 3
  %v5737 = vshll.u32 %v5585, 16
  %v5739 = vrot.slane %v5737, 4
  %v5740 = vor.u32 %v5736, %v5739
  %v5741 = vsel %vm425, %v5732, %v5740
  %v5743 = vshrl.u32 %v5586, 16
  %v5745 = vrot.slane %v5743, 3
  %v5746 = vshll.u32 %v5586, 16
  %v5748 = vrot.slane %v5746, 4
  %v5749 = vor.u32 %v5745, %v5748
  %v5751 = vshrl.u32 %v5587, 16
  %v5753 = vrot.slane %v5751, 3
  %v5754 = vshll.u32 %v5587, 16
  %v5756 = vrot.slane %v5754, 4
  %v5757 = vor.u32 %v5753, %v5756
  %v5758 = vsel %vm425, %v5749, %v5757
  %v5760 = vshrl.u32 %v5588, 16
  %v5762 = vrot.slane %v5760, 3
  %v5763 = vshll.u32 %v5588, 16
  %v5765 = vrot.slane %v5763, 4
  %v5766 = vor.u32 %v5762, %v5765
  %v5768 = vshrl.u32 %v5589, 16
  %v5770 = vrot.slane %v5768, 3
  %v5771 = vshll.u32 %v5589, 16
  %v5773 = vrot.slane %v5771, 4
  %v5774 = vor.u32 %v5770, %v5773
  %v5775 = vsel %vm425, %v5766, %v5774
  %v5777 = vshrl.u32 %v5590, 16
  %v5779 = vrot.slane %v5777, 3
  %v5780 = vshll.u32 %v5590, 16
  %v5782 = vrot.slane %v5780, 4
  %v5783 = vor.u32 %v5779, %v5782
  %v5785 = vshrl.u32 %v5591, 16
  %v5787 = vrot.slane %v5785, 3
  %v5788 = vshll.u32 %v5591, 16
  %v5790 = vrot.slane %v5788, 4
  %v5791 = vor.u32 %v5787, %v5790
  %v5792 = vsel %vm425, %v5783, %v5791
  %v5794 = vshrl.u32 %v5592, 16
  %v5796 = vrot.slane %v5794, 3
  %v5797 = vshll.u32 %v5592, 16
  %v5799 = vrot.slane %v5797, 4
  %v5800 = vor.u32 %v5796, %v5799
  %v5802 = vshrl.u32 %v5593, 16
  %v5804 = vrot.slane %v5802, 3
  %v5805 = vshll.u32 %v5593, 16
  %v5807 = vrot.slane %v5805, 4
  %v5808 = vor.u32 %v5804, %v5807
  %v5809 = vsel %vm425, %v5800, %v5808
  %v5811 = vshrl.u32 %v5594, 16
  %v5813 = vrot.slane %v5811, 3
  %v5814 = vshll.u32 %v5594, 16
  %v5816 = vrot.slane %v5814, 4
  %v5817 = vor.u32 %v5813, %v5816
  %v5819 = vshrl.u32 %v5595, 16
  %v5821 = vrot.slane %v5819, 3
  %v5822 = vshll.u32 %v5595, 16
  %v5824 = vrot.slane %v5822, 4
  %v5825 = vor.u32 %v5821, %v5824
  %v5826 = vsel %vm425, %v5817, %v5825
  %v5828 = vshrl.u32 %v5596, 16
  %v5830 = vrot.slane %v5828, 3
  %v5831 = vshll.u32 %v5596, 16
  %v5833 = vrot.slane %v5831, 4
  %v5834 = vor.u32 %v5830, %v5833
  %v5836 = vshrl.u32 %v5597, 16
  %v5838 = vrot.slane %v5836, 3
  %v5839 = vshll.u32 %v5597, 16
  %v5841 = vrot.slane %v5839, 4
  %v5842 = vor.u32 %v5838, %v5841
  %v5843 = vsel %vm425, %v5834, %v5842
  %v5845 = vshrl.u32 %v5598, 16
  %v5847 = vrot.slane %v5845, 3
  %v5848 = vshll.u32 %v5598, 16
  %v5850 = vrot.slane %v5848, 4
  %v5851 = vor.u32 %v5847, %v5850
  %v5853 = vshrl.u32 %v5599, 16
  %v5855 = vrot.slane %v5853, 3
  %v5856 = vshll.u32 %v5599, 16
  %v5858 = vrot.slane %v5856, 4
  %v5859 = vor.u32 %v5855, %v5858
  %v5860 = vsel %vm425, %v5851, %v5859
  %v5862 = vshrl.u32 %v5600, 16
  %v5864 = vrot.slane %v5862, 3
  %v5865 = vshll.u32 %v5600, 16
  %v5867 = vrot.slane %v5865, 4
  %v5868 = vor.u32 %v5864, %v5867
  %v5870 = vshrl.u32 %v5601, 16
  %v5872 = vrot.slane %v5870, 3
  %v5873 = vshll.u32 %v5601, 16
  %v5875 = vrot.slane %v5873, 4
  %v5876 = vor.u32 %v5872, %v5875
  %v5877 = vsel %vm425, %v5868, %v5876
  %v5879 = vshrl.u32 %v5602, 16
  %v5881 = vrot.slane %v5879, 3
  %v5882 = vshll.u32 %v5602, 16
  %v5884 = vrot.slane %v5882, 4
  %v5885 = vor.u32 %v5881, %v5884
  %v5887 = vshrl.u32 %v5603, 16
  %v5889 = vrot.slane %v5887, 3
  %v5890 = vshll.u32 %v5603, 16
  %v5892 = vrot.slane %v5890, 4
  %v5893 = vor.u32 %v5889, %v5892
  %v5894 = vsel %vm425, %v5885, %v5893
  %v5896 = vshrl.u32 %v5604, 16
  %v5898 = vrot.slane %v5896, 3
  %v5899 = vshll.u32 %v5604, 16
  %v5901 = vrot.slane %v5899, 4
  %v5902 = vor.u32 %v5898, %v5901
  %v5904 = vshrl.u32 %v5605, 16
  %v5906 = vrot.slane %v5904, 3
  %v5907 = vshll.u32 %v5605, 16
  %v5909 = vrot.slane %v5907, 4
  %v5910 = vor.u32 %v5906, %v5909
  %v5911 = vsel %vm425, %v5902, %v5910
  %v5913 = vshrl.u32 %v5606, 16
  %v5915 = vrot.slane %v5913, 3
  %v5916 = vshll.u32 %v5606, 16
  %v5918 = vrot.slane %v5916, 4
  %v5919 = vor.u32 %v5915, %v5918
  %v5921 = vshrl.u32 %v5607, 16
  %v5923 = vrot.slane %v5921, 3
  %v5924 = vshll.u32 %v5607, 16
  %v5926 = vrot.slane %v5924, 4
  %v5927 = vor.u32 %v5923, %v5926
  %v5928 = vsel %vm425, %v5919, %v5927
  %v5930 = vshrl.u32 %v5608, 16
  %v5932 = vrot.slane %v5930, 3
  %v5933 = vshll.u32 %v5608, 16
  %v5935 = vrot.slane %v5933, 4
  %v5936 = vor.u32 %v5932, %v5935
  %v5938 = vshrl.u32 %v5609, 16
  %v5940 = vrot.slane %v5938, 3
  %v5941 = vshll.u32 %v5609, 16
  %v5943 = vrot.slane %v5941, 4
  %v5944 = vor.u32 %v5940, %v5943
  %v5945 = vsel %vm425, %v5936, %v5944
  %v5947 = vshrl.u32 %v5654, 16
  %v5949 = vrot.slane %v5947, 3
  %v5950 = vshll.u32 %v5654, 16
  %v5952 = vrot.slane %v5950, 4
  %v5953 = vor.u32 %v5949, %v5952
  %v5955 = vshrl.u32 %v5655, 16
  %v5957 = vrot.slane %v5955, 3
  %v5958 = vshll.u32 %v5655, 16
  %v5960 = vrot.slane %v5958, 4
  %v5961 = vor.u32 %v5957, %v5960
  %v5962 = vsel %vm425, %v5953, %v5961
  %v5964 = vshrl.u32 %v5670, 16
  %v5966 = vrot.slane %v5964, 3
  %v5967 = vshll.u32 %v5670, 16
  %v5969 = vrot.slane %v5967, 4
  %v5970 = vor.u32 %v5966, %v5969
  %v5972 = vshrl.u32 %v5671, 16
  %v5974 = vrot.slane %v5972, 3
  %v5975 = vshll.u32 %v5671, 16
  %v5977 = vrot.slane %v5975, 4
  %v5978 = vor.u32 %v5974, %v5977
  %v5979 = vsel %vm425, %v5970, %v5978
  %v5981 = vshrl.u32 %v5610, 16
  %v5983 = vrot.slane %v5981, 3
  %v5984 = vshll.u32 %v5610, 16
  %v5986 = vrot.slane %v5984, 4
  %v5987 = vor.u32 %v5983, %v5986
  %v5989 = vshrl.u32 %v5611, 16
  %v5991 = vrot.slane %v5989, 3
  %v5992 = vshll.u32 %v5611, 16
  %v5994 = vrot.slane %v5992, 4
  %v5995 = vor.u32 %v5991, %v5994
  %v5996 = vsel %vm425, %v5987, %v5995
  %v5998 = vshrl.u32 %v5612, 16
  %v6000 = vrot.slane %v5998, 3
  %v6001 = vshll.u32 %v5612, 16
  %v6003 = vrot.slane %v6001, 4
  %v6004 = vor.u32 %v6000, %v6003
  %v6006 = vshrl.u32 %v5613, 16
  %v6008 = vrot.slane %v6006, 3
  %v6009 = vshll.u32 %v5613, 16
  %v6011 = vrot.slane %v6009, 4
  %v6012 = vor.u32 %v6008, %v6011
  %v6013 = vsel %vm425, %v6004, %v6012
  %v6015 = vshrl.u32 %v5614, 16
  %v6017 = vrot.slane %v6015, 3
  %v6018 = vshll.u32 %v5614, 16
  %v6020 = vrot.slane %v6018, 4
  %v6021 = vor.u32 %v6017, %v6020
  %v6023 = vshrl.u32 %v5615, 16
  %v6025 = vrot.slane %v6023, 3
  %v6026 = vshll.u32 %v5615, 16
  %v6028 = vrot.slane %v6026, 4
  %v6029 = vor.u32 %v6025, %v6028
  %v6030 = vsel %vm425, %v6021, %v6029
  %v6032 = vshrl.u32 %v5616, 16
  %v6034 = vrot.slane %v6032, 3
  %v6035 = vshll.u32 %v5616, 16
  %v6037 = vrot.slane %v6035, 4
  %v6038 = vor.u32 %v6034, %v6037
  %v6040 = vshrl.u32 %v5617, 16
  %v6042 = vrot.slane %v6040, 3
  %v6043 = vshll.u32 %v5617, 16
  %v6045 = vrot.slane %v6043, 4
  %v6046 = vor.u32 %v6042, %v6045
  %v6047 = vsel %vm425, %v6038, %v6046
  %v6049 = vshrl.u32 %v5618, 16
  %v6051 = vrot.slane %v6049, 3
  %v6052 = vshll.u32 %v5618, 16
  %v6054 = vrot.slane %v6052, 4
  %v6055 = vor.u32 %v6051, %v6054
  %v6057 = vshrl.u32 %v5619, 16
  %v6059 = vrot.slane %v6057, 3
  %v6060 = vshll.u32 %v5619, 16
  %v6062 = vrot.slane %v6060, 4
  %v6063 = vor.u32 %v6059, %v6062
  %v6064 = vsel %vm425, %v6055, %v6063
  %v6066 = vshrl.u32 %v5620, 16
  %v6068 = vrot.slane %v6066, 3
  %v6069 = vshll.u32 %v5620, 16
  %v6071 = vrot.slane %v6069, 4
  %v6072 = vor.u32 %v6068, %v6071
  %v6074 = vshrl.u32 %v5621, 16
  %v6076 = vrot.slane %v6074, 3
  %v6077 = vshll.u32 %v5621, 16
  %v6079 = vrot.slane %v6077, 4
  %v6080 = vor.u32 %v6076, %v6079
  %v6081 = vsel %vm425, %v6072, %v6080
  %v6083 = vshrl.u32 %v5622, 16
  %v6085 = vrot.slane %v6083, 3
  %v6086 = vshll.u32 %v5622, 16
  %v6088 = vrot.slane %v6086, 4
  %v6089 = vor.u32 %v6085, %v6088
  %v6091 = vshrl.u32 %v5623, 16
  %v6093 = vrot.slane %v6091, 3
  %v6094 = vshll.u32 %v5623, 16
  %v6096 = vrot.slane %v6094, 4
  %v6097 = vor.u32 %v6093, %v6096
  %v6098 = vsel %vm425, %v6089, %v6097
  %v6100 = vshrl.u32 %v5624, 16
  %v6102 = vrot.slane %v6100, 3
  %v6103 = vshll.u32 %v5624, 16
  %v6105 = vrot.slane %v6103, 4
  %v6106 = vor.u32 %v6102, %v6105
  %v6108 = vshrl.u32 %v5625, 16
  %v6110 = vrot.slane %v6108, 3
  %v6111 = vshll.u32 %v5625, 16
  %v6113 = vrot.slane %v6111, 4
  %v6114 = vor.u32 %v6110, %v6113
  %v6115 = vsel %vm425, %v6106, %v6114
  %v6117 = vshrl.u32 %v5626, 16
  %v6119 = vrot.slane %v6117, 3
  %v6120 = vshll.u32 %v5626, 16
  %v6122 = vrot.slane %v6120, 4
  %v6123 = vor.u32 %v6119, %v6122
  %v6125 = vshrl.u32 %v5627, 16
  %v6127 = vrot.slane %v6125, 3
  %v6128 = vshll.u32 %v5627, 16
  %v6130 = vrot.slane %v6128, 4
  %v6131 = vor.u32 %v6127, %v6130
  %v6132 = vsel %vm425, %v6123, %v6131
  %v6134 = vshrl.u32 %v5628, 16
  %v6136 = vrot.slane %v6134, 3
  %v6137 = vshll.u32 %v5628, 16
  %v6139 = vrot.slane %v6137, 4
  %v6140 = vor.u32 %v6136, %v6139
  %v6142 = vshrl.u32 %v5629, 16
  %v6144 = vrot.slane %v6142, 3
  %v6145 = vshll.u32 %v5629, 16
  %v6147 = vrot.slane %v6145, 4
  %v6148 = vor.u32 %v6144, %v6147
  %v6149 = vsel %vm425, %v6140, %v6148
  %v6151 = vshrl.u32 %v5630, 16
  %v6153 = vrot.slane %v6151, 3
  %v6154 = vshll.u32 %v5630, 16
  %v6156 = vrot.slane %v6154, 4
  %v6157 = vor.u32 %v6153, %v6156
  %v6159 = vshrl.u32 %v5631, 16
  %v6161 = vrot.slane %v6159, 3
  %v6162 = vshll.u32 %v5631, 16
  %v6164 = vrot.slane %v6162, 4
  %v6165 = vor.u32 %v6161, %v6164
  %v6166 = vsel %vm425, %v6157, %v6165
  %v6168 = vshrl.u32 %v5632, 16
  %v6170 = vrot.slane %v6168, 3
  %v6171 = vshll.u32 %v5632, 16
  %v6173 = vrot.slane %v6171, 4
  %v6174 = vor.u32 %v6170, %v6173
  %v6176 = vshrl.u32 %v5633, 16
  %v6178 = vrot.slane %v6176, 3
  %v6179 = vshll.u32 %v5633, 16
  %v6181 = vrot.slane %v6179, 4
  %v6182 = vor.u32 %v6178, %v6181
  %v6183 = vsel %vm425, %v6174, %v6182
  %v6185 = vshrl.u32 %v5634, 16
  %v6187 = vrot.slane %v6185, 3
  %v6188 = vshll.u32 %v5634, 16
  %v6190 = vrot.slane %v6188, 4
  %v6191 = vor.u32 %v6187, %v6190
  %v6193 = vshrl.u32 %v5635, 16
  %v6195 = vrot.slane %v6193, 3
  %v6196 = vshll.u32 %v5635, 16
  %v6198 = vrot.slane %v6196, 4
  %v6199 = vor.u32 %v6195, %v6198
  %v6200 = vsel %vm425, %v6191, %v6199
  %v6202 = vshrl.u32 %v5636, 16
  %v6204 = vrot.slane %v6202, 3
  %v6205 = vshll.u32 %v5636, 16
  %v6207 = vrot.slane %v6205, 4
  %v6208 = vor.u32 %v6204, %v6207
  %v6210 = vshrl.u32 %v5637, 16
  %v6212 = vrot.slane %v6210, 3
  %v6213 = vshll.u32 %v5637, 16
  %v6215 = vrot.slane %v6213, 4
  %v6216 = vor.u32 %v6212, %v6215
  %v6217 = vsel %vm425, %v6208, %v6216
  %v6219 = vshrl.u32 %v5638, 16
  %v6221 = vrot.slane %v6219, 3
  %v6222 = vshll.u32 %v5638, 16
  %v6224 = vrot.slane %v6222, 4
  %v6225 = vor.u32 %v6221, %v6224
  %v6227 = vshrl.u32 %v5639, 16
  %v6229 = vrot.slane %v6227, 3
  %v6230 = vshll.u32 %v5639, 16
  %v6232 = vrot.slane %v6230, 4
  %v6233 = vor.u32 %v6229, %v6232
  %v6234 = vsel %vm425, %v6225, %v6233
  %v6236 = vshrl.u32 %v5640, 16
  %v6238 = vrot.slane %v6236, 3
  %v6239 = vshll.u32 %v5640, 16
  %v6241 = vrot.slane %v6239, 4
  %v6242 = vor.u32 %v6238, %v6241
  %v6244 = vshrl.u32 %v5641, 16
  %v6246 = vrot.slane %v6244, 3
  %v6247 = vshll.u32 %v5641, 16
  %v6249 = vrot.slane %v6247, 4
  %v6250 = vor.u32 %v6246, %v6249
  %v6251 = vsel %vm425, %v6242, %v6250
  %v6253 = vshrl.u32 %v5656, 16
  %v6255 = vrot.slane %v6253, 3
  %v6256 = vshll.u32 %v5656, 16
  %v6258 = vrot.slane %v6256, 4
  %v6259 = vor.u32 %v6255, %v6258
  %v6261 = vshrl.u32 %v5657, 16
  %v6263 = vrot.slane %v6261, 3
  %v6264 = vshll.u32 %v5657, 16
  %v6266 = vrot.slane %v6264, 4
  %v6267 = vor.u32 %v6263, %v6266
  %v6268 = vsel %vm425, %v6259, %v6267
  %v6270 = vshrl.u32 %v5672, 16
  %v6272 = vrot.slane %v6270, 3
  %v6273 = vshll.u32 %v5672, 16
  %v6275 = vrot.slane %v6273, 4
  %v6276 = vor.u32 %v6272, %v6275
  %v6278 = vshrl.u32 %v5673, 16
  %v6280 = vrot.slane %v6278, 3
  %v6281 = vshll.u32 %v5673, 16
  %v6283 = vrot.slane %v6281, 4
  %v6284 = vor.u32 %v6280, %v6283
  %v6285 = vsel %vm425, %v6276, %v6284
  %v6322 = vld [vmem:[%s2] sm:$0xf]
  %v6323 = vld [vmem:[%s2 + $0x4] sm:$0xf]
  %v6324 = vld [vmem:[%s2 + $0x8] sm:$0xf]
  %v6325 = vld [vmem:[%s2 + $0xc] sm:$0xf]
  %v6326 = vld [vmem:[%s2 + $0x10] sm:$0xf]
  %v6327 = vld [vmem:[%s2 + $0x14] sm:$0xf]
  %v6328 = vld [vmem:[%s2 + $0x18] sm:$0xf]
  %v6329 = vld [vmem:[%s2 + $0x1c] sm:$0xf]
  %v6330 = vld [vmem:[%s2 + $0x20] sm:$0xf]
  %v6331 = vld [vmem:[%s2 + $0x24] sm:$0xf]
  %v6332 = vld [vmem:[%s2 + $0x28] sm:$0xf]
  %v6333 = vld [vmem:[%s2 + $0x2c] sm:$0xf]
  %v6334 = vld [vmem:[%s2 + $0x30] sm:$0xf]
  %v6335 = vld [vmem:[%s2 + $0x34] sm:$0xf]
  %v6336 = vld [vmem:[%s2 + $0x38] sm:$0xf]
  %v6337 = vld [vmem:[%s2 + $0x3c] sm:$0xf]
  %v6338 = vld [vmem:[%s2 + $0x40] sm:$0xf]
  %v6339 = vld [vmem:[%s2 + $0x44] sm:$0xf]
  %v6340 = vld [vmem:[%s2 + $0x48] sm:$0xf]
  %v6341 = vld [vmem:[%s2 + $0x4c] sm:$0xf]
  %v6342 = vld [vmem:[%s2 + $0x50] sm:$0xf]
  %v6343 = vld [vmem:[%s2 + $0x54] sm:$0xf]
  %v6344 = vld [vmem:[%s2 + $0x58] sm:$0xf]
  %v6345 = vld [vmem:[%s2 + $0x5c] sm:$0xf]
  %v6346 = vld [vmem:[%s2 + $0x60] sm:$0xf]
  %v6347 = vld [vmem:[%s2 + $0x64] sm:$0xf]
  %v6348 = vld [vmem:[%s2 + $0x68] sm:$0xf]
  %v6349 = vld [vmem:[%s2 + $0x6c] sm:$0xf]
  %v6350 = vld [vmem:[%s2 + $0x70] sm:$0xf]
  %v6351 = vld [vmem:[%s2 + $0x74] sm:$0xf]
  %v6352 = vld [vmem:[%s2 + $0x78] sm:$0xf]
  %v6353 = vld [vmem:[%s2 + $0x7c] sm:$0xf]
  %v6354 = vld [vmem:[%s2 + $0x80] sm:$0xf]
  %v6355 = vld [vmem:[%s2 + $0x84] sm:$0xf]
  %v6356 = vld [vmem:[%s2 + $0x88] sm:$0xf]
  %v6357 = vld [vmem:[%s2 + $0x8c] sm:$0xf]
  %v6358 = vld [vmem:[%s2 + $0x90] sm:$0xf]
  %v6359 = vld [vmem:[%s2 + $0x94] sm:$0xf]
  %v6360 = vld [vmem:[%s2 + $0x98] sm:$0xf]
  %v6361 = vld [vmem:[%s2 + $0x9c] sm:$0xf]
  %v6362 = vld [vmem:[%s2 + $0xa0] sm:$0xf]
  %v6363 = vld [vmem:[%s2 + $0xa4] sm:$0xf]
  %v6364 = vld [vmem:[%s2 + $0xa8] sm:$0xf]
  %v6365 = vld [vmem:[%s2 + $0xac] sm:$0xf]
  %v6366 = vld [vmem:[%s2 + $0xb0] sm:$0xf]
  %v6367 = vld [vmem:[%s2 + $0xb4] sm:$0xf]
  %v6368 = vld [vmem:[%s2 + $0xb8] sm:$0xf]
  %v6369 = vld [vmem:[%s2 + $0xbc] sm:$0xf]
  %v6370 = vpack.c.b16 %v5484, %v5483
  %v6371 = vpack.c.b16 %v5487, %v5486
  %v6372 = vpack.c.b16 %v5490, %v5489
  %v6373 = vpack.c.b16 %v5493, %v5492
  %v6374 = vpack.c.b16 %v5496, %v5495
  %v6375 = vpack.c.b16 %v5499, %v5498
  %v6376 = vpack.c.b16 %v5502, %v5501
  %v6377 = vpack.c.b16 %v5505, %v5504
  %v6378 = vpack.c.b16 %v5508, %v5507
  %v6379 = vpack.c.b16 %v5511, %v5510
  %v6380 = vpack.c.b16 %v5514, %v5513
  %v6381 = vpack.c.b16 %v5517, %v5516
  %v6382 = vpack.c.b16 %v5520, %v5519
  %v6383 = vpack.c.b16 %v5523, %v5522
  %v6384 = vpack.c.b16 %v5526, %v5525
  %v6385 = vpack.c.b16 %v5529, %v5528
  %v6386 = vpack.c.b16 %v5532, %v5531
  %v6387 = vpack.c.b16 %v5535, %v5534
  %v6388 = vpack.c.b16 %v5538, %v5537
  %v6389 = vpack.c.b16 %v5541, %v5540
  %v6390 = vpack.c.b16 %v5544, %v5543
  %v6391 = vpack.c.b16 %v5547, %v5546
  %v6392 = vpack.c.b16 %v5550, %v5549
  %v6393 = vpack.c.b16 %v5553, %v5552
  %v6394 = vpack.c.b16 %v5556, %v5555
  %v6395 = vpack.c.b16 %v5559, %v5558
  %v6396 = vpack.c.b16 %v5562, %v5561
  %v6397 = vpack.c.b16 %v5565, %v5564
  %v6398 = vpack.c.b16 %v5568, %v5567
  %v6399 = vpack.c.b16 %v5571, %v5570
  %v6400 = vpack.c.b16 %v5574, %v5573
  %v6401 = vpack.c.b16 %v5577, %v5576
  %v6434 = vpack.c.b16 %v5650, %v5649
  %v6435 = vpack.c.b16 %v5653, %v5652
  %v6438 = vpack.c.b16 %v5666, %v5665
  %v6439 = vpack.c.b16 %v5669, %v5668
  %s6442 = scalar_lea.vmem %s2, 192
  %v6443 = vld [vmem:[%s6442] sm:$0xf]
  %v6444 = vld [vmem:[%s6442 + $0x4] sm:$0xf]
  %v6445 = vld [vmem:[%s6442 + $0x8] sm:$0xf]
  %v6446 = vld [vmem:[%s6442 + $0xc] sm:$0xf]
  %v6447 = vld [vmem:[%s6442 + $0x10] sm:$0xf]
  %v6448 = vld [vmem:[%s6442 + $0x14] sm:$0xf]
  %v6449 = vld [vmem:[%s6442 + $0x18] sm:$0xf]
  %v6450 = vld [vmem:[%s6442 + $0x1c] sm:$0xf]
  %v6451 = vld [vmem:[%s6442 + $0x20] sm:$0xf]
  %v6452 = vld [vmem:[%s6442 + $0x24] sm:$0xf]
  %v6453 = vld [vmem:[%s6442 + $0x28] sm:$0xf]
  %v6454 = vld [vmem:[%s6442 + $0x2c] sm:$0xf]
  %v6455 = vld [vmem:[%s6442 + $0x30] sm:$0xf]
  %v6456 = vld [vmem:[%s6442 + $0x34] sm:$0xf]
  %v6457 = vld [vmem:[%s6442 + $0x38] sm:$0xf]
  %v6458 = vld [vmem:[%s6442 + $0x3c] sm:$0xf]
  %v6459 = vld [vmem:[%s6442 + $0x40] sm:$0xf]
  %v6460 = vld [vmem:[%s6442 + $0x44] sm:$0xf]
  %v6461 = vld [vmem:[%s6442 + $0x48] sm:$0xf]
  %v6462 = vld [vmem:[%s6442 + $0x4c] sm:$0xf]
  %v6463 = vld [vmem:[%s6442 + $0x50] sm:$0xf]
  %v6464 = vld [vmem:[%s6442 + $0x54] sm:$0xf]
  %v6465 = vld [vmem:[%s6442 + $0x58] sm:$0xf]
  %v6466 = vld [vmem:[%s6442 + $0x5c] sm:$0xf]
  %v6467 = vld [vmem:[%s6442 + $0x60] sm:$0xf]
  %v6468 = vld [vmem:[%s6442 + $0x64] sm:$0xf]
  %v6469 = vld [vmem:[%s6442 + $0x68] sm:$0xf]
  %v6470 = vld [vmem:[%s6442 + $0x6c] sm:$0xf]
  %v6471 = vld [vmem:[%s6442 + $0x70] sm:$0xf]
  %v6472 = vld [vmem:[%s6442 + $0x74] sm:$0xf]
  %v6473 = vld [vmem:[%s6442 + $0x78] sm:$0xf]
  %v6474 = vld [vmem:[%s6442 + $0x7c] sm:$0xf]
  %v6475 = vld [vmem:[%s6442 + $0x80] sm:$0xf]
  %v6476 = vld [vmem:[%s6442 + $0x84] sm:$0xf]
  %v6477 = vld [vmem:[%s6442 + $0x88] sm:$0xf]
  %v6478 = vld [vmem:[%s6442 + $0x8c] sm:$0xf]
  %v6479 = vld [vmem:[%s6442 + $0x90] sm:$0xf]
  %v6480 = vld [vmem:[%s6442 + $0x94] sm:$0xf]
  %v6481 = vld [vmem:[%s6442 + $0x98] sm:$0xf]
  %v6482 = vld [vmem:[%s6442 + $0x9c] sm:$0xf]
  %v6483 = vld [vmem:[%s6442 + $0xa0] sm:$0xf]
  %v6484 = vld [vmem:[%s6442 + $0xa4] sm:$0xf]
  %v6485 = vld [vmem:[%s6442 + $0xa8] sm:$0xf]
  %v6486 = vld [vmem:[%s6442 + $0xac] sm:$0xf]
  %v6487 = vld [vmem:[%s6442 + $0xb0] sm:$0xf]
  %v6488 = vld [vmem:[%s6442 + $0xb4] sm:$0xf]
  %v6489 = vld [vmem:[%s6442 + $0xb8] sm:$0xf]
  %v6490 = vld [vmem:[%s6442 + $0xbc] sm:$0xf]
  %v6539 = vunpack.c.l.b16 %v6443
  %v6540 = vunpack.c.l.b16 %v6444
  %v6541 = vunpack.c.l.b16 %v6445
  %v6542 = vunpack.c.l.b16 %v6446
  %v6543 = vunpack.c.l.b16 %v6447
  %v6544 = vunpack.c.l.b16 %v6448
  %v6545 = vunpack.c.l.b16 %v6449
  %v6546 = vunpack.c.l.b16 %v6450
  %v6547 = vunpack.c.l.b16 %v6451
  %v6548 = vunpack.c.l.b16 %v6452
  %v6549 = vunpack.c.l.b16 %v6453
  %v6550 = vunpack.c.l.b16 %v6454
  %v6551 = vunpack.c.l.b16 %v6455
  %v6552 = vunpack.c.l.b16 %v6456
  %v6553 = vunpack.c.l.b16 %v6457
  %v6554 = vunpack.c.l.b16 %v6458
  %v6555 = vunpack.c.l.b16 %v6459
  %v6556 = vunpack.c.l.b16 %v6460
  %v6557 = vunpack.c.l.b16 %v6461
  %v6558 = vunpack.c.l.b16 %v6462
  %v6559 = vunpack.c.l.b16 %v6463
  %v6560 = vunpack.c.l.b16 %v6464
  %v6561 = vunpack.c.l.b16 %v6465
  %v6562 = vunpack.c.l.b16 %v6466
  %v6563 = vunpack.c.l.b16 %v6467
  %v6564 = vunpack.c.l.b16 %v6468
  %v6565 = vunpack.c.l.b16 %v6469
  %v6566 = vunpack.c.l.b16 %v6470
  %v6567 = vunpack.c.l.b16 %v6471
  %v6568 = vunpack.c.l.b16 %v6472
  %v6569 = vunpack.c.l.b16 %v6473
  %v6570 = vunpack.c.l.b16 %v6474
  %v6571 = vunpack.c.l.b16 %v6475
  %v6572 = vunpack.c.l.b16 %v6476
  %v6573 = vunpack.c.l.b16 %v6477
  %v6574 = vunpack.c.l.b16 %v6478
  %v6575 = vunpack.c.l.b16 %v6479
  %v6576 = vunpack.c.l.b16 %v6480
  %v6577 = vunpack.c.l.b16 %v6481
  %v6578 = vunpack.c.l.b16 %v6482
  %v6579 = vunpack.c.l.b16 %v6483
  %v6580 = vunpack.c.l.b16 %v6484
  %v6581 = vunpack.c.l.b16 %v6485
  %v6582 = vunpack.c.l.b16 %v6486
  %v6583 = vunpack.c.l.b16 %v6487
  %v6584 = vunpack.c.l.b16 %v6488
  %v6585 = vunpack.c.l.b16 %v6489
  %v6586 = vunpack.c.l.b16 %v6490
  %v6587 = vpack.c.b16 %v6540, %v6539
  %v6588 = vpack.c.b16 %v6542, %v6541
  %v6589 = vpack.c.b16 %v6544, %v6543
  %v6590 = vpack.c.b16 %v6546, %v6545
  %v6591 = vpack.c.b16 %v6548, %v6547
  %v6592 = vpack.c.b16 %v6550, %v6549
  %v6593 = vpack.c.b16 %v6552, %v6551
  %v6594 = vpack.c.b16 %v6554, %v6553
  %v6595 = vpack.c.b16 %v6556, %v6555
  %v6596 = vpack.c.b16 %v6558, %v6557
  %v6597 = vpack.c.b16 %v6560, %v6559
  %v6598 = vpack.c.b16 %v6562, %v6561
  %v6599 = vpack.c.b16 %v6564, %v6563
  %v6600 = vpack.c.b16 %v6566, %v6565
  %v6601 = vpack.c.b16 %v6568, %v6567
  %v6602 = vpack.c.b16 %v6570, %v6569
  %v6603 = vpack.c.b16 %v6572, %v6571
  %v6604 = vpack.c.b16 %v6574, %v6573
  %v6605 = vpack.c.b16 %v6576, %v6575
  %v6606 = vpack.c.b16 %v6578, %v6577
  %v6607 = vpack.c.b16 %v6580, %v6579
  %v6608 = vpack.c.b16 %v6582, %v6581
  %v6609 = vpack.c.b16 %v6584, %v6583
  %v6610 = vpack.c.b16 %v6586, %v6585
  %6635 = vmatprep.subr.bf16.mxu0 0
  %6636 = vmatpush1.bf16.msra.mxu0 %v6594
  %6637 = vmatprep.subr.bf16.mxu0 0
  %6638 = vmatpush1.bf16.msra.mxu0 %v6593
  %6639 = vmatprep.subr.bf16.mxu0 0
  %6640 = vmatpush1.bf16.msra.mxu0 %v6592
  %6641 = vmatprep.subr.bf16.mxu0 0
  %6642 = vmatpush1.bf16.msra.mxu0 %v6591
  %6643 = vmatprep.subr.bf16.mxu0 0
  %6644 = vmatpush1.bf16.msra.mxu0 %v6590
  %6645 = vmatprep.subr.bf16.mxu0 0
  %6646 = vmatpush1.bf16.msra.mxu0 %v6589
  %6647 = vmatprep.subr.bf16.mxu0 0
  %6648 = vmatpush1.bf16.msra.mxu0 %v6588
  %6649 = vmatprep.subr.bf16.mxu0 0
  %6650 = vmatpush1.bf16.msra.mxu0 %v6587
  %6651 = vmatprep.subr.bf16.mxu0 0
  %6652 = vmatpush2.bf16.msra.mxu0 %v6602
  %6653 = vmatprep.subr.bf16.mxu0 0
  %6654 = vmatpush2.bf16.msra.mxu0 %v6601
  %6655 = vmatprep.subr.bf16.mxu0 0
  %6656 = vmatpush2.bf16.msra.mxu0 %v6600
  %6657 = vmatprep.subr.bf16.mxu0 0
  %6658 = vmatpush2.bf16.msra.mxu0 %v6599
  %6659 = vmatprep.subr.bf16.mxu0 0
  %6660 = vmatpush2.bf16.msra.mxu0 %v6598
  %6661 = vmatprep.subr.bf16.mxu0 0
  %6662 = vmatpush2.bf16.msra.mxu0 %v6597
  %6663 = vmatprep.subr.bf16.mxu0 0
  %6664 = vmatpush2.bf16.msra.mxu0 %v6596
  %6665 = vmatprep.subr.bf16.mxu0 0
  %6666 = vmatpush2.bf16.msra.mxu0 %v6595
  %6667 = vmatprep.mubr.bf16.mxu0 %v6371
  %6668 = vmatmul.mubr.bf16.gmra.mxu0 %v6370
  %v6669 = vpop.f32.mrf.mxu0
  %v6670 = vadd.f32 0.0, %v6669
  %v6671 = vpop.f32.mrf.mxu0
  %v6672 = vpop.f32.mrf.mxu0
  %v6673 = vadd.f32 0.0, %v6672
  %v6674 = vpop.f32.mrf.mxu0
  %6675 = vmatprep.mubr.bf16.mxu0 %v6372
  %6676 = vmatmul.mubr.bf16.gmra.mxu0 %v6371
  %v6677 = vpop.f32.mrf.mxu0
  %v6678 = vadd.f32 0.0, %v6677
  %v6679 = vpop.f32.mrf.mxu0
  %v6680 = vpop.f32.mrf.mxu0
  %v6681 = vadd.f32 0.0, %v6680
  %v6682 = vpop.f32.mrf.mxu0
  %6683 = vmatprep.mubr.bf16.mxu0 %v6373
  %6684 = vmatmul.mubr.bf16.gmra.mxu0 %v6372
  %v6685 = vpop.f32.mrf.mxu0
  %v6686 = vadd.f32 0.0, %v6685
  %v6687 = vpop.f32.mrf.mxu0
  %v6688 = vpop.f32.mrf.mxu0
  %v6689 = vadd.f32 0.0, %v6688
  %v6690 = vpop.f32.mrf.mxu0
  %6691 = vmatprep.mubr.bf16.mxu0 %v6374
  %6692 = vmatmul.mubr.bf16.gmra.mxu0 %v6373
  %v6693 = vpop.f32.mrf.mxu0
  %v6694 = vadd.f32 0.0, %v6693
  %v6695 = vpop.f32.mrf.mxu0
  %v6696 = vpop.f32.mrf.mxu0
  %v6697 = vadd.f32 0.0, %v6696
  %v6698 = vpop.f32.mrf.mxu0
  %6699 = vmatprep.mubr.bf16.mxu0 %v6375
  %6700 = vmatmul.mubr.bf16.gmra.mxu0 %v6374
  %v6701 = vpop.f32.mrf.mxu0
  %v6702 = vadd.f32 0.0, %v6701
  %v6703 = vpop.f32.mrf.mxu0
  %v6704 = vpop.f32.mrf.mxu0
  %v6705 = vadd.f32 0.0, %v6704
  %v6706 = vpop.f32.mrf.mxu0
  %6707 = vmatprep.mubr.bf16.mxu0 %v6376
  %6708 = vmatmul.mubr.bf16.gmra.mxu0 %v6375
  %v6709 = vpop.f32.mrf.mxu0
  %v6710 = vadd.f32 0.0, %v6709
  %v6711 = vpop.f32.mrf.mxu0
  %v6712 = vpop.f32.mrf.mxu0
  %v6713 = vadd.f32 0.0, %v6712
  %v6714 = vpop.f32.mrf.mxu0
  %6715 = vmatprep.mubr.bf16.mxu0 %v6377
  %6716 = vmatmul.mubr.bf16.gmra.mxu0 %v6376
  %v6717 = vpop.f32.mrf.mxu0
  %v6718 = vadd.f32 0.0, %v6717
  %v6719 = vpop.f32.mrf.mxu0
  %v6720 = vpop.f32.mrf.mxu0
  %v6721 = vadd.f32 0.0, %v6720
  %v6722 = vpop.f32.mrf.mxu0
  %6723 = vmatprep.mubr.bf16.mxu0 %v6378
  %6724 = vmatmul.mubr.bf16.gmra.mxu0 %v6377
  %v6725 = vpop.f32.mrf.mxu0
  %v6726 = vadd.f32 0.0, %v6725
  %v6727 = vpop.f32.mrf.mxu0
  %v6728 = vpop.f32.mrf.mxu0
  %v6729 = vadd.f32 0.0, %v6728
  %v6730 = vpop.f32.mrf.mxu0
  %6731 = vmatprep.mubr.bf16.mxu0 %v6379
  %6732 = vmatmul.mubr.bf16.gmra.mxu0 %v6378
  %v6733 = vpop.f32.mrf.mxu0
  %v6734 = vadd.f32 0.0, %v6733
  %v6735 = vpop.f32.mrf.mxu0
  %v6736 = vpop.f32.mrf.mxu0
  %v6737 = vadd.f32 0.0, %v6736
  %v6738 = vpop.f32.mrf.mxu0
  %6739 = vmatprep.mubr.bf16.mxu0 %v6380
  %6740 = vmatmul.mubr.bf16.gmra.mxu0 %v6379
  %v6741 = vpop.f32.mrf.mxu0
  %v6742 = vadd.f32 0.0, %v6741
  %v6743 = vpop.f32.mrf.mxu0
  %v6744 = vpop.f32.mrf.mxu0
  %v6745 = vadd.f32 0.0, %v6744
  %v6746 = vpop.f32.mrf.mxu0
  %6747 = vmatprep.mubr.bf16.mxu0 %v6381
  %6748 = vmatmul.mubr.bf16.gmra.mxu0 %v6380
  %v6749 = vpop.f32.mrf.mxu0
  %v6750 = vadd.f32 0.0, %v6749
  %v6751 = vpop.f32.mrf.mxu0
  %v6752 = vpop.f32.mrf.mxu0
  %v6753 = vadd.f32 0.0, %v6752
  %v6754 = vpop.f32.mrf.mxu0
  %6755 = vmatprep.mubr.bf16.mxu0 %v6382
  %6756 = vmatmul.mubr.bf16.gmra.mxu0 %v6381
  %v6757 = vpop.f32.mrf.mxu0
  %v6758 = vadd.f32 0.0, %v6757
  %v6759 = vpop.f32.mrf.mxu0
  %v6760 = vpop.f32.mrf.mxu0
  %v6761 = vadd.f32 0.0, %v6760
  %v6762 = vpop.f32.mrf.mxu0
  %6763 = vmatprep.mubr.bf16.mxu0 %v6383
  %6764 = vmatmul.mubr.bf16.gmra.mxu0 %v6382
  %v6765 = vpop.f32.mrf.mxu0
  %v6766 = vadd.f32 0.0, %v6765
  %v6767 = vpop.f32.mrf.mxu0
  %v6768 = vpop.f32.mrf.mxu0
  %v6769 = vadd.f32 0.0, %v6768
  %v6770 = vpop.f32.mrf.mxu0
  %6771 = vmatprep.mubr.bf16.mxu0 %v6384
  %6772 = vmatmul.mubr.bf16.gmra.mxu0 %v6383
  %v6773 = vpop.f32.mrf.mxu0
  %v6774 = vadd.f32 0.0, %v6773
  %v6775 = vpop.f32.mrf.mxu0
  %v6776 = vpop.f32.mrf.mxu0
  %v6777 = vadd.f32 0.0, %v6776
  %v6778 = vpop.f32.mrf.mxu0
  %6779 = vmatprep.mubr.bf16.mxu0 %v6385
  %6780 = vmatmul.mubr.bf16.gmra.mxu0 %v6384
  %v6781 = vpop.f32.mrf.mxu0
  %v6782 = vadd.f32 0.0, %v6781
  %v6783 = vpop.f32.mrf.mxu0
  %v6784 = vpop.f32.mrf.mxu0
  %v6785 = vadd.f32 0.0, %v6784
  %v6786 = vpop.f32.mrf.mxu0
  %6787 = vmatprep.mubr.bf16.mxu0 %v6434
  %6788 = vmatmul.mubr.bf16.gmra.mxu0 %v6385
  %v6789 = vpop.f32.mrf.mxu0
  %v6790 = vadd.f32 0.0, %v6789
  %v6791 = vpop.f32.mrf.mxu0
  %v6792 = vpop.f32.mrf.mxu0
  %v6793 = vadd.f32 0.0, %v6792
  %v6794 = vpop.f32.mrf.mxu0
  %6795 = vmatprep.mubr.bf16.mxu0 %v6387
  %6796 = vmatmul.mubr.bf16.gmra.mxu0 %v6386
  %v6797 = vpop.f32.mrf.mxu0
  %v6798 = vadd.f32 0.0, %v6797
  %v6799 = vpop.f32.mrf.mxu0
  %v6800 = vpop.f32.mrf.mxu0
  %v6801 = vadd.f32 0.0, %v6800
  %v6802 = vpop.f32.mrf.mxu0
  %6803 = vmatprep.mubr.bf16.mxu0 %v6388
  %6804 = vmatmul.mubr.bf16.gmra.mxu0 %v6387
  %v6805 = vpop.f32.mrf.mxu0
  %v6806 = vadd.f32 0.0, %v6805
  %v6807 = vpop.f32.mrf.mxu0
  %v6808 = vpop.f32.mrf.mxu0
  %v6809 = vadd.f32 0.0, %v6808
  %v6810 = vpop.f32.mrf.mxu0
  %6811 = vmatprep.mubr.bf16.mxu0 %v6389
  %6812 = vmatmul.mubr.bf16.gmra.mxu0 %v6388
  %v6813 = vpop.f32.mrf.mxu0
  %v6814 = vadd.f32 0.0, %v6813
  %v6815 = vpop.f32.mrf.mxu0
  %v6816 = vpop.f32.mrf.mxu0
  %v6817 = vadd.f32 0.0, %v6816
  %v6818 = vpop.f32.mrf.mxu0
  %6819 = vmatprep.mubr.bf16.mxu0 %v6390
  %6820 = vmatmul.mubr.bf16.gmra.mxu0 %v6389
  %v6821 = vpop.f32.mrf.mxu0
  %v6822 = vadd.f32 0.0, %v6821
  %v6823 = vpop.f32.mrf.mxu0
  %v6824 = vpop.f32.mrf.mxu0
  %v6825 = vadd.f32 0.0, %v6824
  %v6826 = vpop.f32.mrf.mxu0
  %6827 = vmatprep.mubr.bf16.mxu0 %v6391
  %6828 = vmatmul.mubr.bf16.gmra.mxu0 %v6390
  %v6829 = vpop.f32.mrf.mxu0
  %v6830 = vadd.f32 0.0, %v6829
  %v6831 = vpop.f32.mrf.mxu0
  %v6832 = vpop.f32.mrf.mxu0
  %v6833 = vadd.f32 0.0, %v6832
  %v6834 = vpop.f32.mrf.mxu0
  %6835 = vmatprep.mubr.bf16.mxu0 %v6392
  %6836 = vmatmul.mubr.bf16.gmra.mxu0 %v6391
  %v6837 = vpop.f32.mrf.mxu0
  %v6838 = vadd.f32 0.0, %v6837
  %v6839 = vpop.f32.mrf.mxu0
  %v6840 = vpop.f32.mrf.mxu0
  %v6841 = vadd.f32 0.0, %v6840
  %v6842 = vpop.f32.mrf.mxu0
  %6843 = vmatprep.mubr.bf16.mxu0 %v6393
  %6844 = vmatmul.mubr.bf16.gmra.mxu0 %v6392
  %v6845 = vpop.f32.mrf.mxu0
  %v6846 = vadd.f32 0.0, %v6845
  %v6847 = vpop.f32.mrf.mxu0
  %v6848 = vpop.f32.mrf.mxu0
  %v6849 = vadd.f32 0.0, %v6848
  %v6850 = vpop.f32.mrf.mxu0
  %6851 = vmatprep.mubr.bf16.mxu0 %v6394
  %6852 = vmatmul.mubr.bf16.gmra.mxu0 %v6393
  %v6853 = vpop.f32.mrf.mxu0
  %v6854 = vadd.f32 0.0, %v6853
  %v6855 = vpop.f32.mrf.mxu0
  %v6856 = vpop.f32.mrf.mxu0
  %v6857 = vadd.f32 0.0, %v6856
  %v6858 = vpop.f32.mrf.mxu0
  %6859 = vmatprep.mubr.bf16.mxu0 %v6395
  %6860 = vmatmul.mubr.bf16.gmra.mxu0 %v6394
  %v6861 = vpop.f32.mrf.mxu0
  %v6862 = vadd.f32 0.0, %v6861
  %v6863 = vpop.f32.mrf.mxu0
  %v6864 = vpop.f32.mrf.mxu0
  %v6865 = vadd.f32 0.0, %v6864
  %v6866 = vpop.f32.mrf.mxu0
  %6867 = vmatprep.mubr.bf16.mxu0 %v6396
  %6868 = vmatmul.mubr.bf16.gmra.mxu0 %v6395
  %v6869 = vpop.f32.mrf.mxu0
  %v6870 = vadd.f32 0.0, %v6869
  %v6871 = vpop.f32.mrf.mxu0
  %v6872 = vpop.f32.mrf.mxu0
  %v6873 = vadd.f32 0.0, %v6872
  %v6874 = vpop.f32.mrf.mxu0
  %6875 = vmatprep.mubr.bf16.mxu0 %v6397
  %6876 = vmatmul.mubr.bf16.gmra.mxu0 %v6396
  %v6877 = vpop.f32.mrf.mxu0
  %v6878 = vadd.f32 0.0, %v6877
  %v6879 = vpop.f32.mrf.mxu0
  %v6880 = vpop.f32.mrf.mxu0
  %v6881 = vadd.f32 0.0, %v6880
  %v6882 = vpop.f32.mrf.mxu0
  %6883 = vmatprep.mubr.bf16.mxu0 %v6398
  %6884 = vmatmul.mubr.bf16.gmra.mxu0 %v6397
  %v6885 = vpop.f32.mrf.mxu0
  %v6886 = vadd.f32 0.0, %v6885
  %v6887 = vpop.f32.mrf.mxu0
  %v6888 = vpop.f32.mrf.mxu0
  %v6889 = vadd.f32 0.0, %v6888
  %v6890 = vpop.f32.mrf.mxu0
  %6891 = vmatprep.mubr.bf16.mxu0 %v6399
  %6892 = vmatmul.mubr.bf16.gmra.mxu0 %v6398
  %v6893 = vpop.f32.mrf.mxu0
  %v6894 = vadd.f32 0.0, %v6893
  %v6895 = vpop.f32.mrf.mxu0
  %v6896 = vpop.f32.mrf.mxu0
  %v6897 = vadd.f32 0.0, %v6896
  %v6898 = vpop.f32.mrf.mxu0
  %6899 = vmatprep.mubr.bf16.mxu0 %v6400
  %6900 = vmatmul.mubr.bf16.gmra.mxu0 %v6399
  %v6901 = vpop.f32.mrf.mxu0
  %v6902 = vadd.f32 0.0, %v6901
  %v6903 = vpop.f32.mrf.mxu0
  %v6904 = vpop.f32.mrf.mxu0
  %v6905 = vadd.f32 0.0, %v6904
  %v6906 = vpop.f32.mrf.mxu0
  %6907 = vmatprep.mubr.bf16.mxu0 %v6401
  %6908 = vmatmul.mubr.bf16.gmra.mxu0 %v6400
  %v6909 = vpop.f32.mrf.mxu0
  %v6910 = vadd.f32 0.0, %v6909
  %v6911 = vpop.f32.mrf.mxu0
  %v6912 = vpop.f32.mrf.mxu0
  %v6913 = vadd.f32 0.0, %v6912
  %v6914 = vpop.f32.mrf.mxu0
  %6915 = vmatprep.mubr.bf16.mxu0 %v6435
  %6916 = vmatmul.mubr.bf16.gmra.mxu0 %v6401
  %v6917 = vpop.f32.mrf.mxu0
  %v6918 = vadd.f32 0.0, %v6917
  %v6919 = vpop.f32.mrf.mxu0
  %v6920 = vpop.f32.mrf.mxu0
  %v6921 = vadd.f32 0.0, %v6920
  %v6922 = vpop.f32.mrf.mxu0
  %6923 = vdwg.mxu0
  %6924 = vmatprep.subr.bf16.mxu0 0
  %6925 = vmatpush1.bf16.msra.mxu0 %v6610
  %6926 = vmatprep.subr.bf16.mxu0 0
  %6927 = vmatpush1.bf16.msra.mxu0 %v6609
  %6928 = vmatprep.subr.bf16.mxu0 0
  %6929 = vmatpush1.bf16.msra.mxu0 %v6608
  %6930 = vmatprep.subr.bf16.mxu0 0
  %6931 = vmatpush1.bf16.msra.mxu0 %v6607
  %6932 = vmatprep.subr.bf16.mxu0 0
  %6933 = vmatpush1.bf16.msra.mxu0 %v6606
  %6934 = vmatprep.subr.bf16.mxu0 0
  %6935 = vmatpush1.bf16.msra.mxu0 %v6605
  %6936 = vmatprep.subr.bf16.mxu0 0
  %6937 = vmatpush1.bf16.msra.mxu0 %v6604
  %6938 = vmatprep.subr.bf16.mxu0 0
  %6939 = vmatpush1.bf16.msra.mxu0 %v6603
  %6940 = vmatprep.subr.bf16.mxu0 0
  %6941 = vmatpush2.bf16.msra.mxu0 0
  %6942 = vmatprep.subr.bf16.mxu0 0
  %6943 = vmatpush2.bf16.msra.mxu0 0
  %6944 = vmatprep.subr.bf16.mxu0 0
  %6945 = vmatpush2.bf16.msra.mxu0 0
  %6946 = vmatprep.subr.bf16.mxu0 0
  %6947 = vmatpush2.bf16.msra.mxu0 0
  %6948 = vmatprep.subr.bf16.mxu0 0
  %6949 = vmatpush2.bf16.msra.mxu0 0
  %6950 = vmatprep.subr.bf16.mxu0 0
  %6951 = vmatpush2.bf16.msra.mxu0 0
  %6952 = vmatprep.subr.bf16.mxu0 0
  %6953 = vmatpush2.bf16.msra.mxu0 0
  %6954 = vmatprep.subr.bf16.mxu0 0
  %6955 = vmatpush2.bf16.msra.mxu0 0
  %6956 = vmatprep.mubr.bf16.mxu0 0
  %6957 = vmatmul.mubr.bf16.gmra.mxu0 %v6372
  %v6958 = vpop.f32.mrf.mxu0
  %v6959 = vadd.f32 %v6670, %v6958
  %v6960 = vpop.f32.mrf.mxu0
  %v6961 = vpop.f32.mrf.mxu0
  %v6962 = vadd.f32 %v6673, %v6961
  %v6963 = vpop.f32.mrf.mxu0
  %6964 = vmatprep.mubr.bf16.mxu0 0
  %6965 = vmatmul.mubr.bf16.gmra.mxu0 %v6373
  %v6966 = vpop.f32.mrf.mxu0
  %v6967 = vadd.f32 %v6678, %v6966
  %v6968 = vpop.f32.mrf.mxu0
  %v6969 = vpop.f32.mrf.mxu0
  %v6970 = vadd.f32 %v6681, %v6969
  %v6971 = vpop.f32.mrf.mxu0
  %6972 = vmatprep.mubr.bf16.mxu0 0
  %6973 = vmatmul.mubr.bf16.gmra.mxu0 %v6374
  %v6974 = vpop.f32.mrf.mxu0
  %v6975 = vadd.f32 %v6686, %v6974
  %v6976 = vpop.f32.mrf.mxu0
  %v6977 = vpop.f32.mrf.mxu0
  %v6978 = vadd.f32 %v6689, %v6977
  %v6979 = vpop.f32.mrf.mxu0
  %6980 = vmatprep.mubr.bf16.mxu0 0
  %6981 = vmatmul.mubr.bf16.gmra.mxu0 %v6375
  %v6982 = vpop.f32.mrf.mxu0
  %v6983 = vadd.f32 %v6694, %v6982
  %v6984 = vpop.f32.mrf.mxu0
  %v6985 = vpop.f32.mrf.mxu0
  %v6986 = vadd.f32 %v6697, %v6985
  %v6987 = vpop.f32.mrf.mxu0
  %6988 = vmatprep.mubr.bf16.mxu0 0
  %6989 = vmatmul.mubr.bf16.gmra.mxu0 %v6376
  %v6990 = vpop.f32.mrf.mxu0
  %v6991 = vadd.f32 %v6702, %v6990
  %v6992 = vpop.f32.mrf.mxu0
  %v6993 = vpop.f32.mrf.mxu0
  %v6994 = vadd.f32 %v6705, %v6993
  %v6995 = vpop.f32.mrf.mxu0
  %6996 = vmatprep.mubr.bf16.mxu0 0
  %6997 = vmatmul.mubr.bf16.gmra.mxu0 %v6377
  %v6998 = vpop.f32.mrf.mxu0
  %v6999 = vadd.f32 %v6710, %v6998
  %v7000 = vpop.f32.mrf.mxu0
  %v7001 = vpop.f32.mrf.mxu0
  %v7002 = vadd.f32 %v6713, %v7001
  %v7003 = vpop.f32.mrf.mxu0
  %7004 = vmatprep.mubr.bf16.mxu0 0
  %7005 = vmatmul.mubr.bf16.gmra.mxu0 %v6378
  %v7006 = vpop.f32.mrf.mxu0
  %v7007 = vadd.f32 %v6718, %v7006
  %v7008 = vpop.f32.mrf.mxu0
  %v7009 = vpop.f32.mrf.mxu0
  %v7010 = vadd.f32 %v6721, %v7009
  %v7011 = vpop.f32.mrf.mxu0
  %7012 = vmatprep.mubr.bf16.mxu0 0
  %7013 = vmatmul.mubr.bf16.gmra.mxu0 %v6379
  %v7014 = vpop.f32.mrf.mxu0
  %v7015 = vadd.f32 %v6726, %v7014
  %v7016 = vpop.f32.mrf.mxu0
  %v7017 = vpop.f32.mrf.mxu0
  %v7018 = vadd.f32 %v6729, %v7017
  %v7019 = vpop.f32.mrf.mxu0
  %7020 = vmatprep.mubr.bf16.mxu0 0
  %7021 = vmatmul.mubr.bf16.gmra.mxu0 %v6380
  %v7022 = vpop.f32.mrf.mxu0
  %v7023 = vadd.f32 %v6734, %v7022
  %v7024 = vpop.f32.mrf.mxu0
  %v7025 = vpop.f32.mrf.mxu0
  %v7026 = vadd.f32 %v6737, %v7025
  %v7027 = vpop.f32.mrf.mxu0
  %7028 = vmatprep.mubr.bf16.mxu0 0
  %7029 = vmatmul.mubr.bf16.gmra.mxu0 %v6381
  %v7030 = vpop.f32.mrf.mxu0
  %v7031 = vadd.f32 %v6742, %v7030
  %v7032 = vpop.f32.mrf.mxu0
  %v7033 = vpop.f32.mrf.mxu0
  %v7034 = vadd.f32 %v6745, %v7033
  %v7035 = vpop.f32.mrf.mxu0
  %7036 = vmatprep.mubr.bf16.mxu0 0
  %7037 = vmatmul.mubr.bf16.gmra.mxu0 %v6382
  %v7038 = vpop.f32.mrf.mxu0
  %v7039 = vadd.f32 %v6750, %v7038
  %v7040 = vpop.f32.mrf.mxu0
  %v7041 = vpop.f32.mrf.mxu0
  %v7042 = vadd.f32 %v6753, %v7041
  %v7043 = vpop.f32.mrf.mxu0
  %7044 = vmatprep.mubr.bf16.mxu0 0
  %7045 = vmatmul.mubr.bf16.gmra.mxu0 %v6383
  %v7046 = vpop.f32.mrf.mxu0
  %v7047 = vadd.f32 %v6758, %v7046
  %v7048 = vpop.f32.mrf.mxu0
  %v7049 = vpop.f32.mrf.mxu0
  %v7050 = vadd.f32 %v6761, %v7049
  %v7051 = vpop.f32.mrf.mxu0
  %7052 = vmatprep.mubr.bf16.mxu0 0
  %7053 = vmatmul.mubr.bf16.gmra.mxu0 %v6384
  %v7054 = vpop.f32.mrf.mxu0
  %v7055 = vadd.f32 %v6766, %v7054
  %v7056 = vpop.f32.mrf.mxu0
  %v7057 = vpop.f32.mrf.mxu0
  %v7058 = vadd.f32 %v6769, %v7057
  %v7059 = vpop.f32.mrf.mxu0
  %7060 = vmatprep.mubr.bf16.mxu0 0
  %7061 = vmatmul.mubr.bf16.gmra.mxu0 %v6385
  %v7062 = vpop.f32.mrf.mxu0
  %v7063 = vadd.f32 %v6774, %v7062
  %v7064 = vpop.f32.mrf.mxu0
  %v7065 = vpop.f32.mrf.mxu0
  %v7066 = vadd.f32 %v6777, %v7065
  %v7067 = vpop.f32.mrf.mxu0
  %7068 = vmatprep.mubr.bf16.mxu0 0
  %7069 = vmatmul.mubr.bf16.gmra.mxu0 %v6434
  %v7070 = vpop.f32.mrf.mxu0
  %v7071 = vadd.f32 %v6782, %v7070
  %v7072 = vpop.f32.mrf.mxu0
  %v7073 = vpop.f32.mrf.mxu0
  %v7074 = vadd.f32 %v6785, %v7073
  %v7075 = vpop.f32.mrf.mxu0
  %7076 = vmatprep.mubr.bf16.mxu0 0
  %7077 = vmatmul.mubr.bf16.gmra.mxu0 %v6438
  %v7078 = vpop.f32.mrf.mxu0
  %v7079 = vadd.f32 %v6790, %v7078
  %v7080 = vpop.f32.mrf.mxu0
  %v7081 = vpop.f32.mrf.mxu0
  %v7082 = vadd.f32 %v6793, %v7081
  %v7083 = vpop.f32.mrf.mxu0
  %7084 = vmatprep.mubr.bf16.mxu0 0
  %7085 = vmatmul.mubr.bf16.gmra.mxu0 %v6388
  %v7086 = vpop.f32.mrf.mxu0
  %v7087 = vadd.f32 %v6798, %v7086
  %v7088 = vpop.f32.mrf.mxu0
  %v7089 = vpop.f32.mrf.mxu0
  %v7090 = vadd.f32 %v6801, %v7089
  %v7091 = vpop.f32.mrf.mxu0
  %7092 = vmatprep.mubr.bf16.mxu0 0
  %7093 = vmatmul.mubr.bf16.gmra.mxu0 %v6389
  %v7094 = vpop.f32.mrf.mxu0
  %v7095 = vadd.f32 %v6806, %v7094
  %v7096 = vpop.f32.mrf.mxu0
  %v7097 = vpop.f32.mrf.mxu0
  %v7098 = vadd.f32 %v6809, %v7097
  %v7099 = vpop.f32.mrf.mxu0
  %7100 = vmatprep.mubr.bf16.mxu0 0
  %7101 = vmatmul.mubr.bf16.gmra.mxu0 %v6390
  %v7102 = vpop.f32.mrf.mxu0
  %v7103 = vadd.f32 %v6814, %v7102
  %v7104 = vpop.f32.mrf.mxu0
  %v7105 = vpop.f32.mrf.mxu0
  %v7106 = vadd.f32 %v6817, %v7105
  %v7107 = vpop.f32.mrf.mxu0
  %7108 = vmatprep.mubr.bf16.mxu0 0
  %7109 = vmatmul.mubr.bf16.gmra.mxu0 %v6391
  %v7110 = vpop.f32.mrf.mxu0
  %v7111 = vadd.f32 %v6822, %v7110
  %v7112 = vpop.f32.mrf.mxu0
  %v7113 = vpop.f32.mrf.mxu0
  %v7114 = vadd.f32 %v6825, %v7113
  %v7115 = vpop.f32.mrf.mxu0
  %7116 = vmatprep.mubr.bf16.mxu0 0
  %7117 = vmatmul.mubr.bf16.gmra.mxu0 %v6392
  %v7118 = vpop.f32.mrf.mxu0
  %v7119 = vadd.f32 %v6830, %v7118
  %v7120 = vpop.f32.mrf.mxu0
  %v7121 = vpop.f32.mrf.mxu0
  %v7122 = vadd.f32 %v6833, %v7121
  %v7123 = vpop.f32.mrf.mxu0
  %7124 = vmatprep.mubr.bf16.mxu0 0
  %7125 = vmatmul.mubr.bf16.gmra.mxu0 %v6393
  %v7126 = vpop.f32.mrf.mxu0
  %v7127 = vadd.f32 %v6838, %v7126
  %v7128 = vpop.f32.mrf.mxu0
  %v7129 = vpop.f32.mrf.mxu0
  %v7130 = vadd.f32 %v6841, %v7129
  %v7131 = vpop.f32.mrf.mxu0
  %7132 = vmatprep.mubr.bf16.mxu0 0
  %7133 = vmatmul.mubr.bf16.gmra.mxu0 %v6394
  %v7134 = vpop.f32.mrf.mxu0
  %v7135 = vadd.f32 %v6846, %v7134
  %v7136 = vpop.f32.mrf.mxu0
  %v7137 = vpop.f32.mrf.mxu0
  %v7138 = vadd.f32 %v6849, %v7137
  %v7139 = vpop.f32.mrf.mxu0
  %7140 = vmatprep.mubr.bf16.mxu0 0
  %7141 = vmatmul.mubr.bf16.gmra.mxu0 %v6395
  %v7142 = vpop.f32.mrf.mxu0
  %v7143 = vadd.f32 %v6854, %v7142
  %v7144 = vpop.f32.mrf.mxu0
  %v7145 = vpop.f32.mrf.mxu0
  %v7146 = vadd.f32 %v6857, %v7145
  %v7147 = vpop.f32.mrf.mxu0
  %7148 = vmatprep.mubr.bf16.mxu0 0
  %7149 = vmatmul.mubr.bf16.gmra.mxu0 %v6396
  %v7150 = vpop.f32.mrf.mxu0
  %v7151 = vadd.f32 %v6862, %v7150
  %v7152 = vpop.f32.mrf.mxu0
  %v7153 = vpop.f32.mrf.mxu0
  %v7154 = vadd.f32 %v6865, %v7153
  %v7155 = vpop.f32.mrf.mxu0
  %7156 = vmatprep.mubr.bf16.mxu0 0
  %7157 = vmatmul.mubr.bf16.gmra.mxu0 %v6397
  %v7158 = vpop.f32.mrf.mxu0
  %v7159 = vadd.f32 %v6870, %v7158
  %v7160 = vpop.f32.mrf.mxu0
  %v7161 = vpop.f32.mrf.mxu0
  %v7162 = vadd.f32 %v6873, %v7161
  %v7163 = vpop.f32.mrf.mxu0
  %7164 = vmatprep.mubr.bf16.mxu0 0
  %7165 = vmatmul.mubr.bf16.gmra.mxu0 %v6398
  %v7166 = vpop.f32.mrf.mxu0
  %v7167 = vadd.f32 %v6878, %v7166
  %v7168 = vpop.f32.mrf.mxu0
  %v7169 = vpop.f32.mrf.mxu0
  %v7170 = vadd.f32 %v6881, %v7169
  %v7171 = vpop.f32.mrf.mxu0
  %7172 = vmatprep.mubr.bf16.mxu0 0
  %7173 = vmatmul.mubr.bf16.gmra.mxu0 %v6399
  %v7174 = vpop.f32.mrf.mxu0
  %v7175 = vadd.f32 %v6886, %v7174
  %v7176 = vpop.f32.mrf.mxu0
  %v7177 = vpop.f32.mrf.mxu0
  %v7178 = vadd.f32 %v6889, %v7177
  %v7179 = vpop.f32.mrf.mxu0
  %7180 = vmatprep.mubr.bf16.mxu0 0
  %7181 = vmatmul.mubr.bf16.gmra.mxu0 %v6400
  %v7182 = vpop.f32.mrf.mxu0
  %v7183 = vadd.f32 %v6894, %v7182
  %v7184 = vpop.f32.mrf.mxu0
  %v7185 = vpop.f32.mrf.mxu0
  %v7186 = vadd.f32 %v6897, %v7185
  %v7187 = vpop.f32.mrf.mxu0
  %7188 = vmatprep.mubr.bf16.mxu0 0
  %7189 = vmatmul.mubr.bf16.gmra.mxu0 %v6401
  %v7190 = vpop.f32.mrf.mxu0
  %v7191 = vadd.f32 %v6902, %v7190
  %v7192 = vpop.f32.mrf.mxu0
  %v7193 = vpop.f32.mrf.mxu0
  %v7194 = vadd.f32 %v6905, %v7193
  %v7195 = vpop.f32.mrf.mxu0
  %7196 = vmatprep.mubr.bf16.mxu0 0
  %7197 = vmatmul.mubr.bf16.gmra.mxu0 %v6435
  %v7198 = vpop.f32.mrf.mxu0
  %v7199 = vadd.f32 %v6910, %v7198
  %v7200 = vpop.f32.mrf.mxu0
  %v7201 = vpop.f32.mrf.mxu0
  %v7202 = vadd.f32 %v6913, %v7201
  %v7203 = vpop.f32.mrf.mxu0
  %7204 = vmatprep.mubr.bf16.mxu0 0
  %7205 = vmatmul.mubr.bf16.gmra.mxu0 %v6439
  %v7206 = vpop.f32.mrf.mxu0
  %v7207 = vadd.f32 %v6918, %v7206
  %v7208 = vpop.f32.mrf.mxu0
  %v7209 = vpop.f32.mrf.mxu0
  %v7210 = vadd.f32 %v6921, %v7209
  %v7211 = vpop.f32.mrf.mxu0
  %7212 = vdwg.mxu0
  %v7261 = vunpack.c.l.b16 %v6322
  %v7262 = vunpack.c.l.b16 %v6323
  %v7263 = vunpack.c.l.b16 %v6324
  %v7264 = vunpack.c.l.b16 %v6325
  %v7265 = vunpack.c.l.b16 %v6326
  %v7266 = vunpack.c.l.b16 %v6327
  %v7267 = vunpack.c.l.b16 %v6328
  %v7268 = vunpack.c.l.b16 %v6329
  %v7269 = vunpack.c.l.b16 %v6330
  %v7270 = vunpack.c.l.b16 %v6331
  %v7271 = vunpack.c.l.b16 %v6332
  %v7272 = vunpack.c.l.b16 %v6333
  %v7273 = vunpack.c.l.b16 %v6334
  %v7274 = vunpack.c.l.b16 %v6335
  %v7275 = vunpack.c.l.b16 %v6336
  %v7276 = vunpack.c.l.b16 %v6337
  %v7277 = vunpack.c.l.b16 %v6338
  %v7278 = vunpack.c.l.b16 %v6339
  %v7279 = vunpack.c.l.b16 %v6340
  %v7280 = vunpack.c.l.b16 %v6341
  %v7281 = vunpack.c.l.b16 %v6342
  %v7282 = vunpack.c.l.b16 %v6343
  %v7283 = vunpack.c.l.b16 %v6344
  %v7284 = vunpack.c.l.b16 %v6345
  %v7285 = vunpack.c.l.b16 %v6346
  %v7286 = vunpack.c.l.b16 %v6347
  %v7287 = vunpack.c.l.b16 %v6348
  %v7288 = vunpack.c.l.b16 %v6349
  %v7289 = vunpack.c.l.b16 %v6350
  %v7290 = vunpack.c.l.b16 %v6351
  %v7291 = vunpack.c.l.b16 %v6352
  %v7292 = vunpack.c.l.b16 %v6353
  %v7293 = vunpack.c.l.b16 %v6354
  %v7294 = vunpack.c.l.b16 %v6355
  %v7295 = vunpack.c.l.b16 %v6356
  %v7296 = vunpack.c.l.b16 %v6357
  %v7297 = vunpack.c.l.b16 %v6358
  %v7298 = vunpack.c.l.b16 %v6359
  %v7299 = vunpack.c.l.b16 %v6360
  %v7300 = vunpack.c.l.b16 %v6361
  %v7301 = vunpack.c.l.b16 %v6362
  %v7302 = vunpack.c.l.b16 %v6363
  %v7303 = vunpack.c.l.b16 %v6364
  %v7304 = vunpack.c.l.b16 %v6365
  %v7305 = vunpack.c.l.b16 %v6366
  %v7306 = vunpack.c.l.b16 %v6367
  %v7307 = vunpack.c.l.b16 %v6368
  %v7308 = vunpack.c.l.b16 %v6369
  %v7309 = vpack.c.b16 %v7262, %v7261
  %v7310 = vpack.c.b16 %v7264, %v7263
  %v7311 = vpack.c.b16 %v7266, %v7265
  %v7312 = vpack.c.b16 %v7268, %v7267
  %v7313 = vpack.c.b16 %v7270, %v7269
  %v7314 = vpack.c.b16 %v7272, %v7271
  %v7315 = vpack.c.b16 %v7274, %v7273
  %v7316 = vpack.c.b16 %v7276, %v7275
  %v7317 = vpack.c.b16 %v7278, %v7277
  %v7318 = vpack.c.b16 %v7280, %v7279
  %v7319 = vpack.c.b16 %v7282, %v7281
  %v7320 = vpack.c.b16 %v7284, %v7283
  %v7321 = vpack.c.b16 %v7286, %v7285
  %v7322 = vpack.c.b16 %v7288, %v7287
  %v7323 = vpack.c.b16 %v7290, %v7289
  %v7324 = vpack.c.b16 %v7292, %v7291
  %v7325 = vpack.c.b16 %v7294, %v7293
  %v7326 = vpack.c.b16 %v7296, %v7295
  %v7327 = vpack.c.b16 %v7298, %v7297
  %v7328 = vpack.c.b16 %v7300, %v7299
  %v7329 = vpack.c.b16 %v7302, %v7301
  %v7330 = vpack.c.b16 %v7304, %v7303
  %v7331 = vpack.c.b16 %v7306, %v7305
  %v7332 = vpack.c.b16 %v7308, %v7307
  %7357 = vmatprep.subr.bf16.mxu0 0
  %7358 = vmatpush1.bf16.msra.mxu0 %v7316
  %7359 = vmatprep.subr.bf16.mxu0 0
  %7360 = vmatpush1.bf16.msra.mxu0 %v7315
  %7361 = vmatprep.subr.bf16.mxu0 0
  %7362 = vmatpush1.bf16.msra.mxu0 %v7314
  %7363 = vmatprep.subr.bf16.mxu0 0
  %7364 = vmatpush1.bf16.msra.mxu0 %v7313
  %7365 = vmatprep.subr.bf16.mxu0 0
  %7366 = vmatpush1.bf16.msra.mxu0 %v7312
  %7367 = vmatprep.subr.bf16.mxu0 0
  %7368 = vmatpush1.bf16.msra.mxu0 %v7311
  %7369 = vmatprep.subr.bf16.mxu0 0
  %7370 = vmatpush1.bf16.msra.mxu0 %v7310
  %7371 = vmatprep.subr.bf16.mxu0 0
  %7372 = vmatpush1.bf16.msra.mxu0 %v7309
  %7373 = vmatprep.subr.bf16.mxu0 0
  %7374 = vmatpush2.bf16.msra.mxu0 %v7324
  %7375 = vmatprep.subr.bf16.mxu0 0
  %7376 = vmatpush2.bf16.msra.mxu0 %v7323
  %7377 = vmatprep.subr.bf16.mxu0 0
  %7378 = vmatpush2.bf16.msra.mxu0 %v7322
  %7379 = vmatprep.subr.bf16.mxu0 0
  %7380 = vmatpush2.bf16.msra.mxu0 %v7321
  %7381 = vmatprep.subr.bf16.mxu0 0
  %7382 = vmatpush2.bf16.msra.mxu0 %v7320
  %7383 = vmatprep.subr.bf16.mxu0 0
  %7384 = vmatpush2.bf16.msra.mxu0 %v7319
  %7385 = vmatprep.subr.bf16.mxu0 0
  %7386 = vmatpush2.bf16.msra.mxu0 %v7318
  %7387 = vmatprep.subr.bf16.mxu0 0
  %7388 = vmatpush2.bf16.msra.mxu0 %v7317
  %7389 = vmatprep.mubr.bf16.mxu0 %v5707
  %7390 = vmatmul.mubr.bf16.gmra.mxu0 %v5690
  %v7391 = vpop.f32.mrf.mxu0
  %v7392 = vadd.f32 %v6959, %v7391
  %v7393 = vpop.f32.mrf.mxu0
  %v7394 = vpop.f32.mrf.mxu0
  %v7395 = vadd.f32 %v6962, %v7394
  %v7396 = vpop.f32.mrf.mxu0
  %7397 = vmatprep.mubr.bf16.mxu0 %v5724
  %7398 = vmatmul.mubr.bf16.gmra.mxu0 %v5707
  %v7399 = vpop.f32.mrf.mxu0
  %v7400 = vadd.f32 %v6967, %v7399
  %v7401 = vpop.f32.mrf.mxu0
  %v7402 = vpop.f32.mrf.mxu0
  %v7403 = vadd.f32 %v6970, %v7402
  %v7404 = vpop.f32.mrf.mxu0
  %7405 = vmatprep.mubr.bf16.mxu0 %v5741
  %7406 = vmatmul.mubr.bf16.gmra.mxu0 %v5724
  %v7407 = vpop.f32.mrf.mxu0
  %v7408 = vadd.f32 %v6975, %v7407
  %v7409 = vpop.f32.mrf.mxu0
  %v7410 = vpop.f32.mrf.mxu0
  %v7411 = vadd.f32 %v6978, %v7410
  %v7412 = vpop.f32.mrf.mxu0
  %7413 = vmatprep.mubr.bf16.mxu0 %v5758
  %7414 = vmatmul.mubr.bf16.gmra.mxu0 %v5741
  %v7415 = vpop.f32.mrf.mxu0
  %v7416 = vadd.f32 %v6983, %v7415
  %v7417 = vpop.f32.mrf.mxu0
  %v7418 = vpop.f32.mrf.mxu0
  %v7419 = vadd.f32 %v6986, %v7418
  %v7420 = vpop.f32.mrf.mxu0
  %7421 = vmatprep.mubr.bf16.mxu0 %v5775
  %7422 = vmatmul.mubr.bf16.gmra.mxu0 %v5758
  %v7423 = vpop.f32.mrf.mxu0
  %v7424 = vadd.f32 %v6991, %v7423
  %v7425 = vpop.f32.mrf.mxu0
  %v7426 = vpop.f32.mrf.mxu0
  %v7427 = vadd.f32 %v6994, %v7426
  %v7428 = vpop.f32.mrf.mxu0
  %7429 = vmatprep.mubr.bf16.mxu0 %v5792
  %7430 = vmatmul.mubr.bf16.gmra.mxu0 %v5775
  %v7431 = vpop.f32.mrf.mxu0
  %v7432 = vadd.f32 %v6999, %v7431
  %v7433 = vpop.f32.mrf.mxu0
  %v7434 = vpop.f32.mrf.mxu0
  %v7435 = vadd.f32 %v7002, %v7434
  %v7436 = vpop.f32.mrf.mxu0
  %7437 = vmatprep.mubr.bf16.mxu0 %v5809
  %7438 = vmatmul.mubr.bf16.gmra.mxu0 %v5792
  %v7439 = vpop.f32.mrf.mxu0
  %v7440 = vadd.f32 %v7007, %v7439
  %v7441 = vpop.f32.mrf.mxu0
  %v7442 = vpop.f32.mrf.mxu0
  %v7443 = vadd.f32 %v7010, %v7442
  %v7444 = vpop.f32.mrf.mxu0
  %7445 = vmatprep.mubr.bf16.mxu0 %v5826
  %7446 = vmatmul.mubr.bf16.gmra.mxu0 %v5809
  %v7447 = vpop.f32.mrf.mxu0
  %v7448 = vadd.f32 %v7015, %v7447
  %v7449 = vpop.f32.mrf.mxu0
  %v7450 = vpop.f32.mrf.mxu0
  %v7451 = vadd.f32 %v7018, %v7450
  %v7452 = vpop.f32.mrf.mxu0
  %7453 = vmatprep.mubr.bf16.mxu0 %v5843
  %7454 = vmatmul.mubr.bf16.gmra.mxu0 %v5826
  %v7455 = vpop.f32.mrf.mxu0
  %v7456 = vadd.f32 %v7023, %v7455
  %v7457 = vpop.f32.mrf.mxu0
  %v7458 = vpop.f32.mrf.mxu0
  %v7459 = vadd.f32 %v7026, %v7458
  %v7460 = vpop.f32.mrf.mxu0
  %7461 = vmatprep.mubr.bf16.mxu0 %v5860
  %7462 = vmatmul.mubr.bf16.gmra.mxu0 %v5843
  %v7463 = vpop.f32.mrf.mxu0
  %v7464 = vadd.f32 %v7031, %v7463
  %v7465 = vpop.f32.mrf.mxu0
  %v7466 = vpop.f32.mrf.mxu0
  %v7467 = vadd.f32 %v7034, %v7466
  %v7468 = vpop.f32.mrf.mxu0
  %7469 = vmatprep.mubr.bf16.mxu0 %v5877
  %7470 = vmatmul.mubr.bf16.gmra.mxu0 %v5860
  %v7471 = vpop.f32.mrf.mxu0
  %v7472 = vadd.f32 %v7039, %v7471
  %v7473 = vpop.f32.mrf.mxu0
  %v7474 = vpop.f32.mrf.mxu0
  %v7475 = vadd.f32 %v7042, %v7474
  %v7476 = vpop.f32.mrf.mxu0
  %7477 = vmatprep.mubr.bf16.mxu0 %v5894
  %7478 = vmatmul.mubr.bf16.gmra.mxu0 %v5877
  %v7479 = vpop.f32.mrf.mxu0
  %v7480 = vadd.f32 %v7047, %v7479
  %v7481 = vpop.f32.mrf.mxu0
  %v7482 = vpop.f32.mrf.mxu0
  %v7483 = vadd.f32 %v7050, %v7482
  %v7484 = vpop.f32.mrf.mxu0
  %7485 = vmatprep.mubr.bf16.mxu0 %v5911
  %7486 = vmatmul.mubr.bf16.gmra.mxu0 %v5894
  %v7487 = vpop.f32.mrf.mxu0
  %v7488 = vadd.f32 %v7055, %v7487
  %v7489 = vpop.f32.mrf.mxu0
  %v7490 = vpop.f32.mrf.mxu0
  %v7491 = vadd.f32 %v7058, %v7490
  %v7492 = vpop.f32.mrf.mxu0
  %7493 = vmatprep.mubr.bf16.mxu0 %v5928
  %7494 = vmatmul.mubr.bf16.gmra.mxu0 %v5911
  %v7495 = vpop.f32.mrf.mxu0
  %v7496 = vadd.f32 %v7063, %v7495
  %v7497 = vpop.f32.mrf.mxu0
  %v7498 = vpop.f32.mrf.mxu0
  %v7499 = vadd.f32 %v7066, %v7498
  %v7500 = vpop.f32.mrf.mxu0
  %7501 = vmatprep.mubr.bf16.mxu0 %v5945
  %7502 = vmatmul.mubr.bf16.gmra.mxu0 %v5928
  %v7503 = vpop.f32.mrf.mxu0
  %v7504 = vadd.f32 %v7071, %v7503
  %v7505 = vpop.f32.mrf.mxu0
  %v7506 = vpop.f32.mrf.mxu0
  %v7507 = vadd.f32 %v7074, %v7506
  %v7508 = vpop.f32.mrf.mxu0
  %7509 = vmatprep.mubr.bf16.mxu0 %v5962
  %7510 = vmatmul.mubr.bf16.gmra.mxu0 %v5945
  %v7511 = vpop.f32.mrf.mxu0
  %v7512 = vadd.f32 %v7079, %v7511
  %v7513 = vpop.f32.mrf.mxu0
  %v7514 = vpop.f32.mrf.mxu0
  %v7515 = vadd.f32 %v7082, %v7514
  %v7516 = vpop.f32.mrf.mxu0
  %7517 = vmatprep.mubr.bf16.mxu0 %v6013
  %7518 = vmatmul.mubr.bf16.gmra.mxu0 %v5996
  %v7519 = vpop.f32.mrf.mxu0
  %v7520 = vadd.f32 %v7087, %v7519
  %v7521 = vpop.f32.mrf.mxu0
  %v7522 = vpop.f32.mrf.mxu0
  %v7523 = vadd.f32 %v7090, %v7522
  %v7524 = vpop.f32.mrf.mxu0
  %7525 = vmatprep.mubr.bf16.mxu0 %v6030
  %7526 = vmatmul.mubr.bf16.gmra.mxu0 %v6013
  %v7527 = vpop.f32.mrf.mxu0
  %v7528 = vadd.f32 %v7095, %v7527
  %v7529 = vpop.f32.mrf.mxu0
  %v7530 = vpop.f32.mrf.mxu0
  %v7531 = vadd.f32 %v7098, %v7530
  %v7532 = vpop.f32.mrf.mxu0
  %7533 = vmatprep.mubr.bf16.mxu0 %v6047
  %7534 = vmatmul.mubr.bf16.gmra.mxu0 %v6030
  %v7535 = vpop.f32.mrf.mxu0
  %v7536 = vadd.f32 %v7103, %v7535
  %v7537 = vpop.f32.mrf.mxu0
  %v7538 = vpop.f32.mrf.mxu0
  %v7539 = vadd.f32 %v7106, %v7538
  %v7540 = vpop.f32.mrf.mxu0
  %7541 = vmatprep.mubr.bf16.mxu0 %v6064
  %7542 = vmatmul.mubr.bf16.gmra.mxu0 %v6047
  %v7543 = vpop.f32.mrf.mxu0
  %v7544 = vadd.f32 %v7111, %v7543
  %v7545 = vpop.f32.mrf.mxu0
  %v7546 = vpop.f32.mrf.mxu0
  %v7547 = vadd.f32 %v7114, %v7546
  %v7548 = vpop.f32.mrf.mxu0
  %7549 = vmatprep.mubr.bf16.mxu0 %v6081
  %7550 = vmatmul.mubr.bf16.gmra.mxu0 %v6064
  %v7551 = vpop.f32.mrf.mxu0
  %v7552 = vadd.f32 %v7119, %v7551
  %v7553 = vpop.f32.mrf.mxu0
  %v7554 = vpop.f32.mrf.mxu0
  %v7555 = vadd.f32 %v7122, %v7554
  %v7556 = vpop.f32.mrf.mxu0
  %7557 = vmatprep.mubr.bf16.mxu0 %v6098
  %7558 = vmatmul.mubr.bf16.gmra.mxu0 %v6081
  %v7559 = vpop.f32.mrf.mxu0
  %v7560 = vadd.f32 %v7127, %v7559
  %v7561 = vpop.f32.mrf.mxu0
  %v7562 = vpop.f32.mrf.mxu0
  %v7563 = vadd.f32 %v7130, %v7562
  %v7564 = vpop.f32.mrf.mxu0
  %7565 = vmatprep.mubr.bf16.mxu0 %v6115
  %7566 = vmatmul.mubr.bf16.gmra.mxu0 %v6098
  %v7567 = vpop.f32.mrf.mxu0
  %v7568 = vadd.f32 %v7135, %v7567
  %v7569 = vpop.f32.mrf.mxu0
  %v7570 = vpop.f32.mrf.mxu0
  %v7571 = vadd.f32 %v7138, %v7570
  %v7572 = vpop.f32.mrf.mxu0
  %7573 = vmatprep.mubr.bf16.mxu0 %v6132
  %7574 = vmatmul.mubr.bf16.gmra.mxu0 %v6115
  %v7575 = vpop.f32.mrf.mxu0
  %v7576 = vadd.f32 %v7143, %v7575
  %v7577 = vpop.f32.mrf.mxu0
  %v7578 = vpop.f32.mrf.mxu0
  %v7579 = vadd.f32 %v7146, %v7578
  %v7580 = vpop.f32.mrf.mxu0
  %7581 = vmatprep.mubr.bf16.mxu0 %v6149
  %7582 = vmatmul.mubr.bf16.gmra.mxu0 %v6132
  %v7583 = vpop.f32.mrf.mxu0
  %v7584 = vadd.f32 %v7151, %v7583
  %v7585 = vpop.f32.mrf.mxu0
  %v7586 = vpop.f32.mrf.mxu0
  %v7587 = vadd.f32 %v7154, %v7586
  %v7588 = vpop.f32.mrf.mxu0
  %7589 = vmatprep.mubr.bf16.mxu0 %v6166
  %7590 = vmatmul.mubr.bf16.gmra.mxu0 %v6149
  %v7591 = vpop.f32.mrf.mxu0
  %v7592 = vadd.f32 %v7159, %v7591
  %v7593 = vpop.f32.mrf.mxu0
  %v7594 = vpop.f32.mrf.mxu0
  %v7595 = vadd.f32 %v7162, %v7594
  %v7596 = vpop.f32.mrf.mxu0
  %7597 = vmatprep.mubr.bf16.mxu0 %v6183
  %7598 = vmatmul.mubr.bf16.gmra.mxu0 %v6166
  %v7599 = vpop.f32.mrf.mxu0
  %v7600 = vadd.f32 %v7167, %v7599
  %v7601 = vpop.f32.mrf.mxu0
  %v7602 = vpop.f32.mrf.mxu0
  %v7603 = vadd.f32 %v7170, %v7602
  %v7604 = vpop.f32.mrf.mxu0
  %7605 = vmatprep.mubr.bf16.mxu0 %v6200
  %7606 = vmatmul.mubr.bf16.gmra.mxu0 %v6183
  %v7607 = vpop.f32.mrf.mxu0
  %v7608 = vadd.f32 %v7175, %v7607
  %v7609 = vpop.f32.mrf.mxu0
  %v7610 = vpop.f32.mrf.mxu0
  %v7611 = vadd.f32 %v7178, %v7610
  %v7612 = vpop.f32.mrf.mxu0
  %7613 = vmatprep.mubr.bf16.mxu0 %v6217
  %7614 = vmatmul.mubr.bf16.gmra.mxu0 %v6200
  %v7615 = vpop.f32.mrf.mxu0
  %v7616 = vadd.f32 %v7183, %v7615
  %v7617 = vpop.f32.mrf.mxu0
  %v7618 = vpop.f32.mrf.mxu0
  %v7619 = vadd.f32 %v7186, %v7618
  %v7620 = vpop.f32.mrf.mxu0
  %7621 = vmatprep.mubr.bf16.mxu0 %v6234
  %7622 = vmatmul.mubr.bf16.gmra.mxu0 %v6217
  %v7623 = vpop.f32.mrf.mxu0
  %v7624 = vadd.f32 %v7191, %v7623
  %v7625 = vpop.f32.mrf.mxu0
  %v7626 = vpop.f32.mrf.mxu0
  %v7627 = vadd.f32 %v7194, %v7626
  %v7628 = vpop.f32.mrf.mxu0
  %7629 = vmatprep.mubr.bf16.mxu0 %v6251
  %7630 = vmatmul.mubr.bf16.gmra.mxu0 %v6234
  %v7631 = vpop.f32.mrf.mxu0
  %v7632 = vadd.f32 %v7199, %v7631
  %v7633 = vpop.f32.mrf.mxu0
  %v7634 = vpop.f32.mrf.mxu0
  %v7635 = vadd.f32 %v7202, %v7634
  %v7636 = vpop.f32.mrf.mxu0
  %7637 = vmatprep.mubr.bf16.mxu0 %v6268
  %7638 = vmatmul.mubr.bf16.gmra.mxu0 %v6251
  %v7639 = vpop.f32.mrf.mxu0
  %v7640 = vadd.f32 %v7207, %v7639
  %v7641 = vpop.f32.mrf.mxu0
  %v7642 = vpop.f32.mrf.mxu0
  %v7643 = vadd.f32 %v7210, %v7642
  %v7644 = vpop.f32.mrf.mxu0
  %7645 = vdwg.mxu0
  %7646 = vmatprep.subr.bf16.mxu0 0
  %7647 = vmatpush1.bf16.msra.mxu0 %v7332
  %7648 = vmatprep.subr.bf16.mxu0 0
  %7649 = vmatpush1.bf16.msra.mxu0 %v7331
  %7650 = vmatprep.subr.bf16.mxu0 0
  %7651 = vmatpush1.bf16.msra.mxu0 %v7330
  %7652 = vmatprep.subr.bf16.mxu0 0
  %7653 = vmatpush1.bf16.msra.mxu0 %v7329
  %7654 = vmatprep.subr.bf16.mxu0 0
  %7655 = vmatpush1.bf16.msra.mxu0 %v7328
  %7656 = vmatprep.subr.bf16.mxu0 0
  %7657 = vmatpush1.bf16.msra.mxu0 %v7327
  %7658 = vmatprep.subr.bf16.mxu0 0
  %7659 = vmatpush1.bf16.msra.mxu0 %v7326
  %7660 = vmatprep.subr.bf16.mxu0 0
  %7661 = vmatpush1.bf16.msra.mxu0 %v7325
  %7662 = vmatprep.subr.bf16.mxu0 0
  %7663 = vmatpush2.bf16.msra.mxu0 0
  %7664 = vmatprep.subr.bf16.mxu0 0
  %7665 = vmatpush2.bf16.msra.mxu0 0
  %7666 = vmatprep.subr.bf16.mxu0 0
  %7667 = vmatpush2.bf16.msra.mxu0 0
  %7668 = vmatprep.subr.bf16.mxu0 0
  %7669 = vmatpush2.bf16.msra.mxu0 0
  %7670 = vmatprep.subr.bf16.mxu0 0
  %7671 = vmatpush2.bf16.msra.mxu0 0
  %7672 = vmatprep.subr.bf16.mxu0 0
  %7673 = vmatpush2.bf16.msra.mxu0 0
  %7674 = vmatprep.subr.bf16.mxu0 0
  %7675 = vmatpush2.bf16.msra.mxu0 0
  %7676 = vmatprep.subr.bf16.mxu0 0
  %7677 = vmatpush2.bf16.msra.mxu0 0
  %7678 = vmatprep.mubr.bf16.mxu0 0
  %7679 = vmatmul.mubr.bf16.gmra.mxu0 %v5724
  %v7680 = vpop.f32.mrf.mxu0
  %v7681 = vadd.f32 %v7392, %v7680
  %v7682 = vpop.f32.mrf.mxu0
  %v7683 = vpop.f32.mrf.mxu0
  %v7684 = vadd.f32 %v7395, %v7683
  %v7685 = vpop.f32.mrf.mxu0
  %7686 = vmatprep.mubr.bf16.mxu0 0
  %7687 = vmatmul.mubr.bf16.gmra.mxu0 %v5741
  %v7688 = vpop.f32.mrf.mxu0
  %v7689 = vadd.f32 %v7400, %v7688
  %v7690 = vpop.f32.mrf.mxu0
  %v7691 = vpop.f32.mrf.mxu0
  %v7692 = vadd.f32 %v7403, %v7691
  %v7693 = vpop.f32.mrf.mxu0
  %7694 = vmatprep.mubr.bf16.mxu0 0
  %7695 = vmatmul.mubr.bf16.gmra.mxu0 %v5758
  %v7696 = vpop.f32.mrf.mxu0
  %v7697 = vadd.f32 %v7408, %v7696
  %v7698 = vpop.f32.mrf.mxu0
  %v7699 = vpop.f32.mrf.mxu0
  %v7700 = vadd.f32 %v7411, %v7699
  %v7701 = vpop.f32.mrf.mxu0
  %7702 = vmatprep.mubr.bf16.mxu0 0
  %7703 = vmatmul.mubr.bf16.gmra.mxu0 %v5775
  %v7704 = vpop.f32.mrf.mxu0
  %v7705 = vadd.f32 %v7416, %v7704
  %v7706 = vpop.f32.mrf.mxu0
  %v7707 = vpop.f32.mrf.mxu0
  %v7708 = vadd.f32 %v7419, %v7707
  %v7709 = vpop.f32.mrf.mxu0
  %7710 = vmatprep.mubr.bf16.mxu0 0
  %7711 = vmatmul.mubr.bf16.gmra.mxu0 %v5792
  %v7712 = vpop.f32.mrf.mxu0
  %v7713 = vadd.f32 %v7424, %v7712
  %v7714 = vpop.f32.mrf.mxu0
  %v7715 = vpop.f32.mrf.mxu0
  %v7716 = vadd.f32 %v7427, %v7715
  %v7717 = vpop.f32.mrf.mxu0
  %7718 = vmatprep.mubr.bf16.mxu0 0
  %7719 = vmatmul.mubr.bf16.gmra.mxu0 %v5809
  %v7720 = vpop.f32.mrf.mxu0
  %v7721 = vadd.f32 %v7432, %v7720
  %v7722 = vpop.f32.mrf.mxu0
  %v7723 = vpop.f32.mrf.mxu0
  %v7724 = vadd.f32 %v7435, %v7723
  %v7725 = vpop.f32.mrf.mxu0
  %7726 = vmatprep.mubr.bf16.mxu0 0
  %7727 = vmatmul.mubr.bf16.gmra.mxu0 %v5826
  %v7728 = vpop.f32.mrf.mxu0
  %v7729 = vadd.f32 %v7440, %v7728
  %v7730 = vpop.f32.mrf.mxu0
  %v7731 = vpop.f32.mrf.mxu0
  %v7732 = vadd.f32 %v7443, %v7731
  %v7733 = vpop.f32.mrf.mxu0
  %7734 = vmatprep.mubr.bf16.mxu0 0
  %7735 = vmatmul.mubr.bf16.gmra.mxu0 %v5843
  %v7736 = vpop.f32.mrf.mxu0
  %v7737 = vadd.f32 %v7448, %v7736
  %v7738 = vpop.f32.mrf.mxu0
  %v7739 = vpop.f32.mrf.mxu0
  %v7740 = vadd.f32 %v7451, %v7739
  %v7741 = vpop.f32.mrf.mxu0
  %7742 = vmatprep.mubr.bf16.mxu0 0
  %7743 = vmatmul.mubr.bf16.gmra.mxu0 %v5860
  %v7744 = vpop.f32.mrf.mxu0
  %v7745 = vadd.f32 %v7456, %v7744
  %v7746 = vpop.f32.mrf.mxu0
  %v7747 = vpop.f32.mrf.mxu0
  %v7748 = vadd.f32 %v7459, %v7747
  %v7749 = vpop.f32.mrf.mxu0
  %7750 = vmatprep.mubr.bf16.mxu0 0
  %7751 = vmatmul.mubr.bf16.gmra.mxu0 %v5877
  %v7752 = vpop.f32.mrf.mxu0
  %v7753 = vadd.f32 %v7464, %v7752
  %v7754 = vpop.f32.mrf.mxu0
  %v7755 = vpop.f32.mrf.mxu0
  %v7756 = vadd.f32 %v7467, %v7755
  %v7757 = vpop.f32.mrf.mxu0
  %7758 = vmatprep.mubr.bf16.mxu0 0
  %7759 = vmatmul.mubr.bf16.gmra.mxu0 %v5894
  %v7760 = vpop.f32.mrf.mxu0
  %v7761 = vadd.f32 %v7472, %v7760
  %v7762 = vpop.f32.mrf.mxu0
  %v7763 = vpop.f32.mrf.mxu0
  %v7764 = vadd.f32 %v7475, %v7763
  %v7765 = vpop.f32.mrf.mxu0
  %7766 = vmatprep.mubr.bf16.mxu0 0
  %7767 = vmatmul.mubr.bf16.gmra.mxu0 %v5911
  %v7768 = vpop.f32.mrf.mxu0
  %v7769 = vadd.f32 %v7480, %v7768
  %v7770 = vpop.f32.mrf.mxu0
  %v7771 = vpop.f32.mrf.mxu0
  %v7772 = vadd.f32 %v7483, %v7771
  %v7773 = vpop.f32.mrf.mxu0
  %7774 = vmatprep.mubr.bf16.mxu0 0
  %7775 = vmatmul.mubr.bf16.gmra.mxu0 %v5928
  %v7776 = vpop.f32.mrf.mxu0
  %v7777 = vadd.f32 %v7488, %v7776
  %v7778 = vpop.f32.mrf.mxu0
  %v7779 = vpop.f32.mrf.mxu0
  %v7780 = vadd.f32 %v7491, %v7779
  %v7781 = vpop.f32.mrf.mxu0
  %7782 = vmatprep.mubr.bf16.mxu0 0
  %7783 = vmatmul.mubr.bf16.gmra.mxu0 %v5945
  %v7784 = vpop.f32.mrf.mxu0
  %v7785 = vadd.f32 %v7496, %v7784
  %v7786 = vpop.f32.mrf.mxu0
  %v7787 = vpop.f32.mrf.mxu0
  %v7788 = vadd.f32 %v7499, %v7787
  %v7789 = vpop.f32.mrf.mxu0
  %7790 = vmatprep.mubr.bf16.mxu0 0
  %7791 = vmatmul.mubr.bf16.gmra.mxu0 %v5962
  %v7792 = vpop.f32.mrf.mxu0
  %v7793 = vadd.f32 %v7504, %v7792
  %v7794 = vpop.f32.mrf.mxu0
  %v7795 = vpop.f32.mrf.mxu0
  %v7796 = vadd.f32 %v7507, %v7795
  %v7797 = vpop.f32.mrf.mxu0
  %7798 = vmatprep.mubr.bf16.mxu0 0
  %7799 = vmatmul.mubr.bf16.gmra.mxu0 %v5979
  %v7800 = vpop.f32.mrf.mxu0
  %v7801 = vadd.f32 %v7512, %v7800
  %v7802 = vpop.f32.mrf.mxu0
  %v7803 = vpop.f32.mrf.mxu0
  %v7804 = vadd.f32 %v7515, %v7803
  %v7805 = vpop.f32.mrf.mxu0
  %7806 = vmatprep.mubr.bf16.mxu0 0
  %7807 = vmatmul.mubr.bf16.gmra.mxu0 %v6030
  %v7808 = vpop.f32.mrf.mxu0
  %v7809 = vadd.f32 %v7520, %v7808
  %v7810 = vpop.f32.mrf.mxu0
  %v7811 = vpop.f32.mrf.mxu0
  %v7812 = vadd.f32 %v7523, %v7811
  %v7813 = vpop.f32.mrf.mxu0
  %7814 = vmatprep.mubr.bf16.mxu0 0
  %7815 = vmatmul.mubr.bf16.gmra.mxu0 %v6047
  %v7816 = vpop.f32.mrf.mxu0
  %v7817 = vadd.f32 %v7528, %v7816
  %v7818 = vpop.f32.mrf.mxu0
  %v7819 = vpop.f32.mrf.mxu0
  %v7820 = vadd.f32 %v7531, %v7819
  %v7821 = vpop.f32.mrf.mxu0
  %7822 = vmatprep.mubr.bf16.mxu0 0
  %7823 = vmatmul.mubr.bf16.gmra.mxu0 %v6064
  %v7824 = vpop.f32.mrf.mxu0
  %v7825 = vadd.f32 %v7536, %v7824
  %v7826 = vpop.f32.mrf.mxu0
  %v7827 = vpop.f32.mrf.mxu0
  %v7828 = vadd.f32 %v7539, %v7827
  %v7829 = vpop.f32.mrf.mxu0
  %7830 = vmatprep.mubr.bf16.mxu0 0
  %7831 = vmatmul.mubr.bf16.gmra.mxu0 %v6081
  %v7832 = vpop.f32.mrf.mxu0
  %v7833 = vadd.f32 %v7544, %v7832
  %v7834 = vpop.f32.mrf.mxu0
  %v7835 = vpop.f32.mrf.mxu0
  %v7836 = vadd.f32 %v7547, %v7835
  %v7837 = vpop.f32.mrf.mxu0
  %7838 = vmatprep.mubr.bf16.mxu0 0
  %7839 = vmatmul.mubr.bf16.gmra.mxu0 %v6098
  %v7840 = vpop.f32.mrf.mxu0
  %v7841 = vadd.f32 %v7552, %v7840
  %v7842 = vpop.f32.mrf.mxu0
  %v7843 = vpop.f32.mrf.mxu0
  %v7844 = vadd.f32 %v7555, %v7843
  %v7845 = vpop.f32.mrf.mxu0
  %7846 = vmatprep.mubr.bf16.mxu0 0
  %7847 = vmatmul.mubr.bf16.gmra.mxu0 %v6115
  %v7848 = vpop.f32.mrf.mxu0
  %v7849 = vadd.f32 %v7560, %v7848
  %v7850 = vpop.f32.mrf.mxu0
  %v7851 = vpop.f32.mrf.mxu0
  %v7852 = vadd.f32 %v7563, %v7851
  %v7853 = vpop.f32.mrf.mxu0
  %7854 = vmatprep.mubr.bf16.mxu0 0
  %7855 = vmatmul.mubr.bf16.gmra.mxu0 %v6132
  %v7856 = vpop.f32.mrf.mxu0
  %v7857 = vadd.f32 %v7568, %v7856
  %v7858 = vpop.f32.mrf.mxu0
  %v7859 = vpop.f32.mrf.mxu0
  %v7860 = vadd.f32 %v7571, %v7859
  %v7861 = vpop.f32.mrf.mxu0
  %7862 = vmatprep.mubr.bf16.mxu0 0
  %7863 = vmatmul.mubr.bf16.gmra.mxu0 %v6149
  %v7864 = vpop.f32.mrf.mxu0
  %v7865 = vadd.f32 %v7576, %v7864
  %v7866 = vpop.f32.mrf.mxu0
  %v7867 = vpop.f32.mrf.mxu0
  %v7868 = vadd.f32 %v7579, %v7867
  %v7869 = vpop.f32.mrf.mxu0
  %7870 = vmatprep.mubr.bf16.mxu0 0
  %7871 = vmatmul.mubr.bf16.gmra.mxu0 %v6166
  %v7872 = vpop.f32.mrf.mxu0
  %v7873 = vadd.f32 %v7584, %v7872
  %v7874 = vpop.f32.mrf.mxu0
  %v7875 = vpop.f32.mrf.mxu0
  %v7876 = vadd.f32 %v7587, %v7875
  %v7877 = vpop.f32.mrf.mxu0
  %7878 = vmatprep.mubr.bf16.mxu0 0
  %7879 = vmatmul.mubr.bf16.gmra.mxu0 %v6183
  %v7880 = vpop.f32.mrf.mxu0
  %v7881 = vadd.f32 %v7592, %v7880
  %v7882 = vpop.f32.mrf.mxu0
  %v7883 = vpop.f32.mrf.mxu0
  %v7884 = vadd.f32 %v7595, %v7883
  %v7885 = vpop.f32.mrf.mxu0
  %7886 = vmatprep.mubr.bf16.mxu0 0
  %7887 = vmatmul.mubr.bf16.gmra.mxu0 %v6200
  %v7888 = vpop.f32.mrf.mxu0
  %v7889 = vadd.f32 %v7600, %v7888
  %v7890 = vpop.f32.mrf.mxu0
  %v7891 = vpop.f32.mrf.mxu0
  %v7892 = vadd.f32 %v7603, %v7891
  %v7893 = vpop.f32.mrf.mxu0
  %7894 = vmatprep.mubr.bf16.mxu0 0
  %7895 = vmatmul.mubr.bf16.gmra.mxu0 %v6217
  %v7896 = vpop.f32.mrf.mxu0
  %v7897 = vadd.f32 %v7608, %v7896
  %v7898 = vpop.f32.mrf.mxu0
  %v7899 = vpop.f32.mrf.mxu0
  %v7900 = vadd.f32 %v7611, %v7899
  %v7901 = vpop.f32.mrf.mxu0
  %7902 = vmatprep.mubr.bf16.mxu0 0
  %7903 = vmatmul.mubr.bf16.gmra.mxu0 %v6234
  %v7904 = vpop.f32.mrf.mxu0
  %v7905 = vadd.f32 %v7616, %v7904
  %v7906 = vpop.f32.mrf.mxu0
  %v7907 = vpop.f32.mrf.mxu0
  %v7908 = vadd.f32 %v7619, %v7907
  %v7909 = vpop.f32.mrf.mxu0
  %7910 = vmatprep.mubr.bf16.mxu0 0
  %7911 = vmatmul.mubr.bf16.gmra.mxu0 %v6251
  %v7912 = vpop.f32.mrf.mxu0
  %v7913 = vadd.f32 %v7624, %v7912
  %v7914 = vpop.f32.mrf.mxu0
  %v7915 = vpop.f32.mrf.mxu0
  %v7916 = vadd.f32 %v7627, %v7915
  %v7917 = vpop.f32.mrf.mxu0
  %7918 = vmatprep.mubr.bf16.mxu0 0
  %7919 = vmatmul.mubr.bf16.gmra.mxu0 %v6268
  %v7920 = vpop.f32.mrf.mxu0
  %v7921 = vadd.f32 %v7632, %v7920
  %v7922 = vpop.f32.mrf.mxu0
  %v7923 = vpop.f32.mrf.mxu0
  %v7924 = vadd.f32 %v7635, %v7923
  %v7925 = vpop.f32.mrf.mxu0
  %7926 = vmatprep.mubr.bf16.mxu0 0
  %7927 = vmatmul.mubr.bf16.gmra.mxu0 %v6285
  %v7928 = vpop.f32.mrf.mxu0
  %v7929 = vadd.f32 %v7640, %v7928
  %v7930 = vpop.f32.mrf.mxu0
  %v7931 = vpop.f32.mrf.mxu0
  %v7932 = vadd.f32 %v7643, %v7931
  %v7933 = vpop.f32.mrf.mxu0
  %7934 = vdwg.mxu0
  %v7935 = vld [vmem:[#allocation2 + $0x8] sm:$0xf]
  %v7936 = vld [vmem:[#allocation2 + $0xc] sm:$0xf]
  %v7937 = vld [vmem:[#allocation2 + $0x10] sm:$0x1]
  %v7938 = vld [vmem:[#allocation2 + $0x20] sm:$0xf]
  %v7939 = vld [vmem:[#allocation2 + $0x24] sm:$0xf]
  %v7940 = vld [vmem:[#allocation2 + $0x28] sm:$0x1]
  %v7941 = vld [vmem:[#allocation2 + $0x38] sm:$0xf]
  %v7942 = vld [vmem:[#allocation2 + $0x3c] sm:$0xf]
  %v7943 = vld [vmem:[#allocation2 + $0x40] sm:$0x1]
  %v7944 = vld [vmem:[#allocation2 + $0x50] sm:$0xf]
  %v7945 = vld [vmem:[#allocation2 + $0x54] sm:$0xf]
  %v7946 = vld [vmem:[#allocation2 + $0x58] sm:$0x1]
  %v7947 = vld [vmem:[#allocation2 + $0x68] sm:$0xf]
  %v7948 = vld [vmem:[#allocation2 + $0x6c] sm:$0xf]
  %v7949 = vld [vmem:[#allocation2 + $0x70] sm:$0x1]
  %v7950 = vld [vmem:[#allocation2 + $0x80] sm:$0xf]
  %v7951 = vld [vmem:[#allocation2 + $0x84] sm:$0xf]
  %v7952 = vld [vmem:[#allocation2 + $0x88] sm:$0x1]
  %v7953 = vld [vmem:[#allocation2 + $0x98] sm:$0xf]
  %v7954 = vld [vmem:[#allocation2 + $0x9c] sm:$0xf]
  %v7955 = vld [vmem:[#allocation2 + $0xa0] sm:$0x1]
  %v7956 = vld [vmem:[#allocation2 + $0xb0] sm:$0xf]
  %v7957 = vld [vmem:[#allocation2 + $0xb4] sm:$0xf]
  %v7958 = vld [vmem:[#allocation2 + $0xb8] sm:$0x1]
  %v7959 = vld [vmem:[#allocation2 + $0xc8] sm:$0xf]
  %v7960 = vld [vmem:[#allocation2 + $0xcc] sm:$0xf]
  %v7961 = vld [vmem:[#allocation2 + $0xd0] sm:$0x1]
  %v7962 = vld [vmem:[#allocation2 + $0xe0] sm:$0xf]
  %v7963 = vld [vmem:[#allocation2 + $0xe4] sm:$0xf]
  %v7964 = vld [vmem:[#allocation2 + $0xe8] sm:$0x1]
  %v7965 = vld [vmem:[#allocation2 + $0xf8] sm:$0xf]
  %v7966 = vld [vmem:[#allocation2 + $0xfc] sm:$0xf]
  %v7967 = vld [vmem:[#allocation2 + $0x100] sm:$0x1]
  %v7968 = vld [vmem:[#allocation2 + $0x110] sm:$0xf]
  %v7969 = vld [vmem:[#allocation2 + $0x114] sm:$0xf]
  %v7970 = vld [vmem:[#allocation2 + $0x118] sm:$0x1]
  %v7971 = vld [vmem:[#allocation2 + $0x128] sm:$0xf]
  %v7972 = vld [vmem:[#allocation2 + $0x12c] sm:$0xf]
  %v7973 = vld [vmem:[#allocation2 + $0x130] sm:$0x1]
  %v7974 = vld [vmem:[#allocation2 + $0x140] sm:$0xf]
  %v7975 = vld [vmem:[#allocation2 + $0x144] sm:$0xf]
  %v7976 = vld [vmem:[#allocation2 + $0x148] sm:$0x1]
  %v7977 = vld [vmem:[#allocation2 + $0x158] sm:$0xf]
  %v7978 = vld [vmem:[#allocation2 + $0x15c] sm:$0xf]
  %v7979 = vld [vmem:[#allocation2 + $0x160] sm:$0x1]
  %v7980 = vld [vmem:[#allocation2 + $0x170] sm:$0xf]
  %v7981 = vld [vmem:[#allocation2 + $0x174] sm:$0xf]
  %v7982 = vld [vmem:[#allocation2 + $0x178] sm:$0x1]
  %v7983 = vld [vmem:[#allocation2 + $0x188] sm:$0xf]
  %v7984 = vld [vmem:[#allocation2 + $0x18c] sm:$0xf]
  %v7985 = vld [vmem:[#allocation2 + $0x190] sm:$0x1]
  %v7986 = vld [vmem:[#allocation2 + $0x1a0] sm:$0xf]
  %v7987 = vld [vmem:[#allocation2 + $0x1a4] sm:$0xf]
  %v7988 = vld [vmem:[#allocation2 + $0x1a8] sm:$0x1]
  %v7989 = vld [vmem:[#allocation2 + $0x1b8] sm:$0xf]
  %v7990 = vld [vmem:[#allocation2 + $0x1bc] sm:$0xf]
  %v7991 = vld [vmem:[#allocation2 + $0x1c0] sm:$0x1]
  %v7992 = vld [vmem:[#allocation2 + $0x1d0] sm:$0xf]
  %v7993 = vld [vmem:[#allocation2 + $0x1d4] sm:$0xf]
  %v7994 = vld [vmem:[#allocation2 + $0x1d8] sm:$0x1]
  %v7995 = vld [vmem:[#allocation2 + $0x1e8] sm:$0xf]
  %v7996 = vld [vmem:[#allocation2 + $0x1ec] sm:$0xf]
  %v7997 = vld [vmem:[#allocation2 + $0x1f0] sm:$0x1]
  %v7998 = vld [vmem:[#allocation2 + $0x200] sm:$0xf]
  %v7999 = vld [vmem:[#allocation2 + $0x204] sm:$0xf]
  %v8000 = vld [vmem:[#allocation2 + $0x208] sm:$0x1]
  %v8001 = vld [vmem:[#allocation2 + $0x218] sm:$0xf]
  %v8002 = vld [vmem:[#allocation2 + $0x21c] sm:$0xf]
  %v8003 = vld [vmem:[#allocation2 + $0x220] sm:$0x1]
  %v8004 = vld [vmem:[#allocation2 + $0x230] sm:$0xf]
  %v8005 = vld [vmem:[#allocation2 + $0x234] sm:$0xf]
  %v8006 = vld [vmem:[#allocation2 + $0x238] sm:$0x1]
  %v8007 = vld [vmem:[#allocation2 + $0x248] sm:$0xf]
  %v8008 = vld [vmem:[#allocation2 + $0x24c] sm:$0xf]
  %v8009 = vld [vmem:[#allocation2 + $0x250] sm:$0x1]
  %v8010 = vld [vmem:[#allocation2 + $0x260] sm:$0xf]
  %v8011 = vld [vmem:[#allocation2 + $0x264] sm:$0xf]
  %v8012 = vld [vmem:[#allocation2 + $0x268] sm:$0x1]
  %v8013 = vld [vmem:[#allocation2 + $0x278] sm:$0xf]
  %v8014 = vld [vmem:[#allocation2 + $0x27c] sm:$0xf]
  %v8015 = vld [vmem:[#allocation2 + $0x280] sm:$0x1]
  %v8016 = vld [vmem:[#allocation2 + $0x290] sm:$0xf]
  %v8017 = vld [vmem:[#allocation2 + $0x294] sm:$0xf]
  %v8018 = vld [vmem:[#allocation2 + $0x298] sm:$0x1]
  %v8019 = vld [vmem:[#allocation2 + $0x2a8] sm:$0xf]
  %v8020 = vld [vmem:[#allocation2 + $0x2ac] sm:$0xf]
  %v8021 = vld [vmem:[#allocation2 + $0x2b0] sm:$0x1]
  %v8022 = vld [vmem:[#allocation2 + $0x2c0] sm:$0xf]
  %v8023 = vld [vmem:[#allocation2 + $0x2c4] sm:$0xf]
  %v8024 = vld [vmem:[#allocation2 + $0x2c8] sm:$0x1]
  %v8025 = vld [vmem:[#allocation2 + $0x2d8] sm:$0xf]
  %v8026 = vld [vmem:[#allocation2 + $0x2dc] sm:$0xf]
  %v8027 = vld [vmem:[#allocation2 + $0x2e0] sm:$0x1]
  %v8028 = vld [vmem:[#allocation2 + $0x2f0] sm:$0xf]
  %v8029 = vld [vmem:[#allocation2 + $0x2f4] sm:$0xf]
  %v8030 = vld [vmem:[#allocation2 + $0x2f8] sm:$0x1]
  %v8031 = vld [vmem:[#allocation2 + $0x308] sm:$0xf]
  %v8032 = vld [vmem:[#allocation2 + $0x30c] sm:$0xf]
  %v8033 = vld [vmem:[#allocation2 + $0x310] sm:$0x1]
  %v8034 = vld [vmem:[#allocation2 + $0x320] sm:$0xf]
  %v8035 = vld [vmem:[#allocation2 + $0x324] sm:$0xf]
  %v8036 = vld [vmem:[#allocation2 + $0x328] sm:$0x1]
  %v8037 = vld [vmem:[#allocation2 + $0x338] sm:$0xf]
  %v8038 = vld [vmem:[#allocation2 + $0x33c] sm:$0xf]
  %v8039 = vld [vmem:[#allocation2 + $0x340] sm:$0x1]
  %v8040 = vld [vmem:[#allocation2 + $0x350] sm:$0xf]
  %v8041 = vld [vmem:[#allocation2 + $0x354] sm:$0xf]
  %v8042 = vld [vmem:[#allocation2 + $0x358] sm:$0x1]
  %v8139 = vunpack.c.l.b16 %v7935
  %v8140 = vunpack.c.l.b16 %v7936
  %v8141 = vunpack.c.l.b16 %v7937
  %v8142 = vunpack.c.l.b16 %v7938
  %v8143 = vunpack.c.l.b16 %v7939
  %v8144 = vunpack.c.l.b16 %v7940
  %v8145 = vunpack.c.l.b16 %v7941
  %v8146 = vunpack.c.l.b16 %v7942
  %v8147 = vunpack.c.l.b16 %v7943
  %v8148 = vunpack.c.l.b16 %v7944
  %v8149 = vunpack.c.l.b16 %v7945
  %v8150 = vunpack.c.l.b16 %v7946
  %v8151 = vunpack.c.l.b16 %v7947
  %v8152 = vunpack.c.l.b16 %v7948
  %v8153 = vunpack.c.l.b16 %v7949
  %v8154 = vunpack.c.l.b16 %v7950
  %v8155 = vunpack.c.l.b16 %v7951
  %v8156 = vunpack.c.l.b16 %v7952
  %v8157 = vunpack.c.l.b16 %v7953
  %v8158 = vunpack.c.l.b16 %v7954
  %v8159 = vunpack.c.l.b16 %v7955
  %v8160 = vunpack.c.l.b16 %v7956
  %v8161 = vunpack.c.l.b16 %v7957
  %v8162 = vunpack.c.l.b16 %v7958
  %v8163 = vunpack.c.l.b16 %v7959
  %v8164 = vunpack.c.l.b16 %v7960
  %v8165 = vunpack.c.l.b16 %v7961
  %v8166 = vunpack.c.l.b16 %v7962
  %v8167 = vunpack.c.l.b16 %v7963
  %v8168 = vunpack.c.l.b16 %v7964
  %v8169 = vunpack.c.l.b16 %v7965
  %v8170 = vunpack.c.l.b16 %v7966
  %v8171 = vunpack.c.l.b16 %v7967
  %v8172 = vunpack.c.l.b16 %v7968
  %v8173 = vunpack.c.l.b16 %v7969
  %v8174 = vunpack.c.l.b16 %v7970
  %v8175 = vunpack.c.l.b16 %v7971
  %v8176 = vunpack.c.l.b16 %v7972
  %v8177 = vunpack.c.l.b16 %v7973
  %v8178 = vunpack.c.l.b16 %v7974
  %v8179 = vunpack.c.l.b16 %v7975
  %v8180 = vunpack.c.l.b16 %v7976
  %v8181 = vunpack.c.l.b16 %v7977
  %v8182 = vunpack.c.l.b16 %v7978
  %v8183 = vunpack.c.l.b16 %v7979
  %v8184 = vunpack.c.l.b16 %v7980
  %v8185 = vunpack.c.l.b16 %v7981
  %v8186 = vunpack.c.l.b16 %v7982
  %v8187 = vunpack.c.l.b16 %v7989
  %v8188 = vunpack.c.l.b16 %v7990
  %v8189 = vunpack.c.l.b16 %v7991
  %v8190 = vunpack.c.l.b16 %v7992
  %v8191 = vunpack.c.l.b16 %v7993
  %v8192 = vunpack.c.l.b16 %v7994
  %v8193 = vunpack.c.l.b16 %v7995
  %v8194 = vunpack.c.l.b16 %v7996
  %v8195 = vunpack.c.l.b16 %v7997
  %v8196 = vunpack.c.l.b16 %v7998
  %v8197 = vunpack.c.l.b16 %v7999
  %v8198 = vunpack.c.l.b16 %v8000
  %v8199 = vunpack.c.l.b16 %v8001
  %v8200 = vunpack.c.l.b16 %v8002
  %v8201 = vunpack.c.l.b16 %v8003
  %v8202 = vunpack.c.l.b16 %v8004
  %v8203 = vunpack.c.l.b16 %v8005
  %v8204 = vunpack.c.l.b16 %v8006
  %v8205 = vunpack.c.l.b16 %v8007
  %v8206 = vunpack.c.l.b16 %v8008
  %v8207 = vunpack.c.l.b16 %v8009
  %v8208 = vunpack.c.l.b16 %v8010
  %v8209 = vunpack.c.l.b16 %v8011
  %v8210 = vunpack.c.l.b16 %v8012
  %v8211 = vunpack.c.l.b16 %v8013
  %v8212 = vunpack.c.l.b16 %v8014
  %v8213 = vunpack.c.l.b16 %v8015
  %v8214 = vunpack.c.l.b16 %v8016
  %v8215 = vunpack.c.l.b16 %v8017
  %v8216 = vunpack.c.l.b16 %v8018
  %v8217 = vunpack.c.l.b16 %v8019
  %v8218 = vunpack.c.l.b16 %v8020
  %v8219 = vunpack.c.l.b16 %v8021
  %v8220 = vunpack.c.l.b16 %v8022
  %v8221 = vunpack.c.l.b16 %v8023
  %v8222 = vunpack.c.l.b16 %v8024
  %v8223 = vunpack.c.l.b16 %v8025
  %v8224 = vunpack.c.l.b16 %v8026
  %v8225 = vunpack.c.l.b16 %v8027
  %v8226 = vunpack.c.l.b16 %v8028
  %v8227 = vunpack.c.l.b16 %v8029
  %v8228 = vunpack.c.l.b16 %v8030
  %v8229 = vunpack.c.l.b16 %v8031
  %v8230 = vunpack.c.l.b16 %v8032
  %v8231 = vunpack.c.l.b16 %v8033
  %v8232 = vunpack.c.l.b16 %v8034
  %v8233 = vunpack.c.l.b16 %v8035
  %v8234 = vunpack.c.l.b16 %v8036
  %v8235 = vpack.c.b16 %v8140, %v8139
  %v8236 = vpack.c.b16 %v8141, %v8141
  %v8237 = vpack.c.b16 %v8143, %v8142
  %v8238 = vpack.c.b16 %v8144, %v8144
  %v8239 = vpack.c.b16 %v8146, %v8145
  %v8240 = vpack.c.b16 %v8147, %v8147
  %v8241 = vpack.c.b16 %v8149, %v8148
  %v8242 = vpack.c.b16 %v8150, %v8150
  %v8243 = vpack.c.b16 %v8152, %v8151
  %v8244 = vpack.c.b16 %v8153, %v8153
  %v8245 = vpack.c.b16 %v8155, %v8154
  %v8246 = vpack.c.b16 %v8156, %v8156
  %v8247 = vpack.c.b16 %v8158, %v8157
  %v8248 = vpack.c.b16 %v8159, %v8159
  %v8249 = vpack.c.b16 %v8161, %v8160
  %v8250 = vpack.c.b16 %v8162, %v8162
  %v8251 = vpack.c.b16 %v8164, %v8163
  %v8252 = vpack.c.b16 %v8165, %v8165
  %v8253 = vpack.c.b16 %v8167, %v8166
  %v8254 = vpack.c.b16 %v8168, %v8168
  %v8255 = vpack.c.b16 %v8170, %v8169
  %v8256 = vpack.c.b16 %v8171, %v8171
  %v8257 = vpack.c.b16 %v8173, %v8172
  %v8258 = vpack.c.b16 %v8174, %v8174
  %v8259 = vpack.c.b16 %v8176, %v8175
  %v8260 = vpack.c.b16 %v8177, %v8177
  %v8261 = vpack.c.b16 %v8179, %v8178
  %v8262 = vpack.c.b16 %v8180, %v8180
  %v8263 = vpack.c.b16 %v8182, %v8181
  %v8264 = vpack.c.b16 %v8183, %v8183
  %v8265 = vpack.c.b16 %v8185, %v8184
  %v8266 = vpack.c.b16 %v8186, %v8186
  %v8267 = vpack.c.b16 %v8188, %v8187
  %v8268 = vpack.c.b16 %v8189, %v8189
  %v8269 = vpack.c.b16 %v8191, %v8190
  %v8270 = vpack.c.b16 %v8192, %v8192
  %v8271 = vpack.c.b16 %v8194, %v8193
  %v8272 = vpack.c.b16 %v8195, %v8195
  %v8273 = vpack.c.b16 %v8197, %v8196
  %v8274 = vpack.c.b16 %v8198, %v8198
  %v8275 = vpack.c.b16 %v8200, %v8199
  %v8276 = vpack.c.b16 %v8201, %v8201
  %v8277 = vpack.c.b16 %v8203, %v8202
  %v8278 = vpack.c.b16 %v8204, %v8204
  %v8279 = vpack.c.b16 %v8206, %v8205
  %v8280 = vpack.c.b16 %v8207, %v8207
  %v8281 = vpack.c.b16 %v8209, %v8208
  %v8282 = vpack.c.b16 %v8210, %v8210
  %v8283 = vpack.c.b16 %v8212, %v8211
  %v8284 = vpack.c.b16 %v8213, %v8213
  %v8285 = vpack.c.b16 %v8215, %v8214
  %v8286 = vpack.c.b16 %v8216, %v8216
  %v8287 = vpack.c.b16 %v8218, %v8217
  %v8288 = vpack.c.b16 %v8219, %v8219
  %v8289 = vpack.c.b16 %v8221, %v8220
  %v8290 = vpack.c.b16 %v8222, %v8222
  %v8291 = vpack.c.b16 %v8224, %v8223
  %v8292 = vpack.c.b16 %v8225, %v8225
  %v8293 = vpack.c.b16 %v8227, %v8226
  %v8294 = vpack.c.b16 %v8228, %v8228
  %v8295 = vpack.c.b16 %v8230, %v8229
  %v8296 = vpack.c.b16 %v8231, %v8231
  %v8297 = vpack.c.b16 %v8233, %v8232
  %v8298 = vpack.c.b16 %v8234, %v8234
  %v8305 = vunpack.c.l.b16 %v7983
  %v8306 = vunpack.c.l.b16 %v7984
  %v8307 = vunpack.c.l.b16 %v7985
  %v8308 = vunpack.c.l.b16 %v8037
  %v8309 = vunpack.c.l.b16 %v8038
  %v8310 = vunpack.c.l.b16 %v8039
  %v8311 = vpack.c.b16 %v8306, %v8305
  %v8312 = vpack.c.b16 %v8307, %v8307
  %v8313 = vpack.c.b16 %v8309, %v8308
  %v8314 = vpack.c.b16 %v8310, %v8310
  %v8321 = vunpack.c.l.b16 %v7986
  %v8322 = vunpack.c.l.b16 %v7987
  %v8323 = vunpack.c.l.b16 %v7988
  %v8324 = vunpack.c.l.b16 %v8040
  %v8325 = vunpack.c.l.b16 %v8041
  %v8326 = vunpack.c.l.b16 %v8042
  %v8327 = vpack.c.b16 %v8322, %v8321
  %v8328 = vpack.c.b16 %v8323, %v8323
  %v8329 = vpack.c.b16 %v8325, %v8324
  %v8330 = vpack.c.b16 %v8326, %v8326
  %v8332 = vshrl.u32 %v8235, 16
  %v8334 = vshll.u32 %v8235, 16
  %v8336 = vrot.slane %v8334, 1
  %v8337 = vor.u32 %v8332, %v8336
  %v8339 = vshll.u32 %v8236, 16
  %v8341 = vrot.slane %v8339, 1
  %v8342 = vsel %vm3083, %v8337, %v8341
  %v8344 = vshrl.u32 %v8237, 16
  %v8346 = vshll.u32 %v8237, 16
  %v8348 = vrot.slane %v8346, 1
  %v8349 = vor.u32 %v8344, %v8348
  %v8351 = vshll.u32 %v8238, 16
  %v8353 = vrot.slane %v8351, 1
  %v8354 = vsel %vm3083, %v8349, %v8353
  %v8356 = vshrl.u32 %v8239, 16
  %v8358 = vshll.u32 %v8239, 16
  %v8360 = vrot.slane %v8358, 1
  %v8361 = vor.u32 %v8356, %v8360
  %v8363 = vshll.u32 %v8240, 16
  %v8365 = vrot.slane %v8363, 1
  %v8366 = vsel %vm3083, %v8361, %v8365
  %v8368 = vshrl.u32 %v8241, 16
  %v8370 = vshll.u32 %v8241, 16
  %v8372 = vrot.slane %v8370, 1
  %v8373 = vor.u32 %v8368, %v8372
  %v8375 = vshll.u32 %v8242, 16
  %v8377 = vrot.slane %v8375, 1
  %v8378 = vsel %vm3083, %v8373, %v8377
  %v8380 = vshrl.u32 %v8243, 16
  %v8382 = vshll.u32 %v8243, 16
  %v8384 = vrot.slane %v8382, 1
  %v8385 = vor.u32 %v8380, %v8384
  %v8387 = vshll.u32 %v8244, 16
  %v8389 = vrot.slane %v8387, 1
  %v8390 = vsel %vm3083, %v8385, %v8389
  %v8392 = vshrl.u32 %v8245, 16
  %v8394 = vshll.u32 %v8245, 16
  %v8396 = vrot.slane %v8394, 1
  %v8397 = vor.u32 %v8392, %v8396
  %v8399 = vshll.u32 %v8246, 16
  %v8401 = vrot.slane %v8399, 1
  %v8402 = vsel %vm3083, %v8397, %v8401
  %v8404 = vshrl.u32 %v8247, 16
  %v8406 = vshll.u32 %v8247, 16
  %v8408 = vrot.slane %v8406, 1
  %v8409 = vor.u32 %v8404, %v8408
  %v8411 = vshll.u32 %v8248, 16
  %v8413 = vrot.slane %v8411, 1
  %v8414 = vsel %vm3083, %v8409, %v8413
  %v8416 = vshrl.u32 %v8249, 16
  %v8418 = vshll.u32 %v8249, 16
  %v8420 = vrot.slane %v8418, 1
  %v8421 = vor.u32 %v8416, %v8420
  %v8423 = vshll.u32 %v8250, 16
  %v8425 = vrot.slane %v8423, 1
  %v8426 = vsel %vm3083, %v8421, %v8425
  %v8428 = vshrl.u32 %v8251, 16
  %v8430 = vshll.u32 %v8251, 16
  %v8432 = vrot.slane %v8430, 1
  %v8433 = vor.u32 %v8428, %v8432
  %v8435 = vshll.u32 %v8252, 16
  %v8437 = vrot.slane %v8435, 1
  %v8438 = vsel %vm3083, %v8433, %v8437
  %v8440 = vshrl.u32 %v8253, 16
  %v8442 = vshll.u32 %v8253, 16
  %v8444 = vrot.slane %v8442, 1
  %v8445 = vor.u32 %v8440, %v8444
  %v8447 = vshll.u32 %v8254, 16
  %v8449 = vrot.slane %v8447, 1
  %v8450 = vsel %vm3083, %v8445, %v8449
  %v8452 = vshrl.u32 %v8255, 16
  %v8454 = vshll.u32 %v8255, 16
  %v8456 = vrot.slane %v8454, 1
  %v8457 = vor.u32 %v8452, %v8456
  %v8459 = vshll.u32 %v8256, 16
  %v8461 = vrot.slane %v8459, 1
  %v8462 = vsel %vm3083, %v8457, %v8461
  %v8464 = vshrl.u32 %v8257, 16
  %v8466 = vshll.u32 %v8257, 16
  %v8468 = vrot.slane %v8466, 1
  %v8469 = vor.u32 %v8464, %v8468
  %v8471 = vshll.u32 %v8258, 16
  %v8473 = vrot.slane %v8471, 1
  %v8474 = vsel %vm3083, %v8469, %v8473
  %v8476 = vshrl.u32 %v8259, 16
  %v8478 = vshll.u32 %v8259, 16
  %v8480 = vrot.slane %v8478, 1
  %v8481 = vor.u32 %v8476, %v8480
  %v8483 = vshll.u32 %v8260, 16
  %v8485 = vrot.slane %v8483, 1
  %v8486 = vsel %vm3083, %v8481, %v8485
  %v8488 = vshrl.u32 %v8261, 16
  %v8490 = vshll.u32 %v8261, 16
  %v8492 = vrot.slane %v8490, 1
  %v8493 = vor.u32 %v8488, %v8492
  %v8495 = vshll.u32 %v8262, 16
  %v8497 = vrot.slane %v8495, 1
  %v8498 = vsel %vm3083, %v8493, %v8497
  %v8500 = vshrl.u32 %v8263, 16
  %v8502 = vshll.u32 %v8263, 16
  %v8504 = vrot.slane %v8502, 1
  %v8505 = vor.u32 %v8500, %v8504
  %v8507 = vshll.u32 %v8264, 16
  %v8509 = vrot.slane %v8507, 1
  %v8510 = vsel %vm3083, %v8505, %v8509
  %v8512 = vshrl.u32 %v8265, 16
  %v8514 = vshll.u32 %v8265, 16
  %v8516 = vrot.slane %v8514, 1
  %v8517 = vor.u32 %v8512, %v8516
  %v8519 = vshll.u32 %v8266, 16
  %v8521 = vrot.slane %v8519, 1
  %v8522 = vsel %vm3083, %v8517, %v8521
  %v8524 = vshrl.u32 %v8311, 16
  %v8526 = vshll.u32 %v8311, 16
  %v8528 = vrot.slane %v8526, 1
  %v8529 = vor.u32 %v8524, %v8528
  %v8531 = vshll.u32 %v8312, 16
  %v8533 = vrot.slane %v8531, 1
  %v8534 = vsel %vm3083, %v8529, %v8533
  %v8536 = vshrl.u32 %v8327, 16
  %v8538 = vshll.u32 %v8327, 16
  %v8540 = vrot.slane %v8538, 1
  %v8541 = vor.u32 %v8536, %v8540
  %v8543 = vshll.u32 %v8328, 16
  %v8545 = vrot.slane %v8543, 1
  %v8546 = vsel %vm3083, %v8541, %v8545
  %v8548 = vshrl.u32 %v8267, 16
  %v8550 = vshll.u32 %v8267, 16
  %v8552 = vrot.slane %v8550, 1
  %v8553 = vor.u32 %v8548, %v8552
  %v8555 = vshll.u32 %v8268, 16
  %v8557 = vrot.slane %v8555, 1
  %v8558 = vsel %vm3083, %v8553, %v8557
  %v8560 = vshrl.u32 %v8269, 16
  %v8562 = vshll.u32 %v8269, 16
  %v8564 = vrot.slane %v8562, 1
  %v8565 = vor.u32 %v8560, %v8564
  %v8567 = vshll.u32 %v8270, 16
  %v8569 = vrot.slane %v8567, 1
  %v8570 = vsel %vm3083, %v8565, %v8569
  %v8572 = vshrl.u32 %v8271, 16
  %v8574 = vshll.u32 %v8271, 16
  %v8576 = vrot.slane %v8574, 1
  %v8577 = vor.u32 %v8572, %v8576
  %v8579 = vshll.u32 %v8272, 16
  %v8581 = vrot.slane %v8579, 1
  %v8582 = vsel %vm3083, %v8577, %v8581
  %v8584 = vshrl.u32 %v8273, 16
  %v8586 = vshll.u32 %v8273, 16
  %v8588 = vrot.slane %v8586, 1
  %v8589 = vor.u32 %v8584, %v8588
  %v8591 = vshll.u32 %v8274, 16
  %v8593 = vrot.slane %v8591, 1
  %v8594 = vsel %vm3083, %v8589, %v8593
  %v8596 = vshrl.u32 %v8275, 16
  %v8598 = vshll.u32 %v8275, 16
  %v8600 = vrot.slane %v8598, 1
  %v8601 = vor.u32 %v8596, %v8600
  %v8603 = vshll.u32 %v8276, 16
  %v8605 = vrot.slane %v8603, 1
  %v8606 = vsel %vm3083, %v8601, %v8605
  %v8608 = vshrl.u32 %v8277, 16
  %v8610 = vshll.u32 %v8277, 16
  %v8612 = vrot.slane %v8610, 1
  %v8613 = vor.u32 %v8608, %v8612
  %v8615 = vshll.u32 %v8278, 16
  %v8617 = vrot.slane %v8615, 1
  %v8618 = vsel %vm3083, %v8613, %v8617
  %v8620 = vshrl.u32 %v8279, 16
  %v8622 = vshll.u32 %v8279, 16
  %v8624 = vrot.slane %v8622, 1
  %v8625 = vor.u32 %v8620, %v8624
  %v8627 = vshll.u32 %v8280, 16
  %v8629 = vrot.slane %v8627, 1
  %v8630 = vsel %vm3083, %v8625, %v8629
  %v8632 = vshrl.u32 %v8281, 16
  %v8634 = vshll.u32 %v8281, 16
  %v8636 = vrot.slane %v8634, 1
  %v8637 = vor.u32 %v8632, %v8636
  %v8639 = vshll.u32 %v8282, 16
  %v8641 = vrot.slane %v8639, 1
  %v8642 = vsel %vm3083, %v8637, %v8641
  %v8644 = vshrl.u32 %v8283, 16
  %v8646 = vshll.u32 %v8283, 16
  %v8648 = vrot.slane %v8646, 1
  %v8649 = vor.u32 %v8644, %v8648
  %v8651 = vshll.u32 %v8284, 16
  %v8653 = vrot.slane %v8651, 1
  %v8654 = vsel %vm3083, %v8649, %v8653
  %v8656 = vshrl.u32 %v8285, 16
  %v8658 = vshll.u32 %v8285, 16
  %v8660 = vrot.slane %v8658, 1
  %v8661 = vor.u32 %v8656, %v8660
  %v8663 = vshll.u32 %v8286, 16
  %v8665 = vrot.slane %v8663, 1
  %v8666 = vsel %vm3083, %v8661, %v8665
  %v8668 = vshrl.u32 %v8287, 16
  %v8670 = vshll.u32 %v8287, 16
  %v8672 = vrot.slane %v8670, 1
  %v8673 = vor.u32 %v8668, %v8672
  %v8675 = vshll.u32 %v8288, 16
  %v8677 = vrot.slane %v8675, 1
  %v8678 = vsel %vm3083, %v8673, %v8677
  %v8680 = vshrl.u32 %v8289, 16
  %v8682 = vshll.u32 %v8289, 16
  %v8684 = vrot.slane %v8682, 1
  %v8685 = vor.u32 %v8680, %v8684
  %v8687 = vshll.u32 %v8290, 16
  %v8689 = vrot.slane %v8687, 1
  %v8690 = vsel %vm3083, %v8685, %v8689
  %v8692 = vshrl.u32 %v8291, 16
  %v8694 = vshll.u32 %v8291, 16
  %v8696 = vrot.slane %v8694, 1
  %v8697 = vor.u32 %v8692, %v8696
  %v8699 = vshll.u32 %v8292, 16
  %v8701 = vrot.slane %v8699, 1
  %v8702 = vsel %vm3083, %v8697, %v8701
  %v8704 = vshrl.u32 %v8293, 16
  %v8706 = vshll.u32 %v8293, 16
  %v8708 = vrot.slane %v8706, 1
  %v8709 = vor.u32 %v8704, %v8708
  %v8711 = vshll.u32 %v8294, 16
  %v8713 = vrot.slane %v8711, 1
  %v8714 = vsel %vm3083, %v8709, %v8713
  %v8716 = vshrl.u32 %v8295, 16
  %v8718 = vshll.u32 %v8295, 16
  %v8720 = vrot.slane %v8718, 1
  %v8721 = vor.u32 %v8716, %v8720
  %v8723 = vshll.u32 %v8296, 16
  %v8725 = vrot.slane %v8723, 1
  %v8726 = vsel %vm3083, %v8721, %v8725
  %v8728 = vshrl.u32 %v8297, 16
  %v8730 = vshll.u32 %v8297, 16
  %v8732 = vrot.slane %v8730, 1
  %v8733 = vor.u32 %v8728, %v8732
  %v8735 = vshll.u32 %v8298, 16
  %v8737 = vrot.slane %v8735, 1
  %v8738 = vsel %vm3083, %v8733, %v8737
  %v8740 = vshrl.u32 %v8313, 16
  %v8742 = vshll.u32 %v8313, 16
  %v8744 = vrot.slane %v8742, 1
  %v8745 = vor.u32 %v8740, %v8744
  %v8747 = vshll.u32 %v8314, 16
  %v8749 = vrot.slane %v8747, 1
  %v8750 = vsel %vm3083, %v8745, %v8749
  %v8752 = vshrl.u32 %v8329, 16
  %v8754 = vshll.u32 %v8329, 16
  %v8756 = vrot.slane %v8754, 1
  %v8757 = vor.u32 %v8752, %v8756
  %v8759 = vshll.u32 %v8330, 16
  %v8761 = vrot.slane %v8759, 1
  %v8762 = vsel %vm3083, %v8757, %v8761
  %s8799 = scalar_lea.vmem %s2, 384
  %v8800 = vld [vmem:[%s8799] sm:$0xf]
  %v8801 = vld [vmem:[%s8799 + $0x4] sm:$0xf]
  %v8802 = vld [vmem:[%s8799 + $0x8] sm:$0xf]
  %v8803 = vld [vmem:[%s8799 + $0xc] sm:$0xf]
  %v8804 = vld [vmem:[%s8799 + $0x10] sm:$0xf]
  %v8805 = vld [vmem:[%s8799 + $0x14] sm:$0xf]
  %v8806 = vld [vmem:[%s8799 + $0x18] sm:$0xf]
  %v8807 = vld [vmem:[%s8799 + $0x1c] sm:$0xf]
  %v8808 = vld [vmem:[%s8799 + $0x20] sm:$0xf]
  %v8809 = vld [vmem:[%s8799 + $0x24] sm:$0xf]
  %v8810 = vld [vmem:[%s8799 + $0x28] sm:$0xf]
  %v8811 = vld [vmem:[%s8799 + $0x2c] sm:$0xf]
  %v8812 = vld [vmem:[%s8799 + $0x30] sm:$0xf]
  %v8813 = vld [vmem:[%s8799 + $0x34] sm:$0xf]
  %v8814 = vld [vmem:[%s8799 + $0x38] sm:$0xf]
  %v8815 = vld [vmem:[%s8799 + $0x3c] sm:$0xf]
  %v8816 = vld [vmem:[%s8799 + $0x40] sm:$0xf]
  %v8817 = vld [vmem:[%s8799 + $0x44] sm:$0xf]
  %v8818 = vld [vmem:[%s8799 + $0x48] sm:$0xf]
  %v8819 = vld [vmem:[%s8799 + $0x4c] sm:$0xf]
  %v8820 = vld [vmem:[%s8799 + $0x50] sm:$0xf]
  %v8821 = vld [vmem:[%s8799 + $0x54] sm:$0xf]
  %v8822 = vld [vmem:[%s8799 + $0x58] sm:$0xf]
  %v8823 = vld [vmem:[%s8799 + $0x5c] sm:$0xf]
  %v8824 = vld [vmem:[%s8799 + $0x60] sm:$0xf]
  %v8825 = vld [vmem:[%s8799 + $0x64] sm:$0xf]
  %v8826 = vld [vmem:[%s8799 + $0x68] sm:$0xf]
  %v8827 = vld [vmem:[%s8799 + $0x6c] sm:$0xf]
  %v8828 = vld [vmem:[%s8799 + $0x70] sm:$0xf]
  %v8829 = vld [vmem:[%s8799 + $0x74] sm:$0xf]
  %v8830 = vld [vmem:[%s8799 + $0x78] sm:$0xf]
  %v8831 = vld [vmem:[%s8799 + $0x7c] sm:$0xf]
  %v8832 = vld [vmem:[%s8799 + $0x80] sm:$0xf]
  %v8833 = vld [vmem:[%s8799 + $0x84] sm:$0xf]
  %v8834 = vld [vmem:[%s8799 + $0x88] sm:$0xf]
  %v8835 = vld [vmem:[%s8799 + $0x8c] sm:$0xf]
  %v8836 = vld [vmem:[%s8799 + $0x90] sm:$0xf]
  %v8837 = vld [vmem:[%s8799 + $0x94] sm:$0xf]
  %v8838 = vld [vmem:[%s8799 + $0x98] sm:$0xf]
  %v8839 = vld [vmem:[%s8799 + $0x9c] sm:$0xf]
  %v8840 = vld [vmem:[%s8799 + $0xa0] sm:$0xf]
  %v8841 = vld [vmem:[%s8799 + $0xa4] sm:$0xf]
  %v8842 = vld [vmem:[%s8799 + $0xa8] sm:$0xf]
  %v8843 = vld [vmem:[%s8799 + $0xac] sm:$0xf]
  %v8844 = vld [vmem:[%s8799 + $0xb0] sm:$0xf]
  %v8845 = vld [vmem:[%s8799 + $0xb4] sm:$0xf]
  %v8846 = vld [vmem:[%s8799 + $0xb8] sm:$0xf]
  %v8847 = vld [vmem:[%s8799 + $0xbc] sm:$0xf]
  %v8896 = vunpack.c.l.b16 %v8800
  %v8897 = vunpack.c.l.b16 %v8801
  %v8898 = vunpack.c.l.b16 %v8802
  %v8899 = vunpack.c.l.b16 %v8803
  %v8900 = vunpack.c.l.b16 %v8804
  %v8901 = vunpack.c.l.b16 %v8805
  %v8902 = vunpack.c.l.b16 %v8806
  %v8903 = vunpack.c.l.b16 %v8807
  %v8904 = vunpack.c.l.b16 %v8808
  %v8905 = vunpack.c.l.b16 %v8809
  %v8906 = vunpack.c.l.b16 %v8810
  %v8907 = vunpack.c.l.b16 %v8811
  %v8908 = vunpack.c.l.b16 %v8812
  %v8909 = vunpack.c.l.b16 %v8813
  %v8910 = vunpack.c.l.b16 %v8814
  %v8911 = vunpack.c.l.b16 %v8815
  %v8912 = vunpack.c.l.b16 %v8816
  %v8913 = vunpack.c.l.b16 %v8817
  %v8914 = vunpack.c.l.b16 %v8818
  %v8915 = vunpack.c.l.b16 %v8819
  %v8916 = vunpack.c.l.b16 %v8820
  %v8917 = vunpack.c.l.b16 %v8821
  %v8918 = vunpack.c.l.b16 %v8822
  %v8919 = vunpack.c.l.b16 %v8823
  %v8920 = vunpack.c.l.b16 %v8824
  %v8921 = vunpack.c.l.b16 %v8825
  %v8922 = vunpack.c.l.b16 %v8826
  %v8923 = vunpack.c.l.b16 %v8827
  %v8924 = vunpack.c.l.b16 %v8828
  %v8925 = vunpack.c.l.b16 %v8829
  %v8926 = vunpack.c.l.b16 %v8830
  %v8927 = vunpack.c.l.b16 %v8831
  %v8928 = vunpack.c.l.b16 %v8832
  %v8929 = vunpack.c.l.b16 %v8833
  %v8930 = vunpack.c.l.b16 %v8834
  %v8931 = vunpack.c.l.b16 %v8835
  %v8932 = vunpack.c.l.b16 %v8836
  %v8933 = vunpack.c.l.b16 %v8837
  %v8934 = vunpack.c.l.b16 %v8838
  %v8935 = vunpack.c.l.b16 %v8839
  %v8936 = vunpack.c.l.b16 %v8840
  %v8937 = vunpack.c.l.b16 %v8841
  %v8938 = vunpack.c.l.b16 %v8842
  %v8939 = vunpack.c.l.b16 %v8843
  %v8940 = vunpack.c.l.b16 %v8844
  %v8941 = vunpack.c.l.b16 %v8845
  %v8942 = vunpack.c.l.b16 %v8846
  %v8943 = vunpack.c.l.b16 %v8847
  %v8944 = vpack.c.b16 %v8897, %v8896
  %v8945 = vpack.c.b16 %v8899, %v8898
  %v8946 = vpack.c.b16 %v8901, %v8900
  %v8947 = vpack.c.b16 %v8903, %v8902
  %v8948 = vpack.c.b16 %v8905, %v8904
  %v8949 = vpack.c.b16 %v8907, %v8906
  %v8950 = vpack.c.b16 %v8909, %v8908
  %v8951 = vpack.c.b16 %v8911, %v8910
  %v8952 = vpack.c.b16 %v8913, %v8912
  %v8953 = vpack.c.b16 %v8915, %v8914
  %v8954 = vpack.c.b16 %v8917, %v8916
  %v8955 = vpack.c.b16 %v8919, %v8918
  %v8956 = vpack.c.b16 %v8921, %v8920
  %v8957 = vpack.c.b16 %v8923, %v8922
  %v8958 = vpack.c.b16 %v8925, %v8924
  %v8959 = vpack.c.b16 %v8927, %v8926
  %v8960 = vpack.c.b16 %v8929, %v8928
  %v8961 = vpack.c.b16 %v8931, %v8930
  %v8962 = vpack.c.b16 %v8933, %v8932
  %v8963 = vpack.c.b16 %v8935, %v8934
  %v8964 = vpack.c.b16 %v8937, %v8936
  %v8965 = vpack.c.b16 %v8939, %v8938
  %v8966 = vpack.c.b16 %v8941, %v8940
  %v8967 = vpack.c.b16 %v8943, %v8942
  %8992 = vmatprep.subr.bf16.mxu0 0
  %8993 = vmatpush1.bf16.msra.mxu0 %v8951
  %8994 = vmatprep.subr.bf16.mxu0 0
  %8995 = vmatpush1.bf16.msra.mxu0 %v8950
  %8996 = vmatprep.subr.bf16.mxu0 0
  %8997 = vmatpush1.bf16.msra.mxu0 %v8949
  %8998 = vmatprep.subr.bf16.mxu0 0
  %8999 = vmatpush1.bf16.msra.mxu0 %v8948
  %9000 = vmatprep.subr.bf16.mxu0 0
  %9001 = vmatpush1.bf16.msra.mxu0 %v8947
  %9002 = vmatprep.subr.bf16.mxu0 0
  %9003 = vmatpush1.bf16.msra.mxu0 %v8946
  %9004 = vmatprep.subr.bf16.mxu0 0
  %9005 = vmatpush1.bf16.msra.mxu0 %v8945
  %9006 = vmatprep.subr.bf16.mxu0 0
  %9007 = vmatpush1.bf16.msra.mxu0 %v8944
  %9008 = vmatprep.subr.bf16.mxu0 0
  %9009 = vmatpush2.bf16.msra.mxu0 %v8959
  %9010 = vmatprep.subr.bf16.mxu0 0
  %9011 = vmatpush2.bf16.msra.mxu0 %v8958
  %9012 = vmatprep.subr.bf16.mxu0 0
  %9013 = vmatpush2.bf16.msra.mxu0 %v8957
  %9014 = vmatprep.subr.bf16.mxu0 0
  %9015 = vmatpush2.bf16.msra.mxu0 %v8956
  %9016 = vmatprep.subr.bf16.mxu0 0
  %9017 = vmatpush2.bf16.msra.mxu0 %v8955
  %9018 = vmatprep.subr.bf16.mxu0 0
  %9019 = vmatpush2.bf16.msra.mxu0 %v8954
  %9020 = vmatprep.subr.bf16.mxu0 0
  %9021 = vmatpush2.bf16.msra.mxu0 %v8953
  %9022 = vmatprep.subr.bf16.mxu0 0
  %9023 = vmatpush2.bf16.msra.mxu0 %v8952
  %9024 = vmatprep.mubr.bf16.mxu0 %v8354
  %9025 = vmatmul.mubr.bf16.gmra.mxu0 %v8342
  %v9026 = vpop.f32.mrf.mxu0
  %v9027 = vadd.f32 0.0, %v9026
  %v9028 = vpop.f32.mrf.mxu0
  %v9029 = vpop.f32.mrf.mxu0
  %v9030 = vadd.f32 0.0, %v9029
  %v9031 = vpop.f32.mrf.mxu0
  %9032 = vmatprep.mubr.bf16.mxu0 %v8366
  %9033 = vmatmul.mubr.bf16.gmra.mxu0 %v8354
  %v9034 = vpop.f32.mrf.mxu0
  %v9035 = vadd.f32 0.0, %v9034
  %v9036 = vpop.f32.mrf.mxu0
  %v9037 = vpop.f32.mrf.mxu0
  %v9038 = vadd.f32 0.0, %v9037
  %v9039 = vpop.f32.mrf.mxu0
  %9040 = vmatprep.mubr.bf16.mxu0 %v8378
  %9041 = vmatmul.mubr.bf16.gmra.mxu0 %v8366
  %v9042 = vpop.f32.mrf.mxu0
  %v9043 = vadd.f32 0.0, %v9042
  %v9044 = vpop.f32.mrf.mxu0
  %v9045 = vpop.f32.mrf.mxu0
  %v9046 = vadd.f32 0.0, %v9045
  %v9047 = vpop.f32.mrf.mxu0
  %9048 = vmatprep.mubr.bf16.mxu0 %v8390
  %9049 = vmatmul.mubr.bf16.gmra.mxu0 %v8378
  %v9050 = vpop.f32.mrf.mxu0
  %v9051 = vadd.f32 0.0, %v9050
  %v9052 = vpop.f32.mrf.mxu0
  %v9053 = vpop.f32.mrf.mxu0
  %v9054 = vadd.f32 0.0, %v9053
  %v9055 = vpop.f32.mrf.mxu0
  %9056 = vmatprep.mubr.bf16.mxu0 %v8402
  %9057 = vmatmul.mubr.bf16.gmra.mxu0 %v8390
  %v9058 = vpop.f32.mrf.mxu0
  %v9059 = vadd.f32 0.0, %v9058
  %v9060 = vpop.f32.mrf.mxu0
  %v9061 = vpop.f32.mrf.mxu0
  %v9062 = vadd.f32 0.0, %v9061
  %v9063 = vpop.f32.mrf.mxu0
  %9064 = vmatprep.mubr.bf16.mxu0 %v8414
  %9065 = vmatmul.mubr.bf16.gmra.mxu0 %v8402
  %v9066 = vpop.f32.mrf.mxu0
  %v9067 = vadd.f32 0.0, %v9066
  %v9068 = vpop.f32.mrf.mxu0
  %v9069 = vpop.f32.mrf.mxu0
  %v9070 = vadd.f32 0.0, %v9069
  %v9071 = vpop.f32.mrf.mxu0
  %9072 = vmatprep.mubr.bf16.mxu0 %v8426
  %9073 = vmatmul.mubr.bf16.gmra.mxu0 %v8414
  %v9074 = vpop.f32.mrf.mxu0
  %v9075 = vadd.f32 0.0, %v9074
  %v9076 = vpop.f32.mrf.mxu0
  %v9077 = vpop.f32.mrf.mxu0
  %v9078 = vadd.f32 0.0, %v9077
  %v9079 = vpop.f32.mrf.mxu0
  %9080 = vmatprep.mubr.bf16.mxu0 %v8438
  %9081 = vmatmul.mubr.bf16.gmra.mxu0 %v8426
  %v9082 = vpop.f32.mrf.mxu0
  %v9083 = vadd.f32 0.0, %v9082
  %v9084 = vpop.f32.mrf.mxu0
  %v9085 = vpop.f32.mrf.mxu0
  %v9086 = vadd.f32 0.0, %v9085
  %v9087 = vpop.f32.mrf.mxu0
  %9088 = vmatprep.mubr.bf16.mxu0 %v8450
  %9089 = vmatmul.mubr.bf16.gmra.mxu0 %v8438
  %v9090 = vpop.f32.mrf.mxu0
  %v9091 = vadd.f32 0.0, %v9090
  %v9092 = vpop.f32.mrf.mxu0
  %v9093 = vpop.f32.mrf.mxu0
  %v9094 = vadd.f32 0.0, %v9093
  %v9095 = vpop.f32.mrf.mxu0
  %9096 = vmatprep.mubr.bf16.mxu0 %v8462
  %9097 = vmatmul.mubr.bf16.gmra.mxu0 %v8450
  %v9098 = vpop.f32.mrf.mxu0
  %v9099 = vadd.f32 0.0, %v9098
  %v9100 = vpop.f32.mrf.mxu0
  %v9101 = vpop.f32.mrf.mxu0
  %v9102 = vadd.f32 0.0, %v9101
  %v9103 = vpop.f32.mrf.mxu0
  %9104 = vmatprep.mubr.bf16.mxu0 %v8474
  %9105 = vmatmul.mubr.bf16.gmra.mxu0 %v8462
  %v9106 = vpop.f32.mrf.mxu0
  %v9107 = vadd.f32 0.0, %v9106
  %v9108 = vpop.f32.mrf.mxu0
  %v9109 = vpop.f32.mrf.mxu0
  %v9110 = vadd.f32 0.0, %v9109
  %v9111 = vpop.f32.mrf.mxu0
  %9112 = vmatprep.mubr.bf16.mxu0 %v8486
  %9113 = vmatmul.mubr.bf16.gmra.mxu0 %v8474
  %v9114 = vpop.f32.mrf.mxu0
  %v9115 = vadd.f32 0.0, %v9114
  %v9116 = vpop.f32.mrf.mxu0
  %v9117 = vpop.f32.mrf.mxu0
  %v9118 = vadd.f32 0.0, %v9117
  %v9119 = vpop.f32.mrf.mxu0
  %9120 = vmatprep.mubr.bf16.mxu0 %v8498
  %9121 = vmatmul.mubr.bf16.gmra.mxu0 %v8486
  %v9122 = vpop.f32.mrf.mxu0
  %v9123 = vadd.f32 0.0, %v9122
  %v9124 = vpop.f32.mrf.mxu0
  %v9125 = vpop.f32.mrf.mxu0
  %v9126 = vadd.f32 0.0, %v9125
  %v9127 = vpop.f32.mrf.mxu0
  %9128 = vmatprep.mubr.bf16.mxu0 %v8510
  %9129 = vmatmul.mubr.bf16.gmra.mxu0 %v8498
  %v9130 = vpop.f32.mrf.mxu0
  %v9131 = vadd.f32 0.0, %v9130
  %v9132 = vpop.f32.mrf.mxu0
  %v9133 = vpop.f32.mrf.mxu0
  %v9134 = vadd.f32 0.0, %v9133
  %v9135 = vpop.f32.mrf.mxu0
  %9136 = vmatprep.mubr.bf16.mxu0 %v8522
  %9137 = vmatmul.mubr.bf16.gmra.mxu0 %v8510
  %v9138 = vpop.f32.mrf.mxu0
  %v9139 = vadd.f32 0.0, %v9138
  %v9140 = vpop.f32.mrf.mxu0
  %v9141 = vpop.f32.mrf.mxu0
  %v9142 = vadd.f32 0.0, %v9141
  %v9143 = vpop.f32.mrf.mxu0
  %9144 = vmatprep.mubr.bf16.mxu0 %v8534
  %9145 = vmatmul.mubr.bf16.gmra.mxu0 %v8522
  %v9146 = vpop.f32.mrf.mxu0
  %v9147 = vadd.f32 0.0, %v9146
  %v9148 = vpop.f32.mrf.mxu0
  %v9149 = vpop.f32.mrf.mxu0
  %v9150 = vadd.f32 0.0, %v9149
  %v9151 = vpop.f32.mrf.mxu0
  %9152 = vmatprep.mubr.bf16.mxu0 %v8570
  %9153 = vmatmul.mubr.bf16.gmra.mxu0 %v8558
  %v9154 = vpop.f32.mrf.mxu0
  %v9155 = vadd.f32 0.0, %v9154
  %v9156 = vpop.f32.mrf.mxu0
  %v9157 = vpop.f32.mrf.mxu0
  %v9158 = vadd.f32 0.0, %v9157
  %v9159 = vpop.f32.mrf.mxu0
  %9160 = vmatprep.mubr.bf16.mxu0 %v8582
  %9161 = vmatmul.mubr.bf16.gmra.mxu0 %v8570
  %v9162 = vpop.f32.mrf.mxu0
  %v9163 = vadd.f32 0.0, %v9162
  %v9164 = vpop.f32.mrf.mxu0
  %v9165 = vpop.f32.mrf.mxu0
  %v9166 = vadd.f32 0.0, %v9165
  %v9167 = vpop.f32.mrf.mxu0
  %9168 = vmatprep.mubr.bf16.mxu0 %v8594
  %9169 = vmatmul.mubr.bf16.gmra.mxu0 %v8582
  %v9170 = vpop.f32.mrf.mxu0
  %v9171 = vadd.f32 0.0, %v9170
  %v9172 = vpop.f32.mrf.mxu0
  %v9173 = vpop.f32.mrf.mxu0
  %v9174 = vadd.f32 0.0, %v9173
  %v9175 = vpop.f32.mrf.mxu0
  %9176 = vmatprep.mubr.bf16.mxu0 %v8606
  %9177 = vmatmul.mubr.bf16.gmra.mxu0 %v8594
  %v9178 = vpop.f32.mrf.mxu0
  %v9179 = vadd.f32 0.0, %v9178
  %v9180 = vpop.f32.mrf.mxu0
  %v9181 = vpop.f32.mrf.mxu0
  %v9182 = vadd.f32 0.0, %v9181
  %v9183 = vpop.f32.mrf.mxu0
  %9184 = vmatprep.mubr.bf16.mxu0 %v8618
  %9185 = vmatmul.mubr.bf16.gmra.mxu0 %v8606
  %v9186 = vpop.f32.mrf.mxu0
  %v9187 = vadd.f32 0.0, %v9186
  %v9188 = vpop.f32.mrf.mxu0
  %v9189 = vpop.f32.mrf.mxu0
  %v9190 = vadd.f32 0.0, %v9189
  %v9191 = vpop.f32.mrf.mxu0
  %9192 = vmatprep.mubr.bf16.mxu0 %v8630
  %9193 = vmatmul.mubr.bf16.gmra.mxu0 %v8618
  %v9194 = vpop.f32.mrf.mxu0
  %v9195 = vadd.f32 0.0, %v9194
  %v9196 = vpop.f32.mrf.mxu0
  %v9197 = vpop.f32.mrf.mxu0
  %v9198 = vadd.f32 0.0, %v9197
  %v9199 = vpop.f32.mrf.mxu0
  %9200 = vmatprep.mubr.bf16.mxu0 %v8642
  %9201 = vmatmul.mubr.bf16.gmra.mxu0 %v8630
  %v9202 = vpop.f32.mrf.mxu0
  %v9203 = vadd.f32 0.0, %v9202
  %v9204 = vpop.f32.mrf.mxu0
  %v9205 = vpop.f32.mrf.mxu0
  %v9206 = vadd.f32 0.0, %v9205
  %v9207 = vpop.f32.mrf.mxu0
  %9208 = vmatprep.mubr.bf16.mxu0 %v8654
  %9209 = vmatmul.mubr.bf16.gmra.mxu0 %v8642
  %v9210 = vpop.f32.mrf.mxu0
  %v9211 = vadd.f32 0.0, %v9210
  %v9212 = vpop.f32.mrf.mxu0
  %v9213 = vpop.f32.mrf.mxu0
  %v9214 = vadd.f32 0.0, %v9213
  %v9215 = vpop.f32.mrf.mxu0
  %9216 = vmatprep.mubr.bf16.mxu0 %v8666
  %9217 = vmatmul.mubr.bf16.gmra.mxu0 %v8654
  %v9218 = vpop.f32.mrf.mxu0
  %v9219 = vadd.f32 0.0, %v9218
  %v9220 = vpop.f32.mrf.mxu0
  %v9221 = vpop.f32.mrf.mxu0
  %v9222 = vadd.f32 0.0, %v9221
  %v9223 = vpop.f32.mrf.mxu0
  %9224 = vmatprep.mubr.bf16.mxu0 %v8678
  %9225 = vmatmul.mubr.bf16.gmra.mxu0 %v8666
  %v9226 = vpop.f32.mrf.mxu0
  %v9227 = vadd.f32 0.0, %v9226
  %v9228 = vpop.f32.mrf.mxu0
  %v9229 = vpop.f32.mrf.mxu0
  %v9230 = vadd.f32 0.0, %v9229
  %v9231 = vpop.f32.mrf.mxu0
  %9232 = vmatprep.mubr.bf16.mxu0 %v8690
  %9233 = vmatmul.mubr.bf16.gmra.mxu0 %v8678
  %v9234 = vpop.f32.mrf.mxu0
  %v9235 = vadd.f32 0.0, %v9234
  %v9236 = vpop.f32.mrf.mxu0
  %v9237 = vpop.f32.mrf.mxu0
  %v9238 = vadd.f32 0.0, %v9237
  %v9239 = vpop.f32.mrf.mxu0
  %9240 = vmatprep.mubr.bf16.mxu0 %v8702
  %9241 = vmatmul.mubr.bf16.gmra.mxu0 %v8690
  %v9242 = vpop.f32.mrf.mxu0
  %v9243 = vadd.f32 0.0, %v9242
  %v9244 = vpop.f32.mrf.mxu0
  %v9245 = vpop.f32.mrf.mxu0
  %v9246 = vadd.f32 0.0, %v9245
  %v9247 = vpop.f32.mrf.mxu0
  %9248 = vmatprep.mubr.bf16.mxu0 %v8714
  %9249 = vmatmul.mubr.bf16.gmra.mxu0 %v8702
  %v9250 = vpop.f32.mrf.mxu0
  %v9251 = vadd.f32 0.0, %v9250
  %v9252 = vpop.f32.mrf.mxu0
  %v9253 = vpop.f32.mrf.mxu0
  %v9254 = vadd.f32 0.0, %v9253
  %v9255 = vpop.f32.mrf.mxu0
  %9256 = vmatprep.mubr.bf16.mxu0 %v8726
  %9257 = vmatmul.mubr.bf16.gmra.mxu0 %v8714
  %v9258 = vpop.f32.mrf.mxu0
  %v9259 = vadd.f32 0.0, %v9258
  %v9260 = vpop.f32.mrf.mxu0
  %v9261 = vpop.f32.mrf.mxu0
  %v9262 = vadd.f32 0.0, %v9261
  %v9263 = vpop.f32.mrf.mxu0
  %9264 = vmatprep.mubr.bf16.mxu0 %v8738
  %9265 = vmatmul.mubr.bf16.gmra.mxu0 %v8726
  %v9266 = vpop.f32.mrf.mxu0
  %v9267 = vadd.f32 0.0, %v9266
  %v9268 = vpop.f32.mrf.mxu0
  %v9269 = vpop.f32.mrf.mxu0
  %v9270 = vadd.f32 0.0, %v9269
  %v9271 = vpop.f32.mrf.mxu0
  %9272 = vmatprep.mubr.bf16.mxu0 %v8750
  %9273 = vmatmul.mubr.bf16.gmra.mxu0 %v8738
  %v9274 = vpop.f32.mrf.mxu0
  %v9275 = vadd.f32 0.0, %v9274
  %v9276 = vpop.f32.mrf.mxu0
  %v9277 = vpop.f32.mrf.mxu0
  %v9278 = vadd.f32 0.0, %v9277
  %v9279 = vpop.f32.mrf.mxu0
  %9280 = vdwg.mxu0
  %9281 = vmatprep.subr.bf16.mxu0 0
  %9282 = vmatpush1.bf16.msra.mxu0 %v8967
  %9283 = vmatprep.subr.bf16.mxu0 0
  %9284 = vmatpush1.bf16.msra.mxu0 %v8966
  %9285 = vmatprep.subr.bf16.mxu0 0
  %9286 = vmatpush1.bf16.msra.mxu0 %v8965
  %9287 = vmatprep.subr.bf16.mxu0 0
  %9288 = vmatpush1.bf16.msra.mxu0 %v8964
  %9289 = vmatprep.subr.bf16.mxu0 0
  %9290 = vmatpush1.bf16.msra.mxu0 %v8963
  %9291 = vmatprep.subr.bf16.mxu0 0
  %9292 = vmatpush1.bf16.msra.mxu0 %v8962
  %9293 = vmatprep.subr.bf16.mxu0 0
  %9294 = vmatpush1.bf16.msra.mxu0 %v8961
  %9295 = vmatprep.subr.bf16.mxu0 0
  %9296 = vmatpush1.bf16.msra.mxu0 %v8960
  %9297 = vmatprep.subr.bf16.mxu0 0
  %9298 = vmatpush2.bf16.msra.mxu0 0
  %9299 = vmatprep.subr.bf16.mxu0 0
  %9300 = vmatpush2.bf16.msra.mxu0 0
  %9301 = vmatprep.subr.bf16.mxu0 0
  %9302 = vmatpush2.bf16.msra.mxu0 0
  %9303 = vmatprep.subr.bf16.mxu0 0
  %9304 = vmatpush2.bf16.msra.mxu0 0
  %9305 = vmatprep.subr.bf16.mxu0 0
  %9306 = vmatpush2.bf16.msra.mxu0 0
  %9307 = vmatprep.subr.bf16.mxu0 0
  %9308 = vmatpush2.bf16.msra.mxu0 0
  %9309 = vmatprep.subr.bf16.mxu0 0
  %9310 = vmatpush2.bf16.msra.mxu0 0
  %9311 = vmatprep.subr.bf16.mxu0 0
  %9312 = vmatpush2.bf16.msra.mxu0 0
  %9313 = vmatprep.mubr.bf16.mxu0 0
  %9314 = vmatmul.mubr.bf16.gmra.mxu0 %v8366
  %v9315 = vpop.f32.mrf.mxu0
  %v9316 = vadd.f32 %v9027, %v9315
  %v9317 = vpop.f32.mrf.mxu0
  %v9318 = vpop.f32.mrf.mxu0
  %v9319 = vadd.f32 %v9030, %v9318
  %v9320 = vpop.f32.mrf.mxu0
  %9321 = vmatprep.mubr.bf16.mxu0 0
  %9322 = vmatmul.mubr.bf16.gmra.mxu0 %v8378
  %v9323 = vpop.f32.mrf.mxu0
  %v9324 = vadd.f32 %v9035, %v9323
  %v9325 = vpop.f32.mrf.mxu0
  %v9326 = vpop.f32.mrf.mxu0
  %v9327 = vadd.f32 %v9038, %v9326
  %v9328 = vpop.f32.mrf.mxu0
  %9329 = vmatprep.mubr.bf16.mxu0 0
  %9330 = vmatmul.mubr.bf16.gmra.mxu0 %v8390
  %v9331 = vpop.f32.mrf.mxu0
  %v9332 = vadd.f32 %v9043, %v9331
  %v9333 = vpop.f32.mrf.mxu0
  %v9334 = vpop.f32.mrf.mxu0
  %v9335 = vadd.f32 %v9046, %v9334
  %v9336 = vpop.f32.mrf.mxu0
  %9337 = vmatprep.mubr.bf16.mxu0 0
  %9338 = vmatmul.mubr.bf16.gmra.mxu0 %v8402
  %v9339 = vpop.f32.mrf.mxu0
  %v9340 = vadd.f32 %v9051, %v9339
  %v9341 = vpop.f32.mrf.mxu0
  %v9342 = vpop.f32.mrf.mxu0
  %v9343 = vadd.f32 %v9054, %v9342
  %v9344 = vpop.f32.mrf.mxu0
  %9345 = vmatprep.mubr.bf16.mxu0 0
  %9346 = vmatmul.mubr.bf16.gmra.mxu0 %v8414
  %v9347 = vpop.f32.mrf.mxu0
  %v9348 = vadd.f32 %v9059, %v9347
  %v9349 = vpop.f32.mrf.mxu0
  %v9350 = vpop.f32.mrf.mxu0
  %v9351 = vadd.f32 %v9062, %v9350
  %v9352 = vpop.f32.mrf.mxu0
  %9353 = vmatprep.mubr.bf16.mxu0 0
  %9354 = vmatmul.mubr.bf16.gmra.mxu0 %v8426
  %v9355 = vpop.f32.mrf.mxu0
  %v9356 = vadd.f32 %v9067, %v9355
  %v9357 = vpop.f32.mrf.mxu0
  %v9358 = vpop.f32.mrf.mxu0
  %v9359 = vadd.f32 %v9070, %v9358
  %v9360 = vpop.f32.mrf.mxu0
  %9361 = vmatprep.mubr.bf16.mxu0 0
  %9362 = vmatmul.mubr.bf16.gmra.mxu0 %v8438
  %v9363 = vpop.f32.mrf.mxu0
  %v9364 = vadd.f32 %v9075, %v9363
  %v9365 = vpop.f32.mrf.mxu0
  %v9366 = vpop.f32.mrf.mxu0
  %v9367 = vadd.f32 %v9078, %v9366
  %v9368 = vpop.f32.mrf.mxu0
  %9369 = vmatprep.mubr.bf16.mxu0 0
  %9370 = vmatmul.mubr.bf16.gmra.mxu0 %v8450
  %v9371 = vpop.f32.mrf.mxu0
  %v9372 = vadd.f32 %v9083, %v9371
  %v9373 = vpop.f32.mrf.mxu0
  %v9374 = vpop.f32.mrf.mxu0
  %v9375 = vadd.f32 %v9086, %v9374
  %v9376 = vpop.f32.mrf.mxu0
  %9377 = vmatprep.mubr.bf16.mxu0 0
  %9378 = vmatmul.mubr.bf16.gmra.mxu0 %v8462
  %v9379 = vpop.f32.mrf.mxu0
  %v9380 = vadd.f32 %v9091, %v9379
  %v9381 = vpop.f32.mrf.mxu0
  %v9382 = vpop.f32.mrf.mxu0
  %v9383 = vadd.f32 %v9094, %v9382
  %v9384 = vpop.f32.mrf.mxu0
  %9385 = vmatprep.mubr.bf16.mxu0 0
  %9386 = vmatmul.mubr.bf16.gmra.mxu0 %v8474
  %v9387 = vpop.f32.mrf.mxu0
  %v9388 = vadd.f32 %v9099, %v9387
  %v9389 = vpop.f32.mrf.mxu0
  %v9390 = vpop.f32.mrf.mxu0
  %v9391 = vadd.f32 %v9102, %v9390
  %v9392 = vpop.f32.mrf.mxu0
  %9393 = vmatprep.mubr.bf16.mxu0 0
  %9394 = vmatmul.mubr.bf16.gmra.mxu0 %v8486
  %v9395 = vpop.f32.mrf.mxu0
  %v9396 = vadd.f32 %v9107, %v9395
  %v9397 = vpop.f32.mrf.mxu0
  %v9398 = vpop.f32.mrf.mxu0
  %v9399 = vadd.f32 %v9110, %v9398
  %v9400 = vpop.f32.mrf.mxu0
  %9401 = vmatprep.mubr.bf16.mxu0 0
  %9402 = vmatmul.mubr.bf16.gmra.mxu0 %v8498
  %v9403 = vpop.f32.mrf.mxu0
  %v9404 = vadd.f32 %v9115, %v9403
  %v9405 = vpop.f32.mrf.mxu0
  %v9406 = vpop.f32.mrf.mxu0
  %v9407 = vadd.f32 %v9118, %v9406
  %v9408 = vpop.f32.mrf.mxu0
  %9409 = vmatprep.mubr.bf16.mxu0 0
  %9410 = vmatmul.mubr.bf16.gmra.mxu0 %v8510
  %v9411 = vpop.f32.mrf.mxu0
  %v9412 = vadd.f32 %v9123, %v9411
  %v9413 = vpop.f32.mrf.mxu0
  %v9414 = vpop.f32.mrf.mxu0
  %v9415 = vadd.f32 %v9126, %v9414
  %v9416 = vpop.f32.mrf.mxu0
  %9417 = vmatprep.mubr.bf16.mxu0 0
  %9418 = vmatmul.mubr.bf16.gmra.mxu0 %v8522
  %v9419 = vpop.f32.mrf.mxu0
  %v9420 = vadd.f32 %v9131, %v9419
  %v9421 = vpop.f32.mrf.mxu0
  %v9422 = vpop.f32.mrf.mxu0
  %v9423 = vadd.f32 %v9134, %v9422
  %v9424 = vpop.f32.mrf.mxu0
  %9425 = vmatprep.mubr.bf16.mxu0 0
  %9426 = vmatmul.mubr.bf16.gmra.mxu0 %v8534
  %v9427 = vpop.f32.mrf.mxu0
  %v9428 = vadd.f32 %v9139, %v9427
  %v9429 = vpop.f32.mrf.mxu0
  %v9430 = vpop.f32.mrf.mxu0
  %v9431 = vadd.f32 %v9142, %v9430
  %v9432 = vpop.f32.mrf.mxu0
  %9433 = vmatprep.mubr.bf16.mxu0 0
  %9434 = vmatmul.mubr.bf16.gmra.mxu0 %v8546
  %v9435 = vpop.f32.mrf.mxu0
  %v9436 = vadd.f32 %v9147, %v9435
  %v9437 = vpop.f32.mrf.mxu0
  %v9438 = vpop.f32.mrf.mxu0
  %v9439 = vadd.f32 %v9150, %v9438
  %v9440 = vpop.f32.mrf.mxu0
  %9441 = vmatprep.mubr.bf16.mxu0 0
  %9442 = vmatmul.mubr.bf16.gmra.mxu0 %v8582
  %v9443 = vpop.f32.mrf.mxu0
  %v9444 = vadd.f32 %v9155, %v9443
  %v9445 = vpop.f32.mrf.mxu0
  %v9446 = vpop.f32.mrf.mxu0
  %v9447 = vadd.f32 %v9158, %v9446
  %v9448 = vpop.f32.mrf.mxu0
  %9449 = vmatprep.mubr.bf16.mxu0 0
  %9450 = vmatmul.mubr.bf16.gmra.mxu0 %v8594
  %v9451 = vpop.f32.mrf.mxu0
  %v9452 = vadd.f32 %v9163, %v9451
  %v9453 = vpop.f32.mrf.mxu0
  %v9454 = vpop.f32.mrf.mxu0
  %v9455 = vadd.f32 %v9166, %v9454
  %v9456 = vpop.f32.mrf.mxu0
  %9457 = vmatprep.mubr.bf16.mxu0 0
  %9458 = vmatmul.mubr.bf16.gmra.mxu0 %v8606
  %v9459 = vpop.f32.mrf.mxu0
  %v9460 = vadd.f32 %v9171, %v9459
  %v9461 = vpop.f32.mrf.mxu0
  %v9462 = vpop.f32.mrf.mxu0
  %v9463 = vadd.f32 %v9174, %v9462
  %v9464 = vpop.f32.mrf.mxu0
  %9465 = vmatprep.mubr.bf16.mxu0 0
  %9466 = vmatmul.mubr.bf16.gmra.mxu0 %v8618
  %v9467 = vpop.f32.mrf.mxu0
  %v9468 = vadd.f32 %v9179, %v9467
  %v9469 = vpop.f32.mrf.mxu0
  %v9470 = vpop.f32.mrf.mxu0
  %v9471 = vadd.f32 %v9182, %v9470
  %v9472 = vpop.f32.mrf.mxu0
  %9473 = vmatprep.mubr.bf16.mxu0 0
  %9474 = vmatmul.mubr.bf16.gmra.mxu0 %v8630
  %v9475 = vpop.f32.mrf.mxu0
  %v9476 = vadd.f32 %v9187, %v9475
  %v9477 = vpop.f32.mrf.mxu0
  %v9478 = vpop.f32.mrf.mxu0
  %v9479 = vadd.f32 %v9190, %v9478
  %v9480 = vpop.f32.mrf.mxu0
  %9481 = vmatprep.mubr.bf16.mxu0 0
  %9482 = vmatmul.mubr.bf16.gmra.mxu0 %v8642
  %v9483 = vpop.f32.mrf.mxu0
  %v9484 = vadd.f32 %v9195, %v9483
  %v9485 = vpop.f32.mrf.mxu0
  %v9486 = vpop.f32.mrf.mxu0
  %v9487 = vadd.f32 %v9198, %v9486
  %v9488 = vpop.f32.mrf.mxu0
  %9489 = vmatprep.mubr.bf16.mxu0 0
  %9490 = vmatmul.mubr.bf16.gmra.mxu0 %v8654
  %v9491 = vpop.f32.mrf.mxu0
  %v9492 = vadd.f32 %v9203, %v9491
  %v9493 = vpop.f32.mrf.mxu0
  %v9494 = vpop.f32.mrf.mxu0
  %v9495 = vadd.f32 %v9206, %v9494
  %v9496 = vpop.f32.mrf.mxu0
  %9497 = vmatprep.mubr.bf16.mxu0 0
  %9498 = vmatmul.mubr.bf16.gmra.mxu0 %v8666
  %v9499 = vpop.f32.mrf.mxu0
  %v9500 = vadd.f32 %v9211, %v9499
  %v9501 = vpop.f32.mrf.mxu0
  %v9502 = vpop.f32.mrf.mxu0
  %v9503 = vadd.f32 %v9214, %v9502
  %v9504 = vpop.f32.mrf.mxu0
  %9505 = vmatprep.mubr.bf16.mxu0 0
  %9506 = vmatmul.mubr.bf16.gmra.mxu0 %v8678
  %v9507 = vpop.f32.mrf.mxu0
  %v9508 = vadd.f32 %v9219, %v9507
  %v9509 = vpop.f32.mrf.mxu0
  %v9510 = vpop.f32.mrf.mxu0
  %v9511 = vadd.f32 %v9222, %v9510
  %v9512 = vpop.f32.mrf.mxu0
  %9513 = vmatprep.mubr.bf16.mxu0 0
  %9514 = vmatmul.mubr.bf16.gmra.mxu0 %v8690
  %v9515 = vpop.f32.mrf.mxu0
  %v9516 = vadd.f32 %v9227, %v9515
  %v9517 = vpop.f32.mrf.mxu0
  %v9518 = vpop.f32.mrf.mxu0
  %v9519 = vadd.f32 %v9230, %v9518
  %v9520 = vpop.f32.mrf.mxu0
  %9521 = vmatprep.mubr.bf16.mxu0 0
  %9522 = vmatmul.mubr.bf16.gmra.mxu0 %v8702
  %v9523 = vpop.f32.mrf.mxu0
  %v9524 = vadd.f32 %v9235, %v9523
  %v9525 = vpop.f32.mrf.mxu0
  %v9526 = vpop.f32.mrf.mxu0
  %v9527 = vadd.f32 %v9238, %v9526
  %v9528 = vpop.f32.mrf.mxu0
  %9529 = vmatprep.mubr.bf16.mxu0 0
  %9530 = vmatmul.mubr.bf16.gmra.mxu0 %v8714
  %v9531 = vpop.f32.mrf.mxu0
  %v9532 = vadd.f32 %v9243, %v9531
  %v9533 = vpop.f32.mrf.mxu0
  %v9534 = vpop.f32.mrf.mxu0
  %v9535 = vadd.f32 %v9246, %v9534
  %v9536 = vpop.f32.mrf.mxu0
  %9537 = vmatprep.mubr.bf16.mxu0 0
  %9538 = vmatmul.mubr.bf16.gmra.mxu0 %v8726
  %v9539 = vpop.f32.mrf.mxu0
  %v9540 = vadd.f32 %v9251, %v9539
  %v9541 = vpop.f32.mrf.mxu0
  %v9542 = vpop.f32.mrf.mxu0
  %v9543 = vadd.f32 %v9254, %v9542
  %v9544 = vpop.f32.mrf.mxu0
  %9545 = vmatprep.mubr.bf16.mxu0 0
  %9546 = vmatmul.mubr.bf16.gmra.mxu0 %v8738
  %v9547 = vpop.f32.mrf.mxu0
  %v9548 = vadd.f32 %v9259, %v9547
  %v9549 = vpop.f32.mrf.mxu0
  %v9550 = vpop.f32.mrf.mxu0
  %v9551 = vadd.f32 %v9262, %v9550
  %v9552 = vpop.f32.mrf.mxu0
  %9553 = vmatprep.mubr.bf16.mxu0 0
  %9554 = vmatmul.mubr.bf16.gmra.mxu0 %v8750
  %v9555 = vpop.f32.mrf.mxu0
  %v9556 = vadd.f32 %v9267, %v9555
  %v9557 = vpop.f32.mrf.mxu0
  %v9558 = vpop.f32.mrf.mxu0
  %v9559 = vadd.f32 %v9270, %v9558
  %v9560 = vpop.f32.mrf.mxu0
  %9561 = vmatprep.mubr.bf16.mxu0 0
  %9562 = vmatmul.mubr.bf16.gmra.mxu0 %v8762
  %v9563 = vpop.f32.mrf.mxu0
  %v9564 = vadd.f32 %v9275, %v9563
  %v9565 = vpop.f32.mrf.mxu0
  %v9566 = vpop.f32.mrf.mxu0
  %v9567 = vadd.f32 %v9278, %v9566
  %v9568 = vpop.f32.mrf.mxu0
  %9569 = vdwg.mxu0
  %v9570 = vadd.f32 %v7681, %v9316
  %v9571 = vadd.f32 %v7684, %v9319
  %v9572 = vadd.f32 %v7689, %v9324
  %v9573 = vadd.f32 %v7692, %v9327
  %v9574 = vadd.f32 %v7697, %v9332
  %v9575 = vadd.f32 %v7700, %v9335
  %v9576 = vadd.f32 %v7705, %v9340
  %v9577 = vadd.f32 %v7708, %v9343
  %v9578 = vadd.f32 %v7713, %v9348
  %v9579 = vadd.f32 %v7716, %v9351
  %v9580 = vadd.f32 %v7721, %v9356
  %v9581 = vadd.f32 %v7724, %v9359
  %v9582 = vadd.f32 %v7729, %v9364
  %v9583 = vadd.f32 %v7732, %v9367
  %v9584 = vadd.f32 %v7737, %v9372
  %v9585 = vadd.f32 %v7740, %v9375
  %v9586 = vadd.f32 %v7745, %v9380
  %v9587 = vadd.f32 %v7748, %v9383
  %v9588 = vadd.f32 %v7753, %v9388
  %v9589 = vadd.f32 %v7756, %v9391
  %v9590 = vadd.f32 %v7761, %v9396
  %v9591 = vadd.f32 %v7764, %v9399
  %v9592 = vadd.f32 %v7769, %v9404
  %v9593 = vadd.f32 %v7772, %v9407
  %v9594 = vadd.f32 %v7777, %v9412
  %v9595 = vadd.f32 %v7780, %v9415
  %v9596 = vadd.f32 %v7785, %v9420
  %v9597 = vadd.f32 %v7788, %v9423
  %v9598 = vadd.f32 %v7793, %v9428
  %v9599 = vadd.f32 %v7796, %v9431
  %v9600 = vadd.f32 %v7801, %v9436
  %v9601 = vadd.f32 %v7804, %v9439
  %v9602 = vadd.f32 %v7809, %v9444
  %v9603 = vadd.f32 %v7812, %v9447
  %v9604 = vadd.f32 %v7817, %v9452
  %v9605 = vadd.f32 %v7820, %v9455
  %v9606 = vadd.f32 %v7825, %v9460
  %v9607 = vadd.f32 %v7828, %v9463
  %v9608 = vadd.f32 %v7833, %v9468
  %v9609 = vadd.f32 %v7836, %v9471
  %v9610 = vadd.f32 %v7841, %v9476
  %v9611 = vadd.f32 %v7844, %v9479
  %v9612 = vadd.f32 %v7849, %v9484
  %v9613 = vadd.f32 %v7852, %v9487
  %v9614 = vadd.f32 %v7857, %v9492
  %v9615 = vadd.f32 %v7860, %v9495
  %v9616 = vadd.f32 %v7865, %v9500
  %v9617 = vadd.f32 %v7868, %v9503
  %v9618 = vadd.f32 %v7873, %v9508
  %v9619 = vadd.f32 %v7876, %v9511
  %v9620 = vadd.f32 %v7881, %v9516
  %v9621 = vadd.f32 %v7884, %v9519
  %v9622 = vadd.f32 %v7889, %v9524
  %v9623 = vadd.f32 %v7892, %v9527
  %v9624 = vadd.f32 %v7897, %v9532
  %v9625 = vadd.f32 %v7900, %v9535
  %v9626 = vadd.f32 %v7905, %v9540
  %v9627 = vadd.f32 %v7908, %v9543
  %v9628 = vadd.f32 %v7913, %v9548
  %v9629 = vadd.f32 %v7916, %v9551
  %v9630 = vadd.f32 %v7921, %v9556
  %v9631 = vadd.f32 %v7924, %v9559
  %v9632 = vadd.f32 %v7929, %v9564
  %v9633 = vadd.f32 %v7932, %v9567
  %v9634 = vadd.f32 %v9570, %v9571
  %v9635 = vadd.f32 %v9634, %v9572
  %v9636 = vadd.f32 %v9635, %v9573
  %v9637 = vadd.f32 %v9636, %v9574
  %v9638 = vadd.f32 %v9637, %v9575
  %v9639 = vadd.f32 %v9638, %v9576
  %v9640 = vadd.f32 %v9639, %v9577
  %v9641 = vadd.f32 %v9640, %v9578
  %v9642 = vadd.f32 %v9641, %v9579
  %v9643 = vadd.f32 %v9642, %v9580
  %v9644 = vadd.f32 %v9643, %v9581
  %v9645 = vadd.f32 %v9644, %v9582
  %v9646 = vadd.f32 %v9645, %v9583
  %v9647 = vadd.f32 %v9646, %v9584
  %v9648 = vadd.f32 %v9647, %v9585
  %v9649 = vadd.f32 %v9648, %v9586
  %v9650 = vadd.f32 %v9649, %v9587
  %v9651 = vadd.f32 %v9650, %v9588
  %v9652 = vadd.f32 %v9651, %v9589
  %v9653 = vadd.f32 %v9652, %v9590
  %v9654 = vadd.f32 %v9653, %v9591
  %v9655 = vadd.f32 %v9654, %v9592
  %v9656 = vadd.f32 %v9655, %v9593
  %v9657 = vadd.f32 %v9656, %v9594
  %v9658 = vadd.f32 %v9657, %v9595
  %v9659 = vadd.f32 %v9658, %v9596
  %v9660 = vadd.f32 %v9659, %v9597
  %v9661 = vadd.f32 %v9660, %v9598
  %v9662 = vadd.f32 %v9661, %v9599
  %v9663 = vadd.f32 %v9662, %v9600
  %v9664 = vadd.f32 %v9663, %v9601
  %v9665 = vadd.f32 %v9664, %v9602
  %v9666 = vadd.f32 %v9665, %v9603
  %v9667 = vadd.f32 %v9666, %v9604
  %v9668 = vadd.f32 %v9667, %v9605
  %v9669 = vadd.f32 %v9668, %v9606
  %v9670 = vadd.f32 %v9669, %v9607
  %v9671 = vadd.f32 %v9670, %v9608
  %v9672 = vadd.f32 %v9671, %v9609
  %v9673 = vadd.f32 %v9672, %v9610
  %v9674 = vadd.f32 %v9673, %v9611
  %v9675 = vadd.f32 %v9674, %v9612
  %v9676 = vadd.f32 %v9675, %v9613
  %v9677 = vadd.f32 %v9676, %v9614
  %v9678 = vadd.f32 %v9677, %v9615
  %v9679 = vadd.f32 %v9678, %v9616
  %v9680 = vadd.f32 %v9679, %v9617
  %v9681 = vadd.f32 %v9680, %v9618
  %v9682 = vadd.f32 %v9681, %v9619
  %v9683 = vadd.f32 %v9682, %v9620
  %v9684 = vadd.f32 %v9683, %v9621
  %v9685 = vadd.f32 %v9684, %v9622
  %v9686 = vadd.f32 %v9685, %v9623
  %v9687 = vadd.f32 %v9686, %v9624
  %v9688 = vadd.f32 %v9687, %v9625
  %v9689 = vadd.f32 %v9688, %v9626
  %v9690 = vadd.f32 %v9689, %v9627
  %v9691 = vadd.f32 %v9690, %v9628
  %v9692 = vadd.f32 %v9691, %v9629
  %v9693 = vadd.f32 %v9692, %v9630
  %v9694 = vadd.f32 %v9693, %v9631
  %v9695 = vadd.f32 %v9694, %v9632
  %v9696 = vadd.f32 %v9695, %v9633
  %v9697 = vrot.slane %v9696, 4
  %v9698 = vadd.f32 %v9696, %v9697
  %v9699 = vrot.slane %v9698, 2
  %v9700 = vadd.f32 %v9698, %v9699
  %v9701 = vrot.slane %v9700, 1
  %v9702 = vadd.f32 %v9700, %v9701
  %v9703 = vmul.f32 %v9570, %v9570
  %v9704 = vmul.f32 %v9571, %v9571
  %v9705 = vmul.f32 %v9572, %v9572
  %v9706 = vmul.f32 %v9573, %v9573
  %v9707 = vmul.f32 %v9574, %v9574
  %v9708 = vmul.f32 %v9575, %v9575
  %v9709 = vmul.f32 %v9576, %v9576
  %v9710 = vmul.f32 %v9577, %v9577
  %v9711 = vmul.f32 %v9578, %v9578
  %v9712 = vmul.f32 %v9579, %v9579
  %v9713 = vmul.f32 %v9580, %v9580
  %v9714 = vmul.f32 %v9581, %v9581
  %v9715 = vmul.f32 %v9582, %v9582
  %v9716 = vmul.f32 %v9583, %v9583
  %v9717 = vmul.f32 %v9584, %v9584
  %v9718 = vmul.f32 %v9585, %v9585
  %v9719 = vmul.f32 %v9586, %v9586
  %v9720 = vmul.f32 %v9587, %v9587
  %v9721 = vmul.f32 %v9588, %v9588
  %v9722 = vmul.f32 %v9589, %v9589
  %v9723 = vmul.f32 %v9590, %v9590
  %v9724 = vmul.f32 %v9591, %v9591
  %v9725 = vmul.f32 %v9592, %v9592
  %v9726 = vmul.f32 %v9593, %v9593
  %v9727 = vmul.f32 %v9594, %v9594
  %v9728 = vmul.f32 %v9595, %v9595
  %v9729 = vmul.f32 %v9596, %v9596
  %v9730 = vmul.f32 %v9597, %v9597
  %v9731 = vmul.f32 %v9598, %v9598
  %v9732 = vmul.f32 %v9599, %v9599
  %v9733 = vmul.f32 %v9600, %v9600
  %v9734 = vmul.f32 %v9601, %v9601
  %v9735 = vmul.f32 %v9602, %v9602
  %v9736 = vmul.f32 %v9603, %v9603
  %v9737 = vmul.f32 %v9604, %v9604
  %v9738 = vmul.f32 %v9605, %v9605
  %v9739 = vmul.f32 %v9606, %v9606
  %v9740 = vmul.f32 %v9607, %v9607
  %v9741 = vmul.f32 %v9608, %v9608
  %v9742 = vmul.f32 %v9609, %v9609
  %v9743 = vmul.f32 %v9610, %v9610
  %v9744 = vmul.f32 %v9611, %v9611
  %v9745 = vmul.f32 %v9612, %v9612
  %v9746 = vmul.f32 %v9613, %v9613
  %v9747 = vmul.f32 %v9614, %v9614
  %v9748 = vmul.f32 %v9615, %v9615
  %v9749 = vmul.f32 %v9616, %v9616
  %v9750 = vmul.f32 %v9617, %v9617
  %v9751 = vmul.f32 %v9618, %v9618
  %v9752 = vmul.f32 %v9619, %v9619
  %v9753 = vmul.f32 %v9620, %v9620
  %v9754 = vmul.f32 %v9621, %v9621
  %v9755 = vmul.f32 %v9622, %v9622
  %v9756 = vmul.f32 %v9623, %v9623
  %v9757 = vmul.f32 %v9624, %v9624
  %v9758 = vmul.f32 %v9625, %v9625
  %v9759 = vmul.f32 %v9626, %v9626
  %v9760 = vmul.f32 %v9627, %v9627
  %v9761 = vmul.f32 %v9628, %v9628
  %v9762 = vmul.f32 %v9629, %v9629
  %v9763 = vmul.f32 %v9630, %v9630
  %v9764 = vmul.f32 %v9631, %v9631
  %v9765 = vmul.f32 %v9632, %v9632
  %v9766 = vmul.f32 %v9633, %v9633
  %v9767 = vadd.f32 %v9703, %v9704
  %v9768 = vadd.f32 %v9767, %v9705
  %v9769 = vadd.f32 %v9768, %v9706
  %v9770 = vadd.f32 %v9769, %v9707
  %v9771 = vadd.f32 %v9770, %v9708
  %v9772 = vadd.f32 %v9771, %v9709
  %v9773 = vadd.f32 %v9772, %v9710
  %v9774 = vadd.f32 %v9773, %v9711
  %v9775 = vadd.f32 %v9774, %v9712
  %v9776 = vadd.f32 %v9775, %v9713
  %v9777 = vadd.f32 %v9776, %v9714
  %v9778 = vadd.f32 %v9777, %v9715
  %v9779 = vadd.f32 %v9778, %v9716
  %v9780 = vadd.f32 %v9779, %v9717
  %v9781 = vadd.f32 %v9780, %v9718
  %v9782 = vadd.f32 %v9781, %v9719
  %v9783 = vadd.f32 %v9782, %v9720
  %v9784 = vadd.f32 %v9783, %v9721
  %v9785 = vadd.f32 %v9784, %v9722
  %v9786 = vadd.f32 %v9785, %v9723
  %v9787 = vadd.f32 %v9786, %v9724
  %v9788 = vadd.f32 %v9787, %v9725
  %v9789 = vadd.f32 %v9788, %v9726
  %v9790 = vadd.f32 %v9789, %v9727
  %v9791 = vadd.f32 %v9790, %v9728
  %v9792 = vadd.f32 %v9791, %v9729
  %v9793 = vadd.f32 %v9792, %v9730
  %v9794 = vadd.f32 %v9793, %v9731
  %v9795 = vadd.f32 %v9794, %v9732
  %v9796 = vadd.f32 %v9795, %v9733
  %v9797 = vadd.f32 %v9796, %v9734
  %v9798 = vadd.f32 %v9797, %v9735
  %v9799 = vadd.f32 %v9798, %v9736
  %v9800 = vadd.f32 %v9799, %v9737
  %v9801 = vadd.f32 %v9800, %v9738
  %v9802 = vadd.f32 %v9801, %v9739
  %v9803 = vadd.f32 %v9802, %v9740
  %v9804 = vadd.f32 %v9803, %v9741
  %v9805 = vadd.f32 %v9804, %v9742
  %v9806 = vadd.f32 %v9805, %v9743
  %v9807 = vadd.f32 %v9806, %v9744
  %v9808 = vadd.f32 %v9807, %v9745
  %v9809 = vadd.f32 %v9808, %v9746
  %v9810 = vadd.f32 %v9809, %v9747
  %v9811 = vadd.f32 %v9810, %v9748
  %v9812 = vadd.f32 %v9811, %v9749
  %v9813 = vadd.f32 %v9812, %v9750
  %v9814 = vadd.f32 %v9813, %v9751
  %v9815 = vadd.f32 %v9814, %v9752
  %v9816 = vadd.f32 %v9815, %v9753
  %v9817 = vadd.f32 %v9816, %v9754
  %v9818 = vadd.f32 %v9817, %v9755
  %v9819 = vadd.f32 %v9818, %v9756
  %v9820 = vadd.f32 %v9819, %v9757
  %v9821 = vadd.f32 %v9820, %v9758
  %v9822 = vadd.f32 %v9821, %v9759
  %v9823 = vadd.f32 %v9822, %v9760
  %v9824 = vadd.f32 %v9823, %v9761
  %v9825 = vadd.f32 %v9824, %v9762
  %v9826 = vadd.f32 %v9825, %v9763
  %v9827 = vadd.f32 %v9826, %v9764
  %v9828 = vadd.f32 %v9827, %v9765
  %v9829 = vadd.f32 %v9828, %v9766
  %v9830 = vrot.slane %v9829, 4
  %v9831 = vadd.f32 %v9829, %v9830
  %v9832 = vrot.slane %v9831, 2
  %v9833 = vadd.f32 %v9831, %v9832
  %v9834 = vrot.slane %v9833, 1
  %v9835 = vadd.f32 %v9833, %v9834
  %v9836 = vmul.f32 %v9702, 0.001953125
  %v9837 = vmul.f32 %v9835, 0.001953125
  %v9838 = vmul.f32 %v9836, %v9836
  %v9839 = vsub.f32 %v9837, %v9838
  %v9840 = vld [vmem:[%s5] sm:$0x1]
  %v9841 = vadd.f32 %v9839, 1e-05
  %v9842 = vrsqrt.pop %v9841
  %v9843 = vmul.f32 %v9840, %v9842
  %v9844 = vld [vmem:[%s6] sm:$0x1]
  %v9845 = vmul.f32 %v9836, %v9843
  %v9846 = vsub.f32 %v9844, %v9845
  %v9848 = vlaneseq
  %v9849 = vshrl.u32 %v9848, 7
  %v9850 = vsub.s32 0, %v9849
  %v9851 = vrot.slane %v9843, %v9850
  %v9853 = vmul.f32 %v9570, %v9851
  %v9854 = vmul.f32 %v9571, %v9851
  %v9855 = vmul.f32 %v9572, %v9851
  %v9856 = vmul.f32 %v9573, %v9851
  %v9857 = vmul.f32 %v9574, %v9851
  %v9858 = vmul.f32 %v9575, %v9851
  %v9859 = vmul.f32 %v9576, %v9851
  %v9860 = vmul.f32 %v9577, %v9851
  %v9861 = vmul.f32 %v9578, %v9851
  %v9862 = vmul.f32 %v9579, %v9851
  %v9863 = vmul.f32 %v9580, %v9851
  %v9864 = vmul.f32 %v9581, %v9851
  %v9865 = vmul.f32 %v9582, %v9851
  %v9866 = vmul.f32 %v9583, %v9851
  %v9867 = vmul.f32 %v9584, %v9851
  %v9868 = vmul.f32 %v9585, %v9851
  %v9869 = vmul.f32 %v9586, %v9851
  %v9870 = vmul.f32 %v9587, %v9851
  %v9871 = vmul.f32 %v9588, %v9851
  %v9872 = vmul.f32 %v9589, %v9851
  %v9873 = vmul.f32 %v9590, %v9851
  %v9874 = vmul.f32 %v9591, %v9851
  %v9875 = vmul.f32 %v9592, %v9851
  %v9876 = vmul.f32 %v9593, %v9851
  %v9877 = vmul.f32 %v9594, %v9851
  %v9878 = vmul.f32 %v9595, %v9851
  %v9879 = vmul.f32 %v9596, %v9851
  %v9880 = vmul.f32 %v9597, %v9851
  %v9881 = vmul.f32 %v9598, %v9851
  %v9882 = vmul.f32 %v9599, %v9851
  %v9883 = vmul.f32 %v9600, %v9851
  %v9884 = vmul.f32 %v9601, %v9851
  %v9885 = vmul.f32 %v9602, %v9851
  %v9886 = vmul.f32 %v9603, %v9851
  %v9887 = vmul.f32 %v9604, %v9851
  %v9888 = vmul.f32 %v9605, %v9851
  %v9889 = vmul.f32 %v9606, %v9851
  %v9890 = vmul.f32 %v9607, %v9851
  %v9891 = vmul.f32 %v9608, %v9851
  %v9892 = vmul.f32 %v9609, %v9851
  %v9893 = vmul.f32 %v9610, %v9851
  %v9894 = vmul.f32 %v9611, %v9851
  %v9895 = vmul.f32 %v9612, %v9851
  %v9896 = vmul.f32 %v9613, %v9851
  %v9897 = vmul.f32 %v9614, %v9851
  %v9898 = vmul.f32 %v9615, %v9851
  %v9899 = vmul.f32 %v9616, %v9851
  %v9900 = vmul.f32 %v9617, %v9851
  %v9901 = vmul.f32 %v9618, %v9851
  %v9902 = vmul.f32 %v9619, %v9851
  %v9903 = vmul.f32 %v9620, %v9851
  %v9904 = vmul.f32 %v9621, %v9851
  %v9905 = vmul.f32 %v9622, %v9851
  %v9906 = vmul.f32 %v9623, %v9851
  %v9907 = vmul.f32 %v9624, %v9851
  %v9908 = vmul.f32 %v9625, %v9851
  %v9909 = vmul.f32 %v9626, %v9851
  %v9910 = vmul.f32 %v9627, %v9851
  %v9911 = vmul.f32 %v9628, %v9851
  %v9912 = vmul.f32 %v9629, %v9851
  %v9913 = vmul.f32 %v9630, %v9851
  %v9914 = vmul.f32 %v9631, %v9851
  %v9915 = vmul.f32 %v9632, %v9851
  %v9916 = vmul.f32 %v9633, %v9851
  %v9918 = vlaneseq
  %v9919 = vshrl.u32 %v9918, 7
  %v9920 = vsub.s32 0, %v9919
  %v9921 = vrot.slane %v9846, %v9920
  %v9923 = vadd.f32 %v9853, %v9921
  %v9924 = vadd.f32 %v9854, %v9921
  %v9925 = vadd.f32 %v9855, %v9921
  %v9926 = vadd.f32 %v9856, %v9921
  %v9927 = vadd.f32 %v9857, %v9921
  %v9928 = vadd.f32 %v9858, %v9921
  %v9929 = vadd.f32 %v9859, %v9921
  %v9930 = vadd.f32 %v9860, %v9921
  %v9931 = vadd.f32 %v9861, %v9921
  %v9932 = vadd.f32 %v9862, %v9921
  %v9933 = vadd.f32 %v9863, %v9921
  %v9934 = vadd.f32 %v9864, %v9921
  %v9935 = vadd.f32 %v9865, %v9921
  %v9936 = vadd.f32 %v9866, %v9921
  %v9937 = vadd.f32 %v9867, %v9921
  %v9938 = vadd.f32 %v9868, %v9921
  %v9939 = vadd.f32 %v9869, %v9921
  %v9940 = vadd.f32 %v9870, %v9921
  %v9941 = vadd.f32 %v9871, %v9921
  %v9942 = vadd.f32 %v9872, %v9921
  %v9943 = vadd.f32 %v9873, %v9921
  %v9944 = vadd.f32 %v9874, %v9921
  %v9945 = vadd.f32 %v9875, %v9921
  %v9946 = vadd.f32 %v9876, %v9921
  %v9947 = vadd.f32 %v9877, %v9921
  %v9948 = vadd.f32 %v9878, %v9921
  %v9949 = vadd.f32 %v9879, %v9921
  %v9950 = vadd.f32 %v9880, %v9921
  %v9951 = vadd.f32 %v9881, %v9921
  %v9952 = vadd.f32 %v9882, %v9921
  %v9953 = vadd.f32 %v9883, %v9921
  %v9954 = vadd.f32 %v9884, %v9921
  %v9955 = vadd.f32 %v9885, %v9921
  %v9956 = vadd.f32 %v9886, %v9921
  %v9957 = vadd.f32 %v9887, %v9921
  %v9958 = vadd.f32 %v9888, %v9921
  %v9959 = vadd.f32 %v9889, %v9921
  %v9960 = vadd.f32 %v9890, %v9921
  %v9961 = vadd.f32 %v9891, %v9921
  %v9962 = vadd.f32 %v9892, %v9921
  %v9963 = vadd.f32 %v9893, %v9921
  %v9964 = vadd.f32 %v9894, %v9921
  %v9965 = vadd.f32 %v9895, %v9921
  %v9966 = vadd.f32 %v9896, %v9921
  %v9967 = vadd.f32 %v9897, %v9921
  %v9968 = vadd.f32 %v9898, %v9921
  %v9969 = vadd.f32 %v9899, %v9921
  %v9970 = vadd.f32 %v9900, %v9921
  %v9971 = vadd.f32 %v9901, %v9921
  %v9972 = vadd.f32 %v9902, %v9921
  %v9973 = vadd.f32 %v9903, %v9921
  %v9974 = vadd.f32 %v9904, %v9921
  %v9975 = vadd.f32 %v9905, %v9921
  %v9976 = vadd.f32 %v9906, %v9921
  %v9977 = vadd.f32 %v9907, %v9921
  %v9978 = vadd.f32 %v9908, %v9921
  %v9979 = vadd.f32 %v9909, %v9921
  %v9980 = vadd.f32 %v9910, %v9921
  %v9981 = vadd.f32 %v9911, %v9921
  %v9982 = vadd.f32 %v9912, %v9921
  %v9983 = vadd.f32 %v9913, %v9921
  %v9984 = vadd.f32 %v9914, %v9921
  %v9985 = vadd.f32 %v9915, %v9921
  %v9986 = vadd.f32 %v9916, %v9921
  %v9987 = vmax.f32 %v9923, 0.0
  %v9988 = vmax.f32 %v9924, 0.0
  %v9989 = vmax.f32 %v9925, 0.0
  %v9990 = vmax.f32 %v9926, 0.0
  %v9991 = vmax.f32 %v9927, 0.0
  %v9992 = vmax.f32 %v9928, 0.0
  %v9993 = vmax.f32 %v9929, 0.0
  %v9994 = vmax.f32 %v9930, 0.0
  %v9995 = vmax.f32 %v9931, 0.0
  %v9996 = vmax.f32 %v9932, 0.0
  %v9997 = vmax.f32 %v9933, 0.0
  %v9998 = vmax.f32 %v9934, 0.0
  %v9999 = vmax.f32 %v9935, 0.0
  %v10000 = vmax.f32 %v9936, 0.0
  %v10001 = vmax.f32 %v9937, 0.0
  %v10002 = vmax.f32 %v9938, 0.0
  %v10003 = vmax.f32 %v9939, 0.0
  %v10004 = vmax.f32 %v9940, 0.0
  %v10005 = vmax.f32 %v9941, 0.0
  %v10006 = vmax.f32 %v9942, 0.0
  %v10007 = vmax.f32 %v9943, 0.0
  %v10008 = vmax.f32 %v9944, 0.0
  %v10009 = vmax.f32 %v9945, 0.0
  %v10010 = vmax.f32 %v9946, 0.0
  %v10011 = vmax.f32 %v9947, 0.0
  %v10012 = vmax.f32 %v9948, 0.0
  %v10013 = vmax.f32 %v9949, 0.0
  %v10014 = vmax.f32 %v9950, 0.0
  %v10015 = vmax.f32 %v9951, 0.0
  %v10016 = vmax.f32 %v9952, 0.0
  %v10017 = vmax.f32 %v9953, 0.0
  %v10018 = vmax.f32 %v9954, 0.0
  %v10019 = vmax.f32 %v9955, 0.0
  %v10020 = vmax.f32 %v9956, 0.0
  %v10021 = vmax.f32 %v9957, 0.0
  %v10022 = vmax.f32 %v9958, 0.0
  %v10023 = vmax.f32 %v9959, 0.0
  %v10024 = vmax.f32 %v9960, 0.0
  %v10025 = vmax.f32 %v9961, 0.0
  %v10026 = vmax.f32 %v9962, 0.0
  %v10027 = vmax.f32 %v9963, 0.0
  %v10028 = vmax.f32 %v9964, 0.0
  %v10029 = vmax.f32 %v9965, 0.0
  %v10030 = vmax.f32 %v9966, 0.0
  %v10031 = vmax.f32 %v9967, 0.0
  %v10032 = vmax.f32 %v9968, 0.0
  %v10033 = vmax.f32 %v9969, 0.0
  %v10034 = vmax.f32 %v9970, 0.0
  %v10035 = vmax.f32 %v9971, 0.0
  %v10036 = vmax.f32 %v9972, 0.0
  %v10037 = vmax.f32 %v9973, 0.0
  %v10038 = vmax.f32 %v9974, 0.0
  %v10039 = vmax.f32 %v9975, 0.0
  %v10040 = vmax.f32 %v9976, 0.0
  %v10041 = vmax.f32 %v9977, 0.0
  %v10042 = vmax.f32 %v9978, 0.0
  %v10043 = vmax.f32 %v9979, 0.0
  %v10044 = vmax.f32 %v9980, 0.0
  %v10045 = vmax.f32 %v9981, 0.0
  %v10046 = vmax.f32 %v9982, 0.0
  %v10047 = vmax.f32 %v9983, 0.0
  %v10048 = vmax.f32 %v9984, 0.0
  %v10049 = vmax.f32 %v9985, 0.0
  %v10050 = vmax.f32 %v9986, 0.0
  %v10051 = vpack.c.bf16 %v9988, %v9987
  %v10052 = vpack.c.bf16 %v9990, %v9989
  %v10053 = vpack.c.bf16 %v9992, %v9991
  %v10054 = vpack.c.bf16 %v9994, %v9993
  %v10055 = vpack.c.bf16 %v9996, %v9995
  %v10056 = vpack.c.bf16 %v9998, %v9997
  %v10057 = vpack.c.bf16 %v10000, %v9999
  %v10058 = vpack.c.bf16 %v10002, %v10001
  %v10059 = vpack.c.bf16 %v10004, %v10003
  %v10060 = vpack.c.bf16 %v10006, %v10005
  %v10061 = vpack.c.bf16 %v10008, %v10007
  %v10062 = vpack.c.bf16 %v10010, %v10009
  %v10063 = vpack.c.bf16 %v10012, %v10011
  %v10064 = vpack.c.bf16 %v10014, %v10013
  %v10065 = vpack.c.bf16 %v10016, %v10015
  %v10066 = vpack.c.bf16 %v10018, %v10017
  %v10067 = vpack.c.bf16 %v10020, %v10019
  %v10068 = vpack.c.bf16 %v10022, %v10021
  %v10069 = vpack.c.bf16 %v10024, %v10023
  %v10070 = vpack.c.bf16 %v10026, %v10025
  %v10071 = vpack.c.bf16 %v10028, %v10027
  %v10072 = vpack.c.bf16 %v10030, %v10029
  %v10073 = vpack.c.bf16 %v10032, %v10031
  %v10074 = vpack.c.bf16 %v10034, %v10033
  %v10075 = vpack.c.bf16 %v10036, %v10035
  %v10076 = vpack.c.bf16 %v10038, %v10037
  %v10077 = vpack.c.bf16 %v10040, %v10039
  %v10078 = vpack.c.bf16 %v10042, %v10041
  %v10079 = vpack.c.bf16 %v10044, %v10043
  %v10080 = vpack.c.bf16 %v10046, %v10045
  %v10081 = vpack.c.bf16 %v10048, %v10047
  %v10082 = vpack.c.bf16 %v10050, %v10049
  %v10115 = vunpack.c.l.b16 %v10051
  %v10116 = vunpack.c.h.b16 %v10051
  %v10117 = vunpack.c.l.b16 %v10052
  %v10118 = vunpack.c.h.b16 %v10052
  %v10119 = vunpack.c.l.b16 %v10053
  %v10120 = vunpack.c.h.b16 %v10053
  %v10121 = vunpack.c.l.b16 %v10054
  %v10122 = vunpack.c.h.b16 %v10054
  %v10123 = vunpack.c.l.b16 %v10055
  %v10124 = vunpack.c.h.b16 %v10055
  %v10125 = vunpack.c.l.b16 %v10056
  %v10126 = vunpack.c.h.b16 %v10056
  %v10127 = vunpack.c.l.b16 %v10057
  %v10128 = vunpack.c.h.b16 %v10057
  %v10129 = vunpack.c.l.b16 %v10058
  %v10130 = vunpack.c.h.b16 %v10058
  %v10131 = vunpack.c.l.b16 %v10059
  %v10132 = vunpack.c.h.b16 %v10059
  %v10133 = vunpack.c.l.b16 %v10060
  %v10134 = vunpack.c.h.b16 %v10060
  %v10135 = vunpack.c.l.b16 %v10061
  %v10136 = vunpack.c.h.b16 %v10061
  %v10137 = vunpack.c.l.b16 %v10062
  %v10138 = vunpack.c.h.b16 %v10062
  %v10139 = vunpack.c.l.b16 %v10063
  %v10140 = vunpack.c.h.b16 %v10063
  %v10141 = vunpack.c.l.b16 %v10064
  %v10142 = vunpack.c.h.b16 %v10064
  %v10143 = vunpack.c.l.b16 %v10065
  %v10144 = vunpack.c.h.b16 %v10065
  %v10145 = vunpack.c.l.b16 %v10066
  %v10146 = vunpack.c.h.b16 %v10066
  %v10147 = vunpack.c.l.b16 %v10067
  %v10148 = vunpack.c.h.b16 %v10067
  %v10149 = vunpack.c.l.b16 %v10068
  %v10150 = vunpack.c.h.b16 %v10068
  %v10151 = vunpack.c.l.b16 %v10069
  %v10152 = vunpack.c.h.b16 %v10069
  %v10153 = vunpack.c.l.b16 %v10070
  %v10154 = vunpack.c.h.b16 %v10070
  %v10155 = vunpack.c.l.b16 %v10071
  %v10156 = vunpack.c.h.b16 %v10071
  %v10157 = vunpack.c.l.b16 %v10072
  %v10158 = vunpack.c.h.b16 %v10072
  %v10159 = vunpack.c.l.b16 %v10073
  %v10160 = vunpack.c.h.b16 %v10073
  %v10161 = vunpack.c.l.b16 %v10074
  %v10162 = vunpack.c.h.b16 %v10074
  %v10163 = vunpack.c.l.b16 %v10075
  %v10164 = vunpack.c.h.b16 %v10075
  %v10165 = vunpack.c.l.b16 %v10076
  %v10166 = vunpack.c.h.b16 %v10076
  %v10167 = vunpack.c.l.b16 %v10077
  %v10168 = vunpack.c.h.b16 %v10077
  %v10169 = vunpack.c.l.b16 %v10078
  %v10170 = vunpack.c.h.b16 %v10078
  %v10171 = vunpack.c.l.b16 %v10079
  %v10172 = vunpack.c.h.b16 %v10079
  %v10173 = vunpack.c.l.b16 %v10080
  %v10174 = vunpack.c.h.b16 %v10080
  %v10175 = vunpack.c.l.b16 %v10081
  %v10176 = vunpack.c.h.b16 %v10081
  %v10177 = vunpack.c.l.b16 %v10082
  %v10178 = vunpack.c.h.b16 %v10082
  %v10179 = vpack.c.b16 %v10115, %v10115
  %v10180 = vpack.c.b16 %v10116, %v10116
  %v10181 = vpack.c.b16 %v10117, %v10117
  %v10182 = vpack.c.b16 %v10118, %v10118
  %v10183 = vpack.c.b16 %v10119, %v10119
  %v10184 = vpack.c.b16 %v10120, %v10120
  %v10185 = vpack.c.b16 %v10121, %v10121
  %v10186 = vpack.c.b16 %v10122, %v10122
  %v10187 = vpack.c.b16 %v10123, %v10123
  %v10188 = vpack.c.b16 %v10124, %v10124
  %v10189 = vpack.c.b16 %v10125, %v10125
  %v10190 = vpack.c.b16 %v10126, %v10126
  %v10191 = vpack.c.b16 %v10127, %v10127
  %v10192 = vpack.c.b16 %v10128, %v10128
  %v10193 = vpack.c.b16 %v10129, %v10129
  %v10194 = vpack.c.b16 %v10130, %v10130
  %v10195 = vpack.c.b16 %v10131, %v10131
  %v10196 = vpack.c.b16 %v10132, %v10132
  %v10197 = vpack.c.b16 %v10133, %v10133
  %v10198 = vpack.c.b16 %v10134, %v10134
  %v10199 = vpack.c.b16 %v10135, %v10135
  %v10200 = vpack.c.b16 %v10136, %v10136
  %v10201 = vpack.c.b16 %v10137, %v10137
  %v10202 = vpack.c.b16 %v10138, %v10138
  %v10203 = vpack.c.b16 %v10139, %v10139
  %v10204 = vpack.c.b16 %v10140, %v10140
  %v10205 = vpack.c.b16 %v10141, %v10141
  %v10206 = vpack.c.b16 %v10142, %v10142
  %v10207 = vpack.c.b16 %v10143, %v10143
  %v10208 = vpack.c.b16 %v10144, %v10144
  %v10209 = vpack.c.b16 %v10145, %v10145
  %v10210 = vpack.c.b16 %v10146, %v10146
  %v10211 = vpack.c.b16 %v10147, %v10147
  %v10212 = vpack.c.b16 %v10148, %v10148
  %v10213 = vpack.c.b16 %v10149, %v10149
  %v10214 = vpack.c.b16 %v10150, %v10150
  %v10215 = vpack.c.b16 %v10151, %v10151
  %v10216 = vpack.c.b16 %v10152, %v10152
  %v10217 = vpack.c.b16 %v10153, %v10153
  %v10218 = vpack.c.b16 %v10154, %v10154
  %v10219 = vpack.c.b16 %v10155, %v10155
  %v10220 = vpack.c.b16 %v10156, %v10156
  %v10221 = vpack.c.b16 %v10157, %v10157
  %v10222 = vpack.c.b16 %v10158, %v10158
  %v10223 = vpack.c.b16 %v10159, %v10159
  %v10224 = vpack.c.b16 %v10160, %v10160
  %v10225 = vpack.c.b16 %v10161, %v10161
  %v10226 = vpack.c.b16 %v10162, %v10162
  %v10227 = vpack.c.b16 %v10163, %v10163
  %v10228 = vpack.c.b16 %v10164, %v10164
  %v10229 = vpack.c.b16 %v10165, %v10165
  %v10230 = vpack.c.b16 %v10166, %v10166
  %v10231 = vpack.c.b16 %v10167, %v10167
  %v10232 = vpack.c.b16 %v10168, %v10168
  %v10233 = vpack.c.b16 %v10169, %v10169
  %v10234 = vpack.c.b16 %v10170, %v10170
  %v10235 = vpack.c.b16 %v10171, %v10171
  %v10236 = vpack.c.b16 %v10172, %v10172
  %v10237 = vpack.c.b16 %v10173, %v10173
  %v10238 = vpack.c.b16 %v10174, %v10174
  %v10239 = vpack.c.b16 %v10175, %v10175
  %v10240 = vpack.c.b16 %v10176, %v10176
  %v10241 = vpack.c.b16 %v10177, %v10177
  %v10242 = vpack.c.b16 %v10178, %v10178
  %10307 = vst [vmem:[%s7] sm:$0xf] %v10179
  %10308 = vst [vmem:[%s7 + $0x4] sm:$0xf] %v10180
  %10309 = vst [vmem:[%s7 + $0x8] sm:$0xf] %v10181
  %10310 = vst [vmem:[%s7 + $0xc] sm:$0xf] %v10182
  %10311 = vst [vmem:[%s7 + $0x10] sm:$0xf] %v10183
  %10312 = vst [vmem:[%s7 + $0x14] sm:$0xf] %v10184
  %10313 = vst [vmem:[%s7 + $0x18] sm:$0xf] %v10185
  %10314 = vst [vmem:[%s7 + $0x1c] sm:$0xf] %v10186
  %10315 = vst [vmem:[%s7 + $0x20] sm:$0xf] %v10187
  %10316 = vst [vmem:[%s7 + $0x24] sm:$0xf] %v10188
  %10317 = vst [vmem:[%s7 + $0x28] sm:$0xf] %v10189
  %10318 = vst [vmem:[%s7 + $0x2c] sm:$0xf] %v10190
  %10319 = vst [vmem:[%s7 + $0x30] sm:$0xf] %v10191
  %10320 = vst [vmem:[%s7 + $0x34] sm:$0xf] %v10192
  %10321 = vst [vmem:[%s7 + $0x38] sm:$0xf] %v10193
  %10322 = vst [vmem:[%s7 + $0x3c] sm:$0xf] %v10194
  %10323 = vst [vmem:[%s7 + $0x40] sm:$0xf] %v10195
  %10324 = vst [vmem:[%s7 + $0x44] sm:$0xf] %v10196
  %10325 = vst [vmem:[%s7 + $0x48] sm:$0xf] %v10197
  %10326 = vst [vmem:[%s7 + $0x4c] sm:$0xf] %v10198
  %10327 = vst [vmem:[%s7 + $0x50] sm:$0xf] %v10199
  %10328 = vst [vmem:[%s7 + $0x54] sm:$0xf] %v10200
  %10329 = vst [vmem:[%s7 + $0x58] sm:$0xf] %v10201
  %10330 = vst [vmem:[%s7 + $0x5c] sm:$0xf] %v10202
  %10331 = vst [vmem:[%s7 + $0x60] sm:$0xf] %v10203
  %10332 = vst [vmem:[%s7 + $0x64] sm:$0xf] %v10204
  %10333 = vst [vmem:[%s7 + $0x68] sm:$0xf] %v10205
  %10334 = vst [vmem:[%s7 + $0x6c] sm:$0xf] %v10206
  %10335 = vst [vmem:[%s7 + $0x70] sm:$0xf] %v10207
  %10336 = vst [vmem:[%s7 + $0x74] sm:$0xf] %v10208
  %10337 = vst [vmem:[%s7 + $0x78] sm:$0xf] %v10209
  %10338 = vst [vmem:[%s7 + $0x7c] sm:$0xf] %v10210
  %10339 = vst [vmem:[%s7 + $0x80] sm:$0xf] %v10211
  %10340 = vst [vmem:[%s7 + $0x84] sm:$0xf] %v10212
  %10341 = vst [vmem:[%s7 + $0x88] sm:$0xf] %v10213
  %10342 = vst [vmem:[%s7 + $0x8c] sm:$0xf] %v10214
  %10343 = vst [vmem:[%s7 + $0x90] sm:$0xf] %v10215
  %10344 = vst [vmem:[%s7 + $0x94] sm:$0xf] %v10216
  %10345 = vst [vmem:[%s7 + $0x98] sm:$0xf] %v10217
  %10346 = vst [vmem:[%s7 + $0x9c] sm:$0xf] %v10218
  %10347 = vst [vmem:[%s7 + $0xa0] sm:$0xf] %v10219
  %10348 = vst [vmem:[%s7 + $0xa4] sm:$0xf] %v10220
  %10349 = vst [vmem:[%s7 + $0xa8] sm:$0xf] %v10221
  %10350 = vst [vmem:[%s7 + $0xac] sm:$0xf] %v10222
  %10351 = vst [vmem:[%s7 + $0xb0] sm:$0xf] %v10223
  %10352 = vst [vmem:[%s7 + $0xb4] sm:$0xf] %v10224
  %10353 = vst [vmem:[%s7 + $0xb8] sm:$0xf] %v10225
  %10354 = vst [vmem:[%s7 + $0xbc] sm:$0xf] %v10226
  %10355 = vst [vmem:[%s7 + $0xc0] sm:$0xf] %v10227
  %10356 = vst [vmem:[%s7 + $0xc4] sm:$0xf] %v10228
  %10357 = vst [vmem:[%s7 + $0xc8] sm:$0xf] %v10229
  %10358 = vst [vmem:[%s7 + $0xcc] sm:$0xf] %v10230
  %10359 = vst [vmem:[%s7 + $0xd0] sm:$0xf] %v10231
  %10360 = vst [vmem:[%s7 + $0xd4] sm:$0xf] %v10232
  %10361 = vst [vmem:[%s7 + $0xd8] sm:$0xf] %v10233
  %10362 = vst [vmem:[%s7 + $0xdc] sm:$0xf] %v10234
  %10363 = vst [vmem:[%s7 + $0xe0] sm:$0xf] %v10235
  %10364 = vst [vmem:[%s7 + $0xe4] sm:$0xf] %v10236
  %10365 = vst [vmem:[%s7 + $0xe8] sm:$0xf] %v10237
  %10366 = vst [vmem:[%s7 + $0xec] sm:$0xf] %v10238
  %10367 = vst [vmem:[%s7 + $0xf0] sm:$0xf] %v10239
  %10368 = vst [vmem:[%s7 + $0xf4] sm:$0xf] %v10240
  %10369 = vst [vmem:[%s7 + $0xf8] sm:$0xf] %v10241
  %10370 = vst [vmem:[%s7 + $0xfc] sm:$0xf] %v10242
  %v10371 = vmax.f32 %v9987, %v9989
  %v10372 = vmax.f32 %v9988, %v9990
  %v10373 = vmax.f32 %v9991, %v9993
  %v10374 = vmax.f32 %v9992, %v9994
  %v10375 = vmax.f32 %v9995, %v9997
  %v10376 = vmax.f32 %v9996, %v9998
  %v10377 = vmax.f32 %v9999, %v10001
  %v10378 = vmax.f32 %v10000, %v10002
  %v10379 = vmax.f32 %v10003, %v10005
  %v10380 = vmax.f32 %v10004, %v10006
  %v10381 = vmax.f32 %v10007, %v10009
  %v10382 = vmax.f32 %v10008, %v10010
  %v10383 = vmax.f32 %v10011, %v10013
  %v10384 = vmax.f32 %v10012, %v10014
  %v10385 = vmax.f32 %v10015, %v10017
  %v10386 = vmax.f32 %v10016, %v10018
  %v10387 = vmax.f32 %v10019, %v10021
  %v10388 = vmax.f32 %v10020, %v10022
  %v10389 = vmax.f32 %v10023, %v10025
  %v10390 = vmax.f32 %v10024, %v10026
  %v10391 = vmax.f32 %v10027, %v10029
  %v10392 = vmax.f32 %v10028, %v10030
  %v10393 = vmax.f32 %v10031, %v10033
  %v10394 = vmax.f32 %v10032, %v10034
  %v10395 = vmax.f32 %v10035, %v10037
  %v10396 = vmax.f32 %v10036, %v10038
  %v10397 = vmax.f32 %v10039, %v10041
  %v10398 = vmax.f32 %v10040, %v10042
  %v10399 = vmax.f32 %v10043, %v10045
  %v10400 = vmax.f32 %v10044, %v10046
  %v10401 = vmax.f32 %v10047, %v10049
  %v10402 = vmax.f32 %v10048, %v10050
  %v10403 = vpack.c.bf16 %v10372, %v10371
  %v10404 = vpack.c.bf16 %v10374, %v10373
  %v10405 = vpack.c.bf16 %v10376, %v10375
  %v10406 = vpack.c.bf16 %v10378, %v10377
  %v10407 = vpack.c.bf16 %v10380, %v10379
  %v10408 = vpack.c.bf16 %v10382, %v10381
  %v10409 = vpack.c.bf16 %v10384, %v10383
  %v10410 = vpack.c.bf16 %v10386, %v10385
  %v10411 = vpack.c.bf16 %v10388, %v10387
  %v10412 = vpack.c.bf16 %v10390, %v10389
  %v10413 = vpack.c.bf16 %v10392, %v10391
  %v10414 = vpack.c.bf16 %v10394, %v10393
  %v10415 = vpack.c.bf16 %v10396, %v10395
  %v10416 = vpack.c.bf16 %v10398, %v10397
  %v10417 = vpack.c.bf16 %v10400, %v10399
  %v10418 = vpack.c.bf16 %v10402, %v10401
  %v10435 = vunpack.c.l.b16 %v10403
  %v10436 = vunpack.c.h.b16 %v10403
  %v10437 = vunpack.c.l.b16 %v10404
  %v10438 = vunpack.c.h.b16 %v10404
  %v10439 = vunpack.c.l.b16 %v10405
  %v10440 = vunpack.c.h.b16 %v10405
  %v10441 = vunpack.c.l.b16 %v10406
  %v10442 = vunpack.c.h.b16 %v10406
  %v10443 = vunpack.c.l.b16 %v10407
  %v10444 = vunpack.c.h.b16 %v10407
  %v10445 = vunpack.c.l.b16 %v10408
  %v10446 = vunpack.c.h.b16 %v10408
  %v10447 = vunpack.c.l.b16 %v10409
  %v10448 = vunpack.c.h.b16 %v10409
  %v10449 = vunpack.c.l.b16 %v10410
  %v10450 = vunpack.c.h.b16 %v10410
  %v10451 = vunpack.c.l.b16 %v10411
  %v10452 = vunpack.c.h.b16 %v10411
  %v10453 = vunpack.c.l.b16 %v10412
  %v10454 = vunpack.c.h.b16 %v10412
  %v10455 = vunpack.c.l.b16 %v10413
  %v10456 = vunpack.c.h.b16 %v10413
  %v10457 = vunpack.c.l.b16 %v10414
  %v10458 = vunpack.c.h.b16 %v10414
  %v10459 = vunpack.c.l.b16 %v10415
  %v10460 = vunpack.c.h.b16 %v10415
  %v10461 = vunpack.c.l.b16 %v10416
  %v10462 = vunpack.c.h.b16 %v10416
  %v10463 = vunpack.c.l.b16 %v10417
  %v10464 = vunpack.c.h.b16 %v10417
  %v10465 = vunpack.c.l.b16 %v10418
  %v10466 = vunpack.c.h.b16 %v10418
  %v10467 = vpack.c.b16 %v10435, %v10435
  %v10468 = vpack.c.b16 %v10436, %v10436
  %v10469 = vpack.c.b16 %v10437, %v10437
  %v10470 = vpack.c.b16 %v10438, %v10438
  %v10471 = vpack.c.b16 %v10439, %v10439
  %v10472 = vpack.c.b16 %v10440, %v10440
  %v10473 = vpack.c.b16 %v10441, %v10441
  %v10474 = vpack.c.b16 %v10442, %v10442
  %v10475 = vpack.c.b16 %v10443, %v10443
  %v10476 = vpack.c.b16 %v10444, %v10444
  %v10477 = vpack.c.b16 %v10445, %v10445
  %v10478 = vpack.c.b16 %v10446, %v10446
  %v10479 = vpack.c.b16 %v10447, %v10447
  %v10480 = vpack.c.b16 %v10448, %v10448
  %v10481 = vpack.c.b16 %v10449, %v10449
  %v10482 = vpack.c.b16 %v10450, %v10450
  %v10483 = vpack.c.b16 %v10451, %v10451
  %v10484 = vpack.c.b16 %v10452, %v10452
  %v10485 = vpack.c.b16 %v10453, %v10453
  %v10486 = vpack.c.b16 %v10454, %v10454
  %v10487 = vpack.c.b16 %v10455, %v10455
  %v10488 = vpack.c.b16 %v10456, %v10456
  %v10489 = vpack.c.b16 %v10457, %v10457
  %v10490 = vpack.c.b16 %v10458, %v10458
  %v10491 = vpack.c.b16 %v10459, %v10459
  %v10492 = vpack.c.b16 %v10460, %v10460
  %v10493 = vpack.c.b16 %v10461, %v10461
  %v10494 = vpack.c.b16 %v10462, %v10462
  %v10495 = vpack.c.b16 %v10463, %v10463
  %v10496 = vpack.c.b16 %v10464, %v10464
  %v10497 = vpack.c.b16 %v10465, %v10465
  %v10498 = vpack.c.b16 %v10466, %v10466
  %10531 = vst [vmem:[%s8] sm:$0xf] %v10467
  %10532 = vst [vmem:[%s8 + $0x4] sm:$0xf] %v10468
  %10533 = vst [vmem:[%s8 + $0x8] sm:$0xf] %v10469
  %10534 = vst [vmem:[%s8 + $0xc] sm:$0xf] %v10470
  %10535 = vst [vmem:[%s8 + $0x10] sm:$0xf] %v10471
  %10536 = vst [vmem:[%s8 + $0x14] sm:$0xf] %v10472
  %10537 = vst [vmem:[%s8 + $0x18] sm:$0xf] %v10473
  %10538 = vst [vmem:[%s8 + $0x1c] sm:$0xf] %v10474
  %10539 = vst [vmem:[%s8 + $0x20] sm:$0xf] %v10475
  %10540 = vst [vmem:[%s8 + $0x24] sm:$0xf] %v10476
  %10541 = vst [vmem:[%s8 + $0x28] sm:$0xf] %v10477
  %10542 = vst [vmem:[%s8 + $0x2c] sm:$0xf] %v10478
  %10543 = vst [vmem:[%s8 + $0x30] sm:$0xf] %v10479
  %10544 = vst [vmem:[%s8 + $0x34] sm:$0xf] %v10480
  %10545 = vst [vmem:[%s8 + $0x38] sm:$0xf] %v10481
  %10546 = vst [vmem:[%s8 + $0x3c] sm:$0xf] %v10482
  %10547 = vst [vmem:[%s8 + $0x40] sm:$0xf] %v10483
  %10548 = vst [vmem:[%s8 + $0x44] sm:$0xf] %v10484
  %10549 = vst [vmem:[%s8 + $0x48] sm:$0xf] %v10485
  %10550 = vst [vmem:[%s8 + $0x4c] sm:$0xf] %v10486
  %10551 = vst [vmem:[%s8 + $0x50] sm:$0xf] %v10487
  %10552 = vst [vmem:[%s8 + $0x54] sm:$0xf] %v10488
  %10553 = vst [vmem:[%s8 + $0x58] sm:$0xf] %v10489
  %10554 = vst [vmem:[%s8 + $0x5c] sm:$0xf] %v10490
  %10555 = vst [vmem:[%s8 + $0x60] sm:$0xf] %v10491
  %10556 = vst [vmem:[%s8 + $0x64] sm:$0xf] %v10492
  %10557 = vst [vmem:[%s8 + $0x68] sm:$0xf] %v10493
  %10558 = vst [vmem:[%s8 + $0x6c] sm:$0xf] %v10494
  %10559 = vst [vmem:[%s8 + $0x70] sm:$0xf] %v10495
  %10560 = vst [vmem:[%s8 + $0x74] sm:$0xf] %v10496
  %10561 = vst [vmem:[%s8 + $0x78] sm:$0xf] %v10497
  %10562 = vst [vmem:[%s8 + $0x7c] sm:$0xf] %v10498
  // Predicated region
  $region30: #{downsample.1} parent=0 // pred_check
    _
  $region31: #{downsample.1} parent=0 // pred_check_branch
    %10564 = sbr.rel (0) target = $region33
  $region32: #{downsample.1} parent=0 // pred_region
    _
  $region33: #{downsample.1} parent=0 // pred_fallthru
    _
  // Predicated region
  $region34: #{downsample.1} parent=0 // pred_check
    _
  $region35: #{downsample.1} parent=0 // pred_check_branch
    %10566 = sbr.rel (0) target = $region37
  $region36: #{downsample.1} parent=0 // pred_region
    _
  $region37: #{downsample.1} parent=0 // pred_fallthru
    _
  // Predicated region
  $region38: #{downsample.1} parent=0 // pred_check
    _
  $region39: #{downsample.1} parent=0 // pred_check_branch
    %10568 = sbr.rel (0) target = $region41
  $region40: #{downsample.1} parent=0 // pred_region
    _
  $region41: #{downsample.1} parent=0 // pred_fallthru
    _
  // Predicated region
  $region42: #{downsample.1} parent=0 // pred_check
    _
  $region43: #{downsample.1} parent=0 // pred_check_branch
    %10570 = sbr.rel (0) target = $region45
  $region44: #{downsample.1} parent=0 // pred_region
    _
  $region45: #{downsample.1} parent=0 // pred_fallthru
    _

</llo_original>
